<compile_context>
chip_gen: v5e
topology: v5e:2x2
jax: 0.10.0
libtpu: 0.0.40
codegen_flags: <defaults>
</compile_context>

<pallas_src>
import numpy as np
import jax
import jax.numpy as jnp
from jax.experimental import pallas as pl
from jax.experimental.pallas import tpu as pltpu

BN_EPS = 1e-5
KSIZE = 5
STRIDE = 2

# Architecture constants implied by nn.Linear(384, A):  three k=5/s=2 convs
# ending at 32 channels x 3 x 4 spatial = 384 features.
IN_C = 4
IN_H, IN_W = 45, 53


def _co(n):
    return (n - KSIZE) // STRIDE + 1


H1, W1 = _co(IN_H), _co(IN_W)          # 21, 25
H2, W2 = _co(H1), _co(W1)              # 9, 11
H3, W3 = _co(H2), _co(W2)              # 3, 4
C1, C2, C3 = 16, 32, 32
assert C3 * H3 * W3 == 384


def _rup(x, m):
    return ((x + m - 1) // m) * m


# Lane widths (128-aligned) of the (width*channel)-merged activation dims.
LW0 = _rup(IN_W * IN_C, 128)           # 256  (valid: 212)
LW1 = _rup(W1 * C1, 128)               # 512  (valid: 400)
LW2 = _rup(W2 * C2, 128)               # 384  (valid: 352)
LW3 = _rup(W3 * C3, 128)               # 128  (valid: 128, exact)
A_PAD = 128                            # fused heads padded to 128 actions
assert W3 * C3 == LW3                  # head slicing below relies on this

HS0 = _rup(IN_H, 8) // 8               # rows per H-mod-8 phase of the input (6)
G1 = tuple(len(range(r, H1, 4)) for r in range(4))   # layer-1 out, H mod 4: (6,5,5,5)
G2 = tuple(len(range(p, H2, 2)) for p in range(2))   # layer-2 out, H mod 2: (5,4)


# ---------------------------------------------------------------------------
# The single fused kernel (runs once per sample; grid=(N,) "parallel")
# ---------------------------------------------------------------------------
def _dqn_fused_kernel(x_ref, wb1_ref, s1_ref, wb2_ref, s2_ref, wb3_ref, s3_ref,
                      wh_ref, bh_ref, q_ref):
    f32 = jnp.float32
    bf16 = jnp.bfloat16

    def conv_group(lhs_slices, wb_ref, s_ref):
        # sum of 5 banded matmuls (one per kernel row) + shift + ReLU (f32
        # epilogue), then bf16 for the next layer's MXU feed.
        acc = jnp.dot(lhs_slices[0], wb_ref[0], preferred_element_type=f32)
        for i in range(1, KSIZE):
            acc = acc + jnp.dot(lhs_slices[i], wb_ref[i],
                                preferred_element_type=f32)
        return jnp.maximum(acc + s_ref[...], 0.0).astype(bf16)

    # ---- conv1 + bn1 + relu.  x_ref: (1, 8, HS0, LW0), H split mod 8.
    # Output groups r hold rows oh1 = 4*t + r  (what conv2 needs, mod 4).
    act1 = []
    for r in range(4):
        g = G1[r]
        sl = []
        for i in range(KSIZE):
            t = 2 * r + i                       # input row = 8*t' + (t%8) ...
            sl.append(x_ref[0, t % 8, t // 8:t // 8 + g, :])
        act1.append(conv_group(sl, wb1_ref, s1_ref))      # (g, LW1)

    # ---- conv2 + bn2 + relu.  Output groups p hold rows oh2 = 2*t + p.
    act2 = []
    for p in range(2):
        g = G2[p]
        sl = []
        for i in range(KSIZE):
            t = 2 * p + i
            sl.append(act1[t % 4][t // 4:t // 4 + g, :])
        act2.append(conv_group(sl, wb2_ref, s2_ref))      # (g, LW2)

    # ---- conv3 + bn3 + relu.  Plain row order (H3 rows), lanes = W3*C3 = 128.
    sl = [act2[i % 2][i // 2:i // 2 + H3, :] for i in range(KSIZE)]
    feat = conv_group(sl, wb3_ref, s3_ref)                # (H3, 128) bf16

    # ---- fused heads (head1 ++ head2, padded to 128 columns).
    # q[a] = sum_oh feat[oh, :] @ wh[oh*128:(oh+1)*128, a]
    q = jnp.dot(feat[0:1, :], wh_ref[0:LW3, :], preferred_element_type=f32)
    for oh in range(1, H3):
        q = q + jnp.dot(feat[oh:oh + 1, :],
                        wh_ref[oh * LW3:(oh + 1) * LW3, :],
                        preferred_element_type=f32)
    q_ref[0] = q + bh_ref[...]


# ---------------------------------------------------------------------------
# Parameter construction (PyTorch-default-style) + one-time kernel prep
# ---------------------------------------------------------------------------
def init_params(key, num_actions1, num_actions2):
    def uniform(k, shape, fan_in):
        bound = 1.0 / jnp.sqrt(jnp.float32(fan_in))
        return jax.random.uniform(k, shape, jnp.float32, -bound, bound)

    ks = jax.random.split(key, 22)
    p = {}
    p["w1"] = uniform(ks[0], (C1, IN_C, KSIZE, KSIZE), IN_C * 25)
    p["b1"] = uniform(ks[1], (C1,), IN_C * 25)
    p["w2"] = uniform(ks[2], (C2, C1, KSIZE, KSIZE), C1 * 25)
    p["b2"] = uniform(ks[3], (C2,), C1 * 25)
    p["w3"] = uniform(ks[4], (C3, C2, KSIZE, KSIZE), C2 * 25)
    p["b3"] = uniform(ks[5], (C3,), C2 * 25)
    k = 6
    for i, c in zip((1, 2, 3), (C1, C2, C3)):
        p[f"bn{i}_gamma"] = jax.random.uniform(ks[k], (c,), jnp.float32, 0.7, 1.3); k += 1
        p[f"bn{i}_beta"] = 0.1 * jax.random.normal(ks[k], (c,), jnp.float32); k += 1
        p[f"bn{i}_mean"] = 0.1 * jax.random.normal(ks[k], (c,), jnp.float32); k += 1
        p[f"bn{i}_var"] = jax.random.uniform(ks[k], (c,), jnp.float32, 0.5, 1.5); k += 1
    p["hw1"] = uniform(ks[18], (num_actions1, 384), 384)
    p["hb1"] = uniform(ks[19], (num_actions1,), 384)
    p["hw2"] = uniform(ks[20], (num_actions2, 384), 384)
    p["hb2"] = uniform(ks[21], (num_actions2,), 384)
    return p


def prepare_params(params, a1, a2):
    """One-time (outside jit) weight preprocessing: BN folding, banded conv
    weight construction, head fusion/permutation, lane padding, bf16 casts."""

    def fold_bn(w, b, gamma, beta, mean, var):
        scale = gamma / jnp.sqrt(var + BN_EPS)
        return w * scale[:, None, None, None], beta + scale * (b - mean)

    def banded(w_eff, w_in, k_pad, n_pad):
        # w_eff: (OC, C, 5, 5).  Returns (5, k_pad, n_pad) bf16:
        #   WB[i, w*C + c, ow*OC + oc] = w_eff[oc, c, i, w - 2*ow]  (band, else 0)
        oc, c, kh, kw = w_eff.shape
        ow = (w_in - kw) // STRIDE + 1
        d = jnp.arange(w_in)[:, None] - STRIDE * jnp.arange(ow)[None, :]
        valid = (d >= 0) & (d < kw)
        dc = jnp.clip(d, 0, kw - 1)
        mats = []
        for i in range(kh):
            wk = jnp.transpose(w_eff[:, :, i, :], (2, 1, 0))          # (kw, c, oc)
            wb = jnp.where(valid[:, :, None, None], wk[dc], 0.0)      # (w_in, ow, c, oc)
            wb = jnp.transpose(wb, (0, 2, 1, 3)).reshape(w_in * c, ow * oc)
            wb = jnp.pad(wb, ((0, k_pad - w_in * c), (0, n_pad - ow * oc)))
            mats.append(wb)
        return jnp.stack(mats).astype(jnp.bfloat16)

    def tiled_shift(shift, ow, n_pad):
        s = jnp.tile(shift, ow)                                       # lane = ow*OC+oc
        return jnp.pad(s, (0, n_pad - s.shape[0])).reshape(1, n_pad).astype(jnp.float32)

    w1, sh1 = fold_bn(params["w1"], params["b1"], params["bn1_gamma"],
                      params["bn1_beta"], params["bn1_mean"], params["bn1_var"])
    w2, sh2 = fold_bn(params["w2"], params["b2"], params["bn2_gamma"],
                      params["bn2_beta"], params["bn2_mean"], params["bn2_var"])
    w3, sh3 = fold_bn(params["w3"], params["b3"], params["bn3_gamma"],
                      params["bn3_beta"], params["bn3_mean"], params["bn3_var"])

    prep = {
        "wb1": banded(w1, IN_W, LW0, LW1), "s1": tiled_shift(sh1, W1, LW1),
        "wb2": banded(w2, W1, LW1, LW2),   "s2": tiled_shift(sh2, W2, LW2),
        "wb3": banded(w3, W2, LW2, LW3),   "s3": tiled_shift(sh3, W3, LW3),
    }

    # Heads: permute columns so the kernel's (oh, ow, oc) feature order matches
    # PyTorch's NCHW x.view(N, -1) flatten; fuse both heads; pad to 128 lanes.
    def head_w(hw):
        a = hw.shape[0]
        return hw.reshape(a, C3, H3, W3).transpose(2, 3, 1, 0).reshape(H3 * W3 * C3, a)

    wh = jnp.concatenate([head_w(params["hw1"]), head_w(params["hw2"])], axis=1)
    bh = jnp.concatenate([params["hb1"], params["hb2"]])
    prep["wh"] = jnp.pad(wh, ((0, 0), (0, A_PAD - wh.shape[1]))).astype(jnp.bfloat16)
    prep["bh"] = jnp.pad(bh, (0, A_PAD - bh.shape[0])).reshape(1, A_PAD).astype(jnp.float32)
    return prep


# ---------------------------------------------------------------------------
# Forward pass
# ---------------------------------------------------------------------------
def dqn_forward(prep, x, a1, a2):
    N, c, h, w = x.shape
    assert (c, h, w) == (IN_C, IN_H, IN_W)

    # NCHW -> NHWC -> merge (W,C) into lanes -> pad H to 48 & lanes to 256
    # -> split H mod 8 -> bf16.  (Tiny, one-time XLA glue on the raw input.)
    xh = jnp.transpose(x, (0, 2, 3, 1)).reshape(N, IN_H, IN_W * IN_C)
    xh = jnp.pad(xh, ((0, 0), (0, 8 * HS0 - IN_H), (0, LW0 - IN_W * IN_C)))
    xh = xh.reshape(N, HS0, 8, LW0).transpose(0, 2, 1, 3).astype(jnp.bfloat16)

    flops = 2 * N * (KSIZE * (LW0 * LW1 * H1 + LW1 * LW2 * H2 + LW2 * LW3 * H3)
                     + H3 * LW3 * A_PAD)
    ins = (xh, prep["wb1"], prep["s1"], prep["wb2"], prep["s2"],
           prep["wb3"], prep["s3"], prep["wh"], prep["bh"])
    bytes_accessed = int(sum(int(v.size) * v.dtype.itemsize for v in ins)
                         + N * A_PAD * 4)

    q = pl.pallas_call(
        _dqn_fused_kernel,
        grid=(N,),
        out_shape=jax.ShapeDtypeStruct((N, 1, A_PAD), jnp.float32),
        in_specs=[
            pl.BlockSpec((1, 8, HS0, LW0), lambda n: (n, 0, 0, 0)),   # x (per sample)
            pl.BlockSpec((KSIZE, LW0, LW1), lambda n: (0, 0, 0)),     # wb1 (resident)
            pl.BlockSpec((1, LW1), lambda n: (0, 0)),                 # s1
            pl.BlockSpec((KSIZE, LW1, LW2), lambda n: (0, 0, 0)),     # wb2
            pl.BlockSpec((1, LW2), lambda n: (0, 0)),                 # s2
            pl.BlockSpec((KSIZE, LW2, LW3), lambda n: (0, 0, 0)),     # wb3
            pl.BlockSpec((1, LW3), lambda n: (0, 0)),                 # s3
            pl.BlockSpec((H3 * LW3, A_PAD), lambda n: (0, 0)),        # fused head W
            pl.BlockSpec((1, A_PAD), lambda n: (0, 0)),               # fused head b
        ],
        out_specs=pl.BlockSpec((1, 1, A_PAD), lambda n: (n, 0, 0)),
        compiler_params=pltpu.CompilerParams(
            dimension_semantics=("parallel",)),
        cost_estimate=pl.CostEstimate(flops=flops, transcendentals=0,
                                      bytes_accessed=bytes_accessed),
    )(*ins)

    q = q.reshape(N, A_PAD)
    return q[:, :a1], q[:, a1:a1 + a2]


# ---------------------------------------------------------------------------
# Pure-JAX reference (inference-mode BN), for tolerance testing
# ---------------------------------------------------------------------------
def reference_forward(params, x):
    hp = jax.lax.Precision.HIGHEST

    def conv_bn_relu(h, w, b, gamma, beta, mean, var):
        y = jax.lax.conv_general_dilated(
            h, w, window_strides=(STRIDE, STRIDE), padding="VALID",
            dimension_numbers=("NCHW", "OIHW", "NCHW"), precision=hp)
        y = y + b[None, :, None, None]
        scale = gamma / jnp.sqrt(var + BN_EPS)
        y = (y - mean[None, :, None, None]) * scale[None, :, None, None] \
            + beta[None, :, None, None]
        return jnp.maximum(y, 0.0)

    h = conv_bn_relu(x, params["w1"], params["b1"], params["bn1_gamma"],
                     params["bn1_beta"], params["bn1_mean"], params["bn1_var"])
    h = conv_bn_relu(h, params["w2"], params["b2"], params["bn2_gamma"],
                     params["bn2_beta"], params["bn2_mean"], params["bn2_var"])
    h = conv_bn_relu(h, params["w3"], params["b3"], params["bn3_gamma"],
                     params["bn3_beta"], params["bn3_mean"], params["bn3_var"])
    flat = h.reshape(h.shape[0], -1)
    q1 = jnp.dot(flat, params["hw1"].T, precision=hp) + params["hb1"][None, :]
    q2 = jnp.dot(flat, params["hw2"].T, precision=hp) + params["hb2"][None, :]
    return q1, q2


if __name__ == "__main__":
    num_actions1, num_actions2 = 6, 7
    key = jax.random.PRNGKey(0)
    k_param, k_x = jax.random.split(key)

    params = init_params(k_param, num_actions1, num_actions2)
    prep = prepare_params(params, num_actions1, num_actions2)

    # Spatial size 45x53: three (k=5, s=2) valid convs -> 3x4 spatial,
    # 32*3*4 = 384 features, matching nn.Linear(384, A).
    x = jax.random.normal(k_x, (2, IN_C, IN_H, IN_W), dtype=jnp.float32)

    fwd = jax.jit(dqn_forward, static_argnums=(2, 3))
    q1, q2 = fwd(prep, x, num_actions1, num_actions2)
    jax.block_until_ready((q1, q2))

    assert q1.shape == (2, num_actions1) and q2.shape == (2, num_actions2)
    assert jnp.all(jnp.isfinite(q1)) and jnp.all(jnp.isfinite(q2))

    # Tolerance test vs f32 reference (kernel uses bf16 matmul operands).
    r1, r2 = reference_forward(params, x)
    np.testing.assert_allclose(np.asarray(q1), np.asarray(r1), rtol=2e-2, atol=2e-2)
    np.testing.assert_allclose(np.asarray(q2), np.asarray(r2), rtol=2e-2, atol=2e-2)

    print("KERNEL_OK")
</pallas_src>

<mosaic_0001>
module attributes {stable_mosaic.version = 11 : i64} {
  func.func @_dqn_fused_kernel(%arg0: i32, %arg1: memref<1x8x6x256xbf16, #tpu.memory_space<vmem>>, %arg2: memref<5x256x512xbf16, #tpu.memory_space<vmem>>, %arg3: memref<1x512xf32, #tpu.memory_space<vmem>>, %arg4: memref<5x512x384xbf16, #tpu.memory_space<vmem>>, %arg5: memref<1x384xf32, #tpu.memory_space<vmem>>, %arg6: memref<5x384x128xbf16, #tpu.memory_space<vmem>>, %arg7: memref<1x128xf32, #tpu.memory_space<vmem>>, %arg8: memref<384x128xbf16, #tpu.memory_space<vmem>>, %arg9: memref<1x128xf32, #tpu.memory_space<vmem>>, %arg10: memref<1x1x128xf32, #tpu.memory_space<vmem>>) attributes {dimension_semantics = [#tpu.dimension_semantics<parallel>], iteration_bounds = array<i64: 2>, scalar_prefetch = 0 : i64, scratch_operands = 0 : i64, tpu.core_type = #tpu.core_type<tc>, window_params = [{transform_indices = @transform_0, window_bounds = array<i64: 1, 8, 6, 256>}, {pipeline_mode = #tpu.pipeline_mode<synchronous>, transform_indices = @transform_1, window_bounds = array<i64: 5, 256, 512>}, {pipeline_mode = #tpu.pipeline_mode<synchronous>, transform_indices = @transform_2, window_bounds = array<i64: 1, 512>}, {pipeline_mode = #tpu.pipeline_mode<synchronous>, transform_indices = @transform_3, window_bounds = array<i64: 5, 512, 384>}, {pipeline_mode = #tpu.pipeline_mode<synchronous>, transform_indices = @transform_4, window_bounds = array<i64: 1, 384>}, {pipeline_mode = #tpu.pipeline_mode<synchronous>, transform_indices = @transform_5, window_bounds = array<i64: 5, 384, 128>}, {pipeline_mode = #tpu.pipeline_mode<synchronous>, transform_indices = @transform_6, window_bounds = array<i64: 1, 128>}, {pipeline_mode = #tpu.pipeline_mode<synchronous>, transform_indices = @transform_7, window_bounds = array<i64: 384, 128>}, {pipeline_mode = #tpu.pipeline_mode<synchronous>, transform_indices = @transform_8, window_bounds = array<i64: 1, 128>}, {transform_indices = @transform_9, window_bounds = array<i64: 1, 1, 128>}]} {
    %c0 = arith.constant 0 : index
    %c0_0 = arith.constant 0 : index
    %c0_1 = arith.constant 0 : index
    %c0_2 = arith.constant 0 : index
    %0 = vector.load %arg1[%c0, %c0_0, %c0_1, %c0_2] : memref<1x8x6x256xbf16, #tpu.memory_space<vmem>>, vector<1x1x6x256xbf16>
    %1 = vector.shape_cast %0 : vector<1x1x6x256xbf16> to vector<6x256xbf16>
    %c0_3 = arith.constant 0 : index
    %c1 = arith.constant 1 : index
    %c0_4 = arith.constant 0 : index
    %c0_5 = arith.constant 0 : index
    %2 = vector.load %arg1[%c0_3, %c1, %c0_4, %c0_5] : memref<1x8x6x256xbf16, #tpu.memory_space<vmem>>, vector<1x1x6x256xbf16>
    %3 = vector.shape_cast %2 : vector<1x1x6x256xbf16> to vector<6x256xbf16>
    %c0_6 = arith.constant 0 : index
    %c2 = arith.constant 2 : index
    %c0_7 = arith.constant 0 : index
    %c0_8 = arith.constant 0 : index
    %4 = vector.load %arg1[%c0_6, %c2, %c0_7, %c0_8] : memref<1x8x6x256xbf16, #tpu.memory_space<vmem>>, vector<1x1x6x256xbf16>
    %5 = vector.shape_cast %4 : vector<1x1x6x256xbf16> to vector<6x256xbf16>
    %c0_9 = arith.constant 0 : index
    %c3 = arith.constant 3 : index
    %c0_10 = arith.constant 0 : index
    %c0_11 = arith.constant 0 : index
    %6 = vector.load %arg1[%c0_9, %c3, %c0_10, %c0_11] : memref<1x8x6x256xbf16, #tpu.memory_space<vmem>>, vector<1x1x6x256xbf16>
    %7 = vector.shape_cast %6 : vector<1x1x6x256xbf16> to vector<6x256xbf16>
    %c0_12 = arith.constant 0 : index
    %c4 = arith.constant 4 : index
    %c0_13 = arith.constant 0 : index
    %c0_14 = arith.constant 0 : index
    %8 = vector.load %arg1[%c0_12, %c4, %c0_13, %c0_14] : memref<1x8x6x256xbf16, #tpu.memory_space<vmem>>, vector<1x1x6x256xbf16>
    %9 = vector.shape_cast %8 : vector<1x1x6x256xbf16> to vector<6x256xbf16>
    %c0_15 = arith.constant 0 : index
    %c0_16 = arith.constant 0 : index
    %c0_17 = arith.constant 0 : index
    %10 = vector.load %arg2[%c0_15, %c0_16, %c0_17] : memref<5x256x512xbf16, #tpu.memory_space<vmem>>, vector<1x256x512xbf16>
    %11 = vector.shape_cast %10 : vector<1x256x512xbf16> to vector<256x512xbf16>
    %cst = arith.constant dense<0.000000e+00> : vector<6x512xf32>
    %12 = tpu.matmul %1, %11, %cst {dimension_numbers = #tpu.dot_dimension_numbers<[1], [0], [0], [1], [0, 0, 1, 1], [], []>} : vector<6x256xbf16>, vector<256x512xbf16>, vector<6x512xf32> -> vector<6x512xf32>
    %c1_18 = arith.constant 1 : index
    %c0_19 = arith.constant 0 : index
    %c0_20 = arith.constant 0 : index
    %13 = vector.load %arg2[%c1_18, %c0_19, %c0_20] : memref<5x256x512xbf16, #tpu.memory_space<vmem>>, vector<1x256x512xbf16>
    %14 = vector.shape_cast %13 : vector<1x256x512xbf16> to vector<256x512xbf16>
    %cst_21 = arith.constant dense<0.000000e+00> : vector<6x512xf32>
    %15 = tpu.matmul %3, %14, %cst_21 {dimension_numbers = #tpu.dot_dimension_numbers<[1], [0], [0], [1], [0, 0, 1, 1], [], []>} : vector<6x256xbf16>, vector<256x512xbf16>, vector<6x512xf32> -> vector<6x512xf32>
    %16 = arith.addf %12, %15 : vector<6x512xf32>
    %c2_22 = arith.constant 2 : index
    %c0_23 = arith.constant 0 : index
    %c0_24 = arith.constant 0 : index
    %17 = vector.load %arg2[%c2_22, %c0_23, %c0_24] : memref<5x256x512xbf16, #tpu.memory_space<vmem>>, vector<1x256x512xbf16>
    %18 = vector.shape_cast %17 : vector<1x256x512xbf16> to vector<256x512xbf16>
    %cst_25 = arith.constant dense<0.000000e+00> : vector<6x512xf32>
    %19 = tpu.matmul %5, %18, %cst_25 {dimension_numbers = #tpu.dot_dimension_numbers<[1], [0], [0], [1], [0, 0, 1, 1], [], []>} : vector<6x256xbf16>, vector<256x512xbf16>, vector<6x512xf32> -> vector<6x512xf32>
    %20 = arith.addf %16, %19 : vector<6x512xf32>
    %c3_26 = arith.constant 3 : index
    %c0_27 = arith.constant 0 : index
    %c0_28 = arith.constant 0 : index
    %21 = vector.load %arg2[%c3_26, %c0_27, %c0_28] : memref<5x256x512xbf16, #tpu.memory_space<vmem>>, vector<1x256x512xbf16>
    %22 = vector.shape_cast %21 : vector<1x256x512xbf16> to vector<256x512xbf16>
    %cst_29 = arith.constant dense<0.000000e+00> : vector<6x512xf32>
    %23 = tpu.matmul %7, %22, %cst_29 {dimension_numbers = #tpu.dot_dimension_numbers<[1], [0], [0], [1], [0, 0, 1, 1], [], []>} : vector<6x256xbf16>, vector<256x512xbf16>, vector<6x512xf32> -> vector<6x512xf32>
    %24 = arith.addf %20, %23 : vector<6x512xf32>
    %c4_30 = arith.constant 4 : index
    %c0_31 = arith.constant 0 : index
    %c0_32 = arith.constant 0 : index
    %25 = vector.load %arg2[%c4_30, %c0_31, %c0_32] : memref<5x256x512xbf16, #tpu.memory_space<vmem>>, vector<1x256x512xbf16>
    %26 = vector.shape_cast %25 : vector<1x256x512xbf16> to vector<256x512xbf16>
    %cst_33 = arith.constant dense<0.000000e+00> : vector<6x512xf32>
    %27 = tpu.matmul %9, %26, %cst_33 {dimension_numbers = #tpu.dot_dimension_numbers<[1], [0], [0], [1], [0, 0, 1, 1], [], []>} : vector<6x256xbf16>, vector<256x512xbf16>, vector<6x512xf32> -> vector<6x512xf32>
    %28 = arith.addf %24, %27 : vector<6x512xf32>
    %c0_34 = arith.constant 0 : index
    %c0_35 = arith.constant 0 : index
    %29 = vector.load %arg3[%c0_34, %c0_35] : memref<1x512xf32, #tpu.memory_space<vmem>>, vector<1x512xf32>
    %30 = vector.broadcast %29 : vector<1x512xf32> to vector<6x512xf32>
    %31 = arith.addf %28, %30 : vector<6x512xf32>
    %cst_36 = arith.constant 0.000000e+00 : f32
    %32 = vector.broadcast %cst_36 : f32 to vector<6x512xf32>
    %33 = arith.maximumf %31, %32 : vector<6x512xf32>
    %34 = arith.truncf %33 : vector<6x512xf32> to vector<6x512xbf16>
    %c0_37 = arith.constant 0 : index
    %c2_38 = arith.constant 2 : index
    %c0_39 = arith.constant 0 : index
    %c0_40 = arith.constant 0 : index
    %35 = vector.load %arg1[%c0_37, %c2_38, %c0_39, %c0_40] : memref<1x8x6x256xbf16, #tpu.memory_space<vmem>>, vector<1x1x5x256xbf16>
    %36 = vector.shape_cast %35 : vector<1x1x5x256xbf16> to vector<5x256xbf16>
    %c0_41 = arith.constant 0 : index
    %c3_42 = arith.constant 3 : index
    %c0_43 = arith.constant 0 : index
    %c0_44 = arith.constant 0 : index
    %37 = vector.load %arg1[%c0_41, %c3_42, %c0_43, %c0_44] : memref<1x8x6x256xbf16, #tpu.memory_space<vmem>>, vector<1x1x5x256xbf16>
    %38 = vector.shape_cast %37 : vector<1x1x5x256xbf16> to vector<5x256xbf16>
    %c0_45 = arith.constant 0 : index
    %c4_46 = arith.constant 4 : index
    %c0_47 = arith.constant 0 : index
    %c0_48 = arith.constant 0 : index
    %39 = vector.load %arg1[%c0_45, %c4_46, %c0_47, %c0_48] : memref<1x8x6x256xbf16, #tpu.memory_space<vmem>>, vector<1x1x5x256xbf16>
    %40 = vector.shape_cast %39 : vector<1x1x5x256xbf16> to vector<5x256xbf16>
    %c0_49 = arith.constant 0 : index
    %c5 = arith.constant 5 : index
    %c0_50 = arith.constant 0 : index
    %c0_51 = arith.constant 0 : index
    %41 = vector.load %arg1[%c0_49, %c5, %c0_50, %c0_51] : memref<1x8x6x256xbf16, #tpu.memory_space<vmem>>, vector<1x1x5x256xbf16>
    %42 = vector.shape_cast %41 : vector<1x1x5x256xbf16> to vector<5x256xbf16>
    %c0_52 = arith.constant 0 : index
    %c6 = arith.constant 6 : index
    %c0_53 = arith.constant 0 : index
    %c0_54 = arith.constant 0 : index
    %43 = vector.load %arg1[%c0_52, %c6, %c0_53, %c0_54] : memref<1x8x6x256xbf16, #tpu.memory_space<vmem>>, vector<1x1x5x256xbf16>
    %44 = vector.shape_cast %43 : vector<1x1x5x256xbf16> to vector<5x256xbf16>
    %c0_55 = arith.constant 0 : index
    %c0_56 = arith.constant 0 : index
    %c0_57 = arith.constant 0 : index
    %45 = vector.load %arg2[%c0_55, %c0_56, %c0_57] : memref<5x256x512xbf16, #tpu.memory_space<vmem>>, vector<1x256x512xbf16>
    %46 = vector.shape_cast %45 : vector<1x256x512xbf16> to vector<256x512xbf16>
    %cst_58 = arith.constant dense<0.000000e+00> : vector<5x512xf32>
    %47 = tpu.matmul %36, %46, %cst_58 {dimension_numbers = #tpu.dot_dimension_numbers<[1], [0], [0], [1], [0, 0, 1, 1], [], []>} : vector<5x256xbf16>, vector<256x512xbf16>, vector<5x512xf32> -> vector<5x512xf32>
    %c1_59 = arith.constant 1 : index
    %c0_60 = arith.constant 0 : index
    %c0_61 = arith.constant 0 : index
    %48 = vector.load %arg2[%c1_59, %c0_60, %c0_61] : memref<5x256x512xbf16, #tpu.memory_space<vmem>>, vector<1x256x512xbf16>
    %49 = vector.shape_cast %48 : vector<1x256x512xbf16> to vector<256x512xbf16>
    %cst_62 = arith.constant dense<0.000000e+00> : vector<5x512xf32>
    %50 = tpu.matmul %38, %49, %cst_62 {dimension_numbers = #tpu.dot_dimension_numbers<[1], [0], [0], [1], [0, 0, 1, 1], [], []>} : vector<5x256xbf16>, vector<256x512xbf16>, vector<5x512xf32> -> vector<5x512xf32>
    %51 = arith.addf %47, %50 : vector<5x512xf32>
    %c2_63 = arith.constant 2 : index
    %c0_64 = arith.constant 0 : index
    %c0_65 = arith.constant 0 : index
    %52 = vector.load %arg2[%c2_63, %c0_64, %c0_65] : memref<5x256x512xbf16, #tpu.memory_space<vmem>>, vector<1x256x512xbf16>
    %53 = vector.shape_cast %52 : vector<1x256x512xbf16> to vector<256x512xbf16>
    %cst_66 = arith.constant dense<0.000000e+00> : vector<5x512xf32>
    %54 = tpu.matmul %40, %53, %cst_66 {dimension_numbers = #tpu.dot_dimension_numbers<[1], [0], [0], [1], [0, 0, 1, 1], [], []>} : vector<5x256xbf16>, vector<256x512xbf16>, vector<5x512xf32> -> vector<5x512xf32>
    %55 = arith.addf %51, %54 : vector<5x512xf32>
    %c3_67 = arith.constant 3 : index
    %c0_68 = arith.constant 0 : index
    %c0_69 = arith.constant 0 : index
    %56 = vector.load %arg2[%c3_67, %c0_68, %c0_69] : memref<5x256x512xbf16, #tpu.memory_space<vmem>>, vector<1x256x512xbf16>
    %57 = vector.shape_cast %56 : vector<1x256x512xbf16> to vector<256x512xbf16>
    %cst_70 = arith.constant dense<0.000000e+00> : vector<5x512xf32>
    %58 = tpu.matmul %42, %57, %cst_70 {dimension_numbers = #tpu.dot_dimension_numbers<[1], [0], [0], [1], [0, 0, 1, 1], [], []>} : vector<5x256xbf16>, vector<256x512xbf16>, vector<5x512xf32> -> vector<5x512xf32>
    %59 = arith.addf %55, %58 : vector<5x512xf32>
    %c4_71 = arith.constant 4 : index
    %c0_72 = arith.constant 0 : index
    %c0_73 = arith.constant 0 : index
    %60 = vector.load %arg2[%c4_71, %c0_72, %c0_73] : memref<5x256x512xbf16, #tpu.memory_space<vmem>>, vector<1x256x512xbf16>
    %61 = vector.shape_cast %60 : vector<1x256x512xbf16> to vector<256x512xbf16>
    %cst_74 = arith.constant dense<0.000000e+00> : vector<5x512xf32>
    %62 = tpu.matmul %44, %61, %cst_74 {dimension_numbers = #tpu.dot_dimension_numbers<[1], [0], [0], [1], [0, 0, 1, 1], [], []>} : vector<5x256xbf16>, vector<256x512xbf16>, vector<5x512xf32> -> vector<5x512xf32>
    %63 = arith.addf %59, %62 : vector<5x512xf32>
    %c0_75 = arith.constant 0 : index
    %c0_76 = arith.constant 0 : index
    %64 = vector.load %arg3[%c0_75, %c0_76] : memref<1x512xf32, #tpu.memory_space<vmem>>, vector<1x512xf32>
    %65 = vector.broadcast %64 : vector<1x512xf32> to vector<5x512xf32>
    %66 = arith.addf %63, %65 : vector<5x512xf32>
    %cst_77 = arith.constant 0.000000e+00 : f32
    %67 = vector.broadcast %cst_77 : f32 to vector<5x512xf32>
    %68 = arith.maximumf %66, %67 : vector<5x512xf32>
    %69 = arith.truncf %68 : vector<5x512xf32> to vector<5x512xbf16>
    %c0_78 = arith.constant 0 : index
    %c4_79 = arith.constant 4 : index
    %c0_80 = arith.constant 0 : index
    %c0_81 = arith.constant 0 : index
    %70 = vector.load %arg1[%c0_78, %c4_79, %c0_80, %c0_81] : memref<1x8x6x256xbf16, #tpu.memory_space<vmem>>, vector<1x1x5x256xbf16>
    %71 = vector.shape_cast %70 : vector<1x1x5x256xbf16> to vector<5x256xbf16>
    %c0_82 = arith.constant 0 : index
    %c5_83 = arith.constant 5 : index
    %c0_84 = arith.constant 0 : index
    %c0_85 = arith.constant 0 : index
    %72 = vector.load %arg1[%c0_82, %c5_83, %c0_84, %c0_85] : memref<1x8x6x256xbf16, #tpu.memory_space<vmem>>, vector<1x1x5x256xbf16>
    %73 = vector.shape_cast %72 : vector<1x1x5x256xbf16> to vector<5x256xbf16>
    %c0_86 = arith.constant 0 : index
    %c6_87 = arith.constant 6 : index
    %c0_88 = arith.constant 0 : index
    %c0_89 = arith.constant 0 : index
    %74 = vector.load %arg1[%c0_86, %c6_87, %c0_88, %c0_89] : memref<1x8x6x256xbf16, #tpu.memory_space<vmem>>, vector<1x1x5x256xbf16>
    %75 = vector.shape_cast %74 : vector<1x1x5x256xbf16> to vector<5x256xbf16>
    %c0_90 = arith.constant 0 : index
    %c7 = arith.constant 7 : index
    %c0_91 = arith.constant 0 : index
    %c0_92 = arith.constant 0 : index
    %76 = vector.load %arg1[%c0_90, %c7, %c0_91, %c0_92] : memref<1x8x6x256xbf16, #tpu.memory_space<vmem>>, vector<1x1x5x256xbf16>
    %77 = vector.shape_cast %76 : vector<1x1x5x256xbf16> to vector<5x256xbf16>
    %c0_93 = arith.constant 0 : index
    %c0_94 = arith.constant 0 : index
    %c1_95 = arith.constant 1 : index
    %c0_96 = arith.constant 0 : index
    %78 = vector.load %arg1[%c0_93, %c0_94, %c1_95, %c0_96] : memref<1x8x6x256xbf16, #tpu.memory_space<vmem>>, vector<1x1x5x256xbf16>
    %79 = vector.shape_cast %78 : vector<1x1x5x256xbf16> to vector<5x256xbf16>
    %c0_97 = arith.constant 0 : index
    %c0_98 = arith.constant 0 : index
    %c0_99 = arith.constant 0 : index
    %80 = vector.load %arg2[%c0_97, %c0_98, %c0_99] : memref<5x256x512xbf16, #tpu.memory_space<vmem>>, vector<1x256x512xbf16>
    %81 = vector.shape_cast %80 : vector<1x256x512xbf16> to vector<256x512xbf16>
    %cst_100 = arith.constant dense<0.000000e+00> : vector<5x512xf32>
    %82 = tpu.matmul %71, %81, %cst_100 {dimension_numbers = #tpu.dot_dimension_numbers<[1], [0], [0], [1], [0, 0, 1, 1], [], []>} : vector<5x256xbf16>, vector<256x512xbf16>, vector<5x512xf32> -> vector<5x512xf32>
    %c1_101 = arith.constant 1 : index
    %c0_102 = arith.constant 0 : index
    %c0_103 = arith.constant 0 : index
    %83 = vector.load %arg2[%c1_101, %c0_102, %c0_103] : memref<5x256x512xbf16, #tpu.memory_space<vmem>>, vector<1x256x512xbf16>
    %84 = vector.shape_cast %83 : vector<1x256x512xbf16> to vector<256x512xbf16>
    %cst_104 = arith.constant dense<0.000000e+00> : vector<5x512xf32>
    %85 = tpu.matmul %73, %84, %cst_104 {dimension_numbers = #tpu.dot_dimension_numbers<[1], [0], [0], [1], [0, 0, 1, 1], [], []>} : vector<5x256xbf16>, vector<256x512xbf16>, vector<5x512xf32> -> vector<5x512xf32>
    %86 = arith.addf %82, %85 : vector<5x512xf32>
    %c2_105 = arith.constant 2 : index
    %c0_106 = arith.constant 0 : index
    %c0_107 = arith.constant 0 : index
    %87 = vector.load %arg2[%c2_105, %c0_106, %c0_107] : memref<5x256x512xbf16, #tpu.memory_space<vmem>>, vector<1x256x512xbf16>
    %88 = vector.shape_cast %87 : vector<1x256x512xbf16> to vector<256x512xbf16>
    %cst_108 = arith.constant dense<0.000000e+00> : vector<5x512xf32>
    %89 = tpu.matmul %75, %88, %cst_108 {dimension_numbers = #tpu.dot_dimension_numbers<[1], [0], [0], [1], [0, 0, 1, 1], [], []>} : vector<5x256xbf16>, vector<256x512xbf16>, vector<5x512xf32> -> vector<5x512xf32>
    %90 = arith.addf %86, %89 : vector<5x512xf32>
    %c3_109 = arith.constant 3 : index
    %c0_110 = arith.constant 0 : index
    %c0_111 = arith.constant 0 : index
    %91 = vector.load %arg2[%c3_109, %c0_110, %c0_111] : memref<5x256x512xbf16, #tpu.memory_space<vmem>>, vector<1x256x512xbf16>
    %92 = vector.shape_cast %91 : vector<1x256x512xbf16> to vector<256x512xbf16>
    %cst_112 = arith.constant dense<0.000000e+00> : vector<5x512xf32>
    %93 = tpu.matmul %77, %92, %cst_112 {dimension_numbers = #tpu.dot_dimension_numbers<[1], [0], [0], [1], [0, 0, 1, 1], [], []>} : vector<5x256xbf16>, vector<256x512xbf16>, vector<5x512xf32> -> vector<5x512xf32>
    %94 = arith.addf %90, %93 : vector<5x512xf32>
    %c4_113 = arith.constant 4 : index
    %c0_114 = arith.constant 0 : index
    %c0_115 = arith.constant 0 : index
    %95 = vector.load %arg2[%c4_113, %c0_114, %c0_115] : memref<5x256x512xbf16, #tpu.memory_space<vmem>>, vector<1x256x512xbf16>
    %96 = vector.shape_cast %95 : vector<1x256x512xbf16> to vector<256x512xbf16>
    %cst_116 = arith.constant dense<0.000000e+00> : vector<5x512xf32>
    %97 = tpu.matmul %79, %96, %cst_116 {dimension_numbers = #tpu.dot_dimension_numbers<[1], [0], [0], [1], [0, 0, 1, 1], [], []>} : vector<5x256xbf16>, vector<256x512xbf16>, vector<5x512xf32> -> vector<5x512xf32>
    %98 = arith.addf %94, %97 : vector<5x512xf32>
    %c0_117 = arith.constant 0 : index
    %c0_118 = arith.constant 0 : index
    %99 = vector.load %arg3[%c0_117, %c0_118] : memref<1x512xf32, #tpu.memory_space<vmem>>, vector<1x512xf32>
    %100 = vector.broadcast %99 : vector<1x512xf32> to vector<5x512xf32>
    %101 = arith.addf %98, %100 : vector<5x512xf32>
    %cst_119 = arith.constant 0.000000e+00 : f32
    %102 = vector.broadcast %cst_119 : f32 to vector<5x512xf32>
    %103 = arith.maximumf %101, %102 : vector<5x512xf32>
    %104 = arith.truncf %103 : vector<5x512xf32> to vector<5x512xbf16>
    %c0_120 = arith.constant 0 : index
    %c6_121 = arith.constant 6 : index
    %c0_122 = arith.constant 0 : index
    %c0_123 = arith.constant 0 : index
    %105 = vector.load %arg1[%c0_120, %c6_121, %c0_122, %c0_123] : memref<1x8x6x256xbf16, #tpu.memory_space<vmem>>, vector<1x1x5x256xbf16>
    %106 = vector.shape_cast %105 : vector<1x1x5x256xbf16> to vector<5x256xbf16>
    %c0_124 = arith.constant 0 : index
    %c7_125 = arith.constant 7 : index
    %c0_126 = arith.constant 0 : index
    %c0_127 = arith.constant 0 : index
    %107 = vector.load %arg1[%c0_124, %c7_125, %c0_126, %c0_127] : memref<1x8x6x256xbf16, #tpu.memory_space<vmem>>, vector<1x1x5x256xbf16>
    %108 = vector.shape_cast %107 : vector<1x1x5x256xbf16> to vector<5x256xbf16>
    %c0_128 = arith.constant 0 : index
    %c0_129 = arith.constant 0 : index
    %c1_130 = arith.constant 1 : index
    %c0_131 = arith.constant 0 : index
    %109 = vector.load %arg1[%c0_128, %c0_129, %c1_130, %c0_131] : memref<1x8x6x256xbf16, #tpu.memory_space<vmem>>, vector<1x1x5x256xbf16>
    %110 = vector.shape_cast %109 : vector<1x1x5x256xbf16> to vector<5x256xbf16>
    %c0_132 = arith.constant 0 : index
    %c1_133 = arith.constant 1 : index
    %c1_134 = arith.constant 1 : index
    %c0_135 = arith.constant 0 : index
    %111 = vector.load %arg1[%c0_132, %c1_133, %c1_134, %c0_135] : memref<1x8x6x256xbf16, #tpu.memory_space<vmem>>, vector<1x1x5x256xbf16>
    %112 = vector.shape_cast %111 : vector<1x1x5x256xbf16> to vector<5x256xbf16>
    %c0_136 = arith.constant 0 : index
    %c2_137 = arith.constant 2 : index
    %c1_138 = arith.constant 1 : index
    %c0_139 = arith.constant 0 : index
    %113 = vector.load %arg1[%c0_136, %c2_137, %c1_138, %c0_139] : memref<1x8x6x256xbf16, #tpu.memory_space<vmem>>, vector<1x1x5x256xbf16>
    %114 = vector.shape_cast %113 : vector<1x1x5x256xbf16> to vector<5x256xbf16>
    %c0_140 = arith.constant 0 : index
    %c0_141 = arith.constant 0 : index
    %c0_142 = arith.constant 0 : index
    %115 = vector.load %arg2[%c0_140, %c0_141, %c0_142] : memref<5x256x512xbf16, #tpu.memory_space<vmem>>, vector<1x256x512xbf16>
    %116 = vector.shape_cast %115 : vector<1x256x512xbf16> to vector<256x512xbf16>
    %cst_143 = arith.constant dense<0.000000e+00> : vector<5x512xf32>
    %117 = tpu.matmul %106, %116, %cst_143 {dimension_numbers = #tpu.dot_dimension_numbers<[1], [0], [0], [1], [0, 0, 1, 1], [], []>} : vector<5x256xbf16>, vector<256x512xbf16>, vector<5x512xf32> -> vector<5x512xf32>
    %c1_144 = arith.constant 1 : index
    %c0_145 = arith.constant 0 : index
    %c0_146 = arith.constant 0 : index
    %118 = vector.load %arg2[%c1_144, %c0_145, %c0_146] : memref<5x256x512xbf16, #tpu.memory_space<vmem>>, vector<1x256x512xbf16>
    %119 = vector.shape_cast %118 : vector<1x256x512xbf16> to vector<256x512xbf16>
    %cst_147 = arith.constant dense<0.000000e+00> : vector<5x512xf32>
    %120 = tpu.matmul %108, %119, %cst_147 {dimension_numbers = #tpu.dot_dimension_numbers<[1], [0], [0], [1], [0, 0, 1, 1], [], []>} : vector<5x256xbf16>, vector<256x512xbf16>, vector<5x512xf32> -> vector<5x512xf32>
    %121 = arith.addf %117, %120 : vector<5x512xf32>
    %c2_148 = arith.constant 2 : index
    %c0_149 = arith.constant 0 : index
    %c0_150 = arith.constant 0 : index
    %122 = vector.load %arg2[%c2_148, %c0_149, %c0_150] : memref<5x256x512xbf16, #tpu.memory_space<vmem>>, vector<1x256x512xbf16>
    %123 = vector.shape_cast %122 : vector<1x256x512xbf16> to vector<256x512xbf16>
    %cst_151 = arith.constant dense<0.000000e+00> : vector<5x512xf32>
    %124 = tpu.matmul %110, %123, %cst_151 {dimension_numbers = #tpu.dot_dimension_numbers<[1], [0], [0], [1], [0, 0, 1, 1], [], []>} : vector<5x256xbf16>, vector<256x512xbf16>, vector<5x512xf32> -> vector<5x512xf32>
    %125 = arith.addf %121, %124 : vector<5x512xf32>
    %c3_152 = arith.constant 3 : index
    %c0_153 = arith.constant 0 : index
    %c0_154 = arith.constant 0 : index
    %126 = vector.load %arg2[%c3_152, %c0_153, %c0_154] : memref<5x256x512xbf16, #tpu.memory_space<vmem>>, vector<1x256x512xbf16>
    %127 = vector.shape_cast %126 : vector<1x256x512xbf16> to vector<256x512xbf16>
    %cst_155 = arith.constant dense<0.000000e+00> : vector<5x512xf32>
    %128 = tpu.matmul %112, %127, %cst_155 {dimension_numbers = #tpu.dot_dimension_numbers<[1], [0], [0], [1], [0, 0, 1, 1], [], []>} : vector<5x256xbf16>, vector<256x512xbf16>, vector<5x512xf32> -> vector<5x512xf32>
    %129 = arith.addf %125, %128 : vector<5x512xf32>
    %c4_156 = arith.constant 4 : index
    %c0_157 = arith.constant 0 : index
    %c0_158 = arith.constant 0 : index
    %130 = vector.load %arg2[%c4_156, %c0_157, %c0_158] : memref<5x256x512xbf16, #tpu.memory_space<vmem>>, vector<1x256x512xbf16>
    %131 = vector.shape_cast %130 : vector<1x256x512xbf16> to vector<256x512xbf16>
    %cst_159 = arith.constant dense<0.000000e+00> : vector<5x512xf32>
    %132 = tpu.matmul %114, %131, %cst_159 {dimension_numbers = #tpu.dot_dimension_numbers<[1], [0], [0], [1], [0, 0, 1, 1], [], []>} : vector<5x256xbf16>, vector<256x512xbf16>, vector<5x512xf32> -> vector<5x512xf32>
    %133 = arith.addf %129, %132 : vector<5x512xf32>
    %c0_160 = arith.constant 0 : index
    %c0_161 = arith.constant 0 : index
    %134 = vector.load %arg3[%c0_160, %c0_161] : memref<1x512xf32, #tpu.memory_space<vmem>>, vector<1x512xf32>
    %135 = vector.broadcast %134 : vector<1x512xf32> to vector<5x512xf32>
    %136 = arith.addf %133, %135 : vector<5x512xf32>
    %cst_162 = arith.constant 0.000000e+00 : f32
    %137 = vector.broadcast %cst_162 : f32 to vector<5x512xf32>
    %138 = arith.maximumf %136, %137 : vector<5x512xf32>
    %139 = arith.truncf %138 : vector<5x512xf32> to vector<5x512xbf16>
    %140 = vector.extract_strided_slice %34 {offsets = [0, 0], sizes = [5, 512], strides = [1, 1]} : vector<6x512xbf16> to vector<5x512xbf16>
    %141 = vector.extract_strided_slice %34 {offsets = [1, 0], sizes = [5, 512], strides = [1, 1]} : vector<6x512xbf16> to vector<5x512xbf16>
    %c0_163 = arith.constant 0 : index
    %c0_164 = arith.constant 0 : index
    %c0_165 = arith.constant 0 : index
    %142 = vector.load %arg4[%c0_163, %c0_164, %c0_165] : memref<5x512x384xbf16, #tpu.memory_space<vmem>>, vector<1x512x384xbf16>
    %143 = vector.shape_cast %142 : vector<1x512x384xbf16> to vector<512x384xbf16>
    %cst_166 = arith.constant dense<0.000000e+00> : vector<5x384xf32>
    %144 = tpu.matmul %140, %143, %cst_166 {dimension_numbers = #tpu.dot_dimension_numbers<[1], [0], [0], [1], [0, 0, 1, 1], [], []>} : vector<5x512xbf16>, vector<512x384xbf16>, vector<5x384xf32> -> vector<5x384xf32>
    %c1_167 = arith.constant 1 : index
    %c0_168 = arith.constant 0 : index
    %c0_169 = arith.constant 0 : index
    %145 = vector.load %arg4[%c1_167, %c0_168, %c0_169] : memref<5x512x384xbf16, #tpu.memory_space<vmem>>, vector<1x512x384xbf16>
    %146 = vector.shape_cast %145 : vector<1x512x384xbf16> to vector<512x384xbf16>
    %cst_170 = arith.constant dense<0.000000e+00> : vector<5x384xf32>
    %147 = tpu.matmul %69, %146, %cst_170 {dimension_numbers = #tpu.dot_dimension_numbers<[1], [0], [0], [1], [0, 0, 1, 1], [], []>} : vector<5x512xbf16>, vector<512x384xbf16>, vector<5x384xf32> -> vector<5x384xf32>
    %148 = arith.addf %144, %147 : vector<5x384xf32>
    %c2_171 = arith.constant 2 : index
    %c0_172 = arith.constant 0 : index
    %c0_173 = arith.constant 0 : index
    %149 = vector.load %arg4[%c2_171, %c0_172, %c0_173] : memref<5x512x384xbf16, #tpu.memory_space<vmem>>, vector<1x512x384xbf16>
    %150 = vector.shape_cast %149 : vector<1x512x384xbf16> to vector<512x384xbf16>
    %cst_174 = arith.constant dense<0.000000e+00> : vector<5x384xf32>
    %151 = tpu.matmul %104, %150, %cst_174 {dimension_numbers = #tpu.dot_dimension_numbers<[1], [0], [0], [1], [0, 0, 1, 1], [], []>} : vector<5x512xbf16>, vector<512x384xbf16>, vector<5x384xf32> -> vector<5x384xf32>
    %152 = arith.addf %148, %151 : vector<5x384xf32>
    %c3_175 = arith.constant 3 : index
    %c0_176 = arith.constant 0 : index
    %c0_177 = arith.constant 0 : index
    %153 = vector.load %arg4[%c3_175, %c0_176, %c0_177] : memref<5x512x384xbf16, #tpu.memory_space<vmem>>, vector<1x512x384xbf16>
    %154 = vector.shape_cast %153 : vector<1x512x384xbf16> to vector<512x384xbf16>
    %cst_178 = arith.constant dense<0.000000e+00> : vector<5x384xf32>
    %155 = tpu.matmul %139, %154, %cst_178 {dimension_numbers = #tpu.dot_dimension_numbers<[1], [0], [0], [1], [0, 0, 1, 1], [], []>} : vector<5x512xbf16>, vector<512x384xbf16>, vector<5x384xf32> -> vector<5x384xf32>
    %156 = arith.addf %152, %155 : vector<5x384xf32>
    %c4_179 = arith.constant 4 : index
    %c0_180 = arith.constant 0 : index
    %c0_181 = arith.constant 0 : index
    %157 = vector.load %arg4[%c4_179, %c0_180, %c0_181] : memref<5x512x384xbf16, #tpu.memory_space<vmem>>, vector<1x512x384xbf16>
    %158 = vector.shape_cast %157 : vector<1x512x384xbf16> to vector<512x384xbf16>
    %cst_182 = arith.constant dense<0.000000e+00> : vector<5x384xf32>
    %159 = tpu.matmul %141, %158, %cst_182 {dimension_numbers = #tpu.dot_dimension_numbers<[1], [0], [0], [1], [0, 0, 1, 1], [], []>} : vector<5x512xbf16>, vector<512x384xbf16>, vector<5x384xf32> -> vector<5x384xf32>
    %160 = arith.addf %156, %159 : vector<5x384xf32>
    %c0_183 = arith.constant 0 : index
    %c0_184 = arith.constant 0 : index
    %161 = vector.load %arg5[%c0_183, %c0_184] : memref<1x384xf32, #tpu.memory_space<vmem>>, vector<1x384xf32>
    %162 = vector.broadcast %161 : vector<1x384xf32> to vector<5x384xf32>
    %163 = arith.addf %160, %162 : vector<5x384xf32>
    %cst_185 = arith.constant 0.000000e+00 : f32
    %164 = vector.broadcast %cst_185 : f32 to vector<5x384xf32>
    %165 = arith.maximumf %163, %164 : vector<5x384xf32>
    %166 = arith.truncf %165 : vector<5x384xf32> to vector<5x384xbf16>
    %167 = vector.extract_strided_slice %104 {offsets = [0, 0], sizes = [4, 512], strides = [1, 1]} : vector<5x512xbf16> to vector<4x512xbf16>
    %168 = vector.extract_strided_slice %139 {offsets = [0, 0], sizes = [4, 512], strides = [1, 1]} : vector<5x512xbf16> to vector<4x512xbf16>
    %169 = vector.extract_strided_slice %34 {offsets = [1, 0], sizes = [4, 512], strides = [1, 1]} : vector<6x512xbf16> to vector<4x512xbf16>
    %170 = vector.extract_strided_slice %69 {offsets = [1, 0], sizes = [4, 512], strides = [1, 1]} : vector<5x512xbf16> to vector<4x512xbf16>
    %171 = vector.extract_strided_slice %104 {offsets = [1, 0], sizes = [4, 512], strides = [1, 1]} : vector<5x512xbf16> to vector<4x512xbf16>
    %c0_186 = arith.constant 0 : index
    %c0_187 = arith.constant 0 : index
    %c0_188 = arith.constant 0 : index
    %172 = vector.load %arg4[%c0_186, %c0_187, %c0_188] : memref<5x512x384xbf16, #tpu.memory_space<vmem>>, vector<1x512x384xbf16>
    %173 = vector.shape_cast %172 : vector<1x512x384xbf16> to vector<512x384xbf16>
    %cst_189 = arith.constant dense<0.000000e+00> : vector<4x384xf32>
    %174 = tpu.matmul %167, %173, %cst_189 {dimension_numbers = #tpu.dot_dimension_numbers<[1], [0], [0], [1], [0, 0, 1, 1], [], []>} : vector<4x512xbf16>, vector<512x384xbf16>, vector<4x384xf32> -> vector<4x384xf32>
    %c1_190 = arith.constant 1 : index
    %c0_191 = arith.constant 0 : index
    %c0_192 = arith.constant 0 : index
    %175 = vector.load %arg4[%c1_190, %c0_191, %c0_192] : memref<5x512x384xbf16, #tpu.memory_space<vmem>>, vector<1x512x384xbf16>
    %176 = vector.shape_cast %175 : vector<1x512x384xbf16> to vector<512x384xbf16>
    %cst_193 = arith.constant dense<0.000000e+00> : vector<4x384xf32>
    %177 = tpu.matmul %168, %176, %cst_193 {dimension_numbers = #tpu.dot_dimension_numbers<[1], [0], [0], [1], [0, 0, 1, 1], [], []>} : vector<4x512xbf16>, vector<512x384xbf16>, vector<4x384xf32> -> vector<4x384xf32>
    %178 = arith.addf %174, %177 : vector<4x384xf32>
    %c2_194 = arith.constant 2 : index
    %c0_195 = arith.constant 0 : index
    %c0_196 = arith.constant 0 : index
    %179 = vector.load %arg4[%c2_194, %c0_195, %c0_196] : memref<5x512x384xbf16, #tpu.memory_space<vmem>>, vector<1x512x384xbf16>
    %180 = vector.shape_cast %179 : vector<1x512x384xbf16> to vector<512x384xbf16>
    %cst_197 = arith.constant dense<0.000000e+00> : vector<4x384xf32>
    %181 = tpu.matmul %169, %180, %cst_197 {dimension_numbers = #tpu.dot_dimension_numbers<[1], [0], [0], [1], [0, 0, 1, 1], [], []>} : vector<4x512xbf16>, vector<512x384xbf16>, vector<4x384xf32> -> vector<4x384xf32>
    %182 = arith.addf %178, %181 : vector<4x384xf32>
    %c3_198 = arith.constant 3 : index
    %c0_199 = arith.constant 0 : index
    %c0_200 = arith.constant 0 : index
    %183 = vector.load %arg4[%c3_198, %c0_199, %c0_200] : memref<5x512x384xbf16, #tpu.memory_space<vmem>>, vector<1x512x384xbf16>
    %184 = vector.shape_cast %183 : vector<1x512x384xbf16> to vector<512x384xbf16>
    %cst_201 = arith.constant dense<0.000000e+00> : vector<4x384xf32>
    %185 = tpu.matmul %170, %184, %cst_201 {dimension_numbers = #tpu.dot_dimension_numbers<[1], [0], [0], [1], [0, 0, 1, 1], [], []>} : vector<4x512xbf16>, vector<512x384xbf16>, vector<4x384xf32> -> vector<4x384xf32>
    %186 = arith.addf %182, %185 : vector<4x384xf32>
    %c4_202 = arith.constant 4 : index
    %c0_203 = arith.constant 0 : index
    %c0_204 = arith.constant 0 : index
    %187 = vector.load %arg4[%c4_202, %c0_203, %c0_204] : memref<5x512x384xbf16, #tpu.memory_space<vmem>>, vector<1x512x384xbf16>
    %188 = vector.shape_cast %187 : vector<1x512x384xbf16> to vector<512x384xbf16>
    %cst_205 = arith.constant dense<0.000000e+00> : vector<4x384xf32>
    %189 = tpu.matmul %171, %188, %cst_205 {dimension_numbers = #tpu.dot_dimension_numbers<[1], [0], [0], [1], [0, 0, 1, 1], [], []>} : vector<4x512xbf16>, vector<512x384xbf16>, vector<4x384xf32> -> vector<4x384xf32>
    %190 = arith.addf %186, %189 : vector<4x384xf32>
    %c0_206 = arith.constant 0 : index
    %c0_207 = arith.constant 0 : index
    %191 = vector.load %arg5[%c0_206, %c0_207] : memref<1x384xf32, #tpu.memory_space<vmem>>, vector<1x384xf32>
    %192 = vector.broadcast %191 : vector<1x384xf32> to vector<4x384xf32>
    %193 = arith.addf %190, %192 : vector<4x384xf32>
    %cst_208 = arith.constant 0.000000e+00 : f32
    %194 = vector.broadcast %cst_208 : f32 to vector<4x384xf32>
    %195 = arith.maximumf %193, %194 : vector<4x384xf32>
    %196 = arith.truncf %195 : vector<4x384xf32> to vector<4x384xbf16>
    %197 = vector.extract_strided_slice %166 {offsets = [0, 0], sizes = [3, 384], strides = [1, 1]} : vector<5x384xbf16> to vector<3x384xbf16>
    %198 = vector.extract_strided_slice %196 {offsets = [0, 0], sizes = [3, 384], strides = [1, 1]} : vector<4x384xbf16> to vector<3x384xbf16>
    %199 = vector.extract_strided_slice %166 {offsets = [1, 0], sizes = [3, 384], strides = [1, 1]} : vector<5x384xbf16> to vector<3x384xbf16>
    %200 = vector.extract_strided_slice %196 {offsets = [1, 0], sizes = [3, 384], strides = [1, 1]} : vector<4x384xbf16> to vector<3x384xbf16>
    %201 = vector.extract_strided_slice %166 {offsets = [2, 0], sizes = [3, 384], strides = [1, 1]} : vector<5x384xbf16> to vector<3x384xbf16>
    %c0_209 = arith.constant 0 : index
    %c0_210 = arith.constant 0 : index
    %c0_211 = arith.constant 0 : index
    %202 = vector.load %arg6[%c0_209, %c0_210, %c0_211] : memref<5x384x128xbf16, #tpu.memory_space<vmem>>, vector<1x384x128xbf16>
    %203 = vector.shape_cast %202 : vector<1x384x128xbf16> to vector<384x128xbf16>
    %cst_212 = arith.constant dense<0.000000e+00> : vector<3x128xf32>
    %204 = tpu.matmul %197, %203, %cst_212 {dimension_numbers = #tpu.dot_dimension_numbers<[1], [0], [0], [1], [0, 0, 1, 1], [], []>} : vector<3x384xbf16>, vector<384x128xbf16>, vector<3x128xf32> -> vector<3x128xf32>
    %c1_213 = arith.constant 1 : index
    %c0_214 = arith.constant 0 : index
    %c0_215 = arith.constant 0 : index
    %205 = vector.load %arg6[%c1_213, %c0_214, %c0_215] : memref<5x384x128xbf16, #tpu.memory_space<vmem>>, vector<1x384x128xbf16>
    %206 = vector.shape_cast %205 : vector<1x384x128xbf16> to vector<384x128xbf16>
    %cst_216 = arith.constant dense<0.000000e+00> : vector<3x128xf32>
    %207 = tpu.matmul %198, %206, %cst_216 {dimension_numbers = #tpu.dot_dimension_numbers<[1], [0], [0], [1], [0, 0, 1, 1], [], []>} : vector<3x384xbf16>, vector<384x128xbf16>, vector<3x128xf32> -> vector<3x128xf32>
    %208 = arith.addf %204, %207 : vector<3x128xf32>
    %c2_217 = arith.constant 2 : index
    %c0_218 = arith.constant 0 : index
    %c0_219 = arith.constant 0 : index
    %209 = vector.load %arg6[%c2_217, %c0_218, %c0_219] : memref<5x384x128xbf16, #tpu.memory_space<vmem>>, vector<1x384x128xbf16>
    %210 = vector.shape_cast %209 : vector<1x384x128xbf16> to vector<384x128xbf16>
    %cst_220 = arith.constant dense<0.000000e+00> : vector<3x128xf32>
    %211 = tpu.matmul %199, %210, %cst_220 {dimension_numbers = #tpu.dot_dimension_numbers<[1], [0], [0], [1], [0, 0, 1, 1], [], []>} : vector<3x384xbf16>, vector<384x128xbf16>, vector<3x128xf32> -> vector<3x128xf32>
    %212 = arith.addf %208, %211 : vector<3x128xf32>
    %c3_221 = arith.constant 3 : index
    %c0_222 = arith.constant 0 : index
    %c0_223 = arith.constant 0 : index
    %213 = vector.load %arg6[%c3_221, %c0_222, %c0_223] : memref<5x384x128xbf16, #tpu.memory_space<vmem>>, vector<1x384x128xbf16>
    %214 = vector.shape_cast %213 : vector<1x384x128xbf16> to vector<384x128xbf16>
    %cst_224 = arith.constant dense<0.000000e+00> : vector<3x128xf32>
    %215 = tpu.matmul %200, %214, %cst_224 {dimension_numbers = #tpu.dot_dimension_numbers<[1], [0], [0], [1], [0, 0, 1, 1], [], []>} : vector<3x384xbf16>, vector<384x128xbf16>, vector<3x128xf32> -> vector<3x128xf32>
    %216 = arith.addf %212, %215 : vector<3x128xf32>
    %c4_225 = arith.constant 4 : index
    %c0_226 = arith.constant 0 : index
    %c0_227 = arith.constant 0 : index
    %217 = vector.load %arg6[%c4_225, %c0_226, %c0_227] : memref<5x384x128xbf16, #tpu.memory_space<vmem>>, vector<1x384x128xbf16>
    %218 = vector.shape_cast %217 : vector<1x384x128xbf16> to vector<384x128xbf16>
    %cst_228 = arith.constant dense<0.000000e+00> : vector<3x128xf32>
    %219 = tpu.matmul %201, %218, %cst_228 {dimension_numbers = #tpu.dot_dimension_numbers<[1], [0], [0], [1], [0, 0, 1, 1], [], []>} : vector<3x384xbf16>, vector<384x128xbf16>, vector<3x128xf32> -> vector<3x128xf32>
    %220 = arith.addf %216, %219 : vector<3x128xf32>
    %c0_229 = arith.constant 0 : index
    %c0_230 = arith.constant 0 : index
    %221 = vector.load %arg7[%c0_229, %c0_230] : memref<1x128xf32, #tpu.memory_space<vmem>>, vector<1x128xf32>
    %222 = vector.broadcast %221 : vector<1x128xf32> to vector<3x128xf32>
    %223 = arith.addf %220, %222 : vector<3x128xf32>
    %cst_231 = arith.constant 0.000000e+00 : f32
    %224 = vector.broadcast %cst_231 : f32 to vector<3x128xf32>
    %225 = arith.maximumf %223, %224 : vector<3x128xf32>
    %226 = arith.truncf %225 : vector<3x128xf32> to vector<3x128xbf16>
    %227 = vector.extract_strided_slice %226 {offsets = [0, 0], sizes = [1, 128], strides = [1, 1]} : vector<3x128xbf16> to vector<1x128xbf16>
    %c0_232 = arith.constant 0 : index
    %c0_233 = arith.constant 0 : index
    %228 = vector.load %arg8[%c0_232, %c0_233] : memref<384x128xbf16, #tpu.memory_space<vmem>>, vector<128x128xbf16>
    %cst_234 = arith.constant dense<0.000000e+00> : vector<1x128xf32>
    %229 = tpu.matmul %227, %228, %cst_234 {dimension_numbers = #tpu.dot_dimension_numbers<[1], [0], [0], [1], [0, 0, 1, 1], [], []>} : vector<1x128xbf16>, vector<128x128xbf16>, vector<1x128xf32> -> vector<1x128xf32>
    %230 = vector.extract_strided_slice %226 {offsets = [1, 0], sizes = [1, 128], strides = [1, 1]} : vector<3x128xbf16> to vector<1x128xbf16>
    %c128 = arith.constant 128 : index
    %c0_235 = arith.constant 0 : index
    %231 = vector.load %arg8[%c128, %c0_235] : memref<384x128xbf16, #tpu.memory_space<vmem>>, vector<128x128xbf16>
    %cst_236 = arith.constant dense<0.000000e+00> : vector<1x128xf32>
    %232 = tpu.matmul %230, %231, %cst_236 {dimension_numbers = #tpu.dot_dimension_numbers<[1], [0], [0], [1], [0, 0, 1, 1], [], []>} : vector<1x128xbf16>, vector<128x128xbf16>, vector<1x128xf32> -> vector<1x128xf32>
    %233 = arith.addf %229, %232 : vector<1x128xf32>
    %234 = vector.extract_strided_slice %226 {offsets = [2, 0], sizes = [1, 128], strides = [1, 1]} : vector<3x128xbf16> to vector<1x128xbf16>
    %c256 = arith.constant 256 : index
    %c0_237 = arith.constant 0 : index
    %235 = vector.load %arg8[%c256, %c0_237] : memref<384x128xbf16, #tpu.memory_space<vmem>>, vector<128x128xbf16>
    %cst_238 = arith.constant dense<0.000000e+00> : vector<1x128xf32>
    %236 = tpu.matmul %234, %235, %cst_238 {dimension_numbers = #tpu.dot_dimension_numbers<[1], [0], [0], [1], [0, 0, 1, 1], [], []>} : vector<1x128xbf16>, vector<128x128xbf16>, vector<1x128xf32> -> vector<1x128xf32>
    %237 = arith.addf %233, %236 : vector<1x128xf32>
    %c0_239 = arith.constant 0 : index
    %c0_240 = arith.constant 0 : index
    %238 = vector.load %arg9[%c0_239, %c0_240] : memref<1x128xf32, #tpu.memory_space<vmem>>, vector<1x128xf32>
    %239 = arith.addf %237, %238 : vector<1x128xf32>
    %c0_241 = arith.constant 0 : index
    %c0_242 = arith.constant 0 : index
    %c0_243 = arith.constant 0 : index
    %240 = vector.load %arg10[%c0_241, %c0_242, %c0_243] : memref<1x1x128xf32, #tpu.memory_space<vmem>>, vector<1x1x128xf32>
    %241 = vector.shape_cast %240 : vector<1x1x128xf32> to vector<1x128xf32>
    %242 = vector.shape_cast %239 : vector<1x128xf32> to vector<1x1x128xf32>
    tpu.vector_store %arg10[%c0_241, %c0_242, %c0_243], %242 {strides = array<i32>} : memref<1x1x128xf32, #tpu.memory_space<vmem>>, vector<1x1x128xf32>,
    return
  }
  func.func @transform_0(%arg0: i32) -> (i32, i32, i32, i32) {
    %c0_i32 = arith.constant 0 : i32
    %c0_i32_0 = arith.constant 0 : i32
    %c0_i32_1 = arith.constant 0 : i32
    %c0_i32_2 = arith.constant 0 : i32
    return %arg0, %c0_i32, %c0_i32_0, %c0_i32_1 : i32, i32, i32, i32
  }
  func.func @transform_1(%arg0: i32) -> (i32, i32, i32) {
    %c0_i32 = arith.constant 0 : i32
    %c0_i32_0 = arith.constant 0 : i32
    %c0_i32_1 = arith.constant 0 : i32
    %c0_i32_2 = arith.constant 0 : i32
    return %c0_i32, %c0_i32_0, %c0_i32_1 : i32, i32, i32
  }
  func.func @transform_2(%arg0: i32) -> (i32, i32) {
    %c0_i32 = arith.constant 0 : i32
    %c0_i32_0 = arith.constant 0 : i32
    %c0_i32_1 = arith.constant 0 : i32
    return %c0_i32, %c0_i32_0 : i32, i32
  }
  func.func @transform_3(%arg0: i32) -> (i32, i32, i32) {
    %c0_i32 = arith.constant 0 : i32
    %c0_i32_0 = arith.constant 0 : i32
    %c0_i32_1 = arith.constant 0 : i32
    %c0_i32_2 = arith.constant 0 : i32
    return %c0_i32, %c0_i32_0, %c0_i32_1 : i32, i32, i32
  }
  func.func @transform_4(%arg0: i32) -> (i32, i32) {
    %c0_i32 = arith.constant 0 : i32
    %c0_i32_0 = arith.constant 0 : i32
    %c0_i32_1 = arith.constant 0 : i32
    return %c0_i32, %c0_i32_0 : i32, i32
  }
  func.func @transform_5(%arg0: i32) -> (i32, i32, i32) {
    %c0_i32 = arith.constant 0 : i32
    %c0_i32_0 = arith.constant 0 : i32
    %c0_i32_1 = arith.constant 0 : i32
    %c0_i32_2 = arith.constant 0 : i32
    return %c0_i32, %c0_i32_0, %c0_i32_1 : i32, i32, i32
  }
  func.func @transform_6(%arg0: i32) -> (i32, i32) {
    %c0_i32 = arith.constant 0 : i32
    %c0_i32_0 = arith.constant 0 : i32
    %c0_i32_1 = arith.constant 0 : i32
    return %c0_i32, %c0_i32_0 : i32, i32
  }
  func.func @transform_7(%arg0: i32) -> (i32, i32) {
    %c0_i32 = arith.constant 0 : i32
    %c0_i32_0 = arith.constant 0 : i32
    %c0_i32_1 = arith.constant 0 : i32
    return %c0_i32, %c0_i32_0 : i32, i32
  }
  func.func @transform_8(%arg0: i32) -> (i32, i32) {
    %c0_i32 = arith.constant 0 : i32
    %c0_i32_0 = arith.constant 0 : i32
    %c0_i32_1 = arith.constant 0 : i32
    return %c0_i32, %c0_i32_0 : i32, i32
  }
  func.func @transform_9(%arg0: i32) -> (i32, i32, i32) {
    %c0_i32 = arith.constant 0 : i32
    %c0_i32_0 = arith.constant 0 : i32
    %c0_i32_1 = arith.constant 0 : i32
    return %arg0, %c0_i32, %c0_i32_0 : i32, i32, i32
  }
}

</mosaic_0001>

<llo_original>
// kernel: dqn_forward.1
$region0: #{dqn_forward.1}
  #allocation0 [shape = 'u32[]', space=smem, size = 0x4, offset = 0x4, fixed_abs, tag = 'smem constant byte address 0x4 - core index']
  #allocation1 [shape = 'u32[72,128]{1,0:T(1,128)}', space=vmem, size = 0x9000, scoped, tag = 'internal scratch']
  %s0 = inlined_call_operand.vmem [shape: bf16[2,8,6,256], index: 0, kind: input, shape index: {}]
  %s1 = inlined_call_operand.hbm [shape: bf16[5,256,512], index: 1, kind: input, shape index: {}]
  %s2 = inlined_call_operand.hbm [shape: f32[1,512], index: 2, kind: input, shape index: {}]
  %s3 = inlined_call_operand.hbm [shape: bf16[5,512,384], index: 3, kind: input, shape index: {}]
  %s4 = inlined_call_operand.hbm [shape: f32[1,384], index: 4, kind: input, shape index: {}]
  %s5 = inlined_call_operand.hbm [shape: bf16[5,384,128], index: 5, kind: input, shape index: {}]
  %s6 = inlined_call_operand.hbm [shape: f32[1,128], index: 6, kind: input, shape index: {}]
  %s7 = inlined_call_operand.hbm [shape: bf16[384,128], index: 7, kind: input, shape index: {}]
  %s8 = inlined_call_operand.hbm [shape: f32[1,128], index: 8, kind: input, shape index: {}]
  %s9 = inlined_call_operand.vmem [shape: f32[2,1,128], index: 9, kind: output, shape index: {}]
  %s10 = sld [smem:[#allocation0]]
  $region101: #{dqn_forward.1} parent=0
    _
  %s12 = ssub.s32 1, %s10
  %s13 = scalar_select 0, %s12, %s10
  $region1: #{dqn_forward.1} parent=0
    #allocation2 [shape = 'u8[1310720]{0}', space=vmem, size = 0x140000, scoped, tag = 'input window, operand 1, single buffered']
    #allocation3 [shape = 's32[2]{0}', space=sflag, size = 0x8, scoped, tag = 'scoped memory for dqn_forward.1']
    #allocation4 [shape = 'u8[2048]{0}', space=vmem, size = 0x800, scoped, tag = 'input window, operand 2, single buffered']
    #allocation5 [shape = 's32[1]{0}', space=sflag, size = 0x4, scoped, tag = 'scoped memory for dqn_forward.1']
    #allocation6 [shape = 'u8[1966080]{0}', space=vmem, size = 0x1e0000, scoped, tag = 'input window, operand 3, single buffered']
    #allocation7 [shape = 'u8[1536]{0}', space=vmem, size = 0x800, scoped, tag = 'input window, operand 4, single buffered']
    #allocation8 [shape = 's32[1]{0}', space=sflag, size = 0x4, scoped, tag = 'scoped memory for dqn_forward.1']
    #allocation9 [shape = 'u8[491520]{0}', space=vmem, size = 0x78000, scoped, tag = 'input window, operand 5, single buffered']
    #allocation10 [shape = 'u8[512]{0}', space=vmem, size = 0x400, scoped, tag = 'input window, operand 6, single buffered']
    #allocation11 [shape = 's32[1]{0}', space=sflag, size = 0x4, scoped, tag = 'scoped memory for dqn_forward.1']
    #allocation12 [shape = 'u8[98304]{0}', space=vmem, size = 0x18000, scoped, tag = 'input window, operand 7, single buffered']
    #allocation13 [shape = 'u8[512]{0}', space=vmem, size = 0x400, scoped, tag = 'input window, operand 8, single buffered']
    #allocation14 [shape = 's32[1]{0}', space=sflag, size = 0x4, scoped, tag = 'scoped memory for dqn_forward.1']
    %14 = vsyncpa [#allocation3], 0
    %15 = vsyncpa [#allocation5], 0
    %16 = vsyncpa [#allocation8], 0
    %17 = vsyncpa [#allocation11], 0
    %18 = vsyncpa [#allocation14], 0
    loop: start=0, step=1, limit=4
    $region2: #{dqn_forward.1} parent=1 // loop_pre_header
      _
    $region3: #{dqn_forward.1} parent=1 // loop_header
      %s20 = sphi 0, %s24
      %p21 = scmp.ge.s32.totalorder %s20, 4
      %s30 = sphi 0, %s32
      %s33 = sphi 0, %s30
      %s34 = sphi 0, %s33
      %s50 = sphi 0, %s34
      %s54 = sphi 0, %s54
      %s56 = sphi 0, %s54
      %s57 = sphi 0, %s56
      %s71 = sphi 0, %s57
      %s75 = sphi 0, %s75
      %s77 = sphi 0, %s75
      %s78 = sphi 0, %s77
      %s92 = sphi 0, %s78
      %s96 = sphi 0, %s96
      %s98 = sphi 0, %s96
      %s99 = sphi 0, %s98
      %s113 = sphi 0, %s99
      %s117 = sphi 0, %s117
      %s119 = sphi 0, %s117
      %s120 = sphi 0, %s119
      %s134 = sphi 0, %s120
      %s138 = sphi 0, %s138
      %s140 = sphi 0, %s138
      %s141 = sphi 0, %s140
      %s155 = sphi 0, %s141
      %s159 = sphi 0, %s159
      %s161 = sphi 0, %s159
      %s162 = sphi 0, %s161
      %s176 = sphi 0, %s162
      %s180 = sphi 0, %s180
      %s182 = sphi 0, %s180
      %s183 = sphi 0, %s182
      %s197 = sphi 0, %s183
      %s201 = sphi 0, %s201
      %s203 = sphi 0, %s201
      %s204 = sphi 0, %s203
      %s218 = sphi 0, %s204
      %s224 = sphi 0, %s226
      %s227 = sphi 0, %s224
      %s228 = sphi 0, %s227
      %s244 = sphi 0, %s228
    $region4: #{dqn_forward.1} parent=1 // loop_header_branch
      %23 = sbr.rel (%p21) target = $region8
    $region5: #{dqn_forward.1} parent=1 // loop_body
      %s25 = ssub.s32 %s20, 1
      %s26 = ssub.s32 %s20, 2
      %s27 = sadd.s32 %s20, 1
      %s28 = ssub.s32 %s20, %s27
      %p29 = scmp.eq.s32.totalorder %s28, 0
      %s31 = sadd.s32 %s30, 1
      %s32 = scalar_select %p29, %s30, %s31
      %p35 = pneg %p29
      %p36 = scmp.eq.s32.totalorder %s20, 1
      %p37 = por %p35, %p36
      %p38 = scmp.ne.s32.totalorder %s30, %s33
      %p39 = scmp.eq.s32.totalorder %s20, 0
      %p40 = por %p38, %p39
      %p41 = scmp.ne.s32.totalorder %s30, %s33
      %p42 = scmp.eq.s32.totalorder %s25, 1
      %p43 = por %p41, %p42
      %p44 = scmp.ne.s32.totalorder %s33, %s34
      %p45 = scmp.eq.s32.totalorder %s25, 0
      %p46 = por %p44, %p45
      %p47 = scmp.ne.s32.totalorder %s33, %s34
      %p48 = scmp.eq.s32.totalorder %s26, 1
      %p49 = por %p47, %p48
      %p51 = scmp.ne.s32.totalorder %s34, %s50
      %p52 = scmp.eq.s32.totalorder %s26, 0
      %p53 = por %p51, %p52
      %s55 = sadd.s32 %s54, 1
      %p58 = scmp.eq.s32.totalorder %s20, 1
      %p59 = scmp.ne.s32.totalorder %s54, %s56
      %p60 = scmp.eq.s32.totalorder %s20, 0
      %p61 = por %p59, %p60
      %p62 = scmp.ne.s32.totalorder %s54, %s56
      %p63 = scmp.eq.s32.totalorder %s25, 1
      %p64 = por %p62, %p63
      %p65 = scmp.ne.s32.totalorder %s56, %s57
      %p66 = scmp.eq.s32.totalorder %s25, 0
      %p67 = por %p65, %p66
      %p68 = scmp.ne.s32.totalorder %s56, %s57
      %p69 = scmp.eq.s32.totalorder %s26, 1
      %p70 = por %p68, %p69
      %p72 = scmp.ne.s32.totalorder %s57, %s71
      %p73 = scmp.eq.s32.totalorder %s26, 0
      %p74 = por %p72, %p73
      %s76 = sadd.s32 %s75, 1
      %p79 = scmp.eq.s32.totalorder %s20, 1
      %p80 = scmp.ne.s32.totalorder %s75, %s77
      %p81 = scmp.eq.s32.totalorder %s20, 0
      %p82 = por %p80, %p81
      %p83 = scmp.ne.s32.totalorder %s75, %s77
      %p84 = scmp.eq.s32.totalorder %s25, 1
      %p85 = por %p83, %p84
      %p86 = scmp.ne.s32.totalorder %s77, %s78
      %p87 = scmp.eq.s32.totalorder %s25, 0
      %p88 = por %p86, %p87
      %p89 = scmp.ne.s32.totalorder %s77, %s78
      %p90 = scmp.eq.s32.totalorder %s26, 1
      %p91 = por %p89, %p90
      %p93 = scmp.ne.s32.totalorder %s78, %s92
      %p94 = scmp.eq.s32.totalorder %s26, 0
      %p95 = por %p93, %p94
      %s97 = sadd.s32 %s96, 1
      %p100 = scmp.eq.s32.totalorder %s20, 1
      %p101 = scmp.ne.s32.totalorder %s96, %s98
      %p102 = scmp.eq.s32.totalorder %s20, 0
      %p103 = por %p101, %p102
      %p104 = scmp.ne.s32.totalorder %s96, %s98
      %p105 = scmp.eq.s32.totalorder %s25, 1
      %p106 = por %p104, %p105
      %p107 = scmp.ne.s32.totalorder %s98, %s99
      %p108 = scmp.eq.s32.totalorder %s25, 0
      %p109 = por %p107, %p108
      %p110 = scmp.ne.s32.totalorder %s98, %s99
      %p111 = scmp.eq.s32.totalorder %s26, 1
      %p112 = por %p110, %p111
      %p114 = scmp.ne.s32.totalorder %s99, %s113
      %p115 = scmp.eq.s32.totalorder %s26, 0
      %p116 = por %p114, %p115
      %s118 = sadd.s32 %s117, 1
      %p121 = scmp.eq.s32.totalorder %s20, 1
      %p122 = scmp.ne.s32.totalorder %s117, %s119
      %p123 = scmp.eq.s32.totalorder %s20, 0
      %p124 = por %p122, %p123
      %p125 = scmp.ne.s32.totalorder %s117, %s119
      %p126 = scmp.eq.s32.totalorder %s25, 1
      %p127 = por %p125, %p126
      %p128 = scmp.ne.s32.totalorder %s119, %s120
      %p129 = scmp.eq.s32.totalorder %s25, 0
      %p130 = por %p128, %p129
      %p131 = scmp.ne.s32.totalorder %s119, %s120
      %p132 = scmp.eq.s32.totalorder %s26, 1
      %p133 = por %p131, %p132
      %p135 = scmp.ne.s32.totalorder %s120, %s134
      %p136 = scmp.eq.s32.totalorder %s26, 0
      %p137 = por %p135, %p136
      %s139 = sadd.s32 %s138, 1
      %p142 = scmp.eq.s32.totalorder %s20, 1
      %p143 = scmp.ne.s32.totalorder %s138, %s140
      %p144 = scmp.eq.s32.totalorder %s20, 0
      %p145 = por %p143, %p144
      %p146 = scmp.ne.s32.totalorder %s138, %s140
      %p147 = scmp.eq.s32.totalorder %s25, 1
      %p148 = por %p146, %p147
      %p149 = scmp.ne.s32.totalorder %s140, %s141
      %p150 = scmp.eq.s32.totalorder %s25, 0
      %p151 = por %p149, %p150
      %p152 = scmp.ne.s32.totalorder %s140, %s141
      %p153 = scmp.eq.s32.totalorder %s26, 1
      %p154 = por %p152, %p153
      %p156 = scmp.ne.s32.totalorder %s141, %s155
      %p157 = scmp.eq.s32.totalorder %s26, 0
      %p158 = por %p156, %p157
      %s160 = sadd.s32 %s159, 1
      %p163 = scmp.eq.s32.totalorder %s20, 1
      %p164 = scmp.ne.s32.totalorder %s159, %s161
      %p165 = scmp.eq.s32.totalorder %s20, 0
      %p166 = por %p164, %p165
      %p167 = scmp.ne.s32.totalorder %s159, %s161
      %p168 = scmp.eq.s32.totalorder %s25, 1
      %p169 = por %p167, %p168
      %p170 = scmp.ne.s32.totalorder %s161, %s162
      %p171 = scmp.eq.s32.totalorder %s25, 0
      %p172 = por %p170, %p171
      %p173 = scmp.ne.s32.totalorder %s161, %s162
      %p174 = scmp.eq.s32.totalorder %s26, 1
      %p175 = por %p173, %p174
      %p177 = scmp.ne.s32.totalorder %s162, %s176
      %p178 = scmp.eq.s32.totalorder %s26, 0
      %p179 = por %p177, %p178
      %s181 = sadd.s32 %s180, 1
      %p184 = scmp.eq.s32.totalorder %s20, 1
      %p185 = scmp.ne.s32.totalorder %s180, %s182
      %p186 = scmp.eq.s32.totalorder %s20, 0
      %p187 = por %p185, %p186
      %p188 = scmp.ne.s32.totalorder %s180, %s182
      %p189 = scmp.eq.s32.totalorder %s25, 1
      %p190 = por %p188, %p189
      %p191 = scmp.ne.s32.totalorder %s182, %s183
      %p192 = scmp.eq.s32.totalorder %s25, 0
      %p193 = por %p191, %p192
      %p194 = scmp.ne.s32.totalorder %s182, %s183
      %p195 = scmp.eq.s32.totalorder %s26, 1
      %p196 = por %p194, %p195
      %p198 = scmp.ne.s32.totalorder %s183, %s197
      %p199 = scmp.eq.s32.totalorder %s26, 0
      %p200 = por %p198, %p199
      %s202 = sadd.s32 %s201, 1
      %p205 = scmp.eq.s32.totalorder %s20, 1
      %p206 = scmp.ne.s32.totalorder %s201, %s203
      %p207 = scmp.eq.s32.totalorder %s20, 0
      %p208 = por %p206, %p207
      %p209 = scmp.ne.s32.totalorder %s201, %s203
      %p210 = scmp.eq.s32.totalorder %s25, 1
      %p211 = por %p209, %p210
      %p212 = scmp.ne.s32.totalorder %s203, %s204
      %p213 = scmp.eq.s32.totalorder %s25, 0
      %p214 = por %p212, %p213
      %p215 = scmp.ne.s32.totalorder %s203, %s204
      %p216 = scmp.eq.s32.totalorder %s26, 1
      %p217 = por %p215, %p216
      %p219 = scmp.ne.s32.totalorder %s204, %s218
      %p220 = scmp.eq.s32.totalorder %s26, 0
      %p221 = por %p219, %p220
      %s222 = ssub.s32 %s20, %s27
      %p223 = scmp.eq.s32.totalorder %s222, 0
      %s225 = sadd.s32 %s224, 1
      %s226 = scalar_select %p223, %s224, %s225
      %p229 = pneg %p223
      %p230 = scmp.eq.s32.totalorder %s20, 1
      %p231 = por %p229, %p230
      %p232 = scmp.ne.s32.totalorder %s224, %s227
      %p233 = scmp.eq.s32.totalorder %s20, 0
      %p234 = por %p232, %p233
      %p235 = scmp.ne.s32.totalorder %s224, %s227
      %p236 = scmp.eq.s32.totalorder %s25, 1
      %p237 = por %p235, %p236
      %p238 = scmp.ne.s32.totalorder %s227, %s228
      %p239 = scmp.eq.s32.totalorder %s25, 0
      %p240 = por %p238, %p239
      %p241 = scmp.ne.s32.totalorder %s227, %s228
      %p242 = scmp.eq.s32.totalorder %s26, 1
      %p243 = por %p241, %p242
      %p245 = scmp.ne.s32.totalorder %s228, %s244
      %p246 = scmp.eq.s32.totalorder %s26, 0
      %p247 = por %p245, %p246
      %p248 = scmp.le.s32.totalorder 1, %s20
      %p249 = scmp.lt.s32.totalorder %s20, 3
      %p250 = pnand %p248, %p249
      %p251 = pneg %p250
      // Predicated region
      $region9: #{dqn_forward.1} parent=5 // pred_check
        _
      $region10: #{dqn_forward.1} parent=5 // pred_check_branch
        %253 = sbr.rel (%p250) target = $region12
      $region11: #{dqn_forward.1} parent=5 // pred_region
        %s254 = ssub.s32 %s20, 1
        // Predicated region
        $region13: #{dqn_forward.1} parent=11 // pred_check
          %p255 = pneg %p67
        $region14: #{dqn_forward.1} parent=11 // pred_check_branch
          %257 = sbr.rel (%p255) target = $region16
        $region15: #{dqn_forward.1} parent=11 // pred_region
          %259 = vsyncadd [#allocation3], 0
          %s260 = sshll.u32 %s1, 4
          %s261 = int_to_ptr.hbm [resolvable:$true] %s260
          %s262 = sshll.u32 [#allocation2], 4
          %s263 = int_to_ptr.vmem [resolvable:$true] %s262
          %268 = dma.hbm_to_vmem [thread:$0]  %s261, 40960, %s263, [#allocation3], 256, 256, 16
        $region16: #{dqn_forward.1} parent=11 // pred_fallthru
          _
        // Predicated region
        $region17: #{dqn_forward.1} parent=11 // pred_check
          %p269 = pneg %p88
        $region18: #{dqn_forward.1} parent=11 // pred_check_branch
          %271 = sbr.rel (%p269) target = $region20
        $region19: #{dqn_forward.1} parent=11 // pred_region
          %273 = vsyncadd [#allocation5], 0
          %s275 = sshll.u32 %s2, 4
          %s276 = int_to_ptr.hbm [resolvable:$true] %s275
          %s277 = sshll.u32 [#allocation4], 4
          %s278 = int_to_ptr.vmem [resolvable:$true] %s277
          %280 = dma.hbm_to_vmem [thread:$0]  %s276, 64, %s278, [#allocation5]
        $region20: #{dqn_forward.1} parent=11 // pred_fallthru
          _
        // Predicated region
        $region21: #{dqn_forward.1} parent=11 // pred_check
          %p281 = pneg %p109
        $region22: #{dqn_forward.1} parent=11 // pred_check_branch
          %283 = sbr.rel (%p281) target = $region24
        $region23: #{dqn_forward.1} parent=11 // pred_region
          %285 = vsyncadd [#allocation5], 0
          %s286 = sshll.u32 %s3, 4
          %s287 = int_to_ptr.hbm [resolvable:$true] %s286
          %s288 = sshll.u32 [#allocation6], 4
          %s289 = int_to_ptr.vmem [resolvable:$true] %s288
          %294 = dma.hbm_to_vmem [thread:$0]  %s287, 61440, %s289, [#allocation5], 192, 192, 12
        $region24: #{dqn_forward.1} parent=11 // pred_fallthru
          _
        // Predicated region
        $region25: #{dqn_forward.1} parent=11 // pred_check
          %p295 = pneg %p130
        $region26: #{dqn_forward.1} parent=11 // pred_check_branch
          %297 = sbr.rel (%p295) target = $region28
        $region27: #{dqn_forward.1} parent=11 // pred_region
          %299 = vsyncadd [#allocation8], 0
          %s301 = sshll.u32 %s4, 4
          %s302 = int_to_ptr.hbm [resolvable:$true] %s301
          %s303 = sshll.u32 [#allocation7], 4
          %s304 = int_to_ptr.vmem [resolvable:$true] %s303
          %306 = dma.hbm_to_vmem [thread:$0]  %s302, 48, %s304, [#allocation8]
        $region28: #{dqn_forward.1} parent=11 // pred_fallthru
          _
        // Predicated region
        $region29: #{dqn_forward.1} parent=11 // pred_check
          %p307 = pneg %p151
        $region30: #{dqn_forward.1} parent=11 // pred_check_branch
          %309 = sbr.rel (%p307) target = $region32
        $region31: #{dqn_forward.1} parent=11 // pred_region
          %311 = vsyncadd [#allocation8], 0
          %s312 = sshll.u32 %s5, 4
          %s313 = int_to_ptr.hbm [resolvable:$true] %s312
          %s314 = sshll.u32 [#allocation9], 4
          %s315 = int_to_ptr.vmem [resolvable:$true] %s314
          %320 = dma.hbm_to_vmem [thread:$0]  %s313, 15360, %s315, [#allocation8], 64, 64, 4
        $region32: #{dqn_forward.1} parent=11 // pred_fallthru
          _
        // Predicated region
        $region33: #{dqn_forward.1} parent=11 // pred_check
          %p321 = pneg %p172
        $region34: #{dqn_forward.1} parent=11 // pred_check_branch
          %323 = sbr.rel (%p321) target = $region36
        $region35: #{dqn_forward.1} parent=11 // pred_region
          %325 = vsyncadd [#allocation11], 0
          %s327 = sshll.u32 %s6, 4
          %s328 = int_to_ptr.hbm [resolvable:$true] %s327
          %s329 = sshll.u32 [#allocation10], 4
          %s330 = int_to_ptr.vmem [resolvable:$true] %s329
          %332 = dma.hbm_to_vmem [thread:$0]  %s328, 16, %s330, [#allocation11]
        $region36: #{dqn_forward.1} parent=11 // pred_fallthru
          _
        // Predicated region
        $region37: #{dqn_forward.1} parent=11 // pred_check
          %p333 = pneg %p193
        $region38: #{dqn_forward.1} parent=11 // pred_check_branch
          %335 = sbr.rel (%p333) target = $region40
        $region39: #{dqn_forward.1} parent=11 // pred_region
          %337 = vsyncadd [#allocation11], 0
          %s338 = sshll.u32 %s7, 4
          %s339 = int_to_ptr.hbm [resolvable:$true] %s338
          %s340 = sshll.u32 [#allocation12], 4
          %s341 = int_to_ptr.vmem [resolvable:$true] %s340
          %346 = dma.hbm_to_vmem [thread:$0]  %s339, 3072, %s341, [#allocation11], 64, 64, 4
        $region40: #{dqn_forward.1} parent=11 // pred_fallthru
          _
        // Predicated region
        $region41: #{dqn_forward.1} parent=11 // pred_check
          %p347 = pneg %p214
        $region42: #{dqn_forward.1} parent=11 // pred_check_branch
          %349 = sbr.rel (%p347) target = $region44
        $region43: #{dqn_forward.1} parent=11 // pred_region
          %351 = vsyncadd [#allocation14], 0
          %s353 = sshll.u32 %s8, 4
          %s354 = int_to_ptr.hbm [resolvable:$true] %s353
          %s355 = sshll.u32 [#allocation13], 4
          %s356 = int_to_ptr.vmem [resolvable:$true] %s355
          %358 = dma.hbm_to_vmem [thread:$0]  %s354, 16, %s356, [#allocation14]
        $region44: #{dqn_forward.1} parent=11 // pred_fallthru
          _
      $region12: #{dqn_forward.1} parent=5 // pred_fallthru
        _
      %p359 = scmp.lt.s32.totalorder %s20, 2
      // Predicated region
      $region45: #{dqn_forward.1} parent=5 // pred_check
        %p360 = pneg %p359
      $region46: #{dqn_forward.1} parent=5 // pred_check_branch
        %362 = sbr.rel (%p360) target = $region48
      $region47: #{dqn_forward.1} parent=5 // pred_region
        // Predicated region
        $region49: #{dqn_forward.1} parent=47 // pred_check
          %p363 = pneg %p40
        $region50: #{dqn_forward.1} parent=47 // pred_check_branch
          %365 = sbr.rel (%p363) target = $region52
        $region51: #{dqn_forward.1} parent=47 // pred_region
          %p366 = scmp.lt.s32.totalorder %s20, 1
          %s367 = scalar_select %p366, %s20, 1
          %s368 = smul.addr %s367, 16
          %s369 = smul.addr %s368, 4
          %s370 = scalar_lea.vmem %s0, %s369
        $region52: #{dqn_forward.1} parent=47 // pred_fallthru
          _
      $region48: #{dqn_forward.1} parent=5 // pred_fallthru
        _
      %p371 = scmp.le.s32.totalorder 1, %s20
      %p372 = scmp.lt.s32.totalorder %s20, 3
      %p373 = pnand %p371, %p372
      %p374 = pneg %p373
      // Predicated region
      $region53: #{dqn_forward.1} parent=5 // pred_check
        _
      $region54: #{dqn_forward.1} parent=5 // pred_check_branch
        %376 = sbr.rel (%p373) target = $region56
      $region55: #{dqn_forward.1} parent=5 // pred_region
        %s377 = ssub.s32 %s20, 1
        // Predicated region
        $region57: #{dqn_forward.1} parent=55 // pred_check
          %p378 = pneg %p67
        $region58: #{dqn_forward.1} parent=55 // pred_check_branch
          %380 = sbr.rel (%p378) target = $region60
        $region59: #{dqn_forward.1} parent=55 // pred_region
          %382 = dma.done [#allocation3], 40960
        $region60: #{dqn_forward.1} parent=55 // pred_fallthru
          _
        // Predicated region
        $region61: #{dqn_forward.1} parent=55 // pred_check
          %p383 = pneg %p88
        $region62: #{dqn_forward.1} parent=55 // pred_check_branch
          %385 = sbr.rel (%p383) target = $region64
        $region63: #{dqn_forward.1} parent=55 // pred_region
          %387 = dma.done [#allocation5], 64
        $region64: #{dqn_forward.1} parent=55 // pred_fallthru
          _
        // Predicated region
        $region65: #{dqn_forward.1} parent=55 // pred_check
          %p388 = pneg %p109
        $region66: #{dqn_forward.1} parent=55 // pred_check_branch
          %390 = sbr.rel (%p388) target = $region68
        $region67: #{dqn_forward.1} parent=55 // pred_region
          %392 = dma.done [#allocation5], 61440
        $region68: #{dqn_forward.1} parent=55 // pred_fallthru
          _
        // Predicated region
        $region69: #{dqn_forward.1} parent=55 // pred_check
          %p393 = pneg %p130
        $region70: #{dqn_forward.1} parent=55 // pred_check_branch
          %395 = sbr.rel (%p393) target = $region72
        $region71: #{dqn_forward.1} parent=55 // pred_region
          %397 = dma.done [#allocation8], 48
        $region72: #{dqn_forward.1} parent=55 // pred_fallthru
          _
        // Predicated region
        $region73: #{dqn_forward.1} parent=55 // pred_check
          %p398 = pneg %p151
        $region74: #{dqn_forward.1} parent=55 // pred_check_branch
          %400 = sbr.rel (%p398) target = $region76
        $region75: #{dqn_forward.1} parent=55 // pred_region
          %402 = dma.done [#allocation8], 15360
        $region76: #{dqn_forward.1} parent=55 // pred_fallthru
          _
        // Predicated region
        $region77: #{dqn_forward.1} parent=55 // pred_check
          %p403 = pneg %p172
        $region78: #{dqn_forward.1} parent=55 // pred_check_branch
          %405 = sbr.rel (%p403) target = $region80
        $region79: #{dqn_forward.1} parent=55 // pred_region
          %407 = dma.done [#allocation11], 16
        $region80: #{dqn_forward.1} parent=55 // pred_fallthru
          _
        // Predicated region
        $region81: #{dqn_forward.1} parent=55 // pred_check
          %p408 = pneg %p193
        $region82: #{dqn_forward.1} parent=55 // pred_check_branch
          %410 = sbr.rel (%p408) target = $region84
        $region83: #{dqn_forward.1} parent=55 // pred_region
          %412 = dma.done [#allocation11], 3072
        $region84: #{dqn_forward.1} parent=55 // pred_fallthru
          _
        // Predicated region
        $region85: #{dqn_forward.1} parent=55 // pred_check
          %p413 = pneg %p214
        $region86: #{dqn_forward.1} parent=55 // pred_check_branch
          %415 = sbr.rel (%p413) target = $region88
        $region87: #{dqn_forward.1} parent=55 // pred_region
          %417 = dma.done [#allocation14], 16
        $region88: #{dqn_forward.1} parent=55 // pred_fallthru
          _
        %p418 = scmp.lt.s32.totalorder %s25, 1
        %s419 = scalar_select %p418, %s25, 1
        %s420 = smul.addr %s419, 16
        %s421 = smul.addr %s420, 4
        %s422 = scalar_lea.vmem %s0, %s421
        %p423 = pneg %p46
        %p424 = pneg %p43
        %p425 = pneg %p67
        %p426 = pneg %p64
        %p427 = pneg %p88
        %p428 = pneg %p85
        %p429 = pneg %p109
        %p430 = pneg %p106
        %p431 = pneg %p130
        %p432 = pneg %p127
        %p433 = pneg %p151
        %p434 = pneg %p148
        %p435 = pneg %p172
        %p436 = pneg %p169
        %p437 = pneg %p193
        %p438 = pneg %p190
        %p439 = pneg %p214
        %p440 = pneg %p211
        %p441 = pneg %p240
        %p442 = pneg %p237
        %p443 = scmp.lt.s32.totalorder %s25, 1
        %s444 = scalar_select %p443, %s25, 1
        %s445 = scalar_lea.vmem %s9, %s444
        %p446 = scmp.lt.s32.totalorder %s25, 1
        %s447 = scalar_select %p446, %s25, 1
        %s448 = smul.addr %s447, 16
        %s449 = smul.addr %s448, 4
        %s450 = scalar_lea.vmem %s0, %s449
        %p451 = scmp.lt.s32.totalorder %s25, 1
        %s452 = scalar_select %p451, %s25, 1
        %s453 = scalar_lea.vmem %s9, %s452
        %v454 = vld [vmem:[%s450] sm:$0x77]
        %s455 = scalar_lea.vmem %s450, 8
        %v456 = vld [vmem:[%s455] sm:$0x77]
        %s457 = scalar_lea.vmem %s450, 16
        %v458 = vld [vmem:[%s457] sm:$0x77]
        %s459 = scalar_lea.vmem %s450, 24
        %v460 = vld [vmem:[%s459] sm:$0x77]
        %s461 = scalar_lea.vmem %s450, 32
        %v462 = vld [vmem:[%s461] sm:$0x77]
        %v463 = vld [vmem:[#allocation2] sm:$0xff]
        %v464 = vld [vmem:[#allocation2 + $0x8] sm:$0xff]
        %v465 = vld [vmem:[#allocation2 + $0x10] sm:$0xff]
        %v466 = vld [vmem:[#allocation2 + $0x18] sm:$0xff]
        %v467 = vld [vmem:[#allocation2 + $0x20] sm:$0xff]
        %v468 = vld [vmem:[#allocation2 + $0x28] sm:$0xff]
        %v469 = vld [vmem:[#allocation2 + $0x30] sm:$0xff]
        %v470 = vld [vmem:[#allocation2 + $0x38] sm:$0xff]
        %v471 = vld [vmem:[#allocation2 + $0x40] sm:$0xff]
        %v472 = vld [vmem:[#allocation2 + $0x48] sm:$0xff]
        %v473 = vld [vmem:[#allocation2 + $0x50] sm:$0xff]
        %v474 = vld [vmem:[#allocation2 + $0x58] sm:$0xff]
        %v475 = vld [vmem:[#allocation2 + $0x60] sm:$0xff]
        %v476 = vld [vmem:[#allocation2 + $0x68] sm:$0xff]
        %v477 = vld [vmem:[#allocation2 + $0x70] sm:$0xff]
        %v478 = vld [vmem:[#allocation2 + $0x78] sm:$0xff]
        %v479 = vld [vmem:[#allocation2 + $0x80] sm:$0xff]
        %v480 = vld [vmem:[#allocation2 + $0x88] sm:$0xff]
        %v481 = vld [vmem:[#allocation2 + $0x90] sm:$0xff]
        %v482 = vld [vmem:[#allocation2 + $0x98] sm:$0xff]
        %v483 = vld [vmem:[#allocation2 + $0xa0] sm:$0xff]
        %v484 = vld [vmem:[#allocation2 + $0xa8] sm:$0xff]
        %v485 = vld [vmem:[#allocation2 + $0xb0] sm:$0xff]
        %v486 = vld [vmem:[#allocation2 + $0xb8] sm:$0xff]
        %v487 = vld [vmem:[#allocation2 + $0xc0] sm:$0xff]
        %v488 = vld [vmem:[#allocation2 + $0xc8] sm:$0xff]
        %v489 = vld [vmem:[#allocation2 + $0xd0] sm:$0xff]
        %v490 = vld [vmem:[#allocation2 + $0xd8] sm:$0xff]
        %v491 = vld [vmem:[#allocation2 + $0xe0] sm:$0xff]
        %v492 = vld [vmem:[#allocation2 + $0xe8] sm:$0xff]
        %v493 = vld [vmem:[#allocation2 + $0xf0] sm:$0xff]
        %v494 = vld [vmem:[#allocation2 + $0xf8] sm:$0xff]
        %v495 = vld [vmem:[#allocation2 + $0x100] sm:$0xff]
        %v496 = vld [vmem:[#allocation2 + $0x108] sm:$0xff]
        %v497 = vld [vmem:[#allocation2 + $0x110] sm:$0xff]
        %v498 = vld [vmem:[#allocation2 + $0x118] sm:$0xff]
        %v499 = vld [vmem:[#allocation2 + $0x120] sm:$0xff]
        %v500 = vld [vmem:[#allocation2 + $0x128] sm:$0xff]
        %v501 = vld [vmem:[#allocation2 + $0x130] sm:$0xff]
        %v502 = vld [vmem:[#allocation2 + $0x138] sm:$0xff]
        %v503 = vld [vmem:[#allocation2 + $0x140] sm:$0xff]
        %v504 = vld [vmem:[#allocation2 + $0x148] sm:$0xff]
        %v505 = vld [vmem:[#allocation2 + $0x150] sm:$0xff]
        %v506 = vld [vmem:[#allocation2 + $0x158] sm:$0xff]
        %v507 = vld [vmem:[#allocation2 + $0x160] sm:$0xff]
        %v508 = vld [vmem:[#allocation2 + $0x168] sm:$0xff]
        %v509 = vld [vmem:[#allocation2 + $0x170] sm:$0xff]
        %v510 = vld [vmem:[#allocation2 + $0x178] sm:$0xff]
        %v511 = vld [vmem:[#allocation2 + $0x180] sm:$0xff]
        %v512 = vld [vmem:[#allocation2 + $0x188] sm:$0xff]
        %v513 = vld [vmem:[#allocation2 + $0x190] sm:$0xff]
        %v514 = vld [vmem:[#allocation2 + $0x198] sm:$0xff]
        %v515 = vld [vmem:[#allocation2 + $0x1a0] sm:$0xff]
        %v516 = vld [vmem:[#allocation2 + $0x1a8] sm:$0xff]
        %v517 = vld [vmem:[#allocation2 + $0x1b0] sm:$0xff]
        %v518 = vld [vmem:[#allocation2 + $0x1b8] sm:$0xff]
        %v519 = vld [vmem:[#allocation2 + $0x1c0] sm:$0xff]
        %v520 = vld [vmem:[#allocation2 + $0x1c8] sm:$0xff]
        %v521 = vld [vmem:[#allocation2 + $0x1d0] sm:$0xff]
        %v522 = vld [vmem:[#allocation2 + $0x1d8] sm:$0xff]
        %v523 = vld [vmem:[#allocation2 + $0x1e0] sm:$0xff]
        %v524 = vld [vmem:[#allocation2 + $0x1e8] sm:$0xff]
        %v525 = vld [vmem:[#allocation2 + $0x1f0] sm:$0xff]
        %v526 = vld [vmem:[#allocation2 + $0x1f8] sm:$0xff]
        %s527 = scalar_lea.vmem [#allocation2], 512
        %v528 = vld [vmem:[%s527] sm:$0xff]
        %v529 = vld [vmem:[%s527 + $0x8] sm:$0xff]
        %v530 = vld [vmem:[%s527 + $0x10] sm:$0xff]
        %v531 = vld [vmem:[%s527 + $0x18] sm:$0xff]
        %v532 = vld [vmem:[%s527 + $0x20] sm:$0xff]
        %v533 = vld [vmem:[%s527 + $0x28] sm:$0xff]
        %v534 = vld [vmem:[%s527 + $0x30] sm:$0xff]
        %v535 = vld [vmem:[%s527 + $0x38] sm:$0xff]
        %v536 = vld [vmem:[%s527 + $0x40] sm:$0xff]
        %v537 = vld [vmem:[%s527 + $0x48] sm:$0xff]
        %v538 = vld [vmem:[%s527 + $0x50] sm:$0xff]
        %v539 = vld [vmem:[%s527 + $0x58] sm:$0xff]
        %v540 = vld [vmem:[%s527 + $0x60] sm:$0xff]
        %v541 = vld [vmem:[%s527 + $0x68] sm:$0xff]
        %v542 = vld [vmem:[%s527 + $0x70] sm:$0xff]
        %v543 = vld [vmem:[%s527 + $0x78] sm:$0xff]
        %v544 = vld [vmem:[%s527 + $0x80] sm:$0xff]
        %v545 = vld [vmem:[%s527 + $0x88] sm:$0xff]
        %v546 = vld [vmem:[%s527 + $0x90] sm:$0xff]
        %v547 = vld [vmem:[%s527 + $0x98] sm:$0xff]
        %v548 = vld [vmem:[%s527 + $0xa0] sm:$0xff]
        %v549 = vld [vmem:[%s527 + $0xa8] sm:$0xff]
        %v550 = vld [vmem:[%s527 + $0xb0] sm:$0xff]
        %v551 = vld [vmem:[%s527 + $0xb8] sm:$0xff]
        %v552 = vld [vmem:[%s527 + $0xc0] sm:$0xff]
        %v553 = vld [vmem:[%s527 + $0xc8] sm:$0xff]
        %v554 = vld [vmem:[%s527 + $0xd0] sm:$0xff]
        %v555 = vld [vmem:[%s527 + $0xd8] sm:$0xff]
        %v556 = vld [vmem:[%s527 + $0xe0] sm:$0xff]
        %v557 = vld [vmem:[%s527 + $0xe8] sm:$0xff]
        %v558 = vld [vmem:[%s527 + $0xf0] sm:$0xff]
        %v559 = vld [vmem:[%s527 + $0xf8] sm:$0xff]
        %v560 = vld [vmem:[%s527 + $0x100] sm:$0xff]
        %v561 = vld [vmem:[%s527 + $0x108] sm:$0xff]
        %v562 = vld [vmem:[%s527 + $0x110] sm:$0xff]
        %v563 = vld [vmem:[%s527 + $0x118] sm:$0xff]
        %v564 = vld [vmem:[%s527 + $0x120] sm:$0xff]
        %v565 = vld [vmem:[%s527 + $0x128] sm:$0xff]
        %v566 = vld [vmem:[%s527 + $0x130] sm:$0xff]
        %v567 = vld [vmem:[%s527 + $0x138] sm:$0xff]
        %v568 = vld [vmem:[%s527 + $0x140] sm:$0xff]
        %v569 = vld [vmem:[%s527 + $0x148] sm:$0xff]
        %v570 = vld [vmem:[%s527 + $0x150] sm:$0xff]
        %v571 = vld [vmem:[%s527 + $0x158] sm:$0xff]
        %v572 = vld [vmem:[%s527 + $0x160] sm:$0xff]
        %v573 = vld [vmem:[%s527 + $0x168] sm:$0xff]
        %v574 = vld [vmem:[%s527 + $0x170] sm:$0xff]
        %v575 = vld [vmem:[%s527 + $0x178] sm:$0xff]
        %v576 = vld [vmem:[%s527 + $0x180] sm:$0xff]
        %v577 = vld [vmem:[%s527 + $0x188] sm:$0xff]
        %v578 = vld [vmem:[%s527 + $0x190] sm:$0xff]
        %v579 = vld [vmem:[%s527 + $0x198] sm:$0xff]
        %v580 = vld [vmem:[%s527 + $0x1a0] sm:$0xff]
        %v581 = vld [vmem:[%s527 + $0x1a8] sm:$0xff]
        %v582 = vld [vmem:[%s527 + $0x1b0] sm:$0xff]
        %v583 = vld [vmem:[%s527 + $0x1b8] sm:$0xff]
        %v584 = vld [vmem:[%s527 + $0x1c0] sm:$0xff]
        %v585 = vld [vmem:[%s527 + $0x1c8] sm:$0xff]
        %v586 = vld [vmem:[%s527 + $0x1d0] sm:$0xff]
        %v587 = vld [vmem:[%s527 + $0x1d8] sm:$0xff]
        %v588 = vld [vmem:[%s527 + $0x1e0] sm:$0xff]
        %v589 = vld [vmem:[%s527 + $0x1e8] sm:$0xff]
        %v590 = vld [vmem:[%s527 + $0x1f0] sm:$0xff]
        %v591 = vld [vmem:[%s527 + $0x1f8] sm:$0xff]
        %v593 = vunpack.c.l.b16 %v456
        %v594 = vunpack.c.h.b16 %v456
        %v595 = vpack.c.b16 %v593, %v593
        %v596 = vpack.c.b16 %v594, %v594
        %v663 = vunpack.c.l.b16 %v528
        %v664 = vunpack.c.h.b16 %v528
        %v665 = vunpack.c.l.b16 %v529
        %v666 = vunpack.c.h.b16 %v529
        %v667 = vunpack.c.l.b16 %v530
        %v668 = vunpack.c.h.b16 %v530
        %v669 = vunpack.c.l.b16 %v531
        %v670 = vunpack.c.h.b16 %v531
        %v671 = vunpack.c.l.b16 %v532
        %v672 = vunpack.c.h.b16 %v532
        %v673 = vunpack.c.l.b16 %v533
        %v674 = vunpack.c.h.b16 %v533
        %v675 = vunpack.c.l.b16 %v534
        %v676 = vunpack.c.h.b16 %v534
        %v677 = vunpack.c.l.b16 %v535
        %v678 = vunpack.c.h.b16 %v535
        %v679 = vunpack.c.l.b16 %v536
        %v680 = vunpack.c.h.b16 %v536
        %v681 = vunpack.c.l.b16 %v537
        %v682 = vunpack.c.h.b16 %v537
        %v683 = vunpack.c.l.b16 %v538
        %v684 = vunpack.c.h.b16 %v538
        %v685 = vunpack.c.l.b16 %v539
        %v686 = vunpack.c.h.b16 %v539
        %v687 = vunpack.c.l.b16 %v540
        %v688 = vunpack.c.h.b16 %v540
        %v689 = vunpack.c.l.b16 %v541
        %v690 = vunpack.c.h.b16 %v541
        %v691 = vunpack.c.l.b16 %v542
        %v692 = vunpack.c.h.b16 %v542
        %v693 = vunpack.c.l.b16 %v543
        %v694 = vunpack.c.h.b16 %v543
        %v695 = vunpack.c.l.b16 %v544
        %v696 = vunpack.c.h.b16 %v544
        %v697 = vunpack.c.l.b16 %v545
        %v698 = vunpack.c.h.b16 %v545
        %v699 = vunpack.c.l.b16 %v546
        %v700 = vunpack.c.h.b16 %v546
        %v701 = vunpack.c.l.b16 %v547
        %v702 = vunpack.c.h.b16 %v547
        %v703 = vunpack.c.l.b16 %v548
        %v704 = vunpack.c.h.b16 %v548
        %v705 = vunpack.c.l.b16 %v549
        %v706 = vunpack.c.h.b16 %v549
        %v707 = vunpack.c.l.b16 %v550
        %v708 = vunpack.c.h.b16 %v550
        %v709 = vunpack.c.l.b16 %v551
        %v710 = vunpack.c.h.b16 %v551
        %v711 = vunpack.c.l.b16 %v552
        %v712 = vunpack.c.h.b16 %v552
        %v713 = vunpack.c.l.b16 %v553
        %v714 = vunpack.c.h.b16 %v553
        %v715 = vunpack.c.l.b16 %v554
        %v716 = vunpack.c.h.b16 %v554
        %v717 = vunpack.c.l.b16 %v555
        %v718 = vunpack.c.h.b16 %v555
        %v719 = vunpack.c.l.b16 %v556
        %v720 = vunpack.c.h.b16 %v556
        %v721 = vunpack.c.l.b16 %v557
        %v722 = vunpack.c.h.b16 %v557
        %v723 = vunpack.c.l.b16 %v558
        %v724 = vunpack.c.h.b16 %v558
        %v725 = vunpack.c.l.b16 %v559
        %v726 = vunpack.c.h.b16 %v559
        %v727 = vunpack.c.l.b16 %v560
        %v728 = vunpack.c.h.b16 %v560
        %v729 = vunpack.c.l.b16 %v561
        %v730 = vunpack.c.h.b16 %v561
        %v731 = vunpack.c.l.b16 %v562
        %v732 = vunpack.c.h.b16 %v562
        %v733 = vunpack.c.l.b16 %v563
        %v734 = vunpack.c.h.b16 %v563
        %v735 = vunpack.c.l.b16 %v564
        %v736 = vunpack.c.h.b16 %v564
        %v737 = vunpack.c.l.b16 %v565
        %v738 = vunpack.c.h.b16 %v565
        %v739 = vunpack.c.l.b16 %v566
        %v740 = vunpack.c.h.b16 %v566
        %v741 = vunpack.c.l.b16 %v567
        %v742 = vunpack.c.h.b16 %v567
        %v743 = vunpack.c.l.b16 %v568
        %v744 = vunpack.c.h.b16 %v568
        %v745 = vunpack.c.l.b16 %v569
        %v746 = vunpack.c.h.b16 %v569
        %v747 = vunpack.c.l.b16 %v570
        %v748 = vunpack.c.h.b16 %v570
        %v749 = vunpack.c.l.b16 %v571
        %v750 = vunpack.c.h.b16 %v571
        %v751 = vunpack.c.l.b16 %v572
        %v752 = vunpack.c.h.b16 %v572
        %v753 = vunpack.c.l.b16 %v573
        %v754 = vunpack.c.h.b16 %v573
        %v755 = vunpack.c.l.b16 %v574
        %v756 = vunpack.c.h.b16 %v574
        %v757 = vunpack.c.l.b16 %v575
        %v758 = vunpack.c.h.b16 %v575
        %v759 = vunpack.c.l.b16 %v576
        %v760 = vunpack.c.h.b16 %v576
        %v761 = vunpack.c.l.b16 %v577
        %v762 = vunpack.c.h.b16 %v577
        %v763 = vunpack.c.l.b16 %v578
        %v764 = vunpack.c.h.b16 %v578
        %v765 = vunpack.c.l.b16 %v579
        %v766 = vunpack.c.h.b16 %v579
        %v767 = vunpack.c.l.b16 %v580
        %v768 = vunpack.c.h.b16 %v580
        %v769 = vunpack.c.l.b16 %v581
        %v770 = vunpack.c.h.b16 %v581
        %v771 = vunpack.c.l.b16 %v582
        %v772 = vunpack.c.h.b16 %v582
        %v773 = vunpack.c.l.b16 %v583
        %v774 = vunpack.c.h.b16 %v583
        %v775 = vunpack.c.l.b16 %v584
        %v776 = vunpack.c.h.b16 %v584
        %v777 = vunpack.c.l.b16 %v585
        %v778 = vunpack.c.h.b16 %v585
        %v779 = vunpack.c.l.b16 %v586
        %v780 = vunpack.c.h.b16 %v586
        %v781 = vunpack.c.l.b16 %v587
        %v782 = vunpack.c.h.b16 %v587
        %v783 = vunpack.c.l.b16 %v588
        %v784 = vunpack.c.h.b16 %v588
        %v785 = vunpack.c.l.b16 %v589
        %v786 = vunpack.c.h.b16 %v589
        %v787 = vunpack.c.l.b16 %v590
        %v788 = vunpack.c.h.b16 %v590
        %v789 = vunpack.c.l.b16 %v591
        %v790 = vunpack.c.h.b16 %v591
        %v791 = vpack.c.b16 %v667, %v663
        %v792 = vpack.c.b16 %v668, %v664
        %v793 = vpack.c.b16 %v669, %v665
        %v794 = vpack.c.b16 %v670, %v666
        %v795 = vpack.c.b16 %v675, %v671
        %v796 = vpack.c.b16 %v676, %v672
        %v797 = vpack.c.b16 %v677, %v673
        %v798 = vpack.c.b16 %v678, %v674
        %v799 = vpack.c.b16 %v683, %v679
        %v800 = vpack.c.b16 %v684, %v680
        %v801 = vpack.c.b16 %v685, %v681
        %v802 = vpack.c.b16 %v686, %v682
        %v803 = vpack.c.b16 %v691, %v687
        %v804 = vpack.c.b16 %v692, %v688
        %v805 = vpack.c.b16 %v693, %v689
        %v806 = vpack.c.b16 %v694, %v690
        %v807 = vpack.c.b16 %v699, %v695
        %v808 = vpack.c.b16 %v700, %v696
        %v809 = vpack.c.b16 %v701, %v697
        %v810 = vpack.c.b16 %v702, %v698
        %v811 = vpack.c.b16 %v707, %v703
        %v812 = vpack.c.b16 %v708, %v704
        %v813 = vpack.c.b16 %v709, %v705
        %v814 = vpack.c.b16 %v710, %v706
        %v815 = vpack.c.b16 %v715, %v711
        %v816 = vpack.c.b16 %v716, %v712
        %v817 = vpack.c.b16 %v717, %v713
        %v818 = vpack.c.b16 %v718, %v714
        %v819 = vpack.c.b16 %v723, %v719
        %v820 = vpack.c.b16 %v724, %v720
        %v821 = vpack.c.b16 %v725, %v721
        %v822 = vpack.c.b16 %v726, %v722
        %v823 = vpack.c.b16 %v731, %v727
        %v824 = vpack.c.b16 %v732, %v728
        %v825 = vpack.c.b16 %v733, %v729
        %v826 = vpack.c.b16 %v734, %v730
        %v827 = vpack.c.b16 %v739, %v735
        %v828 = vpack.c.b16 %v740, %v736
        %v829 = vpack.c.b16 %v741, %v737
        %v830 = vpack.c.b16 %v742, %v738
        %v831 = vpack.c.b16 %v747, %v743
        %v832 = vpack.c.b16 %v748, %v744
        %v833 = vpack.c.b16 %v749, %v745
        %v834 = vpack.c.b16 %v750, %v746
        %v835 = vpack.c.b16 %v755, %v751
        %v836 = vpack.c.b16 %v756, %v752
        %v837 = vpack.c.b16 %v757, %v753
        %v838 = vpack.c.b16 %v758, %v754
        %v839 = vpack.c.b16 %v763, %v759
        %v840 = vpack.c.b16 %v764, %v760
        %v841 = vpack.c.b16 %v765, %v761
        %v842 = vpack.c.b16 %v766, %v762
        %v843 = vpack.c.b16 %v771, %v767
        %v844 = vpack.c.b16 %v772, %v768
        %v845 = vpack.c.b16 %v773, %v769
        %v846 = vpack.c.b16 %v774, %v770
        %v847 = vpack.c.b16 %v779, %v775
        %v848 = vpack.c.b16 %v780, %v776
        %v849 = vpack.c.b16 %v781, %v777
        %v850 = vpack.c.b16 %v782, %v778
        %v851 = vpack.c.b16 %v787, %v783
        %v852 = vpack.c.b16 %v788, %v784
        %v853 = vpack.c.b16 %v789, %v785
        %v854 = vpack.c.b16 %v790, %v786
        %919 = vmatpush.bf16.msra.mxu0 %v819
        %920 = vmatpush.bf16.msra.mxu0 %v815
        %921 = vmatpush.bf16.msra.mxu0 %v811
        %922 = vmatpush.bf16.msra.mxu0 %v807
        %923 = vmatpush.bf16.msra.mxu0 %v803
        %924 = vmatpush.bf16.msra.mxu0 %v799
        %925 = vmatpush.bf16.msra.mxu0 %v795
        %926 = vmatpush.bf16.msra.mxu0 %v791
        %927 = vmatmul.bf16.gmra.mxu0 %v595
        %v928 = vpop.f32.mrf.mxu0
        %v929 = vadd.f32 0.0, %v928
        %v930 = vpop.f32.mrf.mxu0
        %931 = vdwg.mxu0
        %932 = vmatpush.bf16.msra.mxu0 %v851
        %933 = vmatpush.bf16.msra.mxu0 %v847
        %934 = vmatpush.bf16.msra.mxu0 %v843
        %935 = vmatpush.bf16.msra.mxu0 %v839
        %936 = vmatpush.bf16.msra.mxu0 %v835
        %937 = vmatpush.bf16.msra.mxu0 %v831
        %938 = vmatpush.bf16.msra.mxu0 %v827
        %939 = vmatpush.bf16.msra.mxu0 %v823
        %940 = vmatmul.bf16.gmra.mxu0 %v596
        %v941 = vpop.f32.mrf.mxu0
        %v942 = vadd.f32 %v929, %v941
        %v943 = vpop.f32.mrf.mxu0
        %944 = vdwg.mxu0
        %945 = vmatpush.bf16.msra.mxu0 %v820
        %946 = vmatpush.bf16.msra.mxu0 %v816
        %947 = vmatpush.bf16.msra.mxu0 %v812
        %948 = vmatpush.bf16.msra.mxu0 %v808
        %949 = vmatpush.bf16.msra.mxu0 %v804
        %950 = vmatpush.bf16.msra.mxu0 %v800
        %951 = vmatpush.bf16.msra.mxu0 %v796
        %952 = vmatpush.bf16.msra.mxu0 %v792
        %953 = vmatmul.bf16.gmra.mxu0 %v595
        %v954 = vpop.f32.mrf.mxu0
        %v955 = vadd.f32 0.0, %v954
        %v956 = vpop.f32.mrf.mxu0
        %957 = vdwg.mxu0
        %958 = vmatpush.bf16.msra.mxu0 %v852
        %959 = vmatpush.bf16.msra.mxu0 %v848
        %960 = vmatpush.bf16.msra.mxu0 %v844
        %961 = vmatpush.bf16.msra.mxu0 %v840
        %962 = vmatpush.bf16.msra.mxu0 %v836
        %963 = vmatpush.bf16.msra.mxu0 %v832
        %964 = vmatpush.bf16.msra.mxu0 %v828
        %965 = vmatpush.bf16.msra.mxu0 %v824
        %966 = vmatmul.bf16.gmra.mxu0 %v596
        %v967 = vpop.f32.mrf.mxu0
        %v968 = vadd.f32 %v955, %v967
        %v969 = vpop.f32.mrf.mxu0
        %970 = vdwg.mxu0
        %971 = vmatpush.bf16.msra.mxu0 %v821
        %972 = vmatpush.bf16.msra.mxu0 %v817
        %973 = vmatpush.bf16.msra.mxu0 %v813
        %974 = vmatpush.bf16.msra.mxu0 %v809
        %975 = vmatpush.bf16.msra.mxu0 %v805
        %976 = vmatpush.bf16.msra.mxu0 %v801
        %977 = vmatpush.bf16.msra.mxu0 %v797
        %978 = vmatpush.bf16.msra.mxu0 %v793
        %979 = vmatmul.bf16.gmra.mxu0 %v595
        %v980 = vpop.f32.mrf.mxu0
        %v981 = vadd.f32 0.0, %v980
        %v982 = vpop.f32.mrf.mxu0
        %983 = vdwg.mxu0
        %984 = vmatpush.bf16.msra.mxu0 %v853
        %985 = vmatpush.bf16.msra.mxu0 %v849
        %986 = vmatpush.bf16.msra.mxu0 %v845
        %987 = vmatpush.bf16.msra.mxu0 %v841
        %988 = vmatpush.bf16.msra.mxu0 %v837
        %989 = vmatpush.bf16.msra.mxu0 %v833
        %990 = vmatpush.bf16.msra.mxu0 %v829
        %991 = vmatpush.bf16.msra.mxu0 %v825
        %992 = vmatmul.bf16.gmra.mxu0 %v596
        %v993 = vpop.f32.mrf.mxu0
        %v994 = vadd.f32 %v981, %v993
        %v995 = vpop.f32.mrf.mxu0
        %996 = vdwg.mxu0
        %997 = vmatpush.bf16.msra.mxu0 %v822
        %998 = vmatpush.bf16.msra.mxu0 %v818
        %999 = vmatpush.bf16.msra.mxu0 %v814
        %1000 = vmatpush.bf16.msra.mxu0 %v810
        %1001 = vmatpush.bf16.msra.mxu0 %v806
        %1002 = vmatpush.bf16.msra.mxu0 %v802
        %1003 = vmatpush.bf16.msra.mxu0 %v798
        %1004 = vmatpush.bf16.msra.mxu0 %v794
        %1005 = vmatmul.bf16.gmra.mxu0 %v595
        %v1006 = vpop.f32.mrf.mxu0
        %v1007 = vadd.f32 0.0, %v1006
        %v1008 = vpop.f32.mrf.mxu0
        %1009 = vdwg.mxu0
        %1010 = vmatpush.bf16.msra.mxu0 %v854
        %1011 = vmatpush.bf16.msra.mxu0 %v850
        %1012 = vmatpush.bf16.msra.mxu0 %v846
        %1013 = vmatpush.bf16.msra.mxu0 %v842
        %1014 = vmatpush.bf16.msra.mxu0 %v838
        %1015 = vmatpush.bf16.msra.mxu0 %v834
        %1016 = vmatpush.bf16.msra.mxu0 %v830
        %1017 = vmatpush.bf16.msra.mxu0 %v826
        %1018 = vmatmul.bf16.gmra.mxu0 %v596
        %v1019 = vpop.f32.mrf.mxu0
        %v1020 = vadd.f32 %v1007, %v1019
        %v1021 = vpop.f32.mrf.mxu0
        %1022 = vdwg.mxu0
        %v1024 = vunpack.c.l.b16 %v454
        %v1025 = vunpack.c.h.b16 %v454
        %v1026 = vpack.c.b16 %v1024, %v1024
        %v1027 = vpack.c.b16 %v1025, %v1025
        %v1094 = vunpack.c.l.b16 %v463
        %v1095 = vunpack.c.h.b16 %v463
        %v1096 = vunpack.c.l.b16 %v464
        %v1097 = vunpack.c.h.b16 %v464
        %v1098 = vunpack.c.l.b16 %v465
        %v1099 = vunpack.c.h.b16 %v465
        %v1100 = vunpack.c.l.b16 %v466
        %v1101 = vunpack.c.h.b16 %v466
        %v1102 = vunpack.c.l.b16 %v467
        %v1103 = vunpack.c.h.b16 %v467
        %v1104 = vunpack.c.l.b16 %v468
        %v1105 = vunpack.c.h.b16 %v468
        %v1106 = vunpack.c.l.b16 %v469
        %v1107 = vunpack.c.h.b16 %v469
        %v1108 = vunpack.c.l.b16 %v470
        %v1109 = vunpack.c.h.b16 %v470
        %v1110 = vunpack.c.l.b16 %v471
        %v1111 = vunpack.c.h.b16 %v471
        %v1112 = vunpack.c.l.b16 %v472
        %v1113 = vunpack.c.h.b16 %v472
        %v1114 = vunpack.c.l.b16 %v473
        %v1115 = vunpack.c.h.b16 %v473
        %v1116 = vunpack.c.l.b16 %v474
        %v1117 = vunpack.c.h.b16 %v474
        %v1118 = vunpack.c.l.b16 %v475
        %v1119 = vunpack.c.h.b16 %v475
        %v1120 = vunpack.c.l.b16 %v476
        %v1121 = vunpack.c.h.b16 %v476
        %v1122 = vunpack.c.l.b16 %v477
        %v1123 = vunpack.c.h.b16 %v477
        %v1124 = vunpack.c.l.b16 %v478
        %v1125 = vunpack.c.h.b16 %v478
        %v1126 = vunpack.c.l.b16 %v479
        %v1127 = vunpack.c.h.b16 %v479
        %v1128 = vunpack.c.l.b16 %v480
        %v1129 = vunpack.c.h.b16 %v480
        %v1130 = vunpack.c.l.b16 %v481
        %v1131 = vunpack.c.h.b16 %v481
        %v1132 = vunpack.c.l.b16 %v482
        %v1133 = vunpack.c.h.b16 %v482
        %v1134 = vunpack.c.l.b16 %v483
        %v1135 = vunpack.c.h.b16 %v483
        %v1136 = vunpack.c.l.b16 %v484
        %v1137 = vunpack.c.h.b16 %v484
        %v1138 = vunpack.c.l.b16 %v485
        %v1139 = vunpack.c.h.b16 %v485
        %v1140 = vunpack.c.l.b16 %v486
        %v1141 = vunpack.c.h.b16 %v486
        %v1142 = vunpack.c.l.b16 %v487
        %v1143 = vunpack.c.h.b16 %v487
        %v1144 = vunpack.c.l.b16 %v488
        %v1145 = vunpack.c.h.b16 %v488
        %v1146 = vunpack.c.l.b16 %v489
        %v1147 = vunpack.c.h.b16 %v489
        %v1148 = vunpack.c.l.b16 %v490
        %v1149 = vunpack.c.h.b16 %v490
        %v1150 = vunpack.c.l.b16 %v491
        %v1151 = vunpack.c.h.b16 %v491
        %v1152 = vunpack.c.l.b16 %v492
        %v1153 = vunpack.c.h.b16 %v492
        %v1154 = vunpack.c.l.b16 %v493
        %v1155 = vunpack.c.h.b16 %v493
        %v1156 = vunpack.c.l.b16 %v494
        %v1157 = vunpack.c.h.b16 %v494
        %v1158 = vunpack.c.l.b16 %v495
        %v1159 = vunpack.c.h.b16 %v495
        %v1160 = vunpack.c.l.b16 %v496
        %v1161 = vunpack.c.h.b16 %v496
        %v1162 = vunpack.c.l.b16 %v497
        %v1163 = vunpack.c.h.b16 %v497
        %v1164 = vunpack.c.l.b16 %v498
        %v1165 = vunpack.c.h.b16 %v498
        %v1166 = vunpack.c.l.b16 %v499
        %v1167 = vunpack.c.h.b16 %v499
        %v1168 = vunpack.c.l.b16 %v500
        %v1169 = vunpack.c.h.b16 %v500
        %v1170 = vunpack.c.l.b16 %v501
        %v1171 = vunpack.c.h.b16 %v501
        %v1172 = vunpack.c.l.b16 %v502
        %v1173 = vunpack.c.h.b16 %v502
        %v1174 = vunpack.c.l.b16 %v503
        %v1175 = vunpack.c.h.b16 %v503
        %v1176 = vunpack.c.l.b16 %v504
        %v1177 = vunpack.c.h.b16 %v504
        %v1178 = vunpack.c.l.b16 %v505
        %v1179 = vunpack.c.h.b16 %v505
        %v1180 = vunpack.c.l.b16 %v506
        %v1181 = vunpack.c.h.b16 %v506
        %v1182 = vunpack.c.l.b16 %v507
        %v1183 = vunpack.c.h.b16 %v507
        %v1184 = vunpack.c.l.b16 %v508
        %v1185 = vunpack.c.h.b16 %v508
        %v1186 = vunpack.c.l.b16 %v509
        %v1187 = vunpack.c.h.b16 %v509
        %v1188 = vunpack.c.l.b16 %v510
        %v1189 = vunpack.c.h.b16 %v510
        %v1190 = vunpack.c.l.b16 %v511
        %v1191 = vunpack.c.h.b16 %v511
        %v1192 = vunpack.c.l.b16 %v512
        %v1193 = vunpack.c.h.b16 %v512
        %v1194 = vunpack.c.l.b16 %v513
        %v1195 = vunpack.c.h.b16 %v513
        %v1196 = vunpack.c.l.b16 %v514
        %v1197 = vunpack.c.h.b16 %v514
        %v1198 = vunpack.c.l.b16 %v515
        %v1199 = vunpack.c.h.b16 %v515
        %v1200 = vunpack.c.l.b16 %v516
        %v1201 = vunpack.c.h.b16 %v516
        %v1202 = vunpack.c.l.b16 %v517
        %v1203 = vunpack.c.h.b16 %v517
        %v1204 = vunpack.c.l.b16 %v518
        %v1205 = vunpack.c.h.b16 %v518
        %v1206 = vunpack.c.l.b16 %v519
        %v1207 = vunpack.c.h.b16 %v519
        %v1208 = vunpack.c.l.b16 %v520
        %v1209 = vunpack.c.h.b16 %v520
        %v1210 = vunpack.c.l.b16 %v521
        %v1211 = vunpack.c.h.b16 %v521
        %v1212 = vunpack.c.l.b16 %v522
        %v1213 = vunpack.c.h.b16 %v522
        %v1214 = vunpack.c.l.b16 %v523
        %v1215 = vunpack.c.h.b16 %v523
        %v1216 = vunpack.c.l.b16 %v524
        %v1217 = vunpack.c.h.b16 %v524
        %v1218 = vunpack.c.l.b16 %v525
        %v1219 = vunpack.c.h.b16 %v525
        %v1220 = vunpack.c.l.b16 %v526
        %v1221 = vunpack.c.h.b16 %v526
        %v1222 = vpack.c.b16 %v1098, %v1094
        %v1223 = vpack.c.b16 %v1099, %v1095
        %v1224 = vpack.c.b16 %v1100, %v1096
        %v1225 = vpack.c.b16 %v1101, %v1097
        %v1226 = vpack.c.b16 %v1106, %v1102
        %v1227 = vpack.c.b16 %v1107, %v1103
        %v1228 = vpack.c.b16 %v1108, %v1104
        %v1229 = vpack.c.b16 %v1109, %v1105
        %v1230 = vpack.c.b16 %v1114, %v1110
        %v1231 = vpack.c.b16 %v1115, %v1111
        %v1232 = vpack.c.b16 %v1116, %v1112
        %v1233 = vpack.c.b16 %v1117, %v1113
        %v1234 = vpack.c.b16 %v1122, %v1118
        %v1235 = vpack.c.b16 %v1123, %v1119
        %v1236 = vpack.c.b16 %v1124, %v1120
        %v1237 = vpack.c.b16 %v1125, %v1121
        %v1238 = vpack.c.b16 %v1130, %v1126
        %v1239 = vpack.c.b16 %v1131, %v1127
        %v1240 = vpack.c.b16 %v1132, %v1128
        %v1241 = vpack.c.b16 %v1133, %v1129
        %v1242 = vpack.c.b16 %v1138, %v1134
        %v1243 = vpack.c.b16 %v1139, %v1135
        %v1244 = vpack.c.b16 %v1140, %v1136
        %v1245 = vpack.c.b16 %v1141, %v1137
        %v1246 = vpack.c.b16 %v1146, %v1142
        %v1247 = vpack.c.b16 %v1147, %v1143
        %v1248 = vpack.c.b16 %v1148, %v1144
        %v1249 = vpack.c.b16 %v1149, %v1145
        %v1250 = vpack.c.b16 %v1154, %v1150
        %v1251 = vpack.c.b16 %v1155, %v1151
        %v1252 = vpack.c.b16 %v1156, %v1152
        %v1253 = vpack.c.b16 %v1157, %v1153
        %v1254 = vpack.c.b16 %v1162, %v1158
        %v1255 = vpack.c.b16 %v1163, %v1159
        %v1256 = vpack.c.b16 %v1164, %v1160
        %v1257 = vpack.c.b16 %v1165, %v1161
        %v1258 = vpack.c.b16 %v1170, %v1166
        %v1259 = vpack.c.b16 %v1171, %v1167
        %v1260 = vpack.c.b16 %v1172, %v1168
        %v1261 = vpack.c.b16 %v1173, %v1169
        %v1262 = vpack.c.b16 %v1178, %v1174
        %v1263 = vpack.c.b16 %v1179, %v1175
        %v1264 = vpack.c.b16 %v1180, %v1176
        %v1265 = vpack.c.b16 %v1181, %v1177
        %v1266 = vpack.c.b16 %v1186, %v1182
        %v1267 = vpack.c.b16 %v1187, %v1183
        %v1268 = vpack.c.b16 %v1188, %v1184
        %v1269 = vpack.c.b16 %v1189, %v1185
        %v1270 = vpack.c.b16 %v1194, %v1190
        %v1271 = vpack.c.b16 %v1195, %v1191
        %v1272 = vpack.c.b16 %v1196, %v1192
        %v1273 = vpack.c.b16 %v1197, %v1193
        %v1274 = vpack.c.b16 %v1202, %v1198
        %v1275 = vpack.c.b16 %v1203, %v1199
        %v1276 = vpack.c.b16 %v1204, %v1200
        %v1277 = vpack.c.b16 %v1205, %v1201
        %v1278 = vpack.c.b16 %v1210, %v1206
        %v1279 = vpack.c.b16 %v1211, %v1207
        %v1280 = vpack.c.b16 %v1212, %v1208
        %v1281 = vpack.c.b16 %v1213, %v1209
        %v1282 = vpack.c.b16 %v1218, %v1214
        %v1283 = vpack.c.b16 %v1219, %v1215
        %v1284 = vpack.c.b16 %v1220, %v1216
        %v1285 = vpack.c.b16 %v1221, %v1217
        %1350 = vmatpush.bf16.msra.mxu0 %v1250
        %1351 = vmatpush.bf16.msra.mxu0 %v1246
        %1352 = vmatpush.bf16.msra.mxu0 %v1242
        %1353 = vmatpush.bf16.msra.mxu0 %v1238
        %1354 = vmatpush.bf16.msra.mxu0 %v1234
        %1355 = vmatpush.bf16.msra.mxu0 %v1230
        %1356 = vmatpush.bf16.msra.mxu0 %v1226
        %1357 = vmatpush.bf16.msra.mxu0 %v1222
        %1358 = vmatmul.bf16.gmra.mxu0 %v1026
        %v1359 = vpop.f32.mrf.mxu0
        %v1360 = vadd.f32 %v942, %v1359
        %v1361 = vpop.f32.mrf.mxu0
        %1362 = vdwg.mxu0
        %1363 = vmatpush.bf16.msra.mxu0 %v1282
        %1364 = vmatpush.bf16.msra.mxu0 %v1278
        %1365 = vmatpush.bf16.msra.mxu0 %v1274
        %1366 = vmatpush.bf16.msra.mxu0 %v1270
        %1367 = vmatpush.bf16.msra.mxu0 %v1266
        %1368 = vmatpush.bf16.msra.mxu0 %v1262
        %1369 = vmatpush.bf16.msra.mxu0 %v1258
        %1370 = vmatpush.bf16.msra.mxu0 %v1254
        %1371 = vmatmul.bf16.gmra.mxu0 %v1027
        %v1372 = vpop.f32.mrf.mxu0
        %v1373 = vadd.f32 %v1360, %v1372
        %v1374 = vpop.f32.mrf.mxu0
        %1375 = vdwg.mxu0
        %1376 = vmatpush.bf16.msra.mxu0 %v1251
        %1377 = vmatpush.bf16.msra.mxu0 %v1247
        %1378 = vmatpush.bf16.msra.mxu0 %v1243
        %1379 = vmatpush.bf16.msra.mxu0 %v1239
        %1380 = vmatpush.bf16.msra.mxu0 %v1235
        %1381 = vmatpush.bf16.msra.mxu0 %v1231
        %1382 = vmatpush.bf16.msra.mxu0 %v1227
        %1383 = vmatpush.bf16.msra.mxu0 %v1223
        %1384 = vmatmul.bf16.gmra.mxu0 %v1026
        %v1385 = vpop.f32.mrf.mxu0
        %v1386 = vadd.f32 %v968, %v1385
        %v1387 = vpop.f32.mrf.mxu0
        %1388 = vdwg.mxu0
        %1389 = vmatpush.bf16.msra.mxu0 %v1283
        %1390 = vmatpush.bf16.msra.mxu0 %v1279
        %1391 = vmatpush.bf16.msra.mxu0 %v1275
        %1392 = vmatpush.bf16.msra.mxu0 %v1271
        %1393 = vmatpush.bf16.msra.mxu0 %v1267
        %1394 = vmatpush.bf16.msra.mxu0 %v1263
        %1395 = vmatpush.bf16.msra.mxu0 %v1259
        %1396 = vmatpush.bf16.msra.mxu0 %v1255
        %1397 = vmatmul.bf16.gmra.mxu0 %v1027
        %v1398 = vpop.f32.mrf.mxu0
        %v1399 = vadd.f32 %v1386, %v1398
        %v1400 = vpop.f32.mrf.mxu0
        %1401 = vdwg.mxu0
        %1402 = vmatpush.bf16.msra.mxu0 %v1252
        %1403 = vmatpush.bf16.msra.mxu0 %v1248
        %1404 = vmatpush.bf16.msra.mxu0 %v1244
        %1405 = vmatpush.bf16.msra.mxu0 %v1240
        %1406 = vmatpush.bf16.msra.mxu0 %v1236
        %1407 = vmatpush.bf16.msra.mxu0 %v1232
        %1408 = vmatpush.bf16.msra.mxu0 %v1228
        %1409 = vmatpush.bf16.msra.mxu0 %v1224
        %1410 = vmatmul.bf16.gmra.mxu0 %v1026
        %v1411 = vpop.f32.mrf.mxu0
        %v1412 = vadd.f32 %v994, %v1411
        %v1413 = vpop.f32.mrf.mxu0
        %1414 = vdwg.mxu0
        %1415 = vmatpush.bf16.msra.mxu0 %v1284
        %1416 = vmatpush.bf16.msra.mxu0 %v1280
        %1417 = vmatpush.bf16.msra.mxu0 %v1276
        %1418 = vmatpush.bf16.msra.mxu0 %v1272
        %1419 = vmatpush.bf16.msra.mxu0 %v1268
        %1420 = vmatpush.bf16.msra.mxu0 %v1264
        %1421 = vmatpush.bf16.msra.mxu0 %v1260
        %1422 = vmatpush.bf16.msra.mxu0 %v1256
        %1423 = vmatmul.bf16.gmra.mxu0 %v1027
        %v1424 = vpop.f32.mrf.mxu0
        %v1425 = vadd.f32 %v1412, %v1424
        %v1426 = vpop.f32.mrf.mxu0
        %1427 = vdwg.mxu0
        %1428 = vmatpush.bf16.msra.mxu0 %v1253
        %1429 = vmatpush.bf16.msra.mxu0 %v1249
        %1430 = vmatpush.bf16.msra.mxu0 %v1245
        %1431 = vmatpush.bf16.msra.mxu0 %v1241
        %1432 = vmatpush.bf16.msra.mxu0 %v1237
        %1433 = vmatpush.bf16.msra.mxu0 %v1233
        %1434 = vmatpush.bf16.msra.mxu0 %v1229
        %1435 = vmatpush.bf16.msra.mxu0 %v1225
        %1436 = vmatmul.bf16.gmra.mxu0 %v1026
        %v1437 = vpop.f32.mrf.mxu0
        %v1438 = vadd.f32 %v1020, %v1437
        %v1439 = vpop.f32.mrf.mxu0
        %1440 = vdwg.mxu0
        %1441 = vmatpush.bf16.msra.mxu0 %v1285
        %1442 = vmatpush.bf16.msra.mxu0 %v1281
        %1443 = vmatpush.bf16.msra.mxu0 %v1277
        %1444 = vmatpush.bf16.msra.mxu0 %v1273
        %1445 = vmatpush.bf16.msra.mxu0 %v1269
        %1446 = vmatpush.bf16.msra.mxu0 %v1265
        %1447 = vmatpush.bf16.msra.mxu0 %v1261
        %1448 = vmatpush.bf16.msra.mxu0 %v1257
        %1449 = vmatmul.bf16.gmra.mxu0 %v1027
        %v1450 = vpop.f32.mrf.mxu0
        %v1451 = vadd.f32 %v1438, %v1450
        %v1452 = vpop.f32.mrf.mxu0
        %1453 = vdwg.mxu0
        %s1454 = scalar_lea.vmem [#allocation2], 1024
        %v1455 = vld [vmem:[%s1454] sm:$0xff]
        %v1456 = vld [vmem:[%s1454 + $0x8] sm:$0xff]
        %v1457 = vld [vmem:[%s1454 + $0x10] sm:$0xff]
        %v1458 = vld [vmem:[%s1454 + $0x18] sm:$0xff]
        %v1459 = vld [vmem:[%s1454 + $0x20] sm:$0xff]
        %v1460 = vld [vmem:[%s1454 + $0x28] sm:$0xff]
        %v1461 = vld [vmem:[%s1454 + $0x30] sm:$0xff]
        %v1462 = vld [vmem:[%s1454 + $0x38] sm:$0xff]
        %v1463 = vld [vmem:[%s1454 + $0x40] sm:$0xff]
        %v1464 = vld [vmem:[%s1454 + $0x48] sm:$0xff]
        %v1465 = vld [vmem:[%s1454 + $0x50] sm:$0xff]
        %v1466 = vld [vmem:[%s1454 + $0x58] sm:$0xff]
        %v1467 = vld [vmem:[%s1454 + $0x60] sm:$0xff]
        %v1468 = vld [vmem:[%s1454 + $0x68] sm:$0xff]
        %v1469 = vld [vmem:[%s1454 + $0x70] sm:$0xff]
        %v1470 = vld [vmem:[%s1454 + $0x78] sm:$0xff]
        %v1471 = vld [vmem:[%s1454 + $0x80] sm:$0xff]
        %v1472 = vld [vmem:[%s1454 + $0x88] sm:$0xff]
        %v1473 = vld [vmem:[%s1454 + $0x90] sm:$0xff]
        %v1474 = vld [vmem:[%s1454 + $0x98] sm:$0xff]
        %v1475 = vld [vmem:[%s1454 + $0xa0] sm:$0xff]
        %v1476 = vld [vmem:[%s1454 + $0xa8] sm:$0xff]
        %v1477 = vld [vmem:[%s1454 + $0xb0] sm:$0xff]
        %v1478 = vld [vmem:[%s1454 + $0xb8] sm:$0xff]
        %v1479 = vld [vmem:[%s1454 + $0xc0] sm:$0xff]
        %v1480 = vld [vmem:[%s1454 + $0xc8] sm:$0xff]
        %v1481 = vld [vmem:[%s1454 + $0xd0] sm:$0xff]
        %v1482 = vld [vmem:[%s1454 + $0xd8] sm:$0xff]
        %v1483 = vld [vmem:[%s1454 + $0xe0] sm:$0xff]
        %v1484 = vld [vmem:[%s1454 + $0xe8] sm:$0xff]
        %v1485 = vld [vmem:[%s1454 + $0xf0] sm:$0xff]
        %v1486 = vld [vmem:[%s1454 + $0xf8] sm:$0xff]
        %v1487 = vld [vmem:[%s1454 + $0x100] sm:$0xff]
        %v1488 = vld [vmem:[%s1454 + $0x108] sm:$0xff]
        %v1489 = vld [vmem:[%s1454 + $0x110] sm:$0xff]
        %v1490 = vld [vmem:[%s1454 + $0x118] sm:$0xff]
        %v1491 = vld [vmem:[%s1454 + $0x120] sm:$0xff]
        %v1492 = vld [vmem:[%s1454 + $0x128] sm:$0xff]
        %v1493 = vld [vmem:[%s1454 + $0x130] sm:$0xff]
        %v1494 = vld [vmem:[%s1454 + $0x138] sm:$0xff]
        %v1495 = vld [vmem:[%s1454 + $0x140] sm:$0xff]
        %v1496 = vld [vmem:[%s1454 + $0x148] sm:$0xff]
        %v1497 = vld [vmem:[%s1454 + $0x150] sm:$0xff]
        %v1498 = vld [vmem:[%s1454 + $0x158] sm:$0xff]
        %v1499 = vld [vmem:[%s1454 + $0x160] sm:$0xff]
        %v1500 = vld [vmem:[%s1454 + $0x168] sm:$0xff]
        %v1501 = vld [vmem:[%s1454 + $0x170] sm:$0xff]
        %v1502 = vld [vmem:[%s1454 + $0x178] sm:$0xff]
        %v1503 = vld [vmem:[%s1454 + $0x180] sm:$0xff]
        %v1504 = vld [vmem:[%s1454 + $0x188] sm:$0xff]
        %v1505 = vld [vmem:[%s1454 + $0x190] sm:$0xff]
        %v1506 = vld [vmem:[%s1454 + $0x198] sm:$0xff]
        %v1507 = vld [vmem:[%s1454 + $0x1a0] sm:$0xff]
        %v1508 = vld [vmem:[%s1454 + $0x1a8] sm:$0xff]
        %v1509 = vld [vmem:[%s1454 + $0x1b0] sm:$0xff]
        %v1510 = vld [vmem:[%s1454 + $0x1b8] sm:$0xff]
        %v1511 = vld [vmem:[%s1454 + $0x1c0] sm:$0xff]
        %v1512 = vld [vmem:[%s1454 + $0x1c8] sm:$0xff]
        %v1513 = vld [vmem:[%s1454 + $0x1d0] sm:$0xff]
        %v1514 = vld [vmem:[%s1454 + $0x1d8] sm:$0xff]
        %v1515 = vld [vmem:[%s1454 + $0x1e0] sm:$0xff]
        %v1516 = vld [vmem:[%s1454 + $0x1e8] sm:$0xff]
        %v1517 = vld [vmem:[%s1454 + $0x1f0] sm:$0xff]
        %v1518 = vld [vmem:[%s1454 + $0x1f8] sm:$0xff]
        %v1520 = vunpack.c.l.b16 %v458
        %v1521 = vunpack.c.h.b16 %v458
        %v1522 = vpack.c.b16 %v1520, %v1520
        %v1523 = vpack.c.b16 %v1521, %v1521
        %v1590 = vunpack.c.l.b16 %v1455
        %v1591 = vunpack.c.h.b16 %v1455
        %v1592 = vunpack.c.l.b16 %v1456
        %v1593 = vunpack.c.h.b16 %v1456
        %v1594 = vunpack.c.l.b16 %v1457
        %v1595 = vunpack.c.h.b16 %v1457
        %v1596 = vunpack.c.l.b16 %v1458
        %v1597 = vunpack.c.h.b16 %v1458
        %v1598 = vunpack.c.l.b16 %v1459
        %v1599 = vunpack.c.h.b16 %v1459
        %v1600 = vunpack.c.l.b16 %v1460
        %v1601 = vunpack.c.h.b16 %v1460
        %v1602 = vunpack.c.l.b16 %v1461
        %v1603 = vunpack.c.h.b16 %v1461
        %v1604 = vunpack.c.l.b16 %v1462
        %v1605 = vunpack.c.h.b16 %v1462
        %v1606 = vunpack.c.l.b16 %v1463
        %v1607 = vunpack.c.h.b16 %v1463
        %v1608 = vunpack.c.l.b16 %v1464
        %v1609 = vunpack.c.h.b16 %v1464
        %v1610 = vunpack.c.l.b16 %v1465
        %v1611 = vunpack.c.h.b16 %v1465
        %v1612 = vunpack.c.l.b16 %v1466
        %v1613 = vunpack.c.h.b16 %v1466
        %v1614 = vunpack.c.l.b16 %v1467
        %v1615 = vunpack.c.h.b16 %v1467
        %v1616 = vunpack.c.l.b16 %v1468
        %v1617 = vunpack.c.h.b16 %v1468
        %v1618 = vunpack.c.l.b16 %v1469
        %v1619 = vunpack.c.h.b16 %v1469
        %v1620 = vunpack.c.l.b16 %v1470
        %v1621 = vunpack.c.h.b16 %v1470
        %v1622 = vunpack.c.l.b16 %v1471
        %v1623 = vunpack.c.h.b16 %v1471
        %v1624 = vunpack.c.l.b16 %v1472
        %v1625 = vunpack.c.h.b16 %v1472
        %v1626 = vunpack.c.l.b16 %v1473
        %v1627 = vunpack.c.h.b16 %v1473
        %v1628 = vunpack.c.l.b16 %v1474
        %v1629 = vunpack.c.h.b16 %v1474
        %v1630 = vunpack.c.l.b16 %v1475
        %v1631 = vunpack.c.h.b16 %v1475
        %v1632 = vunpack.c.l.b16 %v1476
        %v1633 = vunpack.c.h.b16 %v1476
        %v1634 = vunpack.c.l.b16 %v1477
        %v1635 = vunpack.c.h.b16 %v1477
        %v1636 = vunpack.c.l.b16 %v1478
        %v1637 = vunpack.c.h.b16 %v1478
        %v1638 = vunpack.c.l.b16 %v1479
        %v1639 = vunpack.c.h.b16 %v1479
        %v1640 = vunpack.c.l.b16 %v1480
        %v1641 = vunpack.c.h.b16 %v1480
        %v1642 = vunpack.c.l.b16 %v1481
        %v1643 = vunpack.c.h.b16 %v1481
        %v1644 = vunpack.c.l.b16 %v1482
        %v1645 = vunpack.c.h.b16 %v1482
        %v1646 = vunpack.c.l.b16 %v1483
        %v1647 = vunpack.c.h.b16 %v1483
        %v1648 = vunpack.c.l.b16 %v1484
        %v1649 = vunpack.c.h.b16 %v1484
        %v1650 = vunpack.c.l.b16 %v1485
        %v1651 = vunpack.c.h.b16 %v1485
        %v1652 = vunpack.c.l.b16 %v1486
        %v1653 = vunpack.c.h.b16 %v1486
        %v1654 = vunpack.c.l.b16 %v1487
        %v1655 = vunpack.c.h.b16 %v1487
        %v1656 = vunpack.c.l.b16 %v1488
        %v1657 = vunpack.c.h.b16 %v1488
        %v1658 = vunpack.c.l.b16 %v1489
        %v1659 = vunpack.c.h.b16 %v1489
        %v1660 = vunpack.c.l.b16 %v1490
        %v1661 = vunpack.c.h.b16 %v1490
        %v1662 = vunpack.c.l.b16 %v1491
        %v1663 = vunpack.c.h.b16 %v1491
        %v1664 = vunpack.c.l.b16 %v1492
        %v1665 = vunpack.c.h.b16 %v1492
        %v1666 = vunpack.c.l.b16 %v1493
        %v1667 = vunpack.c.h.b16 %v1493
        %v1668 = vunpack.c.l.b16 %v1494
        %v1669 = vunpack.c.h.b16 %v1494
        %v1670 = vunpack.c.l.b16 %v1495
        %v1671 = vunpack.c.h.b16 %v1495
        %v1672 = vunpack.c.l.b16 %v1496
        %v1673 = vunpack.c.h.b16 %v1496
        %v1674 = vunpack.c.l.b16 %v1497
        %v1675 = vunpack.c.h.b16 %v1497
        %v1676 = vunpack.c.l.b16 %v1498
        %v1677 = vunpack.c.h.b16 %v1498
        %v1678 = vunpack.c.l.b16 %v1499
        %v1679 = vunpack.c.h.b16 %v1499
        %v1680 = vunpack.c.l.b16 %v1500
        %v1681 = vunpack.c.h.b16 %v1500
        %v1682 = vunpack.c.l.b16 %v1501
        %v1683 = vunpack.c.h.b16 %v1501
        %v1684 = vunpack.c.l.b16 %v1502
        %v1685 = vunpack.c.h.b16 %v1502
        %v1686 = vunpack.c.l.b16 %v1503
        %v1687 = vunpack.c.h.b16 %v1503
        %v1688 = vunpack.c.l.b16 %v1504
        %v1689 = vunpack.c.h.b16 %v1504
        %v1690 = vunpack.c.l.b16 %v1505
        %v1691 = vunpack.c.h.b16 %v1505
        %v1692 = vunpack.c.l.b16 %v1506
        %v1693 = vunpack.c.h.b16 %v1506
        %v1694 = vunpack.c.l.b16 %v1507
        %v1695 = vunpack.c.h.b16 %v1507
        %v1696 = vunpack.c.l.b16 %v1508
        %v1697 = vunpack.c.h.b16 %v1508
        %v1698 = vunpack.c.l.b16 %v1509
        %v1699 = vunpack.c.h.b16 %v1509
        %v1700 = vunpack.c.l.b16 %v1510
        %v1701 = vunpack.c.h.b16 %v1510
        %v1702 = vunpack.c.l.b16 %v1511
        %v1703 = vunpack.c.h.b16 %v1511
        %v1704 = vunpack.c.l.b16 %v1512
        %v1705 = vunpack.c.h.b16 %v1512
        %v1706 = vunpack.c.l.b16 %v1513
        %v1707 = vunpack.c.h.b16 %v1513
        %v1708 = vunpack.c.l.b16 %v1514
        %v1709 = vunpack.c.h.b16 %v1514
        %v1710 = vunpack.c.l.b16 %v1515
        %v1711 = vunpack.c.h.b16 %v1515
        %v1712 = vunpack.c.l.b16 %v1516
        %v1713 = vunpack.c.h.b16 %v1516
        %v1714 = vunpack.c.l.b16 %v1517
        %v1715 = vunpack.c.h.b16 %v1517
        %v1716 = vunpack.c.l.b16 %v1518
        %v1717 = vunpack.c.h.b16 %v1518
        %v1718 = vpack.c.b16 %v1594, %v1590
        %v1719 = vpack.c.b16 %v1595, %v1591
        %v1720 = vpack.c.b16 %v1596, %v1592
        %v1721 = vpack.c.b16 %v1597, %v1593
        %v1722 = vpack.c.b16 %v1602, %v1598
        %v1723 = vpack.c.b16 %v1603, %v1599
        %v1724 = vpack.c.b16 %v1604, %v1600
        %v1725 = vpack.c.b16 %v1605, %v1601
        %v1726 = vpack.c.b16 %v1610, %v1606
        %v1727 = vpack.c.b16 %v1611, %v1607
        %v1728 = vpack.c.b16 %v1612, %v1608
        %v1729 = vpack.c.b16 %v1613, %v1609
        %v1730 = vpack.c.b16 %v1618, %v1614
        %v1731 = vpack.c.b16 %v1619, %v1615
        %v1732 = vpack.c.b16 %v1620, %v1616
        %v1733 = vpack.c.b16 %v1621, %v1617
        %v1734 = vpack.c.b16 %v1626, %v1622
        %v1735 = vpack.c.b16 %v1627, %v1623
        %v1736 = vpack.c.b16 %v1628, %v1624
        %v1737 = vpack.c.b16 %v1629, %v1625
        %v1738 = vpack.c.b16 %v1634, %v1630
        %v1739 = vpack.c.b16 %v1635, %v1631
        %v1740 = vpack.c.b16 %v1636, %v1632
        %v1741 = vpack.c.b16 %v1637, %v1633
        %v1742 = vpack.c.b16 %v1642, %v1638
        %v1743 = vpack.c.b16 %v1643, %v1639
        %v1744 = vpack.c.b16 %v1644, %v1640
        %v1745 = vpack.c.b16 %v1645, %v1641
        %v1746 = vpack.c.b16 %v1650, %v1646
        %v1747 = vpack.c.b16 %v1651, %v1647
        %v1748 = vpack.c.b16 %v1652, %v1648
        %v1749 = vpack.c.b16 %v1653, %v1649
        %v1750 = vpack.c.b16 %v1658, %v1654
        %v1751 = vpack.c.b16 %v1659, %v1655
        %v1752 = vpack.c.b16 %v1660, %v1656
        %v1753 = vpack.c.b16 %v1661, %v1657
        %v1754 = vpack.c.b16 %v1666, %v1662
        %v1755 = vpack.c.b16 %v1667, %v1663
        %v1756 = vpack.c.b16 %v1668, %v1664
        %v1757 = vpack.c.b16 %v1669, %v1665
        %v1758 = vpack.c.b16 %v1674, %v1670
        %v1759 = vpack.c.b16 %v1675, %v1671
        %v1760 = vpack.c.b16 %v1676, %v1672
        %v1761 = vpack.c.b16 %v1677, %v1673
        %v1762 = vpack.c.b16 %v1682, %v1678
        %v1763 = vpack.c.b16 %v1683, %v1679
        %v1764 = vpack.c.b16 %v1684, %v1680
        %v1765 = vpack.c.b16 %v1685, %v1681
        %v1766 = vpack.c.b16 %v1690, %v1686
        %v1767 = vpack.c.b16 %v1691, %v1687
        %v1768 = vpack.c.b16 %v1692, %v1688
        %v1769 = vpack.c.b16 %v1693, %v1689
        %v1770 = vpack.c.b16 %v1698, %v1694
        %v1771 = vpack.c.b16 %v1699, %v1695
        %v1772 = vpack.c.b16 %v1700, %v1696
        %v1773 = vpack.c.b16 %v1701, %v1697
        %v1774 = vpack.c.b16 %v1706, %v1702
        %v1775 = vpack.c.b16 %v1707, %v1703
        %v1776 = vpack.c.b16 %v1708, %v1704
        %v1777 = vpack.c.b16 %v1709, %v1705
        %v1778 = vpack.c.b16 %v1714, %v1710
        %v1779 = vpack.c.b16 %v1715, %v1711
        %v1780 = vpack.c.b16 %v1716, %v1712
        %v1781 = vpack.c.b16 %v1717, %v1713
        %1846 = vmatpush.bf16.msra.mxu0 %v1746
        %1847 = vmatpush.bf16.msra.mxu0 %v1742
        %1848 = vmatpush.bf16.msra.mxu0 %v1738
        %1849 = vmatpush.bf16.msra.mxu0 %v1734
        %1850 = vmatpush.bf16.msra.mxu0 %v1730
        %1851 = vmatpush.bf16.msra.mxu0 %v1726
        %1852 = vmatpush.bf16.msra.mxu0 %v1722
        %1853 = vmatpush.bf16.msra.mxu0 %v1718
        %1854 = vmatmul.bf16.gmra.mxu0 %v1522
        %v1855 = vpop.f32.mrf.mxu0
        %v1856 = vadd.f32 0.0, %v1855
        %v1857 = vpop.f32.mrf.mxu0
        %1858 = vdwg.mxu0
        %1859 = vmatpush.bf16.msra.mxu0 %v1778
        %1860 = vmatpush.bf16.msra.mxu0 %v1774
        %1861 = vmatpush.bf16.msra.mxu0 %v1770
        %1862 = vmatpush.bf16.msra.mxu0 %v1766
        %1863 = vmatpush.bf16.msra.mxu0 %v1762
        %1864 = vmatpush.bf16.msra.mxu0 %v1758
        %1865 = vmatpush.bf16.msra.mxu0 %v1754
        %1866 = vmatpush.bf16.msra.mxu0 %v1750
        %1867 = vmatmul.bf16.gmra.mxu0 %v1523
        %v1868 = vpop.f32.mrf.mxu0
        %v1869 = vadd.f32 %v1856, %v1868
        %v1870 = vpop.f32.mrf.mxu0
        %1871 = vdwg.mxu0
        %1872 = vmatpush.bf16.msra.mxu0 %v1747
        %1873 = vmatpush.bf16.msra.mxu0 %v1743
        %1874 = vmatpush.bf16.msra.mxu0 %v1739
        %1875 = vmatpush.bf16.msra.mxu0 %v1735
        %1876 = vmatpush.bf16.msra.mxu0 %v1731
        %1877 = vmatpush.bf16.msra.mxu0 %v1727
        %1878 = vmatpush.bf16.msra.mxu0 %v1723
        %1879 = vmatpush.bf16.msra.mxu0 %v1719
        %1880 = vmatmul.bf16.gmra.mxu0 %v1522
        %v1881 = vpop.f32.mrf.mxu0
        %v1882 = vadd.f32 0.0, %v1881
        %v1883 = vpop.f32.mrf.mxu0
        %1884 = vdwg.mxu0
        %1885 = vmatpush.bf16.msra.mxu0 %v1779
        %1886 = vmatpush.bf16.msra.mxu0 %v1775
        %1887 = vmatpush.bf16.msra.mxu0 %v1771
        %1888 = vmatpush.bf16.msra.mxu0 %v1767
        %1889 = vmatpush.bf16.msra.mxu0 %v1763
        %1890 = vmatpush.bf16.msra.mxu0 %v1759
        %1891 = vmatpush.bf16.msra.mxu0 %v1755
        %1892 = vmatpush.bf16.msra.mxu0 %v1751
        %1893 = vmatmul.bf16.gmra.mxu0 %v1523
        %v1894 = vpop.f32.mrf.mxu0
        %v1895 = vadd.f32 %v1882, %v1894
        %v1896 = vpop.f32.mrf.mxu0
        %1897 = vdwg.mxu0
        %1898 = vmatpush.bf16.msra.mxu0 %v1748
        %1899 = vmatpush.bf16.msra.mxu0 %v1744
        %1900 = vmatpush.bf16.msra.mxu0 %v1740
        %1901 = vmatpush.bf16.msra.mxu0 %v1736
        %1902 = vmatpush.bf16.msra.mxu0 %v1732
        %1903 = vmatpush.bf16.msra.mxu0 %v1728
        %1904 = vmatpush.bf16.msra.mxu0 %v1724
        %1905 = vmatpush.bf16.msra.mxu0 %v1720
        %1906 = vmatmul.bf16.gmra.mxu0 %v1522
        %v1907 = vpop.f32.mrf.mxu0
        %v1908 = vadd.f32 0.0, %v1907
        %v1909 = vpop.f32.mrf.mxu0
        %1910 = vdwg.mxu0
        %1911 = vmatpush.bf16.msra.mxu0 %v1780
        %1912 = vmatpush.bf16.msra.mxu0 %v1776
        %1913 = vmatpush.bf16.msra.mxu0 %v1772
        %1914 = vmatpush.bf16.msra.mxu0 %v1768
        %1915 = vmatpush.bf16.msra.mxu0 %v1764
        %1916 = vmatpush.bf16.msra.mxu0 %v1760
        %1917 = vmatpush.bf16.msra.mxu0 %v1756
        %1918 = vmatpush.bf16.msra.mxu0 %v1752
        %1919 = vmatmul.bf16.gmra.mxu0 %v1523
        %v1920 = vpop.f32.mrf.mxu0
        %v1921 = vadd.f32 %v1908, %v1920
        %v1922 = vpop.f32.mrf.mxu0
        %1923 = vdwg.mxu0
        %1924 = vmatpush.bf16.msra.mxu0 %v1749
        %1925 = vmatpush.bf16.msra.mxu0 %v1745
        %1926 = vmatpush.bf16.msra.mxu0 %v1741
        %1927 = vmatpush.bf16.msra.mxu0 %v1737
        %1928 = vmatpush.bf16.msra.mxu0 %v1733
        %1929 = vmatpush.bf16.msra.mxu0 %v1729
        %1930 = vmatpush.bf16.msra.mxu0 %v1725
        %1931 = vmatpush.bf16.msra.mxu0 %v1721
        %1932 = vmatmul.bf16.gmra.mxu0 %v1522
        %v1933 = vpop.f32.mrf.mxu0
        %v1934 = vadd.f32 0.0, %v1933
        %v1935 = vpop.f32.mrf.mxu0
        %1936 = vdwg.mxu0
        %1937 = vmatpush.bf16.msra.mxu0 %v1781
        %1938 = vmatpush.bf16.msra.mxu0 %v1777
        %1939 = vmatpush.bf16.msra.mxu0 %v1773
        %1940 = vmatpush.bf16.msra.mxu0 %v1769
        %1941 = vmatpush.bf16.msra.mxu0 %v1765
        %1942 = vmatpush.bf16.msra.mxu0 %v1761
        %1943 = vmatpush.bf16.msra.mxu0 %v1757
        %1944 = vmatpush.bf16.msra.mxu0 %v1753
        %1945 = vmatmul.bf16.gmra.mxu0 %v1523
        %v1946 = vpop.f32.mrf.mxu0
        %v1947 = vadd.f32 %v1934, %v1946
        %v1948 = vpop.f32.mrf.mxu0
        %1949 = vdwg.mxu0
        %v1950 = vadd.f32 %v1373, %v1869
        %v1951 = vadd.f32 %v1399, %v1895
        %v1952 = vadd.f32 %v1425, %v1921
        %v1953 = vadd.f32 %v1451, %v1947
        %s1954 = scalar_lea.vmem [#allocation2], 1536
        %v1955 = vld [vmem:[%s1954] sm:$0xff]
        %v1956 = vld [vmem:[%s1954 + $0x8] sm:$0xff]
        %v1957 = vld [vmem:[%s1954 + $0x10] sm:$0xff]
        %v1958 = vld [vmem:[%s1954 + $0x18] sm:$0xff]
        %v1959 = vld [vmem:[%s1954 + $0x20] sm:$0xff]
        %v1960 = vld [vmem:[%s1954 + $0x28] sm:$0xff]
        %v1961 = vld [vmem:[%s1954 + $0x30] sm:$0xff]
        %v1962 = vld [vmem:[%s1954 + $0x38] sm:$0xff]
        %v1963 = vld [vmem:[%s1954 + $0x40] sm:$0xff]
        %v1964 = vld [vmem:[%s1954 + $0x48] sm:$0xff]
        %v1965 = vld [vmem:[%s1954 + $0x50] sm:$0xff]
        %v1966 = vld [vmem:[%s1954 + $0x58] sm:$0xff]
        %v1967 = vld [vmem:[%s1954 + $0x60] sm:$0xff]
        %v1968 = vld [vmem:[%s1954 + $0x68] sm:$0xff]
        %v1969 = vld [vmem:[%s1954 + $0x70] sm:$0xff]
        %v1970 = vld [vmem:[%s1954 + $0x78] sm:$0xff]
        %v1971 = vld [vmem:[%s1954 + $0x80] sm:$0xff]
        %v1972 = vld [vmem:[%s1954 + $0x88] sm:$0xff]
        %v1973 = vld [vmem:[%s1954 + $0x90] sm:$0xff]
        %v1974 = vld [vmem:[%s1954 + $0x98] sm:$0xff]
        %v1975 = vld [vmem:[%s1954 + $0xa0] sm:$0xff]
        %v1976 = vld [vmem:[%s1954 + $0xa8] sm:$0xff]
        %v1977 = vld [vmem:[%s1954 + $0xb0] sm:$0xff]
        %v1978 = vld [vmem:[%s1954 + $0xb8] sm:$0xff]
        %v1979 = vld [vmem:[%s1954 + $0xc0] sm:$0xff]
        %v1980 = vld [vmem:[%s1954 + $0xc8] sm:$0xff]
        %v1981 = vld [vmem:[%s1954 + $0xd0] sm:$0xff]
        %v1982 = vld [vmem:[%s1954 + $0xd8] sm:$0xff]
        %v1983 = vld [vmem:[%s1954 + $0xe0] sm:$0xff]
        %v1984 = vld [vmem:[%s1954 + $0xe8] sm:$0xff]
        %v1985 = vld [vmem:[%s1954 + $0xf0] sm:$0xff]
        %v1986 = vld [vmem:[%s1954 + $0xf8] sm:$0xff]
        %v1987 = vld [vmem:[%s1954 + $0x100] sm:$0xff]
        %v1988 = vld [vmem:[%s1954 + $0x108] sm:$0xff]
        %v1989 = vld [vmem:[%s1954 + $0x110] sm:$0xff]
        %v1990 = vld [vmem:[%s1954 + $0x118] sm:$0xff]
        %v1991 = vld [vmem:[%s1954 + $0x120] sm:$0xff]
        %v1992 = vld [vmem:[%s1954 + $0x128] sm:$0xff]
        %v1993 = vld [vmem:[%s1954 + $0x130] sm:$0xff]
        %v1994 = vld [vmem:[%s1954 + $0x138] sm:$0xff]
        %v1995 = vld [vmem:[%s1954 + $0x140] sm:$0xff]
        %v1996 = vld [vmem:[%s1954 + $0x148] sm:$0xff]
        %v1997 = vld [vmem:[%s1954 + $0x150] sm:$0xff]
        %v1998 = vld [vmem:[%s1954 + $0x158] sm:$0xff]
        %v1999 = vld [vmem:[%s1954 + $0x160] sm:$0xff]
        %v2000 = vld [vmem:[%s1954 + $0x168] sm:$0xff]
        %v2001 = vld [vmem:[%s1954 + $0x170] sm:$0xff]
        %v2002 = vld [vmem:[%s1954 + $0x178] sm:$0xff]
        %v2003 = vld [vmem:[%s1954 + $0x180] sm:$0xff]
        %v2004 = vld [vmem:[%s1954 + $0x188] sm:$0xff]
        %v2005 = vld [vmem:[%s1954 + $0x190] sm:$0xff]
        %v2006 = vld [vmem:[%s1954 + $0x198] sm:$0xff]
        %v2007 = vld [vmem:[%s1954 + $0x1a0] sm:$0xff]
        %v2008 = vld [vmem:[%s1954 + $0x1a8] sm:$0xff]
        %v2009 = vld [vmem:[%s1954 + $0x1b0] sm:$0xff]
        %v2010 = vld [vmem:[%s1954 + $0x1b8] sm:$0xff]
        %v2011 = vld [vmem:[%s1954 + $0x1c0] sm:$0xff]
        %v2012 = vld [vmem:[%s1954 + $0x1c8] sm:$0xff]
        %v2013 = vld [vmem:[%s1954 + $0x1d0] sm:$0xff]
        %v2014 = vld [vmem:[%s1954 + $0x1d8] sm:$0xff]
        %v2015 = vld [vmem:[%s1954 + $0x1e0] sm:$0xff]
        %v2016 = vld [vmem:[%s1954 + $0x1e8] sm:$0xff]
        %v2017 = vld [vmem:[%s1954 + $0x1f0] sm:$0xff]
        %v2018 = vld [vmem:[%s1954 + $0x1f8] sm:$0xff]
        %v2020 = vunpack.c.l.b16 %v460
        %v2021 = vunpack.c.h.b16 %v460
        %v2022 = vpack.c.b16 %v2020, %v2020
        %v2023 = vpack.c.b16 %v2021, %v2021
        %v2090 = vunpack.c.l.b16 %v1955
        %v2091 = vunpack.c.h.b16 %v1955
        %v2092 = vunpack.c.l.b16 %v1956
        %v2093 = vunpack.c.h.b16 %v1956
        %v2094 = vunpack.c.l.b16 %v1957
        %v2095 = vunpack.c.h.b16 %v1957
        %v2096 = vunpack.c.l.b16 %v1958
        %v2097 = vunpack.c.h.b16 %v1958
        %v2098 = vunpack.c.l.b16 %v1959
        %v2099 = vunpack.c.h.b16 %v1959
        %v2100 = vunpack.c.l.b16 %v1960
        %v2101 = vunpack.c.h.b16 %v1960
        %v2102 = vunpack.c.l.b16 %v1961
        %v2103 = vunpack.c.h.b16 %v1961
        %v2104 = vunpack.c.l.b16 %v1962
        %v2105 = vunpack.c.h.b16 %v1962
        %v2106 = vunpack.c.l.b16 %v1963
        %v2107 = vunpack.c.h.b16 %v1963
        %v2108 = vunpack.c.l.b16 %v1964
        %v2109 = vunpack.c.h.b16 %v1964
        %v2110 = vunpack.c.l.b16 %v1965
        %v2111 = vunpack.c.h.b16 %v1965
        %v2112 = vunpack.c.l.b16 %v1966
        %v2113 = vunpack.c.h.b16 %v1966
        %v2114 = vunpack.c.l.b16 %v1967
        %v2115 = vunpack.c.h.b16 %v1967
        %v2116 = vunpack.c.l.b16 %v1968
        %v2117 = vunpack.c.h.b16 %v1968
        %v2118 = vunpack.c.l.b16 %v1969
        %v2119 = vunpack.c.h.b16 %v1969
        %v2120 = vunpack.c.l.b16 %v1970
        %v2121 = vunpack.c.h.b16 %v1970
        %v2122 = vunpack.c.l.b16 %v1971
        %v2123 = vunpack.c.h.b16 %v1971
        %v2124 = vunpack.c.l.b16 %v1972
        %v2125 = vunpack.c.h.b16 %v1972
        %v2126 = vunpack.c.l.b16 %v1973
        %v2127 = vunpack.c.h.b16 %v1973
        %v2128 = vunpack.c.l.b16 %v1974
        %v2129 = vunpack.c.h.b16 %v1974
        %v2130 = vunpack.c.l.b16 %v1975
        %v2131 = vunpack.c.h.b16 %v1975
        %v2132 = vunpack.c.l.b16 %v1976
        %v2133 = vunpack.c.h.b16 %v1976
        %v2134 = vunpack.c.l.b16 %v1977
        %v2135 = vunpack.c.h.b16 %v1977
        %v2136 = vunpack.c.l.b16 %v1978
        %v2137 = vunpack.c.h.b16 %v1978
        %v2138 = vunpack.c.l.b16 %v1979
        %v2139 = vunpack.c.h.b16 %v1979
        %v2140 = vunpack.c.l.b16 %v1980
        %v2141 = vunpack.c.h.b16 %v1980
        %v2142 = vunpack.c.l.b16 %v1981
        %v2143 = vunpack.c.h.b16 %v1981
        %v2144 = vunpack.c.l.b16 %v1982
        %v2145 = vunpack.c.h.b16 %v1982
        %v2146 = vunpack.c.l.b16 %v1983
        %v2147 = vunpack.c.h.b16 %v1983
        %v2148 = vunpack.c.l.b16 %v1984
        %v2149 = vunpack.c.h.b16 %v1984
        %v2150 = vunpack.c.l.b16 %v1985
        %v2151 = vunpack.c.h.b16 %v1985
        %v2152 = vunpack.c.l.b16 %v1986
        %v2153 = vunpack.c.h.b16 %v1986
        %v2154 = vunpack.c.l.b16 %v1987
        %v2155 = vunpack.c.h.b16 %v1987
        %v2156 = vunpack.c.l.b16 %v1988
        %v2157 = vunpack.c.h.b16 %v1988
        %v2158 = vunpack.c.l.b16 %v1989
        %v2159 = vunpack.c.h.b16 %v1989
        %v2160 = vunpack.c.l.b16 %v1990
        %v2161 = vunpack.c.h.b16 %v1990
        %v2162 = vunpack.c.l.b16 %v1991
        %v2163 = vunpack.c.h.b16 %v1991
        %v2164 = vunpack.c.l.b16 %v1992
        %v2165 = vunpack.c.h.b16 %v1992
        %v2166 = vunpack.c.l.b16 %v1993
        %v2167 = vunpack.c.h.b16 %v1993
        %v2168 = vunpack.c.l.b16 %v1994
        %v2169 = vunpack.c.h.b16 %v1994
        %v2170 = vunpack.c.l.b16 %v1995
        %v2171 = vunpack.c.h.b16 %v1995
        %v2172 = vunpack.c.l.b16 %v1996
        %v2173 = vunpack.c.h.b16 %v1996
        %v2174 = vunpack.c.l.b16 %v1997
        %v2175 = vunpack.c.h.b16 %v1997
        %v2176 = vunpack.c.l.b16 %v1998
        %v2177 = vunpack.c.h.b16 %v1998
        %v2178 = vunpack.c.l.b16 %v1999
        %v2179 = vunpack.c.h.b16 %v1999
        %v2180 = vunpack.c.l.b16 %v2000
        %v2181 = vunpack.c.h.b16 %v2000
        %v2182 = vunpack.c.l.b16 %v2001
        %v2183 = vunpack.c.h.b16 %v2001
        %v2184 = vunpack.c.l.b16 %v2002
        %v2185 = vunpack.c.h.b16 %v2002
        %v2186 = vunpack.c.l.b16 %v2003
        %v2187 = vunpack.c.h.b16 %v2003
        %v2188 = vunpack.c.l.b16 %v2004
        %v2189 = vunpack.c.h.b16 %v2004
        %v2190 = vunpack.c.l.b16 %v2005
        %v2191 = vunpack.c.h.b16 %v2005
        %v2192 = vunpack.c.l.b16 %v2006
        %v2193 = vunpack.c.h.b16 %v2006
        %v2194 = vunpack.c.l.b16 %v2007
        %v2195 = vunpack.c.h.b16 %v2007
        %v2196 = vunpack.c.l.b16 %v2008
        %v2197 = vunpack.c.h.b16 %v2008
        %v2198 = vunpack.c.l.b16 %v2009
        %v2199 = vunpack.c.h.b16 %v2009
        %v2200 = vunpack.c.l.b16 %v2010
        %v2201 = vunpack.c.h.b16 %v2010
        %v2202 = vunpack.c.l.b16 %v2011
        %v2203 = vunpack.c.h.b16 %v2011
        %v2204 = vunpack.c.l.b16 %v2012
        %v2205 = vunpack.c.h.b16 %v2012
        %v2206 = vunpack.c.l.b16 %v2013
        %v2207 = vunpack.c.h.b16 %v2013
        %v2208 = vunpack.c.l.b16 %v2014
        %v2209 = vunpack.c.h.b16 %v2014
        %v2210 = vunpack.c.l.b16 %v2015
        %v2211 = vunpack.c.h.b16 %v2015
        %v2212 = vunpack.c.l.b16 %v2016
        %v2213 = vunpack.c.h.b16 %v2016
        %v2214 = vunpack.c.l.b16 %v2017
        %v2215 = vunpack.c.h.b16 %v2017
        %v2216 = vunpack.c.l.b16 %v2018
        %v2217 = vunpack.c.h.b16 %v2018
        %v2218 = vpack.c.b16 %v2094, %v2090
        %v2219 = vpack.c.b16 %v2095, %v2091
        %v2220 = vpack.c.b16 %v2096, %v2092
        %v2221 = vpack.c.b16 %v2097, %v2093
        %v2222 = vpack.c.b16 %v2102, %v2098
        %v2223 = vpack.c.b16 %v2103, %v2099
        %v2224 = vpack.c.b16 %v2104, %v2100
        %v2225 = vpack.c.b16 %v2105, %v2101
        %v2226 = vpack.c.b16 %v2110, %v2106
        %v2227 = vpack.c.b16 %v2111, %v2107
        %v2228 = vpack.c.b16 %v2112, %v2108
        %v2229 = vpack.c.b16 %v2113, %v2109
        %v2230 = vpack.c.b16 %v2118, %v2114
        %v2231 = vpack.c.b16 %v2119, %v2115
        %v2232 = vpack.c.b16 %v2120, %v2116
        %v2233 = vpack.c.b16 %v2121, %v2117
        %v2234 = vpack.c.b16 %v2126, %v2122
        %v2235 = vpack.c.b16 %v2127, %v2123
        %v2236 = vpack.c.b16 %v2128, %v2124
        %v2237 = vpack.c.b16 %v2129, %v2125
        %v2238 = vpack.c.b16 %v2134, %v2130
        %v2239 = vpack.c.b16 %v2135, %v2131
        %v2240 = vpack.c.b16 %v2136, %v2132
        %v2241 = vpack.c.b16 %v2137, %v2133
        %v2242 = vpack.c.b16 %v2142, %v2138
        %v2243 = vpack.c.b16 %v2143, %v2139
        %v2244 = vpack.c.b16 %v2144, %v2140
        %v2245 = vpack.c.b16 %v2145, %v2141
        %v2246 = vpack.c.b16 %v2150, %v2146
        %v2247 = vpack.c.b16 %v2151, %v2147
        %v2248 = vpack.c.b16 %v2152, %v2148
        %v2249 = vpack.c.b16 %v2153, %v2149
        %v2250 = vpack.c.b16 %v2158, %v2154
        %v2251 = vpack.c.b16 %v2159, %v2155
        %v2252 = vpack.c.b16 %v2160, %v2156
        %v2253 = vpack.c.b16 %v2161, %v2157
        %v2254 = vpack.c.b16 %v2166, %v2162
        %v2255 = vpack.c.b16 %v2167, %v2163
        %v2256 = vpack.c.b16 %v2168, %v2164
        %v2257 = vpack.c.b16 %v2169, %v2165
        %v2258 = vpack.c.b16 %v2174, %v2170
        %v2259 = vpack.c.b16 %v2175, %v2171
        %v2260 = vpack.c.b16 %v2176, %v2172
        %v2261 = vpack.c.b16 %v2177, %v2173
        %v2262 = vpack.c.b16 %v2182, %v2178
        %v2263 = vpack.c.b16 %v2183, %v2179
        %v2264 = vpack.c.b16 %v2184, %v2180
        %v2265 = vpack.c.b16 %v2185, %v2181
        %v2266 = vpack.c.b16 %v2190, %v2186
        %v2267 = vpack.c.b16 %v2191, %v2187
        %v2268 = vpack.c.b16 %v2192, %v2188
        %v2269 = vpack.c.b16 %v2193, %v2189
        %v2270 = vpack.c.b16 %v2198, %v2194
        %v2271 = vpack.c.b16 %v2199, %v2195
        %v2272 = vpack.c.b16 %v2200, %v2196
        %v2273 = vpack.c.b16 %v2201, %v2197
        %v2274 = vpack.c.b16 %v2206, %v2202
        %v2275 = vpack.c.b16 %v2207, %v2203
        %v2276 = vpack.c.b16 %v2208, %v2204
        %v2277 = vpack.c.b16 %v2209, %v2205
        %v2278 = vpack.c.b16 %v2214, %v2210
        %v2279 = vpack.c.b16 %v2215, %v2211
        %v2280 = vpack.c.b16 %v2216, %v2212
        %v2281 = vpack.c.b16 %v2217, %v2213
        %2346 = vmatpush.bf16.msra.mxu0 %v2246
        %2347 = vmatpush.bf16.msra.mxu0 %v2242
        %2348 = vmatpush.bf16.msra.mxu0 %v2238
        %2349 = vmatpush.bf16.msra.mxu0 %v2234
        %2350 = vmatpush.bf16.msra.mxu0 %v2230
        %2351 = vmatpush.bf16.msra.mxu0 %v2226
        %2352 = vmatpush.bf16.msra.mxu0 %v2222
        %2353 = vmatpush.bf16.msra.mxu0 %v2218
        %2354 = vmatmul.bf16.gmra.mxu0 %v2022
        %v2355 = vpop.f32.mrf.mxu0
        %v2356 = vadd.f32 0.0, %v2355
        %v2357 = vpop.f32.mrf.mxu0
        %2358 = vdwg.mxu0
        %2359 = vmatpush.bf16.msra.mxu0 %v2278
        %2360 = vmatpush.bf16.msra.mxu0 %v2274
        %2361 = vmatpush.bf16.msra.mxu0 %v2270
        %2362 = vmatpush.bf16.msra.mxu0 %v2266
        %2363 = vmatpush.bf16.msra.mxu0 %v2262
        %2364 = vmatpush.bf16.msra.mxu0 %v2258
        %2365 = vmatpush.bf16.msra.mxu0 %v2254
        %2366 = vmatpush.bf16.msra.mxu0 %v2250
        %2367 = vmatmul.bf16.gmra.mxu0 %v2023
        %v2368 = vpop.f32.mrf.mxu0
        %v2369 = vadd.f32 %v2356, %v2368
        %v2370 = vpop.f32.mrf.mxu0
        %2371 = vdwg.mxu0
        %2372 = vmatpush.bf16.msra.mxu0 %v2247
        %2373 = vmatpush.bf16.msra.mxu0 %v2243
        %2374 = vmatpush.bf16.msra.mxu0 %v2239
        %2375 = vmatpush.bf16.msra.mxu0 %v2235
        %2376 = vmatpush.bf16.msra.mxu0 %v2231
        %2377 = vmatpush.bf16.msra.mxu0 %v2227
        %2378 = vmatpush.bf16.msra.mxu0 %v2223
        %2379 = vmatpush.bf16.msra.mxu0 %v2219
        %2380 = vmatmul.bf16.gmra.mxu0 %v2022
        %v2381 = vpop.f32.mrf.mxu0
        %v2382 = vadd.f32 0.0, %v2381
        %v2383 = vpop.f32.mrf.mxu0
        %2384 = vdwg.mxu0
        %2385 = vmatpush.bf16.msra.mxu0 %v2279
        %2386 = vmatpush.bf16.msra.mxu0 %v2275
        %2387 = vmatpush.bf16.msra.mxu0 %v2271
        %2388 = vmatpush.bf16.msra.mxu0 %v2267
        %2389 = vmatpush.bf16.msra.mxu0 %v2263
        %2390 = vmatpush.bf16.msra.mxu0 %v2259
        %2391 = vmatpush.bf16.msra.mxu0 %v2255
        %2392 = vmatpush.bf16.msra.mxu0 %v2251
        %2393 = vmatmul.bf16.gmra.mxu0 %v2023
        %v2394 = vpop.f32.mrf.mxu0
        %v2395 = vadd.f32 %v2382, %v2394
        %v2396 = vpop.f32.mrf.mxu0
        %2397 = vdwg.mxu0
        %2398 = vmatpush.bf16.msra.mxu0 %v2248
        %2399 = vmatpush.bf16.msra.mxu0 %v2244
        %2400 = vmatpush.bf16.msra.mxu0 %v2240
        %2401 = vmatpush.bf16.msra.mxu0 %v2236
        %2402 = vmatpush.bf16.msra.mxu0 %v2232
        %2403 = vmatpush.bf16.msra.mxu0 %v2228
        %2404 = vmatpush.bf16.msra.mxu0 %v2224
        %2405 = vmatpush.bf16.msra.mxu0 %v2220
        %2406 = vmatmul.bf16.gmra.mxu0 %v2022
        %v2407 = vpop.f32.mrf.mxu0
        %v2408 = vadd.f32 0.0, %v2407
        %v2409 = vpop.f32.mrf.mxu0
        %2410 = vdwg.mxu0
        %2411 = vmatpush.bf16.msra.mxu0 %v2280
        %2412 = vmatpush.bf16.msra.mxu0 %v2276
        %2413 = vmatpush.bf16.msra.mxu0 %v2272
        %2414 = vmatpush.bf16.msra.mxu0 %v2268
        %2415 = vmatpush.bf16.msra.mxu0 %v2264
        %2416 = vmatpush.bf16.msra.mxu0 %v2260
        %2417 = vmatpush.bf16.msra.mxu0 %v2256
        %2418 = vmatpush.bf16.msra.mxu0 %v2252
        %2419 = vmatmul.bf16.gmra.mxu0 %v2023
        %v2420 = vpop.f32.mrf.mxu0
        %v2421 = vadd.f32 %v2408, %v2420
        %v2422 = vpop.f32.mrf.mxu0
        %2423 = vdwg.mxu0
        %2424 = vmatpush.bf16.msra.mxu0 %v2249
        %2425 = vmatpush.bf16.msra.mxu0 %v2245
        %2426 = vmatpush.bf16.msra.mxu0 %v2241
        %2427 = vmatpush.bf16.msra.mxu0 %v2237
        %2428 = vmatpush.bf16.msra.mxu0 %v2233
        %2429 = vmatpush.bf16.msra.mxu0 %v2229
        %2430 = vmatpush.bf16.msra.mxu0 %v2225
        %2431 = vmatpush.bf16.msra.mxu0 %v2221
        %2432 = vmatmul.bf16.gmra.mxu0 %v2022
        %v2433 = vpop.f32.mrf.mxu0
        %v2434 = vadd.f32 0.0, %v2433
        %v2435 = vpop.f32.mrf.mxu0
        %2436 = vdwg.mxu0
        %2437 = vmatpush.bf16.msra.mxu0 %v2281
        %2438 = vmatpush.bf16.msra.mxu0 %v2277
        %2439 = vmatpush.bf16.msra.mxu0 %v2273
        %2440 = vmatpush.bf16.msra.mxu0 %v2269
        %2441 = vmatpush.bf16.msra.mxu0 %v2265
        %2442 = vmatpush.bf16.msra.mxu0 %v2261
        %2443 = vmatpush.bf16.msra.mxu0 %v2257
        %2444 = vmatpush.bf16.msra.mxu0 %v2253
        %2445 = vmatmul.bf16.gmra.mxu0 %v2023
        %v2446 = vpop.f32.mrf.mxu0
        %v2447 = vadd.f32 %v2434, %v2446
        %v2448 = vpop.f32.mrf.mxu0
        %2449 = vdwg.mxu0
        %v2450 = vadd.f32 %v1950, %v2369
        %v2451 = vadd.f32 %v1951, %v2395
        %v2452 = vadd.f32 %v1952, %v2421
        %v2453 = vadd.f32 %v1953, %v2447
        %s2454 = scalar_lea.vmem [#allocation2], 2048
        %v2455 = vld [vmem:[%s2454] sm:$0xff]
        %v2456 = vld [vmem:[%s2454 + $0x8] sm:$0xff]
        %v2457 = vld [vmem:[%s2454 + $0x10] sm:$0xff]
        %v2458 = vld [vmem:[%s2454 + $0x18] sm:$0xff]
        %v2459 = vld [vmem:[%s2454 + $0x20] sm:$0xff]
        %v2460 = vld [vmem:[%s2454 + $0x28] sm:$0xff]
        %v2461 = vld [vmem:[%s2454 + $0x30] sm:$0xff]
        %v2462 = vld [vmem:[%s2454 + $0x38] sm:$0xff]
        %v2463 = vld [vmem:[%s2454 + $0x40] sm:$0xff]
        %v2464 = vld [vmem:[%s2454 + $0x48] sm:$0xff]
        %v2465 = vld [vmem:[%s2454 + $0x50] sm:$0xff]
        %v2466 = vld [vmem:[%s2454 + $0x58] sm:$0xff]
        %v2467 = vld [vmem:[%s2454 + $0x60] sm:$0xff]
        %v2468 = vld [vmem:[%s2454 + $0x68] sm:$0xff]
        %v2469 = vld [vmem:[%s2454 + $0x70] sm:$0xff]
        %v2470 = vld [vmem:[%s2454 + $0x78] sm:$0xff]
        %v2471 = vld [vmem:[%s2454 + $0x80] sm:$0xff]
        %v2472 = vld [vmem:[%s2454 + $0x88] sm:$0xff]
        %v2473 = vld [vmem:[%s2454 + $0x90] sm:$0xff]
        %v2474 = vld [vmem:[%s2454 + $0x98] sm:$0xff]
        %v2475 = vld [vmem:[%s2454 + $0xa0] sm:$0xff]
        %v2476 = vld [vmem:[%s2454 + $0xa8] sm:$0xff]
        %v2477 = vld [vmem:[%s2454 + $0xb0] sm:$0xff]
        %v2478 = vld [vmem:[%s2454 + $0xb8] sm:$0xff]
        %v2479 = vld [vmem:[%s2454 + $0xc0] sm:$0xff]
        %v2480 = vld [vmem:[%s2454 + $0xc8] sm:$0xff]
        %v2481 = vld [vmem:[%s2454 + $0xd0] sm:$0xff]
        %v2482 = vld [vmem:[%s2454 + $0xd8] sm:$0xff]
        %v2483 = vld [vmem:[%s2454 + $0xe0] sm:$0xff]
        %v2484 = vld [vmem:[%s2454 + $0xe8] sm:$0xff]
        %v2485 = vld [vmem:[%s2454 + $0xf0] sm:$0xff]
        %v2486 = vld [vmem:[%s2454 + $0xf8] sm:$0xff]
        %v2487 = vld [vmem:[%s2454 + $0x100] sm:$0xff]
        %v2488 = vld [vmem:[%s2454 + $0x108] sm:$0xff]
        %v2489 = vld [vmem:[%s2454 + $0x110] sm:$0xff]
        %v2490 = vld [vmem:[%s2454 + $0x118] sm:$0xff]
        %v2491 = vld [vmem:[%s2454 + $0x120] sm:$0xff]
        %v2492 = vld [vmem:[%s2454 + $0x128] sm:$0xff]
        %v2493 = vld [vmem:[%s2454 + $0x130] sm:$0xff]
        %v2494 = vld [vmem:[%s2454 + $0x138] sm:$0xff]
        %v2495 = vld [vmem:[%s2454 + $0x140] sm:$0xff]
        %v2496 = vld [vmem:[%s2454 + $0x148] sm:$0xff]
        %v2497 = vld [vmem:[%s2454 + $0x150] sm:$0xff]
        %v2498 = vld [vmem:[%s2454 + $0x158] sm:$0xff]
        %v2499 = vld [vmem:[%s2454 + $0x160] sm:$0xff]
        %v2500 = vld [vmem:[%s2454 + $0x168] sm:$0xff]
        %v2501 = vld [vmem:[%s2454 + $0x170] sm:$0xff]
        %v2502 = vld [vmem:[%s2454 + $0x178] sm:$0xff]
        %v2503 = vld [vmem:[%s2454 + $0x180] sm:$0xff]
        %v2504 = vld [vmem:[%s2454 + $0x188] sm:$0xff]
        %v2505 = vld [vmem:[%s2454 + $0x190] sm:$0xff]
        %v2506 = vld [vmem:[%s2454 + $0x198] sm:$0xff]
        %v2507 = vld [vmem:[%s2454 + $0x1a0] sm:$0xff]
        %v2508 = vld [vmem:[%s2454 + $0x1a8] sm:$0xff]
        %v2509 = vld [vmem:[%s2454 + $0x1b0] sm:$0xff]
        %v2510 = vld [vmem:[%s2454 + $0x1b8] sm:$0xff]
        %v2511 = vld [vmem:[%s2454 + $0x1c0] sm:$0xff]
        %v2512 = vld [vmem:[%s2454 + $0x1c8] sm:$0xff]
        %v2513 = vld [vmem:[%s2454 + $0x1d0] sm:$0xff]
        %v2514 = vld [vmem:[%s2454 + $0x1d8] sm:$0xff]
        %v2515 = vld [vmem:[%s2454 + $0x1e0] sm:$0xff]
        %v2516 = vld [vmem:[%s2454 + $0x1e8] sm:$0xff]
        %v2517 = vld [vmem:[%s2454 + $0x1f0] sm:$0xff]
        %v2518 = vld [vmem:[%s2454 + $0x1f8] sm:$0xff]
        %v2520 = vunpack.c.l.b16 %v462
        %v2521 = vunpack.c.h.b16 %v462
        %v2522 = vpack.c.b16 %v2520, %v2520
        %v2523 = vpack.c.b16 %v2521, %v2521
        %v2590 = vunpack.c.l.b16 %v2455
        %v2591 = vunpack.c.h.b16 %v2455
        %v2592 = vunpack.c.l.b16 %v2456
        %v2593 = vunpack.c.h.b16 %v2456
        %v2594 = vunpack.c.l.b16 %v2457
        %v2595 = vunpack.c.h.b16 %v2457
        %v2596 = vunpack.c.l.b16 %v2458
        %v2597 = vunpack.c.h.b16 %v2458
        %v2598 = vunpack.c.l.b16 %v2459
        %v2599 = vunpack.c.h.b16 %v2459
        %v2600 = vunpack.c.l.b16 %v2460
        %v2601 = vunpack.c.h.b16 %v2460
        %v2602 = vunpack.c.l.b16 %v2461
        %v2603 = vunpack.c.h.b16 %v2461
        %v2604 = vunpack.c.l.b16 %v2462
        %v2605 = vunpack.c.h.b16 %v2462
        %v2606 = vunpack.c.l.b16 %v2463
        %v2607 = vunpack.c.h.b16 %v2463
        %v2608 = vunpack.c.l.b16 %v2464
        %v2609 = vunpack.c.h.b16 %v2464
        %v2610 = vunpack.c.l.b16 %v2465
        %v2611 = vunpack.c.h.b16 %v2465
        %v2612 = vunpack.c.l.b16 %v2466
        %v2613 = vunpack.c.h.b16 %v2466
        %v2614 = vunpack.c.l.b16 %v2467
        %v2615 = vunpack.c.h.b16 %v2467
        %v2616 = vunpack.c.l.b16 %v2468
        %v2617 = vunpack.c.h.b16 %v2468
        %v2618 = vunpack.c.l.b16 %v2469
        %v2619 = vunpack.c.h.b16 %v2469
        %v2620 = vunpack.c.l.b16 %v2470
        %v2621 = vunpack.c.h.b16 %v2470
        %v2622 = vunpack.c.l.b16 %v2471
        %v2623 = vunpack.c.h.b16 %v2471
        %v2624 = vunpack.c.l.b16 %v2472
        %v2625 = vunpack.c.h.b16 %v2472
        %v2626 = vunpack.c.l.b16 %v2473
        %v2627 = vunpack.c.h.b16 %v2473
        %v2628 = vunpack.c.l.b16 %v2474
        %v2629 = vunpack.c.h.b16 %v2474
        %v2630 = vunpack.c.l.b16 %v2475
        %v2631 = vunpack.c.h.b16 %v2475
        %v2632 = vunpack.c.l.b16 %v2476
        %v2633 = vunpack.c.h.b16 %v2476
        %v2634 = vunpack.c.l.b16 %v2477
        %v2635 = vunpack.c.h.b16 %v2477
        %v2636 = vunpack.c.l.b16 %v2478
        %v2637 = vunpack.c.h.b16 %v2478
        %v2638 = vunpack.c.l.b16 %v2479
        %v2639 = vunpack.c.h.b16 %v2479
        %v2640 = vunpack.c.l.b16 %v2480
        %v2641 = vunpack.c.h.b16 %v2480
        %v2642 = vunpack.c.l.b16 %v2481
        %v2643 = vunpack.c.h.b16 %v2481
        %v2644 = vunpack.c.l.b16 %v2482
        %v2645 = vunpack.c.h.b16 %v2482
        %v2646 = vunpack.c.l.b16 %v2483
        %v2647 = vunpack.c.h.b16 %v2483
        %v2648 = vunpack.c.l.b16 %v2484
        %v2649 = vunpack.c.h.b16 %v2484
        %v2650 = vunpack.c.l.b16 %v2485
        %v2651 = vunpack.c.h.b16 %v2485
        %v2652 = vunpack.c.l.b16 %v2486
        %v2653 = vunpack.c.h.b16 %v2486
        %v2654 = vunpack.c.l.b16 %v2487
        %v2655 = vunpack.c.h.b16 %v2487
        %v2656 = vunpack.c.l.b16 %v2488
        %v2657 = vunpack.c.h.b16 %v2488
        %v2658 = vunpack.c.l.b16 %v2489
        %v2659 = vunpack.c.h.b16 %v2489
        %v2660 = vunpack.c.l.b16 %v2490
        %v2661 = vunpack.c.h.b16 %v2490
        %v2662 = vunpack.c.l.b16 %v2491
        %v2663 = vunpack.c.h.b16 %v2491
        %v2664 = vunpack.c.l.b16 %v2492
        %v2665 = vunpack.c.h.b16 %v2492
        %v2666 = vunpack.c.l.b16 %v2493
        %v2667 = vunpack.c.h.b16 %v2493
        %v2668 = vunpack.c.l.b16 %v2494
        %v2669 = vunpack.c.h.b16 %v2494
        %v2670 = vunpack.c.l.b16 %v2495
        %v2671 = vunpack.c.h.b16 %v2495
        %v2672 = vunpack.c.l.b16 %v2496
        %v2673 = vunpack.c.h.b16 %v2496
        %v2674 = vunpack.c.l.b16 %v2497
        %v2675 = vunpack.c.h.b16 %v2497
        %v2676 = vunpack.c.l.b16 %v2498
        %v2677 = vunpack.c.h.b16 %v2498
        %v2678 = vunpack.c.l.b16 %v2499
        %v2679 = vunpack.c.h.b16 %v2499
        %v2680 = vunpack.c.l.b16 %v2500
        %v2681 = vunpack.c.h.b16 %v2500
        %v2682 = vunpack.c.l.b16 %v2501
        %v2683 = vunpack.c.h.b16 %v2501
        %v2684 = vunpack.c.l.b16 %v2502
        %v2685 = vunpack.c.h.b16 %v2502
        %v2686 = vunpack.c.l.b16 %v2503
        %v2687 = vunpack.c.h.b16 %v2503
        %v2688 = vunpack.c.l.b16 %v2504
        %v2689 = vunpack.c.h.b16 %v2504
        %v2690 = vunpack.c.l.b16 %v2505
        %v2691 = vunpack.c.h.b16 %v2505
        %v2692 = vunpack.c.l.b16 %v2506
        %v2693 = vunpack.c.h.b16 %v2506
        %v2694 = vunpack.c.l.b16 %v2507
        %v2695 = vunpack.c.h.b16 %v2507
        %v2696 = vunpack.c.l.b16 %v2508
        %v2697 = vunpack.c.h.b16 %v2508
        %v2698 = vunpack.c.l.b16 %v2509
        %v2699 = vunpack.c.h.b16 %v2509
        %v2700 = vunpack.c.l.b16 %v2510
        %v2701 = vunpack.c.h.b16 %v2510
        %v2702 = vunpack.c.l.b16 %v2511
        %v2703 = vunpack.c.h.b16 %v2511
        %v2704 = vunpack.c.l.b16 %v2512
        %v2705 = vunpack.c.h.b16 %v2512
        %v2706 = vunpack.c.l.b16 %v2513
        %v2707 = vunpack.c.h.b16 %v2513
        %v2708 = vunpack.c.l.b16 %v2514
        %v2709 = vunpack.c.h.b16 %v2514
        %v2710 = vunpack.c.l.b16 %v2515
        %v2711 = vunpack.c.h.b16 %v2515
        %v2712 = vunpack.c.l.b16 %v2516
        %v2713 = vunpack.c.h.b16 %v2516
        %v2714 = vunpack.c.l.b16 %v2517
        %v2715 = vunpack.c.h.b16 %v2517
        %v2716 = vunpack.c.l.b16 %v2518
        %v2717 = vunpack.c.h.b16 %v2518
        %v2718 = vpack.c.b16 %v2594, %v2590
        %v2719 = vpack.c.b16 %v2595, %v2591
        %v2720 = vpack.c.b16 %v2596, %v2592
        %v2721 = vpack.c.b16 %v2597, %v2593
        %v2722 = vpack.c.b16 %v2602, %v2598
        %v2723 = vpack.c.b16 %v2603, %v2599
        %v2724 = vpack.c.b16 %v2604, %v2600
        %v2725 = vpack.c.b16 %v2605, %v2601
        %v2726 = vpack.c.b16 %v2610, %v2606
        %v2727 = vpack.c.b16 %v2611, %v2607
        %v2728 = vpack.c.b16 %v2612, %v2608
        %v2729 = vpack.c.b16 %v2613, %v2609
        %v2730 = vpack.c.b16 %v2618, %v2614
        %v2731 = vpack.c.b16 %v2619, %v2615
        %v2732 = vpack.c.b16 %v2620, %v2616
        %v2733 = vpack.c.b16 %v2621, %v2617
        %v2734 = vpack.c.b16 %v2626, %v2622
        %v2735 = vpack.c.b16 %v2627, %v2623
        %v2736 = vpack.c.b16 %v2628, %v2624
        %v2737 = vpack.c.b16 %v2629, %v2625
        %v2738 = vpack.c.b16 %v2634, %v2630
        %v2739 = vpack.c.b16 %v2635, %v2631
        %v2740 = vpack.c.b16 %v2636, %v2632
        %v2741 = vpack.c.b16 %v2637, %v2633
        %v2742 = vpack.c.b16 %v2642, %v2638
        %v2743 = vpack.c.b16 %v2643, %v2639
        %v2744 = vpack.c.b16 %v2644, %v2640
        %v2745 = vpack.c.b16 %v2645, %v2641
        %v2746 = vpack.c.b16 %v2650, %v2646
        %v2747 = vpack.c.b16 %v2651, %v2647
        %v2748 = vpack.c.b16 %v2652, %v2648
        %v2749 = vpack.c.b16 %v2653, %v2649
        %v2750 = vpack.c.b16 %v2658, %v2654
        %v2751 = vpack.c.b16 %v2659, %v2655
        %v2752 = vpack.c.b16 %v2660, %v2656
        %v2753 = vpack.c.b16 %v2661, %v2657
        %v2754 = vpack.c.b16 %v2666, %v2662
        %v2755 = vpack.c.b16 %v2667, %v2663
        %v2756 = vpack.c.b16 %v2668, %v2664
        %v2757 = vpack.c.b16 %v2669, %v2665
        %v2758 = vpack.c.b16 %v2674, %v2670
        %v2759 = vpack.c.b16 %v2675, %v2671
        %v2760 = vpack.c.b16 %v2676, %v2672
        %v2761 = vpack.c.b16 %v2677, %v2673
        %v2762 = vpack.c.b16 %v2682, %v2678
        %v2763 = vpack.c.b16 %v2683, %v2679
        %v2764 = vpack.c.b16 %v2684, %v2680
        %v2765 = vpack.c.b16 %v2685, %v2681
        %v2766 = vpack.c.b16 %v2690, %v2686
        %v2767 = vpack.c.b16 %v2691, %v2687
        %v2768 = vpack.c.b16 %v2692, %v2688
        %v2769 = vpack.c.b16 %v2693, %v2689
        %v2770 = vpack.c.b16 %v2698, %v2694
        %v2771 = vpack.c.b16 %v2699, %v2695
        %v2772 = vpack.c.b16 %v2700, %v2696
        %v2773 = vpack.c.b16 %v2701, %v2697
        %v2774 = vpack.c.b16 %v2706, %v2702
        %v2775 = vpack.c.b16 %v2707, %v2703
        %v2776 = vpack.c.b16 %v2708, %v2704
        %v2777 = vpack.c.b16 %v2709, %v2705
        %v2778 = vpack.c.b16 %v2714, %v2710
        %v2779 = vpack.c.b16 %v2715, %v2711
        %v2780 = vpack.c.b16 %v2716, %v2712
        %v2781 = vpack.c.b16 %v2717, %v2713
        %2846 = vmatpush.bf16.msra.mxu0 %v2746
        %2847 = vmatpush.bf16.msra.mxu0 %v2742
        %2848 = vmatpush.bf16.msra.mxu0 %v2738
        %2849 = vmatpush.bf16.msra.mxu0 %v2734
        %2850 = vmatpush.bf16.msra.mxu0 %v2730
        %2851 = vmatpush.bf16.msra.mxu0 %v2726
        %2852 = vmatpush.bf16.msra.mxu0 %v2722
        %2853 = vmatpush.bf16.msra.mxu0 %v2718
        %2854 = vmatmul.bf16.gmra.mxu0 %v2522
        %v2855 = vpop.f32.mrf.mxu0
        %v2856 = vadd.f32 0.0, %v2855
        %v2857 = vpop.f32.mrf.mxu0
        %2858 = vdwg.mxu0
        %2859 = vmatpush.bf16.msra.mxu0 %v2778
        %2860 = vmatpush.bf16.msra.mxu0 %v2774
        %2861 = vmatpush.bf16.msra.mxu0 %v2770
        %2862 = vmatpush.bf16.msra.mxu0 %v2766
        %2863 = vmatpush.bf16.msra.mxu0 %v2762
        %2864 = vmatpush.bf16.msra.mxu0 %v2758
        %2865 = vmatpush.bf16.msra.mxu0 %v2754
        %2866 = vmatpush.bf16.msra.mxu0 %v2750
        %2867 = vmatmul.bf16.gmra.mxu0 %v2523
        %v2868 = vpop.f32.mrf.mxu0
        %v2869 = vadd.f32 %v2856, %v2868
        %v2870 = vpop.f32.mrf.mxu0
        %2871 = vdwg.mxu0
        %2872 = vmatpush.bf16.msra.mxu0 %v2747
        %2873 = vmatpush.bf16.msra.mxu0 %v2743
        %2874 = vmatpush.bf16.msra.mxu0 %v2739
        %2875 = vmatpush.bf16.msra.mxu0 %v2735
        %2876 = vmatpush.bf16.msra.mxu0 %v2731
        %2877 = vmatpush.bf16.msra.mxu0 %v2727
        %2878 = vmatpush.bf16.msra.mxu0 %v2723
        %2879 = vmatpush.bf16.msra.mxu0 %v2719
        %2880 = vmatmul.bf16.gmra.mxu0 %v2522
        %v2881 = vpop.f32.mrf.mxu0
        %v2882 = vadd.f32 0.0, %v2881
        %v2883 = vpop.f32.mrf.mxu0
        %2884 = vdwg.mxu0
        %2885 = vmatpush.bf16.msra.mxu0 %v2779
        %2886 = vmatpush.bf16.msra.mxu0 %v2775
        %2887 = vmatpush.bf16.msra.mxu0 %v2771
        %2888 = vmatpush.bf16.msra.mxu0 %v2767
        %2889 = vmatpush.bf16.msra.mxu0 %v2763
        %2890 = vmatpush.bf16.msra.mxu0 %v2759
        %2891 = vmatpush.bf16.msra.mxu0 %v2755
        %2892 = vmatpush.bf16.msra.mxu0 %v2751
        %2893 = vmatmul.bf16.gmra.mxu0 %v2523
        %v2894 = vpop.f32.mrf.mxu0
        %v2895 = vadd.f32 %v2882, %v2894
        %v2896 = vpop.f32.mrf.mxu0
        %2897 = vdwg.mxu0
        %2898 = vmatpush.bf16.msra.mxu0 %v2748
        %2899 = vmatpush.bf16.msra.mxu0 %v2744
        %2900 = vmatpush.bf16.msra.mxu0 %v2740
        %2901 = vmatpush.bf16.msra.mxu0 %v2736
        %2902 = vmatpush.bf16.msra.mxu0 %v2732
        %2903 = vmatpush.bf16.msra.mxu0 %v2728
        %2904 = vmatpush.bf16.msra.mxu0 %v2724
        %2905 = vmatpush.bf16.msra.mxu0 %v2720
        %2906 = vmatmul.bf16.gmra.mxu0 %v2522
        %v2907 = vpop.f32.mrf.mxu0
        %v2908 = vadd.f32 0.0, %v2907
        %v2909 = vpop.f32.mrf.mxu0
        %2910 = vdwg.mxu0
        %2911 = vmatpush.bf16.msra.mxu0 %v2780
        %2912 = vmatpush.bf16.msra.mxu0 %v2776
        %2913 = vmatpush.bf16.msra.mxu0 %v2772
        %2914 = vmatpush.bf16.msra.mxu0 %v2768
        %2915 = vmatpush.bf16.msra.mxu0 %v2764
        %2916 = vmatpush.bf16.msra.mxu0 %v2760
        %2917 = vmatpush.bf16.msra.mxu0 %v2756
        %2918 = vmatpush.bf16.msra.mxu0 %v2752
        %2919 = vmatmul.bf16.gmra.mxu0 %v2523
        %v2920 = vpop.f32.mrf.mxu0
        %v2921 = vadd.f32 %v2908, %v2920
        %v2922 = vpop.f32.mrf.mxu0
        %2923 = vdwg.mxu0
        %2924 = vmatpush.bf16.msra.mxu0 %v2749
        %2925 = vmatpush.bf16.msra.mxu0 %v2745
        %2926 = vmatpush.bf16.msra.mxu0 %v2741
        %2927 = vmatpush.bf16.msra.mxu0 %v2737
        %2928 = vmatpush.bf16.msra.mxu0 %v2733
        %2929 = vmatpush.bf16.msra.mxu0 %v2729
        %2930 = vmatpush.bf16.msra.mxu0 %v2725
        %2931 = vmatpush.bf16.msra.mxu0 %v2721
        %2932 = vmatmul.bf16.gmra.mxu0 %v2522
        %v2933 = vpop.f32.mrf.mxu0
        %v2934 = vadd.f32 0.0, %v2933
        %v2935 = vpop.f32.mrf.mxu0
        %2936 = vdwg.mxu0
        %2937 = vmatpush.bf16.msra.mxu0 %v2781
        %2938 = vmatpush.bf16.msra.mxu0 %v2777
        %2939 = vmatpush.bf16.msra.mxu0 %v2773
        %2940 = vmatpush.bf16.msra.mxu0 %v2769
        %2941 = vmatpush.bf16.msra.mxu0 %v2765
        %2942 = vmatpush.bf16.msra.mxu0 %v2761
        %2943 = vmatpush.bf16.msra.mxu0 %v2757
        %2944 = vmatpush.bf16.msra.mxu0 %v2753
        %2945 = vmatmul.bf16.gmra.mxu0 %v2523
        %v2946 = vpop.f32.mrf.mxu0
        %v2947 = vadd.f32 %v2934, %v2946
        %v2948 = vpop.f32.mrf.mxu0
        %2949 = vdwg.mxu0
        %v2950 = vadd.f32 %v2450, %v2869
        %v2951 = vadd.f32 %v2451, %v2895
        %v2952 = vadd.f32 %v2452, %v2921
        %v2953 = vadd.f32 %v2453, %v2947
        %v2954 = vld [vmem:[#allocation4] sm:$0xf]
        %v2956 = vperm.slane %v2954, 0
        %v2957 = vperm.slane %v2954, 1
        %v2958 = vperm.slane %v2954, 2
        %v2959 = vperm.slane %v2954, 3
        %v2964 = vadd.f32 %v2950, %v2956
        %v2965 = vadd.f32 %v2951, %v2957
        %v2966 = vadd.f32 %v2952, %v2958
        %v2967 = vadd.f32 %v2953, %v2959
        %v2968 = vmax.f32 %v2964, 0.0
        %v2969 = vmax.f32 %v2965, 0.0
        %v2970 = vmax.f32 %v2966, 0.0
        %v2971 = vmax.f32 %v2967, 0.0
        %v2972 = vpack.c.bf16 %v2969, %v2968
        %v2973 = vpack.c.bf16 %v2971, %v2970
        %s2974 = scalar_lea.vmem %s450, 40
        %v2975 = vld [vmem:[%s2974] sm:$0x77]
        %s2976 = scalar_lea.vmem %s450, 48
        %v2977 = vld [vmem:[%s2976] sm:$0x77]
        %2978 = vmatpush.bf16.msra.mxu0 %v819
        %2979 = vmatpush.bf16.msra.mxu0 %v815
        %2980 = vmatpush.bf16.msra.mxu0 %v811
        %2981 = vmatpush.bf16.msra.mxu0 %v807
        %2982 = vmatpush.bf16.msra.mxu0 %v803
        %2983 = vmatpush.bf16.msra.mxu0 %v799
        %2984 = vmatpush.bf16.msra.mxu0 %v795
        %2985 = vmatpush.bf16.msra.mxu0 %v791
        %2986 = vmatmul.bf16.gmra.mxu0 %v2022
        %v2987 = vpop.f32.mrf.mxu0
        %v2988 = vadd.f32 0.0, %v2987
        %v2989 = vpop.f32.mrf.mxu0
        %2990 = vdwg.mxu0
        %2991 = vmatpush.bf16.msra.mxu0 %v851
        %2992 = vmatpush.bf16.msra.mxu0 %v847
        %2993 = vmatpush.bf16.msra.mxu0 %v843
        %2994 = vmatpush.bf16.msra.mxu0 %v839
        %2995 = vmatpush.bf16.msra.mxu0 %v835
        %2996 = vmatpush.bf16.msra.mxu0 %v831
        %2997 = vmatpush.bf16.msra.mxu0 %v827
        %2998 = vmatpush.bf16.msra.mxu0 %v823
        %2999 = vmatmul.bf16.gmra.mxu0 %v2023
        %v3000 = vpop.f32.mrf.mxu0
        %v3001 = vadd.f32 %v2988, %v3000
        %v3002 = vpop.f32.mrf.mxu0
        %3003 = vdwg.mxu0
        %3004 = vmatpush.bf16.msra.mxu0 %v820
        %3005 = vmatpush.bf16.msra.mxu0 %v816
        %3006 = vmatpush.bf16.msra.mxu0 %v812
        %3007 = vmatpush.bf16.msra.mxu0 %v808
        %3008 = vmatpush.bf16.msra.mxu0 %v804
        %3009 = vmatpush.bf16.msra.mxu0 %v800
        %3010 = vmatpush.bf16.msra.mxu0 %v796
        %3011 = vmatpush.bf16.msra.mxu0 %v792
        %3012 = vmatmul.bf16.gmra.mxu0 %v2022
        %v3013 = vpop.f32.mrf.mxu0
        %v3014 = vadd.f32 0.0, %v3013
        %v3015 = vpop.f32.mrf.mxu0
        %3016 = vdwg.mxu0
        %3017 = vmatpush.bf16.msra.mxu0 %v852
        %3018 = vmatpush.bf16.msra.mxu0 %v848
        %3019 = vmatpush.bf16.msra.mxu0 %v844
        %3020 = vmatpush.bf16.msra.mxu0 %v840
        %3021 = vmatpush.bf16.msra.mxu0 %v836
        %3022 = vmatpush.bf16.msra.mxu0 %v832
        %3023 = vmatpush.bf16.msra.mxu0 %v828
        %3024 = vmatpush.bf16.msra.mxu0 %v824
        %3025 = vmatmul.bf16.gmra.mxu0 %v2023
        %v3026 = vpop.f32.mrf.mxu0
        %v3027 = vadd.f32 %v3014, %v3026
        %v3028 = vpop.f32.mrf.mxu0
        %3029 = vdwg.mxu0
        %3030 = vmatpush.bf16.msra.mxu0 %v821
        %3031 = vmatpush.bf16.msra.mxu0 %v817
        %3032 = vmatpush.bf16.msra.mxu0 %v813
        %3033 = vmatpush.bf16.msra.mxu0 %v809
        %3034 = vmatpush.bf16.msra.mxu0 %v805
        %3035 = vmatpush.bf16.msra.mxu0 %v801
        %3036 = vmatpush.bf16.msra.mxu0 %v797
        %3037 = vmatpush.bf16.msra.mxu0 %v793
        %3038 = vmatmul.bf16.gmra.mxu0 %v2022
        %v3039 = vpop.f32.mrf.mxu0
        %v3040 = vadd.f32 0.0, %v3039
        %v3041 = vpop.f32.mrf.mxu0
        %3042 = vdwg.mxu0
        %3043 = vmatpush.bf16.msra.mxu0 %v853
        %3044 = vmatpush.bf16.msra.mxu0 %v849
        %3045 = vmatpush.bf16.msra.mxu0 %v845
        %3046 = vmatpush.bf16.msra.mxu0 %v841
        %3047 = vmatpush.bf16.msra.mxu0 %v837
        %3048 = vmatpush.bf16.msra.mxu0 %v833
        %3049 = vmatpush.bf16.msra.mxu0 %v829
        %3050 = vmatpush.bf16.msra.mxu0 %v825
        %3051 = vmatmul.bf16.gmra.mxu0 %v2023
        %v3052 = vpop.f32.mrf.mxu0
        %v3053 = vadd.f32 %v3040, %v3052
        %v3054 = vpop.f32.mrf.mxu0
        %3055 = vdwg.mxu0
        %3056 = vmatpush.bf16.msra.mxu0 %v822
        %3057 = vmatpush.bf16.msra.mxu0 %v818
        %3058 = vmatpush.bf16.msra.mxu0 %v814
        %3059 = vmatpush.bf16.msra.mxu0 %v810
        %3060 = vmatpush.bf16.msra.mxu0 %v806
        %3061 = vmatpush.bf16.msra.mxu0 %v802
        %3062 = vmatpush.bf16.msra.mxu0 %v798
        %3063 = vmatpush.bf16.msra.mxu0 %v794
        %3064 = vmatmul.bf16.gmra.mxu0 %v2022
        %v3065 = vpop.f32.mrf.mxu0
        %v3066 = vadd.f32 0.0, %v3065
        %v3067 = vpop.f32.mrf.mxu0
        %3068 = vdwg.mxu0
        %3069 = vmatpush.bf16.msra.mxu0 %v854
        %3070 = vmatpush.bf16.msra.mxu0 %v850
        %3071 = vmatpush.bf16.msra.mxu0 %v846
        %3072 = vmatpush.bf16.msra.mxu0 %v842
        %3073 = vmatpush.bf16.msra.mxu0 %v838
        %3074 = vmatpush.bf16.msra.mxu0 %v834
        %3075 = vmatpush.bf16.msra.mxu0 %v830
        %3076 = vmatpush.bf16.msra.mxu0 %v826
        %3077 = vmatmul.bf16.gmra.mxu0 %v2023
        %v3078 = vpop.f32.mrf.mxu0
        %v3079 = vadd.f32 %v3066, %v3078
        %v3080 = vpop.f32.mrf.mxu0
        %3081 = vdwg.mxu0
        %3082 = vmatpush.bf16.msra.mxu0 %v1250
        %3083 = vmatpush.bf16.msra.mxu0 %v1246
        %3084 = vmatpush.bf16.msra.mxu0 %v1242
        %3085 = vmatpush.bf16.msra.mxu0 %v1238
        %3086 = vmatpush.bf16.msra.mxu0 %v1234
        %3087 = vmatpush.bf16.msra.mxu0 %v1230
        %3088 = vmatpush.bf16.msra.mxu0 %v1226
        %3089 = vmatpush.bf16.msra.mxu0 %v1222
        %3090 = vmatmul.bf16.gmra.mxu0 %v1522
        %v3091 = vpop.f32.mrf.mxu0
        %v3092 = vadd.f32 %v3001, %v3091
        %v3093 = vpop.f32.mrf.mxu0
        %3094 = vdwg.mxu0
        %3095 = vmatpush.bf16.msra.mxu0 %v1282
        %3096 = vmatpush.bf16.msra.mxu0 %v1278
        %3097 = vmatpush.bf16.msra.mxu0 %v1274
        %3098 = vmatpush.bf16.msra.mxu0 %v1270
        %3099 = vmatpush.bf16.msra.mxu0 %v1266
        %3100 = vmatpush.bf16.msra.mxu0 %v1262
        %3101 = vmatpush.bf16.msra.mxu0 %v1258
        %3102 = vmatpush.bf16.msra.mxu0 %v1254
        %3103 = vmatmul.bf16.gmra.mxu0 %v1523
        %v3104 = vpop.f32.mrf.mxu0
        %v3105 = vadd.f32 %v3092, %v3104
        %v3106 = vpop.f32.mrf.mxu0
        %3107 = vdwg.mxu0
        %3108 = vmatpush.bf16.msra.mxu0 %v1251
        %3109 = vmatpush.bf16.msra.mxu0 %v1247
        %3110 = vmatpush.bf16.msra.mxu0 %v1243
        %3111 = vmatpush.bf16.msra.mxu0 %v1239
        %3112 = vmatpush.bf16.msra.mxu0 %v1235
        %3113 = vmatpush.bf16.msra.mxu0 %v1231
        %3114 = vmatpush.bf16.msra.mxu0 %v1227
        %3115 = vmatpush.bf16.msra.mxu0 %v1223
        %3116 = vmatmul.bf16.gmra.mxu0 %v1522
        %v3117 = vpop.f32.mrf.mxu0
        %v3118 = vadd.f32 %v3027, %v3117
        %v3119 = vpop.f32.mrf.mxu0
        %3120 = vdwg.mxu0
        %3121 = vmatpush.bf16.msra.mxu0 %v1283
        %3122 = vmatpush.bf16.msra.mxu0 %v1279
        %3123 = vmatpush.bf16.msra.mxu0 %v1275
        %3124 = vmatpush.bf16.msra.mxu0 %v1271
        %3125 = vmatpush.bf16.msra.mxu0 %v1267
        %3126 = vmatpush.bf16.msra.mxu0 %v1263
        %3127 = vmatpush.bf16.msra.mxu0 %v1259
        %3128 = vmatpush.bf16.msra.mxu0 %v1255
        %3129 = vmatmul.bf16.gmra.mxu0 %v1523
        %v3130 = vpop.f32.mrf.mxu0
        %v3131 = vadd.f32 %v3118, %v3130
        %v3132 = vpop.f32.mrf.mxu0
        %3133 = vdwg.mxu0
        %3134 = vmatpush.bf16.msra.mxu0 %v1252
        %3135 = vmatpush.bf16.msra.mxu0 %v1248
        %3136 = vmatpush.bf16.msra.mxu0 %v1244
        %3137 = vmatpush.bf16.msra.mxu0 %v1240
        %3138 = vmatpush.bf16.msra.mxu0 %v1236
        %3139 = vmatpush.bf16.msra.mxu0 %v1232
        %3140 = vmatpush.bf16.msra.mxu0 %v1228
        %3141 = vmatpush.bf16.msra.mxu0 %v1224
        %3142 = vmatmul.bf16.gmra.mxu0 %v1522
        %v3143 = vpop.f32.mrf.mxu0
        %v3144 = vadd.f32 %v3053, %v3143
        %v3145 = vpop.f32.mrf.mxu0
        %3146 = vdwg.mxu0
        %3147 = vmatpush.bf16.msra.mxu0 %v1284
        %3148 = vmatpush.bf16.msra.mxu0 %v1280
        %3149 = vmatpush.bf16.msra.mxu0 %v1276
        %3150 = vmatpush.bf16.msra.mxu0 %v1272
        %3151 = vmatpush.bf16.msra.mxu0 %v1268
        %3152 = vmatpush.bf16.msra.mxu0 %v1264
        %3153 = vmatpush.bf16.msra.mxu0 %v1260
        %3154 = vmatpush.bf16.msra.mxu0 %v1256
        %3155 = vmatmul.bf16.gmra.mxu0 %v1523
        %v3156 = vpop.f32.mrf.mxu0
        %v3157 = vadd.f32 %v3144, %v3156
        %v3158 = vpop.f32.mrf.mxu0
        %3159 = vdwg.mxu0
        %3160 = vmatpush.bf16.msra.mxu0 %v1253
        %3161 = vmatpush.bf16.msra.mxu0 %v1249
        %3162 = vmatpush.bf16.msra.mxu0 %v1245
        %3163 = vmatpush.bf16.msra.mxu0 %v1241
        %3164 = vmatpush.bf16.msra.mxu0 %v1237
        %3165 = vmatpush.bf16.msra.mxu0 %v1233
        %3166 = vmatpush.bf16.msra.mxu0 %v1229
        %3167 = vmatpush.bf16.msra.mxu0 %v1225
        %3168 = vmatmul.bf16.gmra.mxu0 %v1522
        %v3169 = vpop.f32.mrf.mxu0
        %v3170 = vadd.f32 %v3079, %v3169
        %v3171 = vpop.f32.mrf.mxu0
        %3172 = vdwg.mxu0
        %3173 = vmatpush.bf16.msra.mxu0 %v1285
        %3174 = vmatpush.bf16.msra.mxu0 %v1281
        %3175 = vmatpush.bf16.msra.mxu0 %v1277
        %3176 = vmatpush.bf16.msra.mxu0 %v1273
        %3177 = vmatpush.bf16.msra.mxu0 %v1269
        %3178 = vmatpush.bf16.msra.mxu0 %v1265
        %3179 = vmatpush.bf16.msra.mxu0 %v1261
        %3180 = vmatpush.bf16.msra.mxu0 %v1257
        %3181 = vmatmul.bf16.gmra.mxu0 %v1523
        %v3182 = vpop.f32.mrf.mxu0
        %v3183 = vadd.f32 %v3170, %v3182
        %v3184 = vpop.f32.mrf.mxu0
        %3185 = vdwg.mxu0
        %3186 = vmatpush.bf16.msra.mxu0 %v1746
        %3187 = vmatpush.bf16.msra.mxu0 %v1742
        %3188 = vmatpush.bf16.msra.mxu0 %v1738
        %3189 = vmatpush.bf16.msra.mxu0 %v1734
        %3190 = vmatpush.bf16.msra.mxu0 %v1730
        %3191 = vmatpush.bf16.msra.mxu0 %v1726
        %3192 = vmatpush.bf16.msra.mxu0 %v1722
        %3193 = vmatpush.bf16.msra.mxu0 %v1718
        %3194 = vmatmul.bf16.gmra.mxu0 %v2522
        %v3195 = vpop.f32.mrf.mxu0
        %v3196 = vadd.f32 0.0, %v3195
        %v3197 = vpop.f32.mrf.mxu0
        %3198 = vdwg.mxu0
        %3199 = vmatpush.bf16.msra.mxu0 %v1778
        %3200 = vmatpush.bf16.msra.mxu0 %v1774
        %3201 = vmatpush.bf16.msra.mxu0 %v1770
        %3202 = vmatpush.bf16.msra.mxu0 %v1766
        %3203 = vmatpush.bf16.msra.mxu0 %v1762
        %3204 = vmatpush.bf16.msra.mxu0 %v1758
        %3205 = vmatpush.bf16.msra.mxu0 %v1754
        %3206 = vmatpush.bf16.msra.mxu0 %v1750
        %3207 = vmatmul.bf16.gmra.mxu0 %v2523
        %v3208 = vpop.f32.mrf.mxu0
        %v3209 = vadd.f32 %v3196, %v3208
        %v3210 = vpop.f32.mrf.mxu0
        %3211 = vdwg.mxu0
        %3212 = vmatpush.bf16.msra.mxu0 %v1747
        %3213 = vmatpush.bf16.msra.mxu0 %v1743
        %3214 = vmatpush.bf16.msra.mxu0 %v1739
        %3215 = vmatpush.bf16.msra.mxu0 %v1735
        %3216 = vmatpush.bf16.msra.mxu0 %v1731
        %3217 = vmatpush.bf16.msra.mxu0 %v1727
        %3218 = vmatpush.bf16.msra.mxu0 %v1723
        %3219 = vmatpush.bf16.msra.mxu0 %v1719
        %3220 = vmatmul.bf16.gmra.mxu0 %v2522
        %v3221 = vpop.f32.mrf.mxu0
        %v3222 = vadd.f32 0.0, %v3221
        %v3223 = vpop.f32.mrf.mxu0
        %3224 = vdwg.mxu0
        %3225 = vmatpush.bf16.msra.mxu0 %v1779
        %3226 = vmatpush.bf16.msra.mxu0 %v1775
        %3227 = vmatpush.bf16.msra.mxu0 %v1771
        %3228 = vmatpush.bf16.msra.mxu0 %v1767
        %3229 = vmatpush.bf16.msra.mxu0 %v1763
        %3230 = vmatpush.bf16.msra.mxu0 %v1759
        %3231 = vmatpush.bf16.msra.mxu0 %v1755
        %3232 = vmatpush.bf16.msra.mxu0 %v1751
        %3233 = vmatmul.bf16.gmra.mxu0 %v2523
        %v3234 = vpop.f32.mrf.mxu0
        %v3235 = vadd.f32 %v3222, %v3234
        %v3236 = vpop.f32.mrf.mxu0
        %3237 = vdwg.mxu0
        %3238 = vmatpush.bf16.msra.mxu0 %v1748
        %3239 = vmatpush.bf16.msra.mxu0 %v1744
        %3240 = vmatpush.bf16.msra.mxu0 %v1740
        %3241 = vmatpush.bf16.msra.mxu0 %v1736
        %3242 = vmatpush.bf16.msra.mxu0 %v1732
        %3243 = vmatpush.bf16.msra.mxu0 %v1728
        %3244 = vmatpush.bf16.msra.mxu0 %v1724
        %3245 = vmatpush.bf16.msra.mxu0 %v1720
        %3246 = vmatmul.bf16.gmra.mxu0 %v2522
        %v3247 = vpop.f32.mrf.mxu0
        %v3248 = vadd.f32 0.0, %v3247
        %v3249 = vpop.f32.mrf.mxu0
        %3250 = vdwg.mxu0
        %3251 = vmatpush.bf16.msra.mxu0 %v1780
        %3252 = vmatpush.bf16.msra.mxu0 %v1776
        %3253 = vmatpush.bf16.msra.mxu0 %v1772
        %3254 = vmatpush.bf16.msra.mxu0 %v1768
        %3255 = vmatpush.bf16.msra.mxu0 %v1764
        %3256 = vmatpush.bf16.msra.mxu0 %v1760
        %3257 = vmatpush.bf16.msra.mxu0 %v1756
        %3258 = vmatpush.bf16.msra.mxu0 %v1752
        %3259 = vmatmul.bf16.gmra.mxu0 %v2523
        %v3260 = vpop.f32.mrf.mxu0
        %v3261 = vadd.f32 %v3248, %v3260
        %v3262 = vpop.f32.mrf.mxu0
        %3263 = vdwg.mxu0
        %3264 = vmatpush.bf16.msra.mxu0 %v1749
        %3265 = vmatpush.bf16.msra.mxu0 %v1745
        %3266 = vmatpush.bf16.msra.mxu0 %v1741
        %3267 = vmatpush.bf16.msra.mxu0 %v1737
        %3268 = vmatpush.bf16.msra.mxu0 %v1733
        %3269 = vmatpush.bf16.msra.mxu0 %v1729
        %3270 = vmatpush.bf16.msra.mxu0 %v1725
        %3271 = vmatpush.bf16.msra.mxu0 %v1721
        %3272 = vmatmul.bf16.gmra.mxu0 %v2522
        %v3273 = vpop.f32.mrf.mxu0
        %v3274 = vadd.f32 0.0, %v3273
        %v3275 = vpop.f32.mrf.mxu0
        %3276 = vdwg.mxu0
        %3277 = vmatpush.bf16.msra.mxu0 %v1781
        %3278 = vmatpush.bf16.msra.mxu0 %v1777
        %3279 = vmatpush.bf16.msra.mxu0 %v1773
        %3280 = vmatpush.bf16.msra.mxu0 %v1769
        %3281 = vmatpush.bf16.msra.mxu0 %v1765
        %3282 = vmatpush.bf16.msra.mxu0 %v1761
        %3283 = vmatpush.bf16.msra.mxu0 %v1757
        %3284 = vmatpush.bf16.msra.mxu0 %v1753
        %3285 = vmatmul.bf16.gmra.mxu0 %v2523
        %v3286 = vpop.f32.mrf.mxu0
        %v3287 = vadd.f32 %v3274, %v3286
        %v3288 = vpop.f32.mrf.mxu0
        %3289 = vdwg.mxu0
        %v3290 = vadd.f32 %v3105, %v3209
        %v3291 = vadd.f32 %v3131, %v3235
        %v3292 = vadd.f32 %v3157, %v3261
        %v3293 = vadd.f32 %v3183, %v3287
        %v3295 = vunpack.c.l.b16 %v2975
        %v3296 = vunpack.c.h.b16 %v2975
        %v3297 = vpack.c.b16 %v3295, %v3295
        %v3298 = vpack.c.b16 %v3296, %v3296
        %3301 = vmatpush.bf16.msra.mxu0 %v2246
        %3302 = vmatpush.bf16.msra.mxu0 %v2242
        %3303 = vmatpush.bf16.msra.mxu0 %v2238
        %3304 = vmatpush.bf16.msra.mxu0 %v2234
        %3305 = vmatpush.bf16.msra.mxu0 %v2230
        %3306 = vmatpush.bf16.msra.mxu0 %v2226
        %3307 = vmatpush.bf16.msra.mxu0 %v2222
        %3308 = vmatpush.bf16.msra.mxu0 %v2218
        %3309 = vmatmul.bf16.gmra.mxu0 %v3297
        %v3310 = vpop.f32.mrf.mxu0
        %v3311 = vadd.f32 0.0, %v3310
        %v3312 = vpop.f32.mrf.mxu0
        %3313 = vdwg.mxu0
        %3314 = vmatpush.bf16.msra.mxu0 %v2278
        %3315 = vmatpush.bf16.msra.mxu0 %v2274
        %3316 = vmatpush.bf16.msra.mxu0 %v2270
        %3317 = vmatpush.bf16.msra.mxu0 %v2266
        %3318 = vmatpush.bf16.msra.mxu0 %v2262
        %3319 = vmatpush.bf16.msra.mxu0 %v2258
        %3320 = vmatpush.bf16.msra.mxu0 %v2254
        %3321 = vmatpush.bf16.msra.mxu0 %v2250
        %3322 = vmatmul.bf16.gmra.mxu0 %v3298
        %v3323 = vpop.f32.mrf.mxu0
        %v3324 = vadd.f32 %v3311, %v3323
        %v3325 = vpop.f32.mrf.mxu0
        %3326 = vdwg.mxu0
        %3327 = vmatpush.bf16.msra.mxu0 %v2247
        %3328 = vmatpush.bf16.msra.mxu0 %v2243
        %3329 = vmatpush.bf16.msra.mxu0 %v2239
        %3330 = vmatpush.bf16.msra.mxu0 %v2235
        %3331 = vmatpush.bf16.msra.mxu0 %v2231
        %3332 = vmatpush.bf16.msra.mxu0 %v2227
        %3333 = vmatpush.bf16.msra.mxu0 %v2223
        %3334 = vmatpush.bf16.msra.mxu0 %v2219
        %3335 = vmatmul.bf16.gmra.mxu0 %v3297
        %v3336 = vpop.f32.mrf.mxu0
        %v3337 = vadd.f32 0.0, %v3336
        %v3338 = vpop.f32.mrf.mxu0
        %3339 = vdwg.mxu0
        %3340 = vmatpush.bf16.msra.mxu0 %v2279
        %3341 = vmatpush.bf16.msra.mxu0 %v2275
        %3342 = vmatpush.bf16.msra.mxu0 %v2271
        %3343 = vmatpush.bf16.msra.mxu0 %v2267
        %3344 = vmatpush.bf16.msra.mxu0 %v2263
        %3345 = vmatpush.bf16.msra.mxu0 %v2259
        %3346 = vmatpush.bf16.msra.mxu0 %v2255
        %3347 = vmatpush.bf16.msra.mxu0 %v2251
        %3348 = vmatmul.bf16.gmra.mxu0 %v3298
        %v3349 = vpop.f32.mrf.mxu0
        %v3350 = vadd.f32 %v3337, %v3349
        %v3351 = vpop.f32.mrf.mxu0
        %3352 = vdwg.mxu0
        %3353 = vmatpush.bf16.msra.mxu0 %v2248
        %3354 = vmatpush.bf16.msra.mxu0 %v2244
        %3355 = vmatpush.bf16.msra.mxu0 %v2240
        %3356 = vmatpush.bf16.msra.mxu0 %v2236
        %3357 = vmatpush.bf16.msra.mxu0 %v2232
        %3358 = vmatpush.bf16.msra.mxu0 %v2228
        %3359 = vmatpush.bf16.msra.mxu0 %v2224
        %3360 = vmatpush.bf16.msra.mxu0 %v2220
        %3361 = vmatmul.bf16.gmra.mxu0 %v3297
        %v3362 = vpop.f32.mrf.mxu0
        %v3363 = vadd.f32 0.0, %v3362
        %v3364 = vpop.f32.mrf.mxu0
        %3365 = vdwg.mxu0
        %3366 = vmatpush.bf16.msra.mxu0 %v2280
        %3367 = vmatpush.bf16.msra.mxu0 %v2276
        %3368 = vmatpush.bf16.msra.mxu0 %v2272
        %3369 = vmatpush.bf16.msra.mxu0 %v2268
        %3370 = vmatpush.bf16.msra.mxu0 %v2264
        %3371 = vmatpush.bf16.msra.mxu0 %v2260
        %3372 = vmatpush.bf16.msra.mxu0 %v2256
        %3373 = vmatpush.bf16.msra.mxu0 %v2252
        %3374 = vmatmul.bf16.gmra.mxu0 %v3298
        %v3375 = vpop.f32.mrf.mxu0
        %v3376 = vadd.f32 %v3363, %v3375
        %v3377 = vpop.f32.mrf.mxu0
        %3378 = vdwg.mxu0
        %3379 = vmatpush.bf16.msra.mxu0 %v2249
        %3380 = vmatpush.bf16.msra.mxu0 %v2245
        %3381 = vmatpush.bf16.msra.mxu0 %v2241
        %3382 = vmatpush.bf16.msra.mxu0 %v2237
        %3383 = vmatpush.bf16.msra.mxu0 %v2233
        %3384 = vmatpush.bf16.msra.mxu0 %v2229
        %3385 = vmatpush.bf16.msra.mxu0 %v2225
        %3386 = vmatpush.bf16.msra.mxu0 %v2221
        %3387 = vmatmul.bf16.gmra.mxu0 %v3297
        %v3388 = vpop.f32.mrf.mxu0
        %v3389 = vadd.f32 0.0, %v3388
        %v3390 = vpop.f32.mrf.mxu0
        %3391 = vdwg.mxu0
        %3392 = vmatpush.bf16.msra.mxu0 %v2281
        %3393 = vmatpush.bf16.msra.mxu0 %v2277
        %3394 = vmatpush.bf16.msra.mxu0 %v2273
        %3395 = vmatpush.bf16.msra.mxu0 %v2269
        %3396 = vmatpush.bf16.msra.mxu0 %v2265
        %3397 = vmatpush.bf16.msra.mxu0 %v2261
        %3398 = vmatpush.bf16.msra.mxu0 %v2257
        %3399 = vmatpush.bf16.msra.mxu0 %v2253
        %3400 = vmatmul.bf16.gmra.mxu0 %v3298
        %v3401 = vpop.f32.mrf.mxu0
        %v3402 = vadd.f32 %v3389, %v3401
        %v3403 = vpop.f32.mrf.mxu0
        %3404 = vdwg.mxu0
        %v3405 = vadd.f32 %v3290, %v3324
        %v3406 = vadd.f32 %v3291, %v3350
        %v3407 = vadd.f32 %v3292, %v3376
        %v3408 = vadd.f32 %v3293, %v3402
        %v3410 = vunpack.c.l.b16 %v2977
        %v3411 = vunpack.c.h.b16 %v2977
        %v3412 = vpack.c.b16 %v3410, %v3410
        %v3413 = vpack.c.b16 %v3411, %v3411
        %3416 = vmatpush.bf16.msra.mxu0 %v2746
        %3417 = vmatpush.bf16.msra.mxu0 %v2742
        %3418 = vmatpush.bf16.msra.mxu0 %v2738
        %3419 = vmatpush.bf16.msra.mxu0 %v2734
        %3420 = vmatpush.bf16.msra.mxu0 %v2730
        %3421 = vmatpush.bf16.msra.mxu0 %v2726
        %3422 = vmatpush.bf16.msra.mxu0 %v2722
        %3423 = vmatpush.bf16.msra.mxu0 %v2718
        %3424 = vmatmul.bf16.gmra.mxu0 %v3412
        %v3425 = vpop.f32.mrf.mxu0
        %v3426 = vadd.f32 0.0, %v3425
        %v3427 = vpop.f32.mrf.mxu0
        %3428 = vdwg.mxu0
        %3429 = vmatpush.bf16.msra.mxu0 %v2778
        %3430 = vmatpush.bf16.msra.mxu0 %v2774
        %3431 = vmatpush.bf16.msra.mxu0 %v2770
        %3432 = vmatpush.bf16.msra.mxu0 %v2766
        %3433 = vmatpush.bf16.msra.mxu0 %v2762
        %3434 = vmatpush.bf16.msra.mxu0 %v2758
        %3435 = vmatpush.bf16.msra.mxu0 %v2754
        %3436 = vmatpush.bf16.msra.mxu0 %v2750
        %3437 = vmatmul.bf16.gmra.mxu0 %v3413
        %v3438 = vpop.f32.mrf.mxu0
        %v3439 = vadd.f32 %v3426, %v3438
        %v3440 = vpop.f32.mrf.mxu0
        %3441 = vdwg.mxu0
        %3442 = vmatpush.bf16.msra.mxu0 %v2747
        %3443 = vmatpush.bf16.msra.mxu0 %v2743
        %3444 = vmatpush.bf16.msra.mxu0 %v2739
        %3445 = vmatpush.bf16.msra.mxu0 %v2735
        %3446 = vmatpush.bf16.msra.mxu0 %v2731
        %3447 = vmatpush.bf16.msra.mxu0 %v2727
        %3448 = vmatpush.bf16.msra.mxu0 %v2723
        %3449 = vmatpush.bf16.msra.mxu0 %v2719
        %3450 = vmatmul.bf16.gmra.mxu0 %v3412
        %v3451 = vpop.f32.mrf.mxu0
        %v3452 = vadd.f32 0.0, %v3451
        %v3453 = vpop.f32.mrf.mxu0
        %3454 = vdwg.mxu0
        %3455 = vmatpush.bf16.msra.mxu0 %v2779
        %3456 = vmatpush.bf16.msra.mxu0 %v2775
        %3457 = vmatpush.bf16.msra.mxu0 %v2771
        %3458 = vmatpush.bf16.msra.mxu0 %v2767
        %3459 = vmatpush.bf16.msra.mxu0 %v2763
        %3460 = vmatpush.bf16.msra.mxu0 %v2759
        %3461 = vmatpush.bf16.msra.mxu0 %v2755
        %3462 = vmatpush.bf16.msra.mxu0 %v2751
        %3463 = vmatmul.bf16.gmra.mxu0 %v3413
        %v3464 = vpop.f32.mrf.mxu0
        %v3465 = vadd.f32 %v3452, %v3464
        %v3466 = vpop.f32.mrf.mxu0
        %3467 = vdwg.mxu0
        %3468 = vmatpush.bf16.msra.mxu0 %v2748
        %3469 = vmatpush.bf16.msra.mxu0 %v2744
        %3470 = vmatpush.bf16.msra.mxu0 %v2740
        %3471 = vmatpush.bf16.msra.mxu0 %v2736
        %3472 = vmatpush.bf16.msra.mxu0 %v2732
        %3473 = vmatpush.bf16.msra.mxu0 %v2728
        %3474 = vmatpush.bf16.msra.mxu0 %v2724
        %3475 = vmatpush.bf16.msra.mxu0 %v2720
        %3476 = vmatmul.bf16.gmra.mxu0 %v3412
        %v3477 = vpop.f32.mrf.mxu0
        %v3478 = vadd.f32 0.0, %v3477
        %v3479 = vpop.f32.mrf.mxu0
        %3480 = vdwg.mxu0
        %3481 = vmatpush.bf16.msra.mxu0 %v2780
        %3482 = vmatpush.bf16.msra.mxu0 %v2776
        %3483 = vmatpush.bf16.msra.mxu0 %v2772
        %3484 = vmatpush.bf16.msra.mxu0 %v2768
        %3485 = vmatpush.bf16.msra.mxu0 %v2764
        %3486 = vmatpush.bf16.msra.mxu0 %v2760
        %3487 = vmatpush.bf16.msra.mxu0 %v2756
        %3488 = vmatpush.bf16.msra.mxu0 %v2752
        %3489 = vmatmul.bf16.gmra.mxu0 %v3413
        %v3490 = vpop.f32.mrf.mxu0
        %v3491 = vadd.f32 %v3478, %v3490
        %v3492 = vpop.f32.mrf.mxu0
        %3493 = vdwg.mxu0
        %3494 = vmatpush.bf16.msra.mxu0 %v2749
        %3495 = vmatpush.bf16.msra.mxu0 %v2745
        %3496 = vmatpush.bf16.msra.mxu0 %v2741
        %3497 = vmatpush.bf16.msra.mxu0 %v2737
        %3498 = vmatpush.bf16.msra.mxu0 %v2733
        %3499 = vmatpush.bf16.msra.mxu0 %v2729
        %3500 = vmatpush.bf16.msra.mxu0 %v2725
        %3501 = vmatpush.bf16.msra.mxu0 %v2721
        %3502 = vmatmul.bf16.gmra.mxu0 %v3412
        %v3503 = vpop.f32.mrf.mxu0
        %v3504 = vadd.f32 0.0, %v3503
        %v3505 = vpop.f32.mrf.mxu0
        %3506 = vdwg.mxu0
        %3507 = vmatpush.bf16.msra.mxu0 %v2781
        %3508 = vmatpush.bf16.msra.mxu0 %v2777
        %3509 = vmatpush.bf16.msra.mxu0 %v2773
        %3510 = vmatpush.bf16.msra.mxu0 %v2769
        %3511 = vmatpush.bf16.msra.mxu0 %v2765
        %3512 = vmatpush.bf16.msra.mxu0 %v2761
        %3513 = vmatpush.bf16.msra.mxu0 %v2757
        %3514 = vmatpush.bf16.msra.mxu0 %v2753
        %3515 = vmatmul.bf16.gmra.mxu0 %v3413
        %v3516 = vpop.f32.mrf.mxu0
        %v3517 = vadd.f32 %v3504, %v3516
        %v3518 = vpop.f32.mrf.mxu0
        %3519 = vdwg.mxu0
        %v3520 = vadd.f32 %v3405, %v3439
        %v3521 = vadd.f32 %v3406, %v3465
        %v3522 = vadd.f32 %v3407, %v3491
        %v3523 = vadd.f32 %v3408, %v3517
        %v3524 = vadd.f32 %v3520, %v2956
        %v3525 = vadd.f32 %v3521, %v2957
        %v3526 = vadd.f32 %v3522, %v2958
        %v3527 = vadd.f32 %v3523, %v2959
        %v3528 = vmax.f32 %v3524, 0.0
        %v3529 = vmax.f32 %v3525, 0.0
        %v3530 = vmax.f32 %v3526, 0.0
        %v3531 = vmax.f32 %v3527, 0.0
        %v3532 = vpack.c.bf16 %v3529, %v3528
        %v3533 = vpack.c.bf16 %v3531, %v3530
        %s3534 = scalar_lea.vmem %s450, 56
        %v3535 = vld [vmem:[%s3534] sm:$0x77]
        %3536 = vmatpush.bf16.msra.mxu0 %v819
        %3537 = vmatpush.bf16.msra.mxu0 %v815
        %3538 = vmatpush.bf16.msra.mxu0 %v811
        %3539 = vmatpush.bf16.msra.mxu0 %v807
        %3540 = vmatpush.bf16.msra.mxu0 %v803
        %3541 = vmatpush.bf16.msra.mxu0 %v799
        %3542 = vmatpush.bf16.msra.mxu0 %v795
        %3543 = vmatpush.bf16.msra.mxu0 %v791
        %3544 = vmatmul.bf16.gmra.mxu0 %v3297
        %v3545 = vpop.f32.mrf.mxu0
        %v3546 = vadd.f32 0.0, %v3545
        %v3547 = vpop.f32.mrf.mxu0
        %3548 = vdwg.mxu0
        %3549 = vmatpush.bf16.msra.mxu0 %v851
        %3550 = vmatpush.bf16.msra.mxu0 %v847
        %3551 = vmatpush.bf16.msra.mxu0 %v843
        %3552 = vmatpush.bf16.msra.mxu0 %v839
        %3553 = vmatpush.bf16.msra.mxu0 %v835
        %3554 = vmatpush.bf16.msra.mxu0 %v831
        %3555 = vmatpush.bf16.msra.mxu0 %v827
        %3556 = vmatpush.bf16.msra.mxu0 %v823
        %3557 = vmatmul.bf16.gmra.mxu0 %v3298
        %v3558 = vpop.f32.mrf.mxu0
        %v3559 = vadd.f32 %v3546, %v3558
        %v3560 = vpop.f32.mrf.mxu0
        %3561 = vdwg.mxu0
        %3562 = vmatpush.bf16.msra.mxu0 %v820
        %3563 = vmatpush.bf16.msra.mxu0 %v816
        %3564 = vmatpush.bf16.msra.mxu0 %v812
        %3565 = vmatpush.bf16.msra.mxu0 %v808
        %3566 = vmatpush.bf16.msra.mxu0 %v804
        %3567 = vmatpush.bf16.msra.mxu0 %v800
        %3568 = vmatpush.bf16.msra.mxu0 %v796
        %3569 = vmatpush.bf16.msra.mxu0 %v792
        %3570 = vmatmul.bf16.gmra.mxu0 %v3297
        %v3571 = vpop.f32.mrf.mxu0
        %v3572 = vadd.f32 0.0, %v3571
        %v3573 = vpop.f32.mrf.mxu0
        %3574 = vdwg.mxu0
        %3575 = vmatpush.bf16.msra.mxu0 %v852
        %3576 = vmatpush.bf16.msra.mxu0 %v848
        %3577 = vmatpush.bf16.msra.mxu0 %v844
        %3578 = vmatpush.bf16.msra.mxu0 %v840
        %3579 = vmatpush.bf16.msra.mxu0 %v836
        %3580 = vmatpush.bf16.msra.mxu0 %v832
        %3581 = vmatpush.bf16.msra.mxu0 %v828
        %3582 = vmatpush.bf16.msra.mxu0 %v824
        %3583 = vmatmul.bf16.gmra.mxu0 %v3298
        %v3584 = vpop.f32.mrf.mxu0
        %v3585 = vadd.f32 %v3572, %v3584
        %v3586 = vpop.f32.mrf.mxu0
        %3587 = vdwg.mxu0
        %3588 = vmatpush.bf16.msra.mxu0 %v821
        %3589 = vmatpush.bf16.msra.mxu0 %v817
        %3590 = vmatpush.bf16.msra.mxu0 %v813
        %3591 = vmatpush.bf16.msra.mxu0 %v809
        %3592 = vmatpush.bf16.msra.mxu0 %v805
        %3593 = vmatpush.bf16.msra.mxu0 %v801
        %3594 = vmatpush.bf16.msra.mxu0 %v797
        %3595 = vmatpush.bf16.msra.mxu0 %v793
        %3596 = vmatmul.bf16.gmra.mxu0 %v3297
        %v3597 = vpop.f32.mrf.mxu0
        %v3598 = vadd.f32 0.0, %v3597
        %v3599 = vpop.f32.mrf.mxu0
        %3600 = vdwg.mxu0
        %3601 = vmatpush.bf16.msra.mxu0 %v853
        %3602 = vmatpush.bf16.msra.mxu0 %v849
        %3603 = vmatpush.bf16.msra.mxu0 %v845
        %3604 = vmatpush.bf16.msra.mxu0 %v841
        %3605 = vmatpush.bf16.msra.mxu0 %v837
        %3606 = vmatpush.bf16.msra.mxu0 %v833
        %3607 = vmatpush.bf16.msra.mxu0 %v829
        %3608 = vmatpush.bf16.msra.mxu0 %v825
        %3609 = vmatmul.bf16.gmra.mxu0 %v3298
        %v3610 = vpop.f32.mrf.mxu0
        %v3611 = vadd.f32 %v3598, %v3610
        %v3612 = vpop.f32.mrf.mxu0
        %3613 = vdwg.mxu0
        %3614 = vmatpush.bf16.msra.mxu0 %v822
        %3615 = vmatpush.bf16.msra.mxu0 %v818
        %3616 = vmatpush.bf16.msra.mxu0 %v814
        %3617 = vmatpush.bf16.msra.mxu0 %v810
        %3618 = vmatpush.bf16.msra.mxu0 %v806
        %3619 = vmatpush.bf16.msra.mxu0 %v802
        %3620 = vmatpush.bf16.msra.mxu0 %v798
        %3621 = vmatpush.bf16.msra.mxu0 %v794
        %3622 = vmatmul.bf16.gmra.mxu0 %v3297
        %v3623 = vpop.f32.mrf.mxu0
        %v3624 = vadd.f32 0.0, %v3623
        %v3625 = vpop.f32.mrf.mxu0
        %3626 = vdwg.mxu0
        %3627 = vmatpush.bf16.msra.mxu0 %v854
        %3628 = vmatpush.bf16.msra.mxu0 %v850
        %3629 = vmatpush.bf16.msra.mxu0 %v846
        %3630 = vmatpush.bf16.msra.mxu0 %v842
        %3631 = vmatpush.bf16.msra.mxu0 %v838
        %3632 = vmatpush.bf16.msra.mxu0 %v834
        %3633 = vmatpush.bf16.msra.mxu0 %v830
        %3634 = vmatpush.bf16.msra.mxu0 %v826
        %3635 = vmatmul.bf16.gmra.mxu0 %v3298
        %v3636 = vpop.f32.mrf.mxu0
        %v3637 = vadd.f32 %v3624, %v3636
        %v3638 = vpop.f32.mrf.mxu0
        %3639 = vdwg.mxu0
        %3640 = vmatpush.bf16.msra.mxu0 %v1250
        %3641 = vmatpush.bf16.msra.mxu0 %v1246
        %3642 = vmatpush.bf16.msra.mxu0 %v1242
        %3643 = vmatpush.bf16.msra.mxu0 %v1238
        %3644 = vmatpush.bf16.msra.mxu0 %v1234
        %3645 = vmatpush.bf16.msra.mxu0 %v1230
        %3646 = vmatpush.bf16.msra.mxu0 %v1226
        %3647 = vmatpush.bf16.msra.mxu0 %v1222
        %3648 = vmatmul.bf16.gmra.mxu0 %v2522
        %v3649 = vpop.f32.mrf.mxu0
        %v3650 = vadd.f32 %v3559, %v3649
        %v3651 = vpop.f32.mrf.mxu0
        %3652 = vdwg.mxu0
        %3653 = vmatpush.bf16.msra.mxu0 %v1282
        %3654 = vmatpush.bf16.msra.mxu0 %v1278
        %3655 = vmatpush.bf16.msra.mxu0 %v1274
        %3656 = vmatpush.bf16.msra.mxu0 %v1270
        %3657 = vmatpush.bf16.msra.mxu0 %v1266
        %3658 = vmatpush.bf16.msra.mxu0 %v1262
        %3659 = vmatpush.bf16.msra.mxu0 %v1258
        %3660 = vmatpush.bf16.msra.mxu0 %v1254
        %3661 = vmatmul.bf16.gmra.mxu0 %v2523
        %v3662 = vpop.f32.mrf.mxu0
        %v3663 = vadd.f32 %v3650, %v3662
        %v3664 = vpop.f32.mrf.mxu0
        %3665 = vdwg.mxu0
        %3666 = vmatpush.bf16.msra.mxu0 %v1251
        %3667 = vmatpush.bf16.msra.mxu0 %v1247
        %3668 = vmatpush.bf16.msra.mxu0 %v1243
        %3669 = vmatpush.bf16.msra.mxu0 %v1239
        %3670 = vmatpush.bf16.msra.mxu0 %v1235
        %3671 = vmatpush.bf16.msra.mxu0 %v1231
        %3672 = vmatpush.bf16.msra.mxu0 %v1227
        %3673 = vmatpush.bf16.msra.mxu0 %v1223
        %3674 = vmatmul.bf16.gmra.mxu0 %v2522
        %v3675 = vpop.f32.mrf.mxu0
        %v3676 = vadd.f32 %v3585, %v3675
        %v3677 = vpop.f32.mrf.mxu0
        %3678 = vdwg.mxu0
        %3679 = vmatpush.bf16.msra.mxu0 %v1283
        %3680 = vmatpush.bf16.msra.mxu0 %v1279
        %3681 = vmatpush.bf16.msra.mxu0 %v1275
        %3682 = vmatpush.bf16.msra.mxu0 %v1271
        %3683 = vmatpush.bf16.msra.mxu0 %v1267
        %3684 = vmatpush.bf16.msra.mxu0 %v1263
        %3685 = vmatpush.bf16.msra.mxu0 %v1259
        %3686 = vmatpush.bf16.msra.mxu0 %v1255
        %3687 = vmatmul.bf16.gmra.mxu0 %v2523
        %v3688 = vpop.f32.mrf.mxu0
        %v3689 = vadd.f32 %v3676, %v3688
        %v3690 = vpop.f32.mrf.mxu0
        %3691 = vdwg.mxu0
        %3692 = vmatpush.bf16.msra.mxu0 %v1252
        %3693 = vmatpush.bf16.msra.mxu0 %v1248
        %3694 = vmatpush.bf16.msra.mxu0 %v1244
        %3695 = vmatpush.bf16.msra.mxu0 %v1240
        %3696 = vmatpush.bf16.msra.mxu0 %v1236
        %3697 = vmatpush.bf16.msra.mxu0 %v1232
        %3698 = vmatpush.bf16.msra.mxu0 %v1228
        %3699 = vmatpush.bf16.msra.mxu0 %v1224
        %3700 = vmatmul.bf16.gmra.mxu0 %v2522
        %v3701 = vpop.f32.mrf.mxu0
        %v3702 = vadd.f32 %v3611, %v3701
        %v3703 = vpop.f32.mrf.mxu0
        %3704 = vdwg.mxu0
        %3705 = vmatpush.bf16.msra.mxu0 %v1284
        %3706 = vmatpush.bf16.msra.mxu0 %v1280
        %3707 = vmatpush.bf16.msra.mxu0 %v1276
        %3708 = vmatpush.bf16.msra.mxu0 %v1272
        %3709 = vmatpush.bf16.msra.mxu0 %v1268
        %3710 = vmatpush.bf16.msra.mxu0 %v1264
        %3711 = vmatpush.bf16.msra.mxu0 %v1260
        %3712 = vmatpush.bf16.msra.mxu0 %v1256
        %3713 = vmatmul.bf16.gmra.mxu0 %v2523
        %v3714 = vpop.f32.mrf.mxu0
        %v3715 = vadd.f32 %v3702, %v3714
        %v3716 = vpop.f32.mrf.mxu0
        %3717 = vdwg.mxu0
        %3718 = vmatpush.bf16.msra.mxu0 %v1253
        %3719 = vmatpush.bf16.msra.mxu0 %v1249
        %3720 = vmatpush.bf16.msra.mxu0 %v1245
        %3721 = vmatpush.bf16.msra.mxu0 %v1241
        %3722 = vmatpush.bf16.msra.mxu0 %v1237
        %3723 = vmatpush.bf16.msra.mxu0 %v1233
        %3724 = vmatpush.bf16.msra.mxu0 %v1229
        %3725 = vmatpush.bf16.msra.mxu0 %v1225
        %3726 = vmatmul.bf16.gmra.mxu0 %v2522
        %v3727 = vpop.f32.mrf.mxu0
        %v3728 = vadd.f32 %v3637, %v3727
        %v3729 = vpop.f32.mrf.mxu0
        %3730 = vdwg.mxu0
        %3731 = vmatpush.bf16.msra.mxu0 %v1285
        %3732 = vmatpush.bf16.msra.mxu0 %v1281
        %3733 = vmatpush.bf16.msra.mxu0 %v1277
        %3734 = vmatpush.bf16.msra.mxu0 %v1273
        %3735 = vmatpush.bf16.msra.mxu0 %v1269
        %3736 = vmatpush.bf16.msra.mxu0 %v1265
        %3737 = vmatpush.bf16.msra.mxu0 %v1261
        %3738 = vmatpush.bf16.msra.mxu0 %v1257
        %3739 = vmatmul.bf16.gmra.mxu0 %v2523
        %v3740 = vpop.f32.mrf.mxu0
        %v3741 = vadd.f32 %v3728, %v3740
        %v3742 = vpop.f32.mrf.mxu0
        %3743 = vdwg.mxu0
        %3744 = vmatpush.bf16.msra.mxu0 %v1746
        %3745 = vmatpush.bf16.msra.mxu0 %v1742
        %3746 = vmatpush.bf16.msra.mxu0 %v1738
        %3747 = vmatpush.bf16.msra.mxu0 %v1734
        %3748 = vmatpush.bf16.msra.mxu0 %v1730
        %3749 = vmatpush.bf16.msra.mxu0 %v1726
        %3750 = vmatpush.bf16.msra.mxu0 %v1722
        %3751 = vmatpush.bf16.msra.mxu0 %v1718
        %3752 = vmatmul.bf16.gmra.mxu0 %v3412
        %v3753 = vpop.f32.mrf.mxu0
        %v3754 = vadd.f32 0.0, %v3753
        %v3755 = vpop.f32.mrf.mxu0
        %3756 = vdwg.mxu0
        %3757 = vmatpush.bf16.msra.mxu0 %v1778
        %3758 = vmatpush.bf16.msra.mxu0 %v1774
        %3759 = vmatpush.bf16.msra.mxu0 %v1770
        %3760 = vmatpush.bf16.msra.mxu0 %v1766
        %3761 = vmatpush.bf16.msra.mxu0 %v1762
        %3762 = vmatpush.bf16.msra.mxu0 %v1758
        %3763 = vmatpush.bf16.msra.mxu0 %v1754
        %3764 = vmatpush.bf16.msra.mxu0 %v1750
        %3765 = vmatmul.bf16.gmra.mxu0 %v3413
        %v3766 = vpop.f32.mrf.mxu0
        %v3767 = vadd.f32 %v3754, %v3766
        %v3768 = vpop.f32.mrf.mxu0
        %3769 = vdwg.mxu0
        %3770 = vmatpush.bf16.msra.mxu0 %v1747
        %3771 = vmatpush.bf16.msra.mxu0 %v1743
        %3772 = vmatpush.bf16.msra.mxu0 %v1739
        %3773 = vmatpush.bf16.msra.mxu0 %v1735
        %3774 = vmatpush.bf16.msra.mxu0 %v1731
        %3775 = vmatpush.bf16.msra.mxu0 %v1727
        %3776 = vmatpush.bf16.msra.mxu0 %v1723
        %3777 = vmatpush.bf16.msra.mxu0 %v1719
        %3778 = vmatmul.bf16.gmra.mxu0 %v3412
        %v3779 = vpop.f32.mrf.mxu0
        %v3780 = vadd.f32 0.0, %v3779
        %v3781 = vpop.f32.mrf.mxu0
        %3782 = vdwg.mxu0
        %3783 = vmatpush.bf16.msra.mxu0 %v1779
        %3784 = vmatpush.bf16.msra.mxu0 %v1775
        %3785 = vmatpush.bf16.msra.mxu0 %v1771
        %3786 = vmatpush.bf16.msra.mxu0 %v1767
        %3787 = vmatpush.bf16.msra.mxu0 %v1763
        %3788 = vmatpush.bf16.msra.mxu0 %v1759
        %3789 = vmatpush.bf16.msra.mxu0 %v1755
        %3790 = vmatpush.bf16.msra.mxu0 %v1751
        %3791 = vmatmul.bf16.gmra.mxu0 %v3413
        %v3792 = vpop.f32.mrf.mxu0
        %v3793 = vadd.f32 %v3780, %v3792
        %v3794 = vpop.f32.mrf.mxu0
        %3795 = vdwg.mxu0
        %3796 = vmatpush.bf16.msra.mxu0 %v1748
        %3797 = vmatpush.bf16.msra.mxu0 %v1744
        %3798 = vmatpush.bf16.msra.mxu0 %v1740
        %3799 = vmatpush.bf16.msra.mxu0 %v1736
        %3800 = vmatpush.bf16.msra.mxu0 %v1732
        %3801 = vmatpush.bf16.msra.mxu0 %v1728
        %3802 = vmatpush.bf16.msra.mxu0 %v1724
        %3803 = vmatpush.bf16.msra.mxu0 %v1720
        %3804 = vmatmul.bf16.gmra.mxu0 %v3412
        %v3805 = vpop.f32.mrf.mxu0
        %v3806 = vadd.f32 0.0, %v3805
        %v3807 = vpop.f32.mrf.mxu0
        %3808 = vdwg.mxu0
        %3809 = vmatpush.bf16.msra.mxu0 %v1780
        %3810 = vmatpush.bf16.msra.mxu0 %v1776
        %3811 = vmatpush.bf16.msra.mxu0 %v1772
        %3812 = vmatpush.bf16.msra.mxu0 %v1768
        %3813 = vmatpush.bf16.msra.mxu0 %v1764
        %3814 = vmatpush.bf16.msra.mxu0 %v1760
        %3815 = vmatpush.bf16.msra.mxu0 %v1756
        %3816 = vmatpush.bf16.msra.mxu0 %v1752
        %3817 = vmatmul.bf16.gmra.mxu0 %v3413
        %v3818 = vpop.f32.mrf.mxu0
        %v3819 = vadd.f32 %v3806, %v3818
        %v3820 = vpop.f32.mrf.mxu0
        %3821 = vdwg.mxu0
        %3822 = vmatpush.bf16.msra.mxu0 %v1749
        %3823 = vmatpush.bf16.msra.mxu0 %v1745
        %3824 = vmatpush.bf16.msra.mxu0 %v1741
        %3825 = vmatpush.bf16.msra.mxu0 %v1737
        %3826 = vmatpush.bf16.msra.mxu0 %v1733
        %3827 = vmatpush.bf16.msra.mxu0 %v1729
        %3828 = vmatpush.bf16.msra.mxu0 %v1725
        %3829 = vmatpush.bf16.msra.mxu0 %v1721
        %3830 = vmatmul.bf16.gmra.mxu0 %v3412
        %v3831 = vpop.f32.mrf.mxu0
        %v3832 = vadd.f32 0.0, %v3831
        %v3833 = vpop.f32.mrf.mxu0
        %3834 = vdwg.mxu0
        %3835 = vmatpush.bf16.msra.mxu0 %v1781
        %3836 = vmatpush.bf16.msra.mxu0 %v1777
        %3837 = vmatpush.bf16.msra.mxu0 %v1773
        %3838 = vmatpush.bf16.msra.mxu0 %v1769
        %3839 = vmatpush.bf16.msra.mxu0 %v1765
        %3840 = vmatpush.bf16.msra.mxu0 %v1761
        %3841 = vmatpush.bf16.msra.mxu0 %v1757
        %3842 = vmatpush.bf16.msra.mxu0 %v1753
        %3843 = vmatmul.bf16.gmra.mxu0 %v3413
        %v3844 = vpop.f32.mrf.mxu0
        %v3845 = vadd.f32 %v3832, %v3844
        %v3846 = vpop.f32.mrf.mxu0
        %3847 = vdwg.mxu0
        %v3848 = vadd.f32 %v3663, %v3767
        %v3849 = vadd.f32 %v3689, %v3793
        %v3850 = vadd.f32 %v3715, %v3819
        %v3851 = vadd.f32 %v3741, %v3845
        %v3853 = vunpack.c.l.b16 %v3535
        %v3854 = vunpack.c.h.b16 %v3535
        %v3855 = vpack.c.b16 %v3853, %v3853
        %v3856 = vpack.c.b16 %v3854, %v3854
        %3859 = vmatpush.bf16.msra.mxu0 %v2246
        %3860 = vmatpush.bf16.msra.mxu0 %v2242
        %3861 = vmatpush.bf16.msra.mxu0 %v2238
        %3862 = vmatpush.bf16.msra.mxu0 %v2234
        %3863 = vmatpush.bf16.msra.mxu0 %v2230
        %3864 = vmatpush.bf16.msra.mxu0 %v2226
        %3865 = vmatpush.bf16.msra.mxu0 %v2222
        %3866 = vmatpush.bf16.msra.mxu0 %v2218
        %3867 = vmatmul.bf16.gmra.mxu0 %v3855
        %v3868 = vpop.f32.mrf.mxu0
        %v3869 = vadd.f32 0.0, %v3868
        %v3870 = vpop.f32.mrf.mxu0
        %3871 = vdwg.mxu0
        %3872 = vmatpush.bf16.msra.mxu0 %v2278
        %3873 = vmatpush.bf16.msra.mxu0 %v2274
        %3874 = vmatpush.bf16.msra.mxu0 %v2270
        %3875 = vmatpush.bf16.msra.mxu0 %v2266
        %3876 = vmatpush.bf16.msra.mxu0 %v2262
        %3877 = vmatpush.bf16.msra.mxu0 %v2258
        %3878 = vmatpush.bf16.msra.mxu0 %v2254
        %3879 = vmatpush.bf16.msra.mxu0 %v2250
        %3880 = vmatmul.bf16.gmra.mxu0 %v3856
        %v3881 = vpop.f32.mrf.mxu0
        %v3882 = vadd.f32 %v3869, %v3881
        %v3883 = vpop.f32.mrf.mxu0
        %3884 = vdwg.mxu0
        %3885 = vmatpush.bf16.msra.mxu0 %v2247
        %3886 = vmatpush.bf16.msra.mxu0 %v2243
        %3887 = vmatpush.bf16.msra.mxu0 %v2239
        %3888 = vmatpush.bf16.msra.mxu0 %v2235
        %3889 = vmatpush.bf16.msra.mxu0 %v2231
        %3890 = vmatpush.bf16.msra.mxu0 %v2227
        %3891 = vmatpush.bf16.msra.mxu0 %v2223
        %3892 = vmatpush.bf16.msra.mxu0 %v2219
        %3893 = vmatmul.bf16.gmra.mxu0 %v3855
        %v3894 = vpop.f32.mrf.mxu0
        %v3895 = vadd.f32 0.0, %v3894
        %v3896 = vpop.f32.mrf.mxu0
        %3897 = vdwg.mxu0
        %3898 = vmatpush.bf16.msra.mxu0 %v2279
        %3899 = vmatpush.bf16.msra.mxu0 %v2275
        %3900 = vmatpush.bf16.msra.mxu0 %v2271
        %3901 = vmatpush.bf16.msra.mxu0 %v2267
        %3902 = vmatpush.bf16.msra.mxu0 %v2263
        %3903 = vmatpush.bf16.msra.mxu0 %v2259
        %3904 = vmatpush.bf16.msra.mxu0 %v2255
        %3905 = vmatpush.bf16.msra.mxu0 %v2251
        %3906 = vmatmul.bf16.gmra.mxu0 %v3856
        %v3907 = vpop.f32.mrf.mxu0
        %v3908 = vadd.f32 %v3895, %v3907
        %v3909 = vpop.f32.mrf.mxu0
        %3910 = vdwg.mxu0
        %3911 = vmatpush.bf16.msra.mxu0 %v2248
        %3912 = vmatpush.bf16.msra.mxu0 %v2244
        %3913 = vmatpush.bf16.msra.mxu0 %v2240
        %3914 = vmatpush.bf16.msra.mxu0 %v2236
        %3915 = vmatpush.bf16.msra.mxu0 %v2232
        %3916 = vmatpush.bf16.msra.mxu0 %v2228
        %3917 = vmatpush.bf16.msra.mxu0 %v2224
        %3918 = vmatpush.bf16.msra.mxu0 %v2220
        %3919 = vmatmul.bf16.gmra.mxu0 %v3855
        %v3920 = vpop.f32.mrf.mxu0
        %v3921 = vadd.f32 0.0, %v3920
        %v3922 = vpop.f32.mrf.mxu0
        %3923 = vdwg.mxu0
        %3924 = vmatpush.bf16.msra.mxu0 %v2280
        %3925 = vmatpush.bf16.msra.mxu0 %v2276
        %3926 = vmatpush.bf16.msra.mxu0 %v2272
        %3927 = vmatpush.bf16.msra.mxu0 %v2268
        %3928 = vmatpush.bf16.msra.mxu0 %v2264
        %3929 = vmatpush.bf16.msra.mxu0 %v2260
        %3930 = vmatpush.bf16.msra.mxu0 %v2256
        %3931 = vmatpush.bf16.msra.mxu0 %v2252
        %3932 = vmatmul.bf16.gmra.mxu0 %v3856
        %v3933 = vpop.f32.mrf.mxu0
        %v3934 = vadd.f32 %v3921, %v3933
        %v3935 = vpop.f32.mrf.mxu0
        %3936 = vdwg.mxu0
        %3937 = vmatpush.bf16.msra.mxu0 %v2249
        %3938 = vmatpush.bf16.msra.mxu0 %v2245
        %3939 = vmatpush.bf16.msra.mxu0 %v2241
        %3940 = vmatpush.bf16.msra.mxu0 %v2237
        %3941 = vmatpush.bf16.msra.mxu0 %v2233
        %3942 = vmatpush.bf16.msra.mxu0 %v2229
        %3943 = vmatpush.bf16.msra.mxu0 %v2225
        %3944 = vmatpush.bf16.msra.mxu0 %v2221
        %3945 = vmatmul.bf16.gmra.mxu0 %v3855
        %v3946 = vpop.f32.mrf.mxu0
        %v3947 = vadd.f32 0.0, %v3946
        %v3948 = vpop.f32.mrf.mxu0
        %3949 = vdwg.mxu0
        %3950 = vmatpush.bf16.msra.mxu0 %v2281
        %3951 = vmatpush.bf16.msra.mxu0 %v2277
        %3952 = vmatpush.bf16.msra.mxu0 %v2273
        %3953 = vmatpush.bf16.msra.mxu0 %v2269
        %3954 = vmatpush.bf16.msra.mxu0 %v2265
        %3955 = vmatpush.bf16.msra.mxu0 %v2261
        %3956 = vmatpush.bf16.msra.mxu0 %v2257
        %3957 = vmatpush.bf16.msra.mxu0 %v2253
        %3958 = vmatmul.bf16.gmra.mxu0 %v3856
        %v3959 = vpop.f32.mrf.mxu0
        %v3960 = vadd.f32 %v3947, %v3959
        %v3961 = vpop.f32.mrf.mxu0
        %3962 = vdwg.mxu0
        %v3963 = vadd.f32 %v3848, %v3882
        %v3964 = vadd.f32 %v3849, %v3908
        %v3965 = vadd.f32 %v3850, %v3934
        %v3966 = vadd.f32 %v3851, %v3960
        %v3968 = vshrl.u32 %v1026, 16
        %v3970 = vshll.u32 %v1026, 16
        %v3972 = vrot.slane %v3970, 1
        %v3973 = vor.u32 %v3968, %v3972
        %v3975 = vshrl.u32 %v1027, 16
        %v3977 = vshll.u32 %v1027, 16
        %v3979 = vrot.slane %v3977, 1
        %v3980 = vor.u32 %v3975, %v3979
        %3983 = vmatpush.bf16.msra.mxu0 %v2746
        %3984 = vmatpush.bf16.msra.mxu0 %v2742
        %3985 = vmatpush.bf16.msra.mxu0 %v2738
        %3986 = vmatpush.bf16.msra.mxu0 %v2734
        %3987 = vmatpush.bf16.msra.mxu0 %v2730
        %3988 = vmatpush.bf16.msra.mxu0 %v2726
        %3989 = vmatpush.bf16.msra.mxu0 %v2722
        %3990 = vmatpush.bf16.msra.mxu0 %v2718
        %3991 = vmatmul.bf16.gmra.mxu0 %v3973
        %v3992 = vpop.f32.mrf.mxu0
        %v3993 = vadd.f32 0.0, %v3992
        %v3994 = vpop.f32.mrf.mxu0
        %3995 = vdwg.mxu0
        %3996 = vmatpush.bf16.msra.mxu0 %v2778
        %3997 = vmatpush.bf16.msra.mxu0 %v2774
        %3998 = vmatpush.bf16.msra.mxu0 %v2770
        %3999 = vmatpush.bf16.msra.mxu0 %v2766
        %4000 = vmatpush.bf16.msra.mxu0 %v2762
        %4001 = vmatpush.bf16.msra.mxu0 %v2758
        %4002 = vmatpush.bf16.msra.mxu0 %v2754
        %4003 = vmatpush.bf16.msra.mxu0 %v2750
        %4004 = vmatmul.bf16.gmra.mxu0 %v3980
        %v4005 = vpop.f32.mrf.mxu0
        %v4006 = vadd.f32 %v3993, %v4005
        %v4007 = vpop.f32.mrf.mxu0
        %4008 = vdwg.mxu0
        %4009 = vmatpush.bf16.msra.mxu0 %v2747
        %4010 = vmatpush.bf16.msra.mxu0 %v2743
        %4011 = vmatpush.bf16.msra.mxu0 %v2739
        %4012 = vmatpush.bf16.msra.mxu0 %v2735
        %4013 = vmatpush.bf16.msra.mxu0 %v2731
        %4014 = vmatpush.bf16.msra.mxu0 %v2727
        %4015 = vmatpush.bf16.msra.mxu0 %v2723
        %4016 = vmatpush.bf16.msra.mxu0 %v2719
        %4017 = vmatmul.bf16.gmra.mxu0 %v3973
        %v4018 = vpop.f32.mrf.mxu0
        %v4019 = vadd.f32 0.0, %v4018
        %v4020 = vpop.f32.mrf.mxu0
        %4021 = vdwg.mxu0
        %4022 = vmatpush.bf16.msra.mxu0 %v2779
        %4023 = vmatpush.bf16.msra.mxu0 %v2775
        %4024 = vmatpush.bf16.msra.mxu0 %v2771
        %4025 = vmatpush.bf16.msra.mxu0 %v2767
        %4026 = vmatpush.bf16.msra.mxu0 %v2763
        %4027 = vmatpush.bf16.msra.mxu0 %v2759
        %4028 = vmatpush.bf16.msra.mxu0 %v2755
        %4029 = vmatpush.bf16.msra.mxu0 %v2751
        %4030 = vmatmul.bf16.gmra.mxu0 %v3980
        %v4031 = vpop.f32.mrf.mxu0
        %v4032 = vadd.f32 %v4019, %v4031
        %v4033 = vpop.f32.mrf.mxu0
        %4034 = vdwg.mxu0
        %4035 = vmatpush.bf16.msra.mxu0 %v2748
        %4036 = vmatpush.bf16.msra.mxu0 %v2744
        %4037 = vmatpush.bf16.msra.mxu0 %v2740
        %4038 = vmatpush.bf16.msra.mxu0 %v2736
        %4039 = vmatpush.bf16.msra.mxu0 %v2732
        %4040 = vmatpush.bf16.msra.mxu0 %v2728
        %4041 = vmatpush.bf16.msra.mxu0 %v2724
        %4042 = vmatpush.bf16.msra.mxu0 %v2720
        %4043 = vmatmul.bf16.gmra.mxu0 %v3973
        %v4044 = vpop.f32.mrf.mxu0
        %v4045 = vadd.f32 0.0, %v4044
        %v4046 = vpop.f32.mrf.mxu0
        %4047 = vdwg.mxu0
        %4048 = vmatpush.bf16.msra.mxu0 %v2780
        %4049 = vmatpush.bf16.msra.mxu0 %v2776
        %4050 = vmatpush.bf16.msra.mxu0 %v2772
        %4051 = vmatpush.bf16.msra.mxu0 %v2768
        %4052 = vmatpush.bf16.msra.mxu0 %v2764
        %4053 = vmatpush.bf16.msra.mxu0 %v2760
        %4054 = vmatpush.bf16.msra.mxu0 %v2756
        %4055 = vmatpush.bf16.msra.mxu0 %v2752
        %4056 = vmatmul.bf16.gmra.mxu0 %v3980
        %v4057 = vpop.f32.mrf.mxu0
        %v4058 = vadd.f32 %v4045, %v4057
        %v4059 = vpop.f32.mrf.mxu0
        %4060 = vdwg.mxu0
        %4061 = vmatpush.bf16.msra.mxu0 %v2749
        %4062 = vmatpush.bf16.msra.mxu0 %v2745
        %4063 = vmatpush.bf16.msra.mxu0 %v2741
        %4064 = vmatpush.bf16.msra.mxu0 %v2737
        %4065 = vmatpush.bf16.msra.mxu0 %v2733
        %4066 = vmatpush.bf16.msra.mxu0 %v2729
        %4067 = vmatpush.bf16.msra.mxu0 %v2725
        %4068 = vmatpush.bf16.msra.mxu0 %v2721
        %4069 = vmatmul.bf16.gmra.mxu0 %v3973
        %v4070 = vpop.f32.mrf.mxu0
        %v4071 = vadd.f32 0.0, %v4070
        %v4072 = vpop.f32.mrf.mxu0
        %4073 = vdwg.mxu0
        %4074 = vmatpush.bf16.msra.mxu0 %v2781
        %4075 = vmatpush.bf16.msra.mxu0 %v2777
        %4076 = vmatpush.bf16.msra.mxu0 %v2773
        %4077 = vmatpush.bf16.msra.mxu0 %v2769
        %4078 = vmatpush.bf16.msra.mxu0 %v2765
        %4079 = vmatpush.bf16.msra.mxu0 %v2761
        %4080 = vmatpush.bf16.msra.mxu0 %v2757
        %4081 = vmatpush.bf16.msra.mxu0 %v2753
        %4082 = vmatmul.bf16.gmra.mxu0 %v3980
        %v4083 = vpop.f32.mrf.mxu0
        %v4084 = vadd.f32 %v4071, %v4083
        %v4085 = vpop.f32.mrf.mxu0
        %4086 = vdwg.mxu0
        %v4087 = vadd.f32 %v3963, %v4006
        %v4088 = vadd.f32 %v3964, %v4032
        %v4089 = vadd.f32 %v3965, %v4058
        %v4090 = vadd.f32 %v3966, %v4084
        %v4091 = vadd.f32 %v4087, %v2956
        %v4092 = vadd.f32 %v4088, %v2957
        %v4093 = vadd.f32 %v4089, %v2958
        %v4094 = vadd.f32 %v4090, %v2959
        %v4095 = vmax.f32 %v4091, 0.0
        %v4096 = vmax.f32 %v4092, 0.0
        %v4097 = vmax.f32 %v4093, 0.0
        %v4098 = vmax.f32 %v4094, 0.0
        %v4099 = vpack.c.bf16 %v4096, %v4095
        %v4100 = vpack.c.bf16 %v4098, %v4097
        %4101 = vmatpush.bf16.msra.mxu0 %v819
        %4102 = vmatpush.bf16.msra.mxu0 %v815
        %4103 = vmatpush.bf16.msra.mxu0 %v811
        %4104 = vmatpush.bf16.msra.mxu0 %v807
        %4105 = vmatpush.bf16.msra.mxu0 %v803
        %4106 = vmatpush.bf16.msra.mxu0 %v799
        %4107 = vmatpush.bf16.msra.mxu0 %v795
        %4108 = vmatpush.bf16.msra.mxu0 %v791
        %4109 = vmatmul.bf16.gmra.mxu0 %v3855
        %v4110 = vpop.f32.mrf.mxu0
        %v4111 = vadd.f32 0.0, %v4110
        %v4112 = vpop.f32.mrf.mxu0
        %4113 = vdwg.mxu0
        %4114 = vmatpush.bf16.msra.mxu0 %v851
        %4115 = vmatpush.bf16.msra.mxu0 %v847
        %4116 = vmatpush.bf16.msra.mxu0 %v843
        %4117 = vmatpush.bf16.msra.mxu0 %v839
        %4118 = vmatpush.bf16.msra.mxu0 %v835
        %4119 = vmatpush.bf16.msra.mxu0 %v831
        %4120 = vmatpush.bf16.msra.mxu0 %v827
        %4121 = vmatpush.bf16.msra.mxu0 %v823
        %4122 = vmatmul.bf16.gmra.mxu0 %v3856
        %v4123 = vpop.f32.mrf.mxu0
        %v4124 = vadd.f32 %v4111, %v4123
        %v4125 = vpop.f32.mrf.mxu0
        %4126 = vdwg.mxu0
        %4127 = vmatpush.bf16.msra.mxu0 %v820
        %4128 = vmatpush.bf16.msra.mxu0 %v816
        %4129 = vmatpush.bf16.msra.mxu0 %v812
        %4130 = vmatpush.bf16.msra.mxu0 %v808
        %4131 = vmatpush.bf16.msra.mxu0 %v804
        %4132 = vmatpush.bf16.msra.mxu0 %v800
        %4133 = vmatpush.bf16.msra.mxu0 %v796
        %4134 = vmatpush.bf16.msra.mxu0 %v792
        %4135 = vmatmul.bf16.gmra.mxu0 %v3855
        %v4136 = vpop.f32.mrf.mxu0
        %v4137 = vadd.f32 0.0, %v4136
        %v4138 = vpop.f32.mrf.mxu0
        %4139 = vdwg.mxu0
        %4140 = vmatpush.bf16.msra.mxu0 %v852
        %4141 = vmatpush.bf16.msra.mxu0 %v848
        %4142 = vmatpush.bf16.msra.mxu0 %v844
        %4143 = vmatpush.bf16.msra.mxu0 %v840
        %4144 = vmatpush.bf16.msra.mxu0 %v836
        %4145 = vmatpush.bf16.msra.mxu0 %v832
        %4146 = vmatpush.bf16.msra.mxu0 %v828
        %4147 = vmatpush.bf16.msra.mxu0 %v824
        %4148 = vmatmul.bf16.gmra.mxu0 %v3856
        %v4149 = vpop.f32.mrf.mxu0
        %v4150 = vadd.f32 %v4137, %v4149
        %v4151 = vpop.f32.mrf.mxu0
        %4152 = vdwg.mxu0
        %4153 = vmatpush.bf16.msra.mxu0 %v821
        %4154 = vmatpush.bf16.msra.mxu0 %v817
        %4155 = vmatpush.bf16.msra.mxu0 %v813
        %4156 = vmatpush.bf16.msra.mxu0 %v809
        %4157 = vmatpush.bf16.msra.mxu0 %v805
        %4158 = vmatpush.bf16.msra.mxu0 %v801
        %4159 = vmatpush.bf16.msra.mxu0 %v797
        %4160 = vmatpush.bf16.msra.mxu0 %v793
        %4161 = vmatmul.bf16.gmra.mxu0 %v3855
        %v4162 = vpop.f32.mrf.mxu0
        %v4163 = vadd.f32 0.0, %v4162
        %v4164 = vpop.f32.mrf.mxu0
        %4165 = vdwg.mxu0
        %4166 = vmatpush.bf16.msra.mxu0 %v853
        %4167 = vmatpush.bf16.msra.mxu0 %v849
        %4168 = vmatpush.bf16.msra.mxu0 %v845
        %4169 = vmatpush.bf16.msra.mxu0 %v841
        %4170 = vmatpush.bf16.msra.mxu0 %v837
        %4171 = vmatpush.bf16.msra.mxu0 %v833
        %4172 = vmatpush.bf16.msra.mxu0 %v829
        %4173 = vmatpush.bf16.msra.mxu0 %v825
        %4174 = vmatmul.bf16.gmra.mxu0 %v3856
        %v4175 = vpop.f32.mrf.mxu0
        %v4176 = vadd.f32 %v4163, %v4175
        %v4177 = vpop.f32.mrf.mxu0
        %4178 = vdwg.mxu0
        %4179 = vmatpush.bf16.msra.mxu0 %v822
        %4180 = vmatpush.bf16.msra.mxu0 %v818
        %4181 = vmatpush.bf16.msra.mxu0 %v814
        %4182 = vmatpush.bf16.msra.mxu0 %v810
        %4183 = vmatpush.bf16.msra.mxu0 %v806
        %4184 = vmatpush.bf16.msra.mxu0 %v802
        %4185 = vmatpush.bf16.msra.mxu0 %v798
        %4186 = vmatpush.bf16.msra.mxu0 %v794
        %4187 = vmatmul.bf16.gmra.mxu0 %v3855
        %v4188 = vpop.f32.mrf.mxu0
        %v4189 = vadd.f32 0.0, %v4188
        %v4190 = vpop.f32.mrf.mxu0
        %4191 = vdwg.mxu0
        %4192 = vmatpush.bf16.msra.mxu0 %v854
        %4193 = vmatpush.bf16.msra.mxu0 %v850
        %4194 = vmatpush.bf16.msra.mxu0 %v846
        %4195 = vmatpush.bf16.msra.mxu0 %v842
        %4196 = vmatpush.bf16.msra.mxu0 %v838
        %4197 = vmatpush.bf16.msra.mxu0 %v834
        %4198 = vmatpush.bf16.msra.mxu0 %v830
        %4199 = vmatpush.bf16.msra.mxu0 %v826
        %4200 = vmatmul.bf16.gmra.mxu0 %v3856
        %v4201 = vpop.f32.mrf.mxu0
        %v4202 = vadd.f32 %v4189, %v4201
        %v4203 = vpop.f32.mrf.mxu0
        %4204 = vdwg.mxu0
        %4205 = vmatpush.bf16.msra.mxu0 %v1250
        %4206 = vmatpush.bf16.msra.mxu0 %v1246
        %4207 = vmatpush.bf16.msra.mxu0 %v1242
        %4208 = vmatpush.bf16.msra.mxu0 %v1238
        %4209 = vmatpush.bf16.msra.mxu0 %v1234
        %4210 = vmatpush.bf16.msra.mxu0 %v1230
        %4211 = vmatpush.bf16.msra.mxu0 %v1226
        %4212 = vmatpush.bf16.msra.mxu0 %v1222
        %4213 = vmatmul.bf16.gmra.mxu0 %v3412
        %v4214 = vpop.f32.mrf.mxu0
        %v4215 = vadd.f32 %v4124, %v4214
        %v4216 = vpop.f32.mrf.mxu0
        %4217 = vdwg.mxu0
        %4218 = vmatpush.bf16.msra.mxu0 %v1282
        %4219 = vmatpush.bf16.msra.mxu0 %v1278
        %4220 = vmatpush.bf16.msra.mxu0 %v1274
        %4221 = vmatpush.bf16.msra.mxu0 %v1270
        %4222 = vmatpush.bf16.msra.mxu0 %v1266
        %4223 = vmatpush.bf16.msra.mxu0 %v1262
        %4224 = vmatpush.bf16.msra.mxu0 %v1258
        %4225 = vmatpush.bf16.msra.mxu0 %v1254
        %4226 = vmatmul.bf16.gmra.mxu0 %v3413
        %v4227 = vpop.f32.mrf.mxu0
        %v4228 = vadd.f32 %v4215, %v4227
        %v4229 = vpop.f32.mrf.mxu0
        %4230 = vdwg.mxu0
        %4231 = vmatpush.bf16.msra.mxu0 %v1251
        %4232 = vmatpush.bf16.msra.mxu0 %v1247
        %4233 = vmatpush.bf16.msra.mxu0 %v1243
        %4234 = vmatpush.bf16.msra.mxu0 %v1239
        %4235 = vmatpush.bf16.msra.mxu0 %v1235
        %4236 = vmatpush.bf16.msra.mxu0 %v1231
        %4237 = vmatpush.bf16.msra.mxu0 %v1227
        %4238 = vmatpush.bf16.msra.mxu0 %v1223
        %4239 = vmatmul.bf16.gmra.mxu0 %v3412
        %v4240 = vpop.f32.mrf.mxu0
        %v4241 = vadd.f32 %v4150, %v4240
        %v4242 = vpop.f32.mrf.mxu0
        %4243 = vdwg.mxu0
        %4244 = vmatpush.bf16.msra.mxu0 %v1283
        %4245 = vmatpush.bf16.msra.mxu0 %v1279
        %4246 = vmatpush.bf16.msra.mxu0 %v1275
        %4247 = vmatpush.bf16.msra.mxu0 %v1271
        %4248 = vmatpush.bf16.msra.mxu0 %v1267
        %4249 = vmatpush.bf16.msra.mxu0 %v1263
        %4250 = vmatpush.bf16.msra.mxu0 %v1259
        %4251 = vmatpush.bf16.msra.mxu0 %v1255
        %4252 = vmatmul.bf16.gmra.mxu0 %v3413
        %v4253 = vpop.f32.mrf.mxu0
        %v4254 = vadd.f32 %v4241, %v4253
        %v4255 = vpop.f32.mrf.mxu0
        %4256 = vdwg.mxu0
        %4257 = vmatpush.bf16.msra.mxu0 %v1252
        %4258 = vmatpush.bf16.msra.mxu0 %v1248
        %4259 = vmatpush.bf16.msra.mxu0 %v1244
        %4260 = vmatpush.bf16.msra.mxu0 %v1240
        %4261 = vmatpush.bf16.msra.mxu0 %v1236
        %4262 = vmatpush.bf16.msra.mxu0 %v1232
        %4263 = vmatpush.bf16.msra.mxu0 %v1228
        %4264 = vmatpush.bf16.msra.mxu0 %v1224
        %4265 = vmatmul.bf16.gmra.mxu0 %v3412
        %v4266 = vpop.f32.mrf.mxu0
        %v4267 = vadd.f32 %v4176, %v4266
        %v4268 = vpop.f32.mrf.mxu0
        %4269 = vdwg.mxu0
        %4270 = vmatpush.bf16.msra.mxu0 %v1284
        %4271 = vmatpush.bf16.msra.mxu0 %v1280
        %4272 = vmatpush.bf16.msra.mxu0 %v1276
        %4273 = vmatpush.bf16.msra.mxu0 %v1272
        %4274 = vmatpush.bf16.msra.mxu0 %v1268
        %4275 = vmatpush.bf16.msra.mxu0 %v1264
        %4276 = vmatpush.bf16.msra.mxu0 %v1260
        %4277 = vmatpush.bf16.msra.mxu0 %v1256
        %4278 = vmatmul.bf16.gmra.mxu0 %v3413
        %v4279 = vpop.f32.mrf.mxu0
        %v4280 = vadd.f32 %v4267, %v4279
        %v4281 = vpop.f32.mrf.mxu0
        %4282 = vdwg.mxu0
        %4283 = vmatpush.bf16.msra.mxu0 %v1253
        %4284 = vmatpush.bf16.msra.mxu0 %v1249
        %4285 = vmatpush.bf16.msra.mxu0 %v1245
        %4286 = vmatpush.bf16.msra.mxu0 %v1241
        %4287 = vmatpush.bf16.msra.mxu0 %v1237
        %4288 = vmatpush.bf16.msra.mxu0 %v1233
        %4289 = vmatpush.bf16.msra.mxu0 %v1229
        %4290 = vmatpush.bf16.msra.mxu0 %v1225
        %4291 = vmatmul.bf16.gmra.mxu0 %v3412
        %v4292 = vpop.f32.mrf.mxu0
        %v4293 = vadd.f32 %v4202, %v4292
        %v4294 = vpop.f32.mrf.mxu0
        %4295 = vdwg.mxu0
        %4296 = vmatpush.bf16.msra.mxu0 %v1285
        %4297 = vmatpush.bf16.msra.mxu0 %v1281
        %4298 = vmatpush.bf16.msra.mxu0 %v1277
        %4299 = vmatpush.bf16.msra.mxu0 %v1273
        %4300 = vmatpush.bf16.msra.mxu0 %v1269
        %4301 = vmatpush.bf16.msra.mxu0 %v1265
        %4302 = vmatpush.bf16.msra.mxu0 %v1261
        %4303 = vmatpush.bf16.msra.mxu0 %v1257
        %4304 = vmatmul.bf16.gmra.mxu0 %v3413
        %v4305 = vpop.f32.mrf.mxu0
        %v4306 = vadd.f32 %v4293, %v4305
        %v4307 = vpop.f32.mrf.mxu0
        %4308 = vdwg.mxu0
        %4309 = vmatpush.bf16.msra.mxu0 %v1746
        %4310 = vmatpush.bf16.msra.mxu0 %v1742
        %4311 = vmatpush.bf16.msra.mxu0 %v1738
        %4312 = vmatpush.bf16.msra.mxu0 %v1734
        %4313 = vmatpush.bf16.msra.mxu0 %v1730
        %4314 = vmatpush.bf16.msra.mxu0 %v1726
        %4315 = vmatpush.bf16.msra.mxu0 %v1722
        %4316 = vmatpush.bf16.msra.mxu0 %v1718
        %4317 = vmatmul.bf16.gmra.mxu0 %v3973
        %v4318 = vpop.f32.mrf.mxu0
        %v4319 = vadd.f32 0.0, %v4318
        %v4320 = vpop.f32.mrf.mxu0
        %4321 = vdwg.mxu0
        %4322 = vmatpush.bf16.msra.mxu0 %v1778
        %4323 = vmatpush.bf16.msra.mxu0 %v1774
        %4324 = vmatpush.bf16.msra.mxu0 %v1770
        %4325 = vmatpush.bf16.msra.mxu0 %v1766
        %4326 = vmatpush.bf16.msra.mxu0 %v1762
        %4327 = vmatpush.bf16.msra.mxu0 %v1758
        %4328 = vmatpush.bf16.msra.mxu0 %v1754
        %4329 = vmatpush.bf16.msra.mxu0 %v1750
        %4330 = vmatmul.bf16.gmra.mxu0 %v3980
        %v4331 = vpop.f32.mrf.mxu0
        %v4332 = vadd.f32 %v4319, %v4331
        %v4333 = vpop.f32.mrf.mxu0
        %4334 = vdwg.mxu0
        %4335 = vmatpush.bf16.msra.mxu0 %v1747
        %4336 = vmatpush.bf16.msra.mxu0 %v1743
        %4337 = vmatpush.bf16.msra.mxu0 %v1739
        %4338 = vmatpush.bf16.msra.mxu0 %v1735
        %4339 = vmatpush.bf16.msra.mxu0 %v1731
        %4340 = vmatpush.bf16.msra.mxu0 %v1727
        %4341 = vmatpush.bf16.msra.mxu0 %v1723
        %4342 = vmatpush.bf16.msra.mxu0 %v1719
        %4343 = vmatmul.bf16.gmra.mxu0 %v3973
        %v4344 = vpop.f32.mrf.mxu0
        %v4345 = vadd.f32 0.0, %v4344
        %v4346 = vpop.f32.mrf.mxu0
        %4347 = vdwg.mxu0
        %4348 = vmatpush.bf16.msra.mxu0 %v1779
        %4349 = vmatpush.bf16.msra.mxu0 %v1775
        %4350 = vmatpush.bf16.msra.mxu0 %v1771
        %4351 = vmatpush.bf16.msra.mxu0 %v1767
        %4352 = vmatpush.bf16.msra.mxu0 %v1763
        %4353 = vmatpush.bf16.msra.mxu0 %v1759
        %4354 = vmatpush.bf16.msra.mxu0 %v1755
        %4355 = vmatpush.bf16.msra.mxu0 %v1751
        %4356 = vmatmul.bf16.gmra.mxu0 %v3980
        %v4357 = vpop.f32.mrf.mxu0
        %v4358 = vadd.f32 %v4345, %v4357
        %v4359 = vpop.f32.mrf.mxu0
        %4360 = vdwg.mxu0
        %4361 = vmatpush.bf16.msra.mxu0 %v1748
        %4362 = vmatpush.bf16.msra.mxu0 %v1744
        %4363 = vmatpush.bf16.msra.mxu0 %v1740
        %4364 = vmatpush.bf16.msra.mxu0 %v1736
        %4365 = vmatpush.bf16.msra.mxu0 %v1732
        %4366 = vmatpush.bf16.msra.mxu0 %v1728
        %4367 = vmatpush.bf16.msra.mxu0 %v1724
        %4368 = vmatpush.bf16.msra.mxu0 %v1720
        %4369 = vmatmul.bf16.gmra.mxu0 %v3973
        %v4370 = vpop.f32.mrf.mxu0
        %v4371 = vadd.f32 0.0, %v4370
        %v4372 = vpop.f32.mrf.mxu0
        %4373 = vdwg.mxu0
        %4374 = vmatpush.bf16.msra.mxu0 %v1780
        %4375 = vmatpush.bf16.msra.mxu0 %v1776
        %4376 = vmatpush.bf16.msra.mxu0 %v1772
        %4377 = vmatpush.bf16.msra.mxu0 %v1768
        %4378 = vmatpush.bf16.msra.mxu0 %v1764
        %4379 = vmatpush.bf16.msra.mxu0 %v1760
        %4380 = vmatpush.bf16.msra.mxu0 %v1756
        %4381 = vmatpush.bf16.msra.mxu0 %v1752
        %4382 = vmatmul.bf16.gmra.mxu0 %v3980
        %v4383 = vpop.f32.mrf.mxu0
        %v4384 = vadd.f32 %v4371, %v4383
        %v4385 = vpop.f32.mrf.mxu0
        %4386 = vdwg.mxu0
        %4387 = vmatpush.bf16.msra.mxu0 %v1749
        %4388 = vmatpush.bf16.msra.mxu0 %v1745
        %4389 = vmatpush.bf16.msra.mxu0 %v1741
        %4390 = vmatpush.bf16.msra.mxu0 %v1737
        %4391 = vmatpush.bf16.msra.mxu0 %v1733
        %4392 = vmatpush.bf16.msra.mxu0 %v1729
        %4393 = vmatpush.bf16.msra.mxu0 %v1725
        %4394 = vmatpush.bf16.msra.mxu0 %v1721
        %4395 = vmatmul.bf16.gmra.mxu0 %v3973
        %v4396 = vpop.f32.mrf.mxu0
        %v4397 = vadd.f32 0.0, %v4396
        %v4398 = vpop.f32.mrf.mxu0
        %4399 = vdwg.mxu0
        %4400 = vmatpush.bf16.msra.mxu0 %v1781
        %4401 = vmatpush.bf16.msra.mxu0 %v1777
        %4402 = vmatpush.bf16.msra.mxu0 %v1773
        %4403 = vmatpush.bf16.msra.mxu0 %v1769
        %4404 = vmatpush.bf16.msra.mxu0 %v1765
        %4405 = vmatpush.bf16.msra.mxu0 %v1761
        %4406 = vmatpush.bf16.msra.mxu0 %v1757
        %4407 = vmatpush.bf16.msra.mxu0 %v1753
        %4408 = vmatmul.bf16.gmra.mxu0 %v3980
        %v4409 = vpop.f32.mrf.mxu0
        %v4410 = vadd.f32 %v4397, %v4409
        %v4411 = vpop.f32.mrf.mxu0
        %4412 = vdwg.mxu0
        %v4413 = vadd.f32 %v4228, %v4332
        %v4414 = vadd.f32 %v4254, %v4358
        %v4415 = vadd.f32 %v4280, %v4384
        %v4416 = vadd.f32 %v4306, %v4410
        %v4418 = vshrl.u32 %v595, 16
        %v4420 = vshll.u32 %v595, 16
        %v4422 = vrot.slane %v4420, 1
        %v4423 = vor.u32 %v4418, %v4422
        %v4425 = vshrl.u32 %v596, 16
        %v4427 = vshll.u32 %v596, 16
        %v4429 = vrot.slane %v4427, 1
        %v4430 = vor.u32 %v4425, %v4429
        %4433 = vmatpush.bf16.msra.mxu0 %v2246
        %4434 = vmatpush.bf16.msra.mxu0 %v2242
        %4435 = vmatpush.bf16.msra.mxu0 %v2238
        %4436 = vmatpush.bf16.msra.mxu0 %v2234
        %4437 = vmatpush.bf16.msra.mxu0 %v2230
        %4438 = vmatpush.bf16.msra.mxu0 %v2226
        %4439 = vmatpush.bf16.msra.mxu0 %v2222
        %4440 = vmatpush.bf16.msra.mxu0 %v2218
        %4441 = vmatmul.bf16.gmra.mxu0 %v4423
        %v4442 = vpop.f32.mrf.mxu0
        %v4443 = vadd.f32 0.0, %v4442
        %v4444 = vpop.f32.mrf.mxu0
        %4445 = vdwg.mxu0
        %4446 = vmatpush.bf16.msra.mxu0 %v2278
        %4447 = vmatpush.bf16.msra.mxu0 %v2274
        %4448 = vmatpush.bf16.msra.mxu0 %v2270
        %4449 = vmatpush.bf16.msra.mxu0 %v2266
        %4450 = vmatpush.bf16.msra.mxu0 %v2262
        %4451 = vmatpush.bf16.msra.mxu0 %v2258
        %4452 = vmatpush.bf16.msra.mxu0 %v2254
        %4453 = vmatpush.bf16.msra.mxu0 %v2250
        %4454 = vmatmul.bf16.gmra.mxu0 %v4430
        %v4455 = vpop.f32.mrf.mxu0
        %v4456 = vadd.f32 %v4443, %v4455
        %v4457 = vpop.f32.mrf.mxu0
        %4458 = vdwg.mxu0
        %4459 = vmatpush.bf16.msra.mxu0 %v2247
        %4460 = vmatpush.bf16.msra.mxu0 %v2243
        %4461 = vmatpush.bf16.msra.mxu0 %v2239
        %4462 = vmatpush.bf16.msra.mxu0 %v2235
        %4463 = vmatpush.bf16.msra.mxu0 %v2231
        %4464 = vmatpush.bf16.msra.mxu0 %v2227
        %4465 = vmatpush.bf16.msra.mxu0 %v2223
        %4466 = vmatpush.bf16.msra.mxu0 %v2219
        %4467 = vmatmul.bf16.gmra.mxu0 %v4423
        %v4468 = vpop.f32.mrf.mxu0
        %v4469 = vadd.f32 0.0, %v4468
        %v4470 = vpop.f32.mrf.mxu0
        %4471 = vdwg.mxu0
        %4472 = vmatpush.bf16.msra.mxu0 %v2279
        %4473 = vmatpush.bf16.msra.mxu0 %v2275
        %4474 = vmatpush.bf16.msra.mxu0 %v2271
        %4475 = vmatpush.bf16.msra.mxu0 %v2267
        %4476 = vmatpush.bf16.msra.mxu0 %v2263
        %4477 = vmatpush.bf16.msra.mxu0 %v2259
        %4478 = vmatpush.bf16.msra.mxu0 %v2255
        %4479 = vmatpush.bf16.msra.mxu0 %v2251
        %4480 = vmatmul.bf16.gmra.mxu0 %v4430
        %v4481 = vpop.f32.mrf.mxu0
        %v4482 = vadd.f32 %v4469, %v4481
        %v4483 = vpop.f32.mrf.mxu0
        %4484 = vdwg.mxu0
        %4485 = vmatpush.bf16.msra.mxu0 %v2248
        %4486 = vmatpush.bf16.msra.mxu0 %v2244
        %4487 = vmatpush.bf16.msra.mxu0 %v2240
        %4488 = vmatpush.bf16.msra.mxu0 %v2236
        %4489 = vmatpush.bf16.msra.mxu0 %v2232
        %4490 = vmatpush.bf16.msra.mxu0 %v2228
        %4491 = vmatpush.bf16.msra.mxu0 %v2224
        %4492 = vmatpush.bf16.msra.mxu0 %v2220
        %4493 = vmatmul.bf16.gmra.mxu0 %v4423
        %v4494 = vpop.f32.mrf.mxu0
        %v4495 = vadd.f32 0.0, %v4494
        %v4496 = vpop.f32.mrf.mxu0
        %4497 = vdwg.mxu0
        %4498 = vmatpush.bf16.msra.mxu0 %v2280
        %4499 = vmatpush.bf16.msra.mxu0 %v2276
        %4500 = vmatpush.bf16.msra.mxu0 %v2272
        %4501 = vmatpush.bf16.msra.mxu0 %v2268
        %4502 = vmatpush.bf16.msra.mxu0 %v2264
        %4503 = vmatpush.bf16.msra.mxu0 %v2260
        %4504 = vmatpush.bf16.msra.mxu0 %v2256
        %4505 = vmatpush.bf16.msra.mxu0 %v2252
        %4506 = vmatmul.bf16.gmra.mxu0 %v4430
        %v4507 = vpop.f32.mrf.mxu0
        %v4508 = vadd.f32 %v4495, %v4507
        %v4509 = vpop.f32.mrf.mxu0
        %4510 = vdwg.mxu0
        %4511 = vmatpush.bf16.msra.mxu0 %v2249
        %4512 = vmatpush.bf16.msra.mxu0 %v2245
        %4513 = vmatpush.bf16.msra.mxu0 %v2241
        %4514 = vmatpush.bf16.msra.mxu0 %v2237
        %4515 = vmatpush.bf16.msra.mxu0 %v2233
        %4516 = vmatpush.bf16.msra.mxu0 %v2229
        %4517 = vmatpush.bf16.msra.mxu0 %v2225
        %4518 = vmatpush.bf16.msra.mxu0 %v2221
        %4519 = vmatmul.bf16.gmra.mxu0 %v4423
        %v4520 = vpop.f32.mrf.mxu0
        %v4521 = vadd.f32 0.0, %v4520
        %v4522 = vpop.f32.mrf.mxu0
        %4523 = vdwg.mxu0
        %4524 = vmatpush.bf16.msra.mxu0 %v2281
        %4525 = vmatpush.bf16.msra.mxu0 %v2277
        %4526 = vmatpush.bf16.msra.mxu0 %v2273
        %4527 = vmatpush.bf16.msra.mxu0 %v2269
        %4528 = vmatpush.bf16.msra.mxu0 %v2265
        %4529 = vmatpush.bf16.msra.mxu0 %v2261
        %4530 = vmatpush.bf16.msra.mxu0 %v2257
        %4531 = vmatpush.bf16.msra.mxu0 %v2253
        %4532 = vmatmul.bf16.gmra.mxu0 %v4430
        %v4533 = vpop.f32.mrf.mxu0
        %v4534 = vadd.f32 %v4521, %v4533
        %v4535 = vpop.f32.mrf.mxu0
        %4536 = vdwg.mxu0
        %v4537 = vadd.f32 %v4413, %v4456
        %v4538 = vadd.f32 %v4414, %v4482
        %v4539 = vadd.f32 %v4415, %v4508
        %v4540 = vadd.f32 %v4416, %v4534
        %v4542 = vshrl.u32 %v1522, 16
        %v4544 = vshll.u32 %v1522, 16
        %v4546 = vrot.slane %v4544, 1
        %v4547 = vor.u32 %v4542, %v4546
        %v4549 = vshrl.u32 %v1523, 16
        %v4551 = vshll.u32 %v1523, 16
        %v4553 = vrot.slane %v4551, 1
        %v4554 = vor.u32 %v4549, %v4553
        %4557 = vmatpush.bf16.msra.mxu0 %v2746
        %4558 = vmatpush.bf16.msra.mxu0 %v2742
        %4559 = vmatpush.bf16.msra.mxu0 %v2738
        %4560 = vmatpush.bf16.msra.mxu0 %v2734
        %4561 = vmatpush.bf16.msra.mxu0 %v2730
        %4562 = vmatpush.bf16.msra.mxu0 %v2726
        %4563 = vmatpush.bf16.msra.mxu0 %v2722
        %4564 = vmatpush.bf16.msra.mxu0 %v2718
        %4565 = vmatmul.bf16.gmra.mxu0 %v4547
        %v4566 = vpop.f32.mrf.mxu0
        %v4567 = vadd.f32 0.0, %v4566
        %v4568 = vpop.f32.mrf.mxu0
        %4569 = vdwg.mxu0
        %4570 = vmatpush.bf16.msra.mxu0 %v2778
        %4571 = vmatpush.bf16.msra.mxu0 %v2774
        %4572 = vmatpush.bf16.msra.mxu0 %v2770
        %4573 = vmatpush.bf16.msra.mxu0 %v2766
        %4574 = vmatpush.bf16.msra.mxu0 %v2762
        %4575 = vmatpush.bf16.msra.mxu0 %v2758
        %4576 = vmatpush.bf16.msra.mxu0 %v2754
        %4577 = vmatpush.bf16.msra.mxu0 %v2750
        %4578 = vmatmul.bf16.gmra.mxu0 %v4554
        %v4579 = vpop.f32.mrf.mxu0
        %v4580 = vadd.f32 %v4567, %v4579
        %v4581 = vpop.f32.mrf.mxu0
        %4582 = vdwg.mxu0
        %4583 = vmatpush.bf16.msra.mxu0 %v2747
        %4584 = vmatpush.bf16.msra.mxu0 %v2743
        %4585 = vmatpush.bf16.msra.mxu0 %v2739
        %4586 = vmatpush.bf16.msra.mxu0 %v2735
        %4587 = vmatpush.bf16.msra.mxu0 %v2731
        %4588 = vmatpush.bf16.msra.mxu0 %v2727
        %4589 = vmatpush.bf16.msra.mxu0 %v2723
        %4590 = vmatpush.bf16.msra.mxu0 %v2719
        %4591 = vmatmul.bf16.gmra.mxu0 %v4547
        %v4592 = vpop.f32.mrf.mxu0
        %v4593 = vadd.f32 0.0, %v4592
        %v4594 = vpop.f32.mrf.mxu0
        %4595 = vdwg.mxu0
        %4596 = vmatpush.bf16.msra.mxu0 %v2779
        %4597 = vmatpush.bf16.msra.mxu0 %v2775
        %4598 = vmatpush.bf16.msra.mxu0 %v2771
        %4599 = vmatpush.bf16.msra.mxu0 %v2767
        %4600 = vmatpush.bf16.msra.mxu0 %v2763
        %4601 = vmatpush.bf16.msra.mxu0 %v2759
        %4602 = vmatpush.bf16.msra.mxu0 %v2755
        %4603 = vmatpush.bf16.msra.mxu0 %v2751
        %4604 = vmatmul.bf16.gmra.mxu0 %v4554
        %v4605 = vpop.f32.mrf.mxu0
        %v4606 = vadd.f32 %v4593, %v4605
        %v4607 = vpop.f32.mrf.mxu0
        %4608 = vdwg.mxu0
        %4609 = vmatpush.bf16.msra.mxu0 %v2748
        %4610 = vmatpush.bf16.msra.mxu0 %v2744
        %4611 = vmatpush.bf16.msra.mxu0 %v2740
        %4612 = vmatpush.bf16.msra.mxu0 %v2736
        %4613 = vmatpush.bf16.msra.mxu0 %v2732
        %4614 = vmatpush.bf16.msra.mxu0 %v2728
        %4615 = vmatpush.bf16.msra.mxu0 %v2724
        %4616 = vmatpush.bf16.msra.mxu0 %v2720
        %4617 = vmatmul.bf16.gmra.mxu0 %v4547
        %v4618 = vpop.f32.mrf.mxu0
        %v4619 = vadd.f32 0.0, %v4618
        %v4620 = vpop.f32.mrf.mxu0
        %4621 = vdwg.mxu0
        %4622 = vmatpush.bf16.msra.mxu0 %v2780
        %4623 = vmatpush.bf16.msra.mxu0 %v2776
        %4624 = vmatpush.bf16.msra.mxu0 %v2772
        %4625 = vmatpush.bf16.msra.mxu0 %v2768
        %4626 = vmatpush.bf16.msra.mxu0 %v2764
        %4627 = vmatpush.bf16.msra.mxu0 %v2760
        %4628 = vmatpush.bf16.msra.mxu0 %v2756
        %4629 = vmatpush.bf16.msra.mxu0 %v2752
        %4630 = vmatmul.bf16.gmra.mxu0 %v4554
        %v4631 = vpop.f32.mrf.mxu0
        %v4632 = vadd.f32 %v4619, %v4631
        %v4633 = vpop.f32.mrf.mxu0
        %4634 = vdwg.mxu0
        %4635 = vmatpush.bf16.msra.mxu0 %v2749
        %4636 = vmatpush.bf16.msra.mxu0 %v2745
        %4637 = vmatpush.bf16.msra.mxu0 %v2741
        %4638 = vmatpush.bf16.msra.mxu0 %v2737
        %4639 = vmatpush.bf16.msra.mxu0 %v2733
        %4640 = vmatpush.bf16.msra.mxu0 %v2729
        %4641 = vmatpush.bf16.msra.mxu0 %v2725
        %4642 = vmatpush.bf16.msra.mxu0 %v2721
        %4643 = vmatmul.bf16.gmra.mxu0 %v4547
        %v4644 = vpop.f32.mrf.mxu0
        %v4645 = vadd.f32 0.0, %v4644
        %v4646 = vpop.f32.mrf.mxu0
        %4647 = vdwg.mxu0
        %4648 = vmatpush.bf16.msra.mxu0 %v2781
        %4649 = vmatpush.bf16.msra.mxu0 %v2777
        %4650 = vmatpush.bf16.msra.mxu0 %v2773
        %4651 = vmatpush.bf16.msra.mxu0 %v2769
        %4652 = vmatpush.bf16.msra.mxu0 %v2765
        %4653 = vmatpush.bf16.msra.mxu0 %v2761
        %4654 = vmatpush.bf16.msra.mxu0 %v2757
        %4655 = vmatpush.bf16.msra.mxu0 %v2753
        %4656 = vmatmul.bf16.gmra.mxu0 %v4554
        %v4657 = vpop.f32.mrf.mxu0
        %v4658 = vadd.f32 %v4645, %v4657
        %v4659 = vpop.f32.mrf.mxu0
        %4660 = vdwg.mxu0
        %v4661 = vadd.f32 %v4537, %v4580
        %v4662 = vadd.f32 %v4538, %v4606
        %v4663 = vadd.f32 %v4539, %v4632
        %v4664 = vadd.f32 %v4540, %v4658
        %v4665 = vadd.f32 %v4661, %v2956
        %v4666 = vadd.f32 %v4662, %v2957
        %v4667 = vadd.f32 %v4663, %v2958
        %v4668 = vadd.f32 %v4664, %v2959
        %v4669 = vmax.f32 %v4665, 0.0
        %v4670 = vmax.f32 %v4666, 0.0
        %v4671 = vmax.f32 %v4667, 0.0
        %v4672 = vmax.f32 %v4668, 0.0
        %v4673 = vpack.c.bf16 %v4670, %v4669
        %v4674 = vpack.c.bf16 %v4672, %v4671
        %v4675 = vld [vmem:[#allocation6] sm:$0xff]
        %v4676 = vld [vmem:[#allocation6 + $0x8] sm:$0xf]
        %v4677 = vld [vmem:[#allocation6 + $0xc] sm:$0xff]
        %v4678 = vld [vmem:[#allocation6 + $0x14] sm:$0xf]
        %v4679 = vld [vmem:[#allocation6 + $0x18] sm:$0xff]
        %v4680 = vld [vmem:[#allocation6 + $0x20] sm:$0xf]
        %v4681 = vld [vmem:[#allocation6 + $0x24] sm:$0xff]
        %v4682 = vld [vmem:[#allocation6 + $0x2c] sm:$0xf]
        %v4683 = vld [vmem:[#allocation6 + $0x30] sm:$0xff]
        %v4684 = vld [vmem:[#allocation6 + $0x38] sm:$0xf]
        %v4685 = vld [vmem:[#allocation6 + $0x3c] sm:$0xff]
        %v4686 = vld [vmem:[#allocation6 + $0x44] sm:$0xf]
        %v4687 = vld [vmem:[#allocation6 + $0x48] sm:$0xff]
        %v4688 = vld [vmem:[#allocation6 + $0x50] sm:$0xf]
        %v4689 = vld [vmem:[#allocation6 + $0x54] sm:$0xff]
        %v4690 = vld [vmem:[#allocation6 + $0x5c] sm:$0xf]
        %v4691 = vld [vmem:[#allocation6 + $0x60] sm:$0xff]
        %v4692 = vld [vmem:[#allocation6 + $0x68] sm:$0xf]
        %v4693 = vld [vmem:[#allocation6 + $0x6c] sm:$0xff]
        %v4694 = vld [vmem:[#allocation6 + $0x74] sm:$0xf]
        %v4695 = vld [vmem:[#allocation6 + $0x78] sm:$0xff]
        %v4696 = vld [vmem:[#allocation6 + $0x80] sm:$0xf]
        %v4697 = vld [vmem:[#allocation6 + $0x84] sm:$0xff]
        %v4698 = vld [vmem:[#allocation6 + $0x8c] sm:$0xf]
        %v4699 = vld [vmem:[#allocation6 + $0x90] sm:$0xff]
        %v4700 = vld [vmem:[#allocation6 + $0x98] sm:$0xf]
        %v4701 = vld [vmem:[#allocation6 + $0x9c] sm:$0xff]
        %v4702 = vld [vmem:[#allocation6 + $0xa4] sm:$0xf]
        %v4703 = vld [vmem:[#allocation6 + $0xa8] sm:$0xff]
        %v4704 = vld [vmem:[#allocation6 + $0xb0] sm:$0xf]
        %v4705 = vld [vmem:[#allocation6 + $0xb4] sm:$0xff]
        %v4706 = vld [vmem:[#allocation6 + $0xbc] sm:$0xf]
        %v4707 = vld [vmem:[#allocation6 + $0xc0] sm:$0xff]
        %v4708 = vld [vmem:[#allocation6 + $0xc8] sm:$0xf]
        %v4709 = vld [vmem:[#allocation6 + $0xcc] sm:$0xff]
        %v4710 = vld [vmem:[#allocation6 + $0xd4] sm:$0xf]
        %v4711 = vld [vmem:[#allocation6 + $0xd8] sm:$0xff]
        %v4712 = vld [vmem:[#allocation6 + $0xe0] sm:$0xf]
        %v4713 = vld [vmem:[#allocation6 + $0xe4] sm:$0xff]
        %v4714 = vld [vmem:[#allocation6 + $0xec] sm:$0xf]
        %v4715 = vld [vmem:[#allocation6 + $0xf0] sm:$0xff]
        %v4716 = vld [vmem:[#allocation6 + $0xf8] sm:$0xf]
        %v4717 = vld [vmem:[#allocation6 + $0xfc] sm:$0xff]
        %v4718 = vld [vmem:[#allocation6 + $0x104] sm:$0xf]
        %v4719 = vld [vmem:[#allocation6 + $0x108] sm:$0xff]
        %v4720 = vld [vmem:[#allocation6 + $0x110] sm:$0xf]
        %v4721 = vld [vmem:[#allocation6 + $0x114] sm:$0xff]
        %v4722 = vld [vmem:[#allocation6 + $0x11c] sm:$0xf]
        %v4723 = vld [vmem:[#allocation6 + $0x120] sm:$0xff]
        %v4724 = vld [vmem:[#allocation6 + $0x128] sm:$0xf]
        %v4725 = vld [vmem:[#allocation6 + $0x12c] sm:$0xff]
        %v4726 = vld [vmem:[#allocation6 + $0x134] sm:$0xf]
        %v4727 = vld [vmem:[#allocation6 + $0x138] sm:$0xff]
        %v4728 = vld [vmem:[#allocation6 + $0x140] sm:$0xf]
        %v4729 = vld [vmem:[#allocation6 + $0x144] sm:$0xff]
        %v4730 = vld [vmem:[#allocation6 + $0x14c] sm:$0xf]
        %v4731 = vld [vmem:[#allocation6 + $0x150] sm:$0xff]
        %v4732 = vld [vmem:[#allocation6 + $0x158] sm:$0xf]
        %v4733 = vld [vmem:[#allocation6 + $0x15c] sm:$0xff]
        %v4734 = vld [vmem:[#allocation6 + $0x164] sm:$0xf]
        %v4735 = vld [vmem:[#allocation6 + $0x168] sm:$0xff]
        %v4736 = vld [vmem:[#allocation6 + $0x170] sm:$0xf]
        %v4737 = vld [vmem:[#allocation6 + $0x174] sm:$0xff]
        %v4738 = vld [vmem:[#allocation6 + $0x17c] sm:$0xf]
        %v4739 = vld [vmem:[#allocation6 + $0x180] sm:$0xff]
        %v4740 = vld [vmem:[#allocation6 + $0x188] sm:$0xf]
        %v4741 = vld [vmem:[#allocation6 + $0x18c] sm:$0xff]
        %v4742 = vld [vmem:[#allocation6 + $0x194] sm:$0xf]
        %v4743 = vld [vmem:[#allocation6 + $0x198] sm:$0xff]
        %v4744 = vld [vmem:[#allocation6 + $0x1a0] sm:$0xf]
        %v4745 = vld [vmem:[#allocation6 + $0x1a4] sm:$0xff]
        %v4746 = vld [vmem:[#allocation6 + $0x1ac] sm:$0xf]
        %v4747 = vld [vmem:[#allocation6 + $0x1b0] sm:$0xff]
        %v4748 = vld [vmem:[#allocation6 + $0x1b8] sm:$0xf]
        %v4749 = vld [vmem:[#allocation6 + $0x1bc] sm:$0xff]
        %v4750 = vld [vmem:[#allocation6 + $0x1c4] sm:$0xf]
        %v4751 = vld [vmem:[#allocation6 + $0x1c8] sm:$0xff]
        %v4752 = vld [vmem:[#allocation6 + $0x1d0] sm:$0xf]
        %v4753 = vld [vmem:[#allocation6 + $0x1d4] sm:$0xff]
        %v4754 = vld [vmem:[#allocation6 + $0x1dc] sm:$0xf]
        %v4755 = vld [vmem:[#allocation6 + $0x1e0] sm:$0xff]
        %v4756 = vld [vmem:[#allocation6 + $0x1e8] sm:$0xf]
        %v4757 = vld [vmem:[#allocation6 + $0x1ec] sm:$0xff]
        %v4758 = vld [vmem:[#allocation6 + $0x1f4] sm:$0xf]
        %v4759 = vld [vmem:[#allocation6 + $0x1f8] sm:$0xff]
        %v4760 = vld [vmem:[#allocation6 + $0x200] sm:$0xf]
        %v4761 = vld [vmem:[#allocation6 + $0x204] sm:$0xff]
        %v4762 = vld [vmem:[#allocation6 + $0x20c] sm:$0xf]
        %v4763 = vld [vmem:[#allocation6 + $0x210] sm:$0xff]
        %v4764 = vld [vmem:[#allocation6 + $0x218] sm:$0xf]
        %v4765 = vld [vmem:[#allocation6 + $0x21c] sm:$0xff]
        %v4766 = vld [vmem:[#allocation6 + $0x224] sm:$0xf]
        %v4767 = vld [vmem:[#allocation6 + $0x228] sm:$0xff]
        %v4768 = vld [vmem:[#allocation6 + $0x230] sm:$0xf]
        %v4769 = vld [vmem:[#allocation6 + $0x234] sm:$0xff]
        %v4770 = vld [vmem:[#allocation6 + $0x23c] sm:$0xf]
        %v4771 = vld [vmem:[#allocation6 + $0x240] sm:$0xff]
        %v4772 = vld [vmem:[#allocation6 + $0x248] sm:$0xf]
        %v4773 = vld [vmem:[#allocation6 + $0x24c] sm:$0xff]
        %v4774 = vld [vmem:[#allocation6 + $0x254] sm:$0xf]
        %v4775 = vld [vmem:[#allocation6 + $0x258] sm:$0xff]
        %v4776 = vld [vmem:[#allocation6 + $0x260] sm:$0xf]
        %v4777 = vld [vmem:[#allocation6 + $0x264] sm:$0xff]
        %v4778 = vld [vmem:[#allocation6 + $0x26c] sm:$0xf]
        %v4779 = vld [vmem:[#allocation6 + $0x270] sm:$0xff]
        %v4780 = vld [vmem:[#allocation6 + $0x278] sm:$0xf]
        %v4781 = vld [vmem:[#allocation6 + $0x27c] sm:$0xff]
        %v4782 = vld [vmem:[#allocation6 + $0x284] sm:$0xf]
        %v4783 = vld [vmem:[#allocation6 + $0x288] sm:$0xff]
        %v4784 = vld [vmem:[#allocation6 + $0x290] sm:$0xf]
        %v4785 = vld [vmem:[#allocation6 + $0x294] sm:$0xff]
        %v4786 = vld [vmem:[#allocation6 + $0x29c] sm:$0xf]
        %v4787 = vld [vmem:[#allocation6 + $0x2a0] sm:$0xff]
        %v4788 = vld [vmem:[#allocation6 + $0x2a8] sm:$0xf]
        %v4789 = vld [vmem:[#allocation6 + $0x2ac] sm:$0xff]
        %v4790 = vld [vmem:[#allocation6 + $0x2b4] sm:$0xf]
        %v4791 = vld [vmem:[#allocation6 + $0x2b8] sm:$0xff]
        %v4792 = vld [vmem:[#allocation6 + $0x2c0] sm:$0xf]
        %v4793 = vld [vmem:[#allocation6 + $0x2c4] sm:$0xff]
        %v4794 = vld [vmem:[#allocation6 + $0x2cc] sm:$0xf]
        %v4795 = vld [vmem:[#allocation6 + $0x2d0] sm:$0xff]
        %v4796 = vld [vmem:[#allocation6 + $0x2d8] sm:$0xf]
        %v4797 = vld [vmem:[#allocation6 + $0x2dc] sm:$0xff]
        %v4798 = vld [vmem:[#allocation6 + $0x2e4] sm:$0xf]
        %v4799 = vld [vmem:[#allocation6 + $0x2e8] sm:$0xff]
        %v4800 = vld [vmem:[#allocation6 + $0x2f0] sm:$0xf]
        %v4801 = vld [vmem:[#allocation6 + $0x2f4] sm:$0xff]
        %v4802 = vld [vmem:[#allocation6 + $0x2fc] sm:$0xf]
        %s4803 = scalar_lea.vmem [#allocation6], 768
        %v4804 = vld [vmem:[%s4803] sm:$0xff]
        %v4805 = vld [vmem:[%s4803 + $0x8] sm:$0xf]
        %v4806 = vld [vmem:[%s4803 + $0xc] sm:$0xff]
        %v4807 = vld [vmem:[%s4803 + $0x14] sm:$0xf]
        %v4808 = vld [vmem:[%s4803 + $0x18] sm:$0xff]
        %v4809 = vld [vmem:[%s4803 + $0x20] sm:$0xf]
        %v4810 = vld [vmem:[%s4803 + $0x24] sm:$0xff]
        %v4811 = vld [vmem:[%s4803 + $0x2c] sm:$0xf]
        %v4812 = vld [vmem:[%s4803 + $0x30] sm:$0xff]
        %v4813 = vld [vmem:[%s4803 + $0x38] sm:$0xf]
        %v4814 = vld [vmem:[%s4803 + $0x3c] sm:$0xff]
        %v4815 = vld [vmem:[%s4803 + $0x44] sm:$0xf]
        %v4816 = vld [vmem:[%s4803 + $0x48] sm:$0xff]
        %v4817 = vld [vmem:[%s4803 + $0x50] sm:$0xf]
        %v4818 = vld [vmem:[%s4803 + $0x54] sm:$0xff]
        %v4819 = vld [vmem:[%s4803 + $0x5c] sm:$0xf]
        %v4820 = vld [vmem:[%s4803 + $0x60] sm:$0xff]
        %v4821 = vld [vmem:[%s4803 + $0x68] sm:$0xf]
        %v4822 = vld [vmem:[%s4803 + $0x6c] sm:$0xff]
        %v4823 = vld [vmem:[%s4803 + $0x74] sm:$0xf]
        %v4824 = vld [vmem:[%s4803 + $0x78] sm:$0xff]
        %v4825 = vld [vmem:[%s4803 + $0x80] sm:$0xf]
        %v4826 = vld [vmem:[%s4803 + $0x84] sm:$0xff]
        %v4827 = vld [vmem:[%s4803 + $0x8c] sm:$0xf]
        %v4828 = vld [vmem:[%s4803 + $0x90] sm:$0xff]
        %v4829 = vld [vmem:[%s4803 + $0x98] sm:$0xf]
        %v4830 = vld [vmem:[%s4803 + $0x9c] sm:$0xff]
        %v4831 = vld [vmem:[%s4803 + $0xa4] sm:$0xf]
        %v4832 = vld [vmem:[%s4803 + $0xa8] sm:$0xff]
        %v4833 = vld [vmem:[%s4803 + $0xb0] sm:$0xf]
        %v4834 = vld [vmem:[%s4803 + $0xb4] sm:$0xff]
        %v4835 = vld [vmem:[%s4803 + $0xbc] sm:$0xf]
        %v4836 = vld [vmem:[%s4803 + $0xc0] sm:$0xff]
        %v4837 = vld [vmem:[%s4803 + $0xc8] sm:$0xf]
        %v4838 = vld [vmem:[%s4803 + $0xcc] sm:$0xff]
        %v4839 = vld [vmem:[%s4803 + $0xd4] sm:$0xf]
        %v4840 = vld [vmem:[%s4803 + $0xd8] sm:$0xff]
        %v4841 = vld [vmem:[%s4803 + $0xe0] sm:$0xf]
        %v4842 = vld [vmem:[%s4803 + $0xe4] sm:$0xff]
        %v4843 = vld [vmem:[%s4803 + $0xec] sm:$0xf]
        %v4844 = vld [vmem:[%s4803 + $0xf0] sm:$0xff]
        %v4845 = vld [vmem:[%s4803 + $0xf8] sm:$0xf]
        %v4846 = vld [vmem:[%s4803 + $0xfc] sm:$0xff]
        %v4847 = vld [vmem:[%s4803 + $0x104] sm:$0xf]
        %v4848 = vld [vmem:[%s4803 + $0x108] sm:$0xff]
        %v4849 = vld [vmem:[%s4803 + $0x110] sm:$0xf]
        %v4850 = vld [vmem:[%s4803 + $0x114] sm:$0xff]
        %v4851 = vld [vmem:[%s4803 + $0x11c] sm:$0xf]
        %v4852 = vld [vmem:[%s4803 + $0x120] sm:$0xff]
        %v4853 = vld [vmem:[%s4803 + $0x128] sm:$0xf]
        %v4854 = vld [vmem:[%s4803 + $0x12c] sm:$0xff]
        %v4855 = vld [vmem:[%s4803 + $0x134] sm:$0xf]
        %v4856 = vld [vmem:[%s4803 + $0x138] sm:$0xff]
        %v4857 = vld [vmem:[%s4803 + $0x140] sm:$0xf]
        %v4858 = vld [vmem:[%s4803 + $0x144] sm:$0xff]
        %v4859 = vld [vmem:[%s4803 + $0x14c] sm:$0xf]
        %v4860 = vld [vmem:[%s4803 + $0x150] sm:$0xff]
        %v4861 = vld [vmem:[%s4803 + $0x158] sm:$0xf]
        %v4862 = vld [vmem:[%s4803 + $0x15c] sm:$0xff]
        %v4863 = vld [vmem:[%s4803 + $0x164] sm:$0xf]
        %v4864 = vld [vmem:[%s4803 + $0x168] sm:$0xff]
        %v4865 = vld [vmem:[%s4803 + $0x170] sm:$0xf]
        %v4866 = vld [vmem:[%s4803 + $0x174] sm:$0xff]
        %v4867 = vld [vmem:[%s4803 + $0x17c] sm:$0xf]
        %v4868 = vld [vmem:[%s4803 + $0x180] sm:$0xff]
        %v4869 = vld [vmem:[%s4803 + $0x188] sm:$0xf]
        %v4870 = vld [vmem:[%s4803 + $0x18c] sm:$0xff]
        %v4871 = vld [vmem:[%s4803 + $0x194] sm:$0xf]
        %v4872 = vld [vmem:[%s4803 + $0x198] sm:$0xff]
        %v4873 = vld [vmem:[%s4803 + $0x1a0] sm:$0xf]
        %v4874 = vld [vmem:[%s4803 + $0x1a4] sm:$0xff]
        %v4875 = vld [vmem:[%s4803 + $0x1ac] sm:$0xf]
        %v4876 = vld [vmem:[%s4803 + $0x1b0] sm:$0xff]
        %v4877 = vld [vmem:[%s4803 + $0x1b8] sm:$0xf]
        %v4878 = vld [vmem:[%s4803 + $0x1bc] sm:$0xff]
        %v4879 = vld [vmem:[%s4803 + $0x1c4] sm:$0xf]
        %v4880 = vld [vmem:[%s4803 + $0x1c8] sm:$0xff]
        %v4881 = vld [vmem:[%s4803 + $0x1d0] sm:$0xf]
        %v4882 = vld [vmem:[%s4803 + $0x1d4] sm:$0xff]
        %v4883 = vld [vmem:[%s4803 + $0x1dc] sm:$0xf]
        %v4884 = vld [vmem:[%s4803 + $0x1e0] sm:$0xff]
        %v4885 = vld [vmem:[%s4803 + $0x1e8] sm:$0xf]
        %v4886 = vld [vmem:[%s4803 + $0x1ec] sm:$0xff]
        %v4887 = vld [vmem:[%s4803 + $0x1f4] sm:$0xf]
        %v4888 = vld [vmem:[%s4803 + $0x1f8] sm:$0xff]
        %v4889 = vld [vmem:[%s4803 + $0x200] sm:$0xf]
        %v4890 = vld [vmem:[%s4803 + $0x204] sm:$0xff]
        %v4891 = vld [vmem:[%s4803 + $0x20c] sm:$0xf]
        %v4892 = vld [vmem:[%s4803 + $0x210] sm:$0xff]
        %v4893 = vld [vmem:[%s4803 + $0x218] sm:$0xf]
        %v4894 = vld [vmem:[%s4803 + $0x21c] sm:$0xff]
        %v4895 = vld [vmem:[%s4803 + $0x224] sm:$0xf]
        %v4896 = vld [vmem:[%s4803 + $0x228] sm:$0xff]
        %v4897 = vld [vmem:[%s4803 + $0x230] sm:$0xf]
        %v4898 = vld [vmem:[%s4803 + $0x234] sm:$0xff]
        %v4899 = vld [vmem:[%s4803 + $0x23c] sm:$0xf]
        %v4900 = vld [vmem:[%s4803 + $0x240] sm:$0xff]
        %v4901 = vld [vmem:[%s4803 + $0x248] sm:$0xf]
        %v4902 = vld [vmem:[%s4803 + $0x24c] sm:$0xff]
        %v4903 = vld [vmem:[%s4803 + $0x254] sm:$0xf]
        %v4904 = vld [vmem:[%s4803 + $0x258] sm:$0xff]
        %v4905 = vld [vmem:[%s4803 + $0x260] sm:$0xf]
        %v4906 = vld [vmem:[%s4803 + $0x264] sm:$0xff]
        %v4907 = vld [vmem:[%s4803 + $0x26c] sm:$0xf]
        %v4908 = vld [vmem:[%s4803 + $0x270] sm:$0xff]
        %v4909 = vld [vmem:[%s4803 + $0x278] sm:$0xf]
        %v4910 = vld [vmem:[%s4803 + $0x27c] sm:$0xff]
        %v4911 = vld [vmem:[%s4803 + $0x284] sm:$0xf]
        %v4912 = vld [vmem:[%s4803 + $0x288] sm:$0xff]
        %v4913 = vld [vmem:[%s4803 + $0x290] sm:$0xf]
        %v4914 = vld [vmem:[%s4803 + $0x294] sm:$0xff]
        %v4915 = vld [vmem:[%s4803 + $0x29c] sm:$0xf]
        %v4916 = vld [vmem:[%s4803 + $0x2a0] sm:$0xff]
        %v4917 = vld [vmem:[%s4803 + $0x2a8] sm:$0xf]
        %v4918 = vld [vmem:[%s4803 + $0x2ac] sm:$0xff]
        %v4919 = vld [vmem:[%s4803 + $0x2b4] sm:$0xf]
        %v4920 = vld [vmem:[%s4803 + $0x2b8] sm:$0xff]
        %v4921 = vld [vmem:[%s4803 + $0x2c0] sm:$0xf]
        %v4922 = vld [vmem:[%s4803 + $0x2c4] sm:$0xff]
        %v4923 = vld [vmem:[%s4803 + $0x2cc] sm:$0xf]
        %v4924 = vld [vmem:[%s4803 + $0x2d0] sm:$0xff]
        %v4925 = vld [vmem:[%s4803 + $0x2d8] sm:$0xf]
        %v4926 = vld [vmem:[%s4803 + $0x2dc] sm:$0xff]
        %v4927 = vld [vmem:[%s4803 + $0x2e4] sm:$0xf]
        %v4928 = vld [vmem:[%s4803 + $0x2e8] sm:$0xff]
        %v4929 = vld [vmem:[%s4803 + $0x2f0] sm:$0xf]
        %v4930 = vld [vmem:[%s4803 + $0x2f4] sm:$0xff]
        %v4931 = vld [vmem:[%s4803 + $0x2fc] sm:$0xf]
        %v4934 = vunpack.c.l.b16 %v3532
        %v4935 = vunpack.c.h.b16 %v3532
        %v4936 = vunpack.c.l.b16 %v3533
        %v4937 = vunpack.c.h.b16 %v3533
        %v4938 = vpack.c.b16 %v4934, %v4934
        %v4939 = vpack.c.b16 %v4935, %v4935
        %v4940 = vpack.c.b16 %v4936, %v4936
        %v4941 = vpack.c.b16 %v4937, %v4937
        %v5074 = vunpack.c.l.b16 %v4804
        %v5075 = vunpack.c.h.b16 %v4804
        %v5076 = vunpack.c.l.b16 %v4805
        %v5077 = vunpack.c.l.b16 %v4806
        %v5078 = vunpack.c.h.b16 %v4806
        %v5079 = vunpack.c.l.b16 %v4807
        %v5080 = vunpack.c.l.b16 %v4808
        %v5081 = vunpack.c.h.b16 %v4808
        %v5082 = vunpack.c.l.b16 %v4809
        %v5083 = vunpack.c.l.b16 %v4810
        %v5084 = vunpack.c.h.b16 %v4810
        %v5085 = vunpack.c.l.b16 %v4811
        %v5086 = vunpack.c.l.b16 %v4812
        %v5087 = vunpack.c.h.b16 %v4812
        %v5088 = vunpack.c.l.b16 %v4813
        %v5089 = vunpack.c.l.b16 %v4814
        %v5090 = vunpack.c.h.b16 %v4814
        %v5091 = vunpack.c.l.b16 %v4815
        %v5092 = vunpack.c.l.b16 %v4816
        %v5093 = vunpack.c.h.b16 %v4816
        %v5094 = vunpack.c.l.b16 %v4817
        %v5095 = vunpack.c.l.b16 %v4818
        %v5096 = vunpack.c.h.b16 %v4818
        %v5097 = vunpack.c.l.b16 %v4819
        %v5098 = vunpack.c.l.b16 %v4820
        %v5099 = vunpack.c.h.b16 %v4820
        %v5100 = vunpack.c.l.b16 %v4821
        %v5101 = vunpack.c.l.b16 %v4822
        %v5102 = vunpack.c.h.b16 %v4822
        %v5103 = vunpack.c.l.b16 %v4823
        %v5104 = vunpack.c.l.b16 %v4824
        %v5105 = vunpack.c.h.b16 %v4824
        %v5106 = vunpack.c.l.b16 %v4825
        %v5107 = vunpack.c.l.b16 %v4826
        %v5108 = vunpack.c.h.b16 %v4826
        %v5109 = vunpack.c.l.b16 %v4827
        %v5110 = vunpack.c.l.b16 %v4828
        %v5111 = vunpack.c.h.b16 %v4828
        %v5112 = vunpack.c.l.b16 %v4829
        %v5113 = vunpack.c.l.b16 %v4830
        %v5114 = vunpack.c.h.b16 %v4830
        %v5115 = vunpack.c.l.b16 %v4831
        %v5116 = vunpack.c.l.b16 %v4832
        %v5117 = vunpack.c.h.b16 %v4832
        %v5118 = vunpack.c.l.b16 %v4833
        %v5119 = vunpack.c.l.b16 %v4834
        %v5120 = vunpack.c.h.b16 %v4834
        %v5121 = vunpack.c.l.b16 %v4835
        %v5122 = vunpack.c.l.b16 %v4836
        %v5123 = vunpack.c.h.b16 %v4836
        %v5124 = vunpack.c.l.b16 %v4837
        %v5125 = vunpack.c.l.b16 %v4838
        %v5126 = vunpack.c.h.b16 %v4838
        %v5127 = vunpack.c.l.b16 %v4839
        %v5128 = vunpack.c.l.b16 %v4840
        %v5129 = vunpack.c.h.b16 %v4840
        %v5130 = vunpack.c.l.b16 %v4841
        %v5131 = vunpack.c.l.b16 %v4842
        %v5132 = vunpack.c.h.b16 %v4842
        %v5133 = vunpack.c.l.b16 %v4843
        %v5134 = vunpack.c.l.b16 %v4844
        %v5135 = vunpack.c.h.b16 %v4844
        %v5136 = vunpack.c.l.b16 %v4845
        %v5137 = vunpack.c.l.b16 %v4846
        %v5138 = vunpack.c.h.b16 %v4846
        %v5139 = vunpack.c.l.b16 %v4847
        %v5140 = vunpack.c.l.b16 %v4848
        %v5141 = vunpack.c.h.b16 %v4848
        %v5142 = vunpack.c.l.b16 %v4849
        %v5143 = vunpack.c.l.b16 %v4850
        %v5144 = vunpack.c.h.b16 %v4850
        %v5145 = vunpack.c.l.b16 %v4851
        %v5146 = vunpack.c.l.b16 %v4852
        %v5147 = vunpack.c.h.b16 %v4852
        %v5148 = vunpack.c.l.b16 %v4853
        %v5149 = vunpack.c.l.b16 %v4854
        %v5150 = vunpack.c.h.b16 %v4854
        %v5151 = vunpack.c.l.b16 %v4855
        %v5152 = vunpack.c.l.b16 %v4856
        %v5153 = vunpack.c.h.b16 %v4856
        %v5154 = vunpack.c.l.b16 %v4857
        %v5155 = vunpack.c.l.b16 %v4858
        %v5156 = vunpack.c.h.b16 %v4858
        %v5157 = vunpack.c.l.b16 %v4859
        %v5158 = vunpack.c.l.b16 %v4860
        %v5159 = vunpack.c.h.b16 %v4860
        %v5160 = vunpack.c.l.b16 %v4861
        %v5161 = vunpack.c.l.b16 %v4862
        %v5162 = vunpack.c.h.b16 %v4862
        %v5163 = vunpack.c.l.b16 %v4863
        %v5164 = vunpack.c.l.b16 %v4864
        %v5165 = vunpack.c.h.b16 %v4864
        %v5166 = vunpack.c.l.b16 %v4865
        %v5167 = vunpack.c.l.b16 %v4866
        %v5168 = vunpack.c.h.b16 %v4866
        %v5169 = vunpack.c.l.b16 %v4867
        %v5170 = vunpack.c.l.b16 %v4868
        %v5171 = vunpack.c.h.b16 %v4868
        %v5172 = vunpack.c.l.b16 %v4869
        %v5173 = vunpack.c.l.b16 %v4870
        %v5174 = vunpack.c.h.b16 %v4870
        %v5175 = vunpack.c.l.b16 %v4871
        %v5176 = vunpack.c.l.b16 %v4872
        %v5177 = vunpack.c.h.b16 %v4872
        %v5178 = vunpack.c.l.b16 %v4873
        %v5179 = vunpack.c.l.b16 %v4874
        %v5180 = vunpack.c.h.b16 %v4874
        %v5181 = vunpack.c.l.b16 %v4875
        %v5182 = vunpack.c.l.b16 %v4876
        %v5183 = vunpack.c.h.b16 %v4876
        %v5184 = vunpack.c.l.b16 %v4877
        %v5185 = vunpack.c.l.b16 %v4878
        %v5186 = vunpack.c.h.b16 %v4878
        %v5187 = vunpack.c.l.b16 %v4879
        %v5188 = vunpack.c.l.b16 %v4880
        %v5189 = vunpack.c.h.b16 %v4880
        %v5190 = vunpack.c.l.b16 %v4881
        %v5191 = vunpack.c.l.b16 %v4882
        %v5192 = vunpack.c.h.b16 %v4882
        %v5193 = vunpack.c.l.b16 %v4883
        %v5194 = vunpack.c.l.b16 %v4884
        %v5195 = vunpack.c.h.b16 %v4884
        %v5196 = vunpack.c.l.b16 %v4885
        %v5197 = vunpack.c.l.b16 %v4886
        %v5198 = vunpack.c.h.b16 %v4886
        %v5199 = vunpack.c.l.b16 %v4887
        %v5200 = vunpack.c.l.b16 %v4888
        %v5201 = vunpack.c.h.b16 %v4888
        %v5202 = vunpack.c.l.b16 %v4889
        %v5203 = vunpack.c.l.b16 %v4890
        %v5204 = vunpack.c.h.b16 %v4890
        %v5205 = vunpack.c.l.b16 %v4891
        %v5206 = vunpack.c.l.b16 %v4892
        %v5207 = vunpack.c.h.b16 %v4892
        %v5208 = vunpack.c.l.b16 %v4893
        %v5209 = vunpack.c.l.b16 %v4894
        %v5210 = vunpack.c.h.b16 %v4894
        %v5211 = vunpack.c.l.b16 %v4895
        %v5212 = vunpack.c.l.b16 %v4896
        %v5213 = vunpack.c.h.b16 %v4896
        %v5214 = vunpack.c.l.b16 %v4897
        %v5215 = vunpack.c.l.b16 %v4898
        %v5216 = vunpack.c.h.b16 %v4898
        %v5217 = vunpack.c.l.b16 %v4899
        %v5218 = vunpack.c.l.b16 %v4900
        %v5219 = vunpack.c.h.b16 %v4900
        %v5220 = vunpack.c.l.b16 %v4901
        %v5221 = vunpack.c.l.b16 %v4902
        %v5222 = vunpack.c.h.b16 %v4902
        %v5223 = vunpack.c.l.b16 %v4903
        %v5224 = vunpack.c.l.b16 %v4904
        %v5225 = vunpack.c.h.b16 %v4904
        %v5226 = vunpack.c.l.b16 %v4905
        %v5227 = vunpack.c.l.b16 %v4906
        %v5228 = vunpack.c.h.b16 %v4906
        %v5229 = vunpack.c.l.b16 %v4907
        %v5230 = vunpack.c.l.b16 %v4908
        %v5231 = vunpack.c.h.b16 %v4908
        %v5232 = vunpack.c.l.b16 %v4909
        %v5233 = vunpack.c.l.b16 %v4910
        %v5234 = vunpack.c.h.b16 %v4910
        %v5235 = vunpack.c.l.b16 %v4911
        %v5236 = vunpack.c.l.b16 %v4912
        %v5237 = vunpack.c.h.b16 %v4912
        %v5238 = vunpack.c.l.b16 %v4913
        %v5239 = vunpack.c.l.b16 %v4914
        %v5240 = vunpack.c.h.b16 %v4914
        %v5241 = vunpack.c.l.b16 %v4915
        %v5242 = vunpack.c.l.b16 %v4916
        %v5243 = vunpack.c.h.b16 %v4916
        %v5244 = vunpack.c.l.b16 %v4917
        %v5245 = vunpack.c.l.b16 %v4918
        %v5246 = vunpack.c.h.b16 %v4918
        %v5247 = vunpack.c.l.b16 %v4919
        %v5248 = vunpack.c.l.b16 %v4920
        %v5249 = vunpack.c.h.b16 %v4920
        %v5250 = vunpack.c.l.b16 %v4921
        %v5251 = vunpack.c.l.b16 %v4922
        %v5252 = vunpack.c.h.b16 %v4922
        %v5253 = vunpack.c.l.b16 %v4923
        %v5254 = vunpack.c.l.b16 %v4924
        %v5255 = vunpack.c.h.b16 %v4924
        %v5256 = vunpack.c.l.b16 %v4925
        %v5257 = vunpack.c.l.b16 %v4926
        %v5258 = vunpack.c.h.b16 %v4926
        %v5259 = vunpack.c.l.b16 %v4927
        %v5260 = vunpack.c.l.b16 %v4928
        %v5261 = vunpack.c.h.b16 %v4928
        %v5262 = vunpack.c.l.b16 %v4929
        %v5263 = vunpack.c.l.b16 %v4930
        %v5264 = vunpack.c.h.b16 %v4930
        %v5265 = vunpack.c.l.b16 %v4931
        %v5266 = vpack.c.b16 %v5077, %v5074
        %v5267 = vpack.c.b16 %v5078, %v5075
        %v5268 = vpack.c.b16 %v5079, %v5076
        %v5269 = vpack.c.b16 %v5083, %v5080
        %v5270 = vpack.c.b16 %v5084, %v5081
        %v5271 = vpack.c.b16 %v5085, %v5082
        %v5272 = vpack.c.b16 %v5089, %v5086
        %v5273 = vpack.c.b16 %v5090, %v5087
        %v5274 = vpack.c.b16 %v5091, %v5088
        %v5275 = vpack.c.b16 %v5095, %v5092
        %v5276 = vpack.c.b16 %v5096, %v5093
        %v5277 = vpack.c.b16 %v5097, %v5094
        %v5278 = vpack.c.b16 %v5101, %v5098
        %v5279 = vpack.c.b16 %v5102, %v5099
        %v5280 = vpack.c.b16 %v5103, %v5100
        %v5281 = vpack.c.b16 %v5107, %v5104
        %v5282 = vpack.c.b16 %v5108, %v5105
        %v5283 = vpack.c.b16 %v5109, %v5106
        %v5284 = vpack.c.b16 %v5113, %v5110
        %v5285 = vpack.c.b16 %v5114, %v5111
        %v5286 = vpack.c.b16 %v5115, %v5112
        %v5287 = vpack.c.b16 %v5119, %v5116
        %v5288 = vpack.c.b16 %v5120, %v5117
        %v5289 = vpack.c.b16 %v5121, %v5118
        %v5290 = vpack.c.b16 %v5125, %v5122
        %v5291 = vpack.c.b16 %v5126, %v5123
        %v5292 = vpack.c.b16 %v5127, %v5124
        %v5293 = vpack.c.b16 %v5131, %v5128
        %v5294 = vpack.c.b16 %v5132, %v5129
        %v5295 = vpack.c.b16 %v5133, %v5130
        %v5296 = vpack.c.b16 %v5137, %v5134
        %v5297 = vpack.c.b16 %v5138, %v5135
        %v5298 = vpack.c.b16 %v5139, %v5136
        %v5299 = vpack.c.b16 %v5143, %v5140
        %v5300 = vpack.c.b16 %v5144, %v5141
        %v5301 = vpack.c.b16 %v5145, %v5142
        %v5302 = vpack.c.b16 %v5149, %v5146
        %v5303 = vpack.c.b16 %v5150, %v5147
        %v5304 = vpack.c.b16 %v5151, %v5148
        %v5305 = vpack.c.b16 %v5155, %v5152
        %v5306 = vpack.c.b16 %v5156, %v5153
        %v5307 = vpack.c.b16 %v5157, %v5154
        %v5308 = vpack.c.b16 %v5161, %v5158
        %v5309 = vpack.c.b16 %v5162, %v5159
        %v5310 = vpack.c.b16 %v5163, %v5160
        %v5311 = vpack.c.b16 %v5167, %v5164
        %v5312 = vpack.c.b16 %v5168, %v5165
        %v5313 = vpack.c.b16 %v5169, %v5166
        %v5314 = vpack.c.b16 %v5173, %v5170
        %v5315 = vpack.c.b16 %v5174, %v5171
        %v5316 = vpack.c.b16 %v5175, %v5172
        %v5317 = vpack.c.b16 %v5179, %v5176
        %v5318 = vpack.c.b16 %v5180, %v5177
        %v5319 = vpack.c.b16 %v5181, %v5178
        %v5320 = vpack.c.b16 %v5185, %v5182
        %v5321 = vpack.c.b16 %v5186, %v5183
        %v5322 = vpack.c.b16 %v5187, %v5184
        %v5323 = vpack.c.b16 %v5191, %v5188
        %v5324 = vpack.c.b16 %v5192, %v5189
        %v5325 = vpack.c.b16 %v5193, %v5190
        %v5326 = vpack.c.b16 %v5197, %v5194
        %v5327 = vpack.c.b16 %v5198, %v5195
        %v5328 = vpack.c.b16 %v5199, %v5196
        %v5329 = vpack.c.b16 %v5203, %v5200
        %v5330 = vpack.c.b16 %v5204, %v5201
        %v5331 = vpack.c.b16 %v5205, %v5202
        %v5332 = vpack.c.b16 %v5209, %v5206
        %v5333 = vpack.c.b16 %v5210, %v5207
        %v5334 = vpack.c.b16 %v5211, %v5208
        %v5335 = vpack.c.b16 %v5215, %v5212
        %v5336 = vpack.c.b16 %v5216, %v5213
        %v5337 = vpack.c.b16 %v5217, %v5214
        %v5338 = vpack.c.b16 %v5221, %v5218
        %v5339 = vpack.c.b16 %v5222, %v5219
        %v5340 = vpack.c.b16 %v5223, %v5220
        %v5341 = vpack.c.b16 %v5227, %v5224
        %v5342 = vpack.c.b16 %v5228, %v5225
        %v5343 = vpack.c.b16 %v5229, %v5226
        %v5344 = vpack.c.b16 %v5233, %v5230
        %v5345 = vpack.c.b16 %v5234, %v5231
        %v5346 = vpack.c.b16 %v5235, %v5232
        %v5347 = vpack.c.b16 %v5239, %v5236
        %v5348 = vpack.c.b16 %v5240, %v5237
        %v5349 = vpack.c.b16 %v5241, %v5238
        %v5350 = vpack.c.b16 %v5245, %v5242
        %v5351 = vpack.c.b16 %v5246, %v5243
        %v5352 = vpack.c.b16 %v5247, %v5244
        %v5353 = vpack.c.b16 %v5251, %v5248
        %v5354 = vpack.c.b16 %v5252, %v5249
        %v5355 = vpack.c.b16 %v5253, %v5250
        %v5356 = vpack.c.b16 %v5257, %v5254
        %v5357 = vpack.c.b16 %v5258, %v5255
        %v5358 = vpack.c.b16 %v5259, %v5256
        %v5359 = vpack.c.b16 %v5263, %v5260
        %v5360 = vpack.c.b16 %v5264, %v5261
        %v5361 = vpack.c.b16 %v5265, %v5262
        %5458 = vmatpush.bf16.msra.mxu0 %v5287
        %5459 = vmatpush.bf16.msra.mxu0 %v5284
        %5460 = vmatpush.bf16.msra.mxu0 %v5281
        %5461 = vmatpush.bf16.msra.mxu0 %v5278
        %5462 = vmatpush.bf16.msra.mxu0 %v5275
        %5463 = vmatpush.bf16.msra.mxu0 %v5272
        %5464 = vmatpush.bf16.msra.mxu0 %v5269
        %5465 = vmatpush.bf16.msra.mxu0 %v5266
        %5466 = vmatmul.bf16.gmra.mxu0 %v4938
        %v5467 = vpop.f32.mrf.mxu0
        %v5468 = vadd.f32 0.0, %v5467
        %v5469 = vpop.f32.mrf.mxu0
        %5470 = vdwg.mxu0
        %5471 = vmatpush.bf16.msra.mxu0 %v5311
        %5472 = vmatpush.bf16.msra.mxu0 %v5308
        %5473 = vmatpush.bf16.msra.mxu0 %v5305
        %5474 = vmatpush.bf16.msra.mxu0 %v5302
        %5475 = vmatpush.bf16.msra.mxu0 %v5299
        %5476 = vmatpush.bf16.msra.mxu0 %v5296
        %5477 = vmatpush.bf16.msra.mxu0 %v5293
        %5478 = vmatpush.bf16.msra.mxu0 %v5290
        %5479 = vmatmul.bf16.gmra.mxu0 %v4939
        %v5480 = vpop.f32.mrf.mxu0
        %v5481 = vadd.f32 %v5468, %v5480
        %v5482 = vpop.f32.mrf.mxu0
        %5483 = vdwg.mxu0
        %5484 = vmatpush.bf16.msra.mxu0 %v5335
        %5485 = vmatpush.bf16.msra.mxu0 %v5332
        %5486 = vmatpush.bf16.msra.mxu0 %v5329
        %5487 = vmatpush.bf16.msra.mxu0 %v5326
        %5488 = vmatpush.bf16.msra.mxu0 %v5323
        %5489 = vmatpush.bf16.msra.mxu0 %v5320
        %5490 = vmatpush.bf16.msra.mxu0 %v5317
        %5491 = vmatpush.bf16.msra.mxu0 %v5314
        %5492 = vmatmul.bf16.gmra.mxu0 %v4940
        %v5493 = vpop.f32.mrf.mxu0
        %v5494 = vadd.f32 %v5481, %v5493
        %v5495 = vpop.f32.mrf.mxu0
        %5496 = vdwg.mxu0
        %5497 = vmatpush.bf16.msra.mxu0 %v5359
        %5498 = vmatpush.bf16.msra.mxu0 %v5356
        %5499 = vmatpush.bf16.msra.mxu0 %v5353
        %5500 = vmatpush.bf16.msra.mxu0 %v5350
        %5501 = vmatpush.bf16.msra.mxu0 %v5347
        %5502 = vmatpush.bf16.msra.mxu0 %v5344
        %5503 = vmatpush.bf16.msra.mxu0 %v5341
        %5504 = vmatpush.bf16.msra.mxu0 %v5338
        %5505 = vmatmul.bf16.gmra.mxu0 %v4941
        %v5506 = vpop.f32.mrf.mxu0
        %v5507 = vadd.f32 %v5494, %v5506
        %v5508 = vpop.f32.mrf.mxu0
        %5509 = vdwg.mxu0
        %5510 = vmatpush.bf16.msra.mxu0 %v5288
        %5511 = vmatpush.bf16.msra.mxu0 %v5285
        %5512 = vmatpush.bf16.msra.mxu0 %v5282
        %5513 = vmatpush.bf16.msra.mxu0 %v5279
        %5514 = vmatpush.bf16.msra.mxu0 %v5276
        %5515 = vmatpush.bf16.msra.mxu0 %v5273
        %5516 = vmatpush.bf16.msra.mxu0 %v5270
        %5517 = vmatpush.bf16.msra.mxu0 %v5267
        %5518 = vmatmul.bf16.gmra.mxu0 %v4938
        %v5519 = vpop.f32.mrf.mxu0
        %v5520 = vadd.f32 0.0, %v5519
        %v5521 = vpop.f32.mrf.mxu0
        %5522 = vdwg.mxu0
        %5523 = vmatpush.bf16.msra.mxu0 %v5312
        %5524 = vmatpush.bf16.msra.mxu0 %v5309
        %5525 = vmatpush.bf16.msra.mxu0 %v5306
        %5526 = vmatpush.bf16.msra.mxu0 %v5303
        %5527 = vmatpush.bf16.msra.mxu0 %v5300
        %5528 = vmatpush.bf16.msra.mxu0 %v5297
        %5529 = vmatpush.bf16.msra.mxu0 %v5294
        %5530 = vmatpush.bf16.msra.mxu0 %v5291
        %5531 = vmatmul.bf16.gmra.mxu0 %v4939
        %v5532 = vpop.f32.mrf.mxu0
        %v5533 = vadd.f32 %v5520, %v5532
        %v5534 = vpop.f32.mrf.mxu0
        %5535 = vdwg.mxu0
        %5536 = vmatpush.bf16.msra.mxu0 %v5336
        %5537 = vmatpush.bf16.msra.mxu0 %v5333
        %5538 = vmatpush.bf16.msra.mxu0 %v5330
        %5539 = vmatpush.bf16.msra.mxu0 %v5327
        %5540 = vmatpush.bf16.msra.mxu0 %v5324
        %5541 = vmatpush.bf16.msra.mxu0 %v5321
        %5542 = vmatpush.bf16.msra.mxu0 %v5318
        %5543 = vmatpush.bf16.msra.mxu0 %v5315
        %5544 = vmatmul.bf16.gmra.mxu0 %v4940
        %v5545 = vpop.f32.mrf.mxu0
        %v5546 = vadd.f32 %v5533, %v5545
        %v5547 = vpop.f32.mrf.mxu0
        %5548 = vdwg.mxu0
        %5549 = vmatpush.bf16.msra.mxu0 %v5360
        %5550 = vmatpush.bf16.msra.mxu0 %v5357
        %5551 = vmatpush.bf16.msra.mxu0 %v5354
        %5552 = vmatpush.bf16.msra.mxu0 %v5351
        %5553 = vmatpush.bf16.msra.mxu0 %v5348
        %5554 = vmatpush.bf16.msra.mxu0 %v5345
        %5555 = vmatpush.bf16.msra.mxu0 %v5342
        %5556 = vmatpush.bf16.msra.mxu0 %v5339
        %5557 = vmatmul.bf16.gmra.mxu0 %v4941
        %v5558 = vpop.f32.mrf.mxu0
        %v5559 = vadd.f32 %v5546, %v5558
        %v5560 = vpop.f32.mrf.mxu0
        %5561 = vdwg.mxu0
        %5562 = vmatpush.bf16.msra.mxu0 %v5289
        %5563 = vmatpush.bf16.msra.mxu0 %v5286
        %5564 = vmatpush.bf16.msra.mxu0 %v5283
        %5565 = vmatpush.bf16.msra.mxu0 %v5280
        %5566 = vmatpush.bf16.msra.mxu0 %v5277
        %5567 = vmatpush.bf16.msra.mxu0 %v5274
        %5568 = vmatpush.bf16.msra.mxu0 %v5271
        %5569 = vmatpush.bf16.msra.mxu0 %v5268
        %5570 = vmatmul.bf16.gmra.mxu0 %v4938
        %v5571 = vpop.f32.mrf.mxu0
        %v5572 = vadd.f32 0.0, %v5571
        %v5573 = vpop.f32.mrf.mxu0
        %5574 = vdwg.mxu0
        %5575 = vmatpush.bf16.msra.mxu0 %v5313
        %5576 = vmatpush.bf16.msra.mxu0 %v5310
        %5577 = vmatpush.bf16.msra.mxu0 %v5307
        %5578 = vmatpush.bf16.msra.mxu0 %v5304
        %5579 = vmatpush.bf16.msra.mxu0 %v5301
        %5580 = vmatpush.bf16.msra.mxu0 %v5298
        %5581 = vmatpush.bf16.msra.mxu0 %v5295
        %5582 = vmatpush.bf16.msra.mxu0 %v5292
        %5583 = vmatmul.bf16.gmra.mxu0 %v4939
        %v5584 = vpop.f32.mrf.mxu0
        %v5585 = vadd.f32 %v5572, %v5584
        %v5586 = vpop.f32.mrf.mxu0
        %5587 = vdwg.mxu0
        %5588 = vmatpush.bf16.msra.mxu0 %v5337
        %5589 = vmatpush.bf16.msra.mxu0 %v5334
        %5590 = vmatpush.bf16.msra.mxu0 %v5331
        %5591 = vmatpush.bf16.msra.mxu0 %v5328
        %5592 = vmatpush.bf16.msra.mxu0 %v5325
        %5593 = vmatpush.bf16.msra.mxu0 %v5322
        %5594 = vmatpush.bf16.msra.mxu0 %v5319
        %5595 = vmatpush.bf16.msra.mxu0 %v5316
        %5596 = vmatmul.bf16.gmra.mxu0 %v4940
        %v5597 = vpop.f32.mrf.mxu0
        %v5598 = vadd.f32 %v5585, %v5597
        %v5599 = vpop.f32.mrf.mxu0
        %5600 = vdwg.mxu0
        %5601 = vmatpush.bf16.msra.mxu0 %v5361
        %5602 = vmatpush.bf16.msra.mxu0 %v5358
        %5603 = vmatpush.bf16.msra.mxu0 %v5355
        %5604 = vmatpush.bf16.msra.mxu0 %v5352
        %5605 = vmatpush.bf16.msra.mxu0 %v5349
        %5606 = vmatpush.bf16.msra.mxu0 %v5346
        %5607 = vmatpush.bf16.msra.mxu0 %v5343
        %5608 = vmatpush.bf16.msra.mxu0 %v5340
        %5609 = vmatmul.bf16.gmra.mxu0 %v4941
        %v5610 = vpop.f32.mrf.mxu0
        %v5611 = vadd.f32 %v5598, %v5610
        %v5612 = vpop.f32.mrf.mxu0
        %5613 = vdwg.mxu0
        %v5616 = vunpack.c.l.b16 %v2972
        %v5617 = vunpack.c.h.b16 %v2972
        %v5618 = vunpack.c.l.b16 %v2973
        %v5619 = vunpack.c.h.b16 %v2973
        %v5620 = vpack.c.b16 %v5616, %v5616
        %v5621 = vpack.c.b16 %v5617, %v5617
        %v5622 = vpack.c.b16 %v5618, %v5618
        %v5623 = vpack.c.b16 %v5619, %v5619
        %v5756 = vunpack.c.l.b16 %v4675
        %v5757 = vunpack.c.h.b16 %v4675
        %v5758 = vunpack.c.l.b16 %v4676
        %v5759 = vunpack.c.l.b16 %v4677
        %v5760 = vunpack.c.h.b16 %v4677
        %v5761 = vunpack.c.l.b16 %v4678
        %v5762 = vunpack.c.l.b16 %v4679
        %v5763 = vunpack.c.h.b16 %v4679
        %v5764 = vunpack.c.l.b16 %v4680
        %v5765 = vunpack.c.l.b16 %v4681
        %v5766 = vunpack.c.h.b16 %v4681
        %v5767 = vunpack.c.l.b16 %v4682
        %v5768 = vunpack.c.l.b16 %v4683
        %v5769 = vunpack.c.h.b16 %v4683
        %v5770 = vunpack.c.l.b16 %v4684
        %v5771 = vunpack.c.l.b16 %v4685
        %v5772 = vunpack.c.h.b16 %v4685
        %v5773 = vunpack.c.l.b16 %v4686
        %v5774 = vunpack.c.l.b16 %v4687
        %v5775 = vunpack.c.h.b16 %v4687
        %v5776 = vunpack.c.l.b16 %v4688
        %v5777 = vunpack.c.l.b16 %v4689
        %v5778 = vunpack.c.h.b16 %v4689
        %v5779 = vunpack.c.l.b16 %v4690
        %v5780 = vunpack.c.l.b16 %v4691
        %v5781 = vunpack.c.h.b16 %v4691
        %v5782 = vunpack.c.l.b16 %v4692
        %v5783 = vunpack.c.l.b16 %v4693
        %v5784 = vunpack.c.h.b16 %v4693
        %v5785 = vunpack.c.l.b16 %v4694
        %v5786 = vunpack.c.l.b16 %v4695
        %v5787 = vunpack.c.h.b16 %v4695
        %v5788 = vunpack.c.l.b16 %v4696
        %v5789 = vunpack.c.l.b16 %v4697
        %v5790 = vunpack.c.h.b16 %v4697
        %v5791 = vunpack.c.l.b16 %v4698
        %v5792 = vunpack.c.l.b16 %v4699
        %v5793 = vunpack.c.h.b16 %v4699
        %v5794 = vunpack.c.l.b16 %v4700
        %v5795 = vunpack.c.l.b16 %v4701
        %v5796 = vunpack.c.h.b16 %v4701
        %v5797 = vunpack.c.l.b16 %v4702
        %v5798 = vunpack.c.l.b16 %v4703
        %v5799 = vunpack.c.h.b16 %v4703
        %v5800 = vunpack.c.l.b16 %v4704
        %v5801 = vunpack.c.l.b16 %v4705
        %v5802 = vunpack.c.h.b16 %v4705
        %v5803 = vunpack.c.l.b16 %v4706
        %v5804 = vunpack.c.l.b16 %v4707
        %v5805 = vunpack.c.h.b16 %v4707
        %v5806 = vunpack.c.l.b16 %v4708
        %v5807 = vunpack.c.l.b16 %v4709
        %v5808 = vunpack.c.h.b16 %v4709
        %v5809 = vunpack.c.l.b16 %v4710
        %v5810 = vunpack.c.l.b16 %v4711
        %v5811 = vunpack.c.h.b16 %v4711
        %v5812 = vunpack.c.l.b16 %v4712
        %v5813 = vunpack.c.l.b16 %v4713
        %v5814 = vunpack.c.h.b16 %v4713
        %v5815 = vunpack.c.l.b16 %v4714
        %v5816 = vunpack.c.l.b16 %v4715
        %v5817 = vunpack.c.h.b16 %v4715
        %v5818 = vunpack.c.l.b16 %v4716
        %v5819 = vunpack.c.l.b16 %v4717
        %v5820 = vunpack.c.h.b16 %v4717
        %v5821 = vunpack.c.l.b16 %v4718
        %v5822 = vunpack.c.l.b16 %v4719
        %v5823 = vunpack.c.h.b16 %v4719
        %v5824 = vunpack.c.l.b16 %v4720
        %v5825 = vunpack.c.l.b16 %v4721
        %v5826 = vunpack.c.h.b16 %v4721
        %v5827 = vunpack.c.l.b16 %v4722
        %v5828 = vunpack.c.l.b16 %v4723
        %v5829 = vunpack.c.h.b16 %v4723
        %v5830 = vunpack.c.l.b16 %v4724
        %v5831 = vunpack.c.l.b16 %v4725
        %v5832 = vunpack.c.h.b16 %v4725
        %v5833 = vunpack.c.l.b16 %v4726
        %v5834 = vunpack.c.l.b16 %v4727
        %v5835 = vunpack.c.h.b16 %v4727
        %v5836 = vunpack.c.l.b16 %v4728
        %v5837 = vunpack.c.l.b16 %v4729
        %v5838 = vunpack.c.h.b16 %v4729
        %v5839 = vunpack.c.l.b16 %v4730
        %v5840 = vunpack.c.l.b16 %v4731
        %v5841 = vunpack.c.h.b16 %v4731
        %v5842 = vunpack.c.l.b16 %v4732
        %v5843 = vunpack.c.l.b16 %v4733
        %v5844 = vunpack.c.h.b16 %v4733
        %v5845 = vunpack.c.l.b16 %v4734
        %v5846 = vunpack.c.l.b16 %v4735
        %v5847 = vunpack.c.h.b16 %v4735
        %v5848 = vunpack.c.l.b16 %v4736
        %v5849 = vunpack.c.l.b16 %v4737
        %v5850 = vunpack.c.h.b16 %v4737
        %v5851 = vunpack.c.l.b16 %v4738
        %v5852 = vunpack.c.l.b16 %v4739
        %v5853 = vunpack.c.h.b16 %v4739
        %v5854 = vunpack.c.l.b16 %v4740
        %v5855 = vunpack.c.l.b16 %v4741
        %v5856 = vunpack.c.h.b16 %v4741
        %v5857 = vunpack.c.l.b16 %v4742
        %v5858 = vunpack.c.l.b16 %v4743
        %v5859 = vunpack.c.h.b16 %v4743
        %v5860 = vunpack.c.l.b16 %v4744
        %v5861 = vunpack.c.l.b16 %v4745
        %v5862 = vunpack.c.h.b16 %v4745
        %v5863 = vunpack.c.l.b16 %v4746
        %v5864 = vunpack.c.l.b16 %v4747
        %v5865 = vunpack.c.h.b16 %v4747
        %v5866 = vunpack.c.l.b16 %v4748
        %v5867 = vunpack.c.l.b16 %v4749
        %v5868 = vunpack.c.h.b16 %v4749
        %v5869 = vunpack.c.l.b16 %v4750
        %v5870 = vunpack.c.l.b16 %v4751
        %v5871 = vunpack.c.h.b16 %v4751
        %v5872 = vunpack.c.l.b16 %v4752
        %v5873 = vunpack.c.l.b16 %v4753
        %v5874 = vunpack.c.h.b16 %v4753
        %v5875 = vunpack.c.l.b16 %v4754
        %v5876 = vunpack.c.l.b16 %v4755
        %v5877 = vunpack.c.h.b16 %v4755
        %v5878 = vunpack.c.l.b16 %v4756
        %v5879 = vunpack.c.l.b16 %v4757
        %v5880 = vunpack.c.h.b16 %v4757
        %v5881 = vunpack.c.l.b16 %v4758
        %v5882 = vunpack.c.l.b16 %v4759
        %v5883 = vunpack.c.h.b16 %v4759
        %v5884 = vunpack.c.l.b16 %v4760
        %v5885 = vunpack.c.l.b16 %v4761
        %v5886 = vunpack.c.h.b16 %v4761
        %v5887 = vunpack.c.l.b16 %v4762
        %v5888 = vunpack.c.l.b16 %v4763
        %v5889 = vunpack.c.h.b16 %v4763
        %v5890 = vunpack.c.l.b16 %v4764
        %v5891 = vunpack.c.l.b16 %v4765
        %v5892 = vunpack.c.h.b16 %v4765
        %v5893 = vunpack.c.l.b16 %v4766
        %v5894 = vunpack.c.l.b16 %v4767
        %v5895 = vunpack.c.h.b16 %v4767
        %v5896 = vunpack.c.l.b16 %v4768
        %v5897 = vunpack.c.l.b16 %v4769
        %v5898 = vunpack.c.h.b16 %v4769
        %v5899 = vunpack.c.l.b16 %v4770
        %v5900 = vunpack.c.l.b16 %v4771
        %v5901 = vunpack.c.h.b16 %v4771
        %v5902 = vunpack.c.l.b16 %v4772
        %v5903 = vunpack.c.l.b16 %v4773
        %v5904 = vunpack.c.h.b16 %v4773
        %v5905 = vunpack.c.l.b16 %v4774
        %v5906 = vunpack.c.l.b16 %v4775
        %v5907 = vunpack.c.h.b16 %v4775
        %v5908 = vunpack.c.l.b16 %v4776
        %v5909 = vunpack.c.l.b16 %v4777
        %v5910 = vunpack.c.h.b16 %v4777
        %v5911 = vunpack.c.l.b16 %v4778
        %v5912 = vunpack.c.l.b16 %v4779
        %v5913 = vunpack.c.h.b16 %v4779
        %v5914 = vunpack.c.l.b16 %v4780
        %v5915 = vunpack.c.l.b16 %v4781
        %v5916 = vunpack.c.h.b16 %v4781
        %v5917 = vunpack.c.l.b16 %v4782
        %v5918 = vunpack.c.l.b16 %v4783
        %v5919 = vunpack.c.h.b16 %v4783
        %v5920 = vunpack.c.l.b16 %v4784
        %v5921 = vunpack.c.l.b16 %v4785
        %v5922 = vunpack.c.h.b16 %v4785
        %v5923 = vunpack.c.l.b16 %v4786
        %v5924 = vunpack.c.l.b16 %v4787
        %v5925 = vunpack.c.h.b16 %v4787
        %v5926 = vunpack.c.l.b16 %v4788
        %v5927 = vunpack.c.l.b16 %v4789
        %v5928 = vunpack.c.h.b16 %v4789
        %v5929 = vunpack.c.l.b16 %v4790
        %v5930 = vunpack.c.l.b16 %v4791
        %v5931 = vunpack.c.h.b16 %v4791
        %v5932 = vunpack.c.l.b16 %v4792
        %v5933 = vunpack.c.l.b16 %v4793
        %v5934 = vunpack.c.h.b16 %v4793
        %v5935 = vunpack.c.l.b16 %v4794
        %v5936 = vunpack.c.l.b16 %v4795
        %v5937 = vunpack.c.h.b16 %v4795
        %v5938 = vunpack.c.l.b16 %v4796
        %v5939 = vunpack.c.l.b16 %v4797
        %v5940 = vunpack.c.h.b16 %v4797
        %v5941 = vunpack.c.l.b16 %v4798
        %v5942 = vunpack.c.l.b16 %v4799
        %v5943 = vunpack.c.h.b16 %v4799
        %v5944 = vunpack.c.l.b16 %v4800
        %v5945 = vunpack.c.l.b16 %v4801
        %v5946 = vunpack.c.h.b16 %v4801
        %v5947 = vunpack.c.l.b16 %v4802
        %v5948 = vpack.c.b16 %v5759, %v5756
        %v5949 = vpack.c.b16 %v5760, %v5757
        %v5950 = vpack.c.b16 %v5761, %v5758
        %v5951 = vpack.c.b16 %v5765, %v5762
        %v5952 = vpack.c.b16 %v5766, %v5763
        %v5953 = vpack.c.b16 %v5767, %v5764
        %v5954 = vpack.c.b16 %v5771, %v5768
        %v5955 = vpack.c.b16 %v5772, %v5769
        %v5956 = vpack.c.b16 %v5773, %v5770
        %v5957 = vpack.c.b16 %v5777, %v5774
        %v5958 = vpack.c.b16 %v5778, %v5775
        %v5959 = vpack.c.b16 %v5779, %v5776
        %v5960 = vpack.c.b16 %v5783, %v5780
        %v5961 = vpack.c.b16 %v5784, %v5781
        %v5962 = vpack.c.b16 %v5785, %v5782
        %v5963 = vpack.c.b16 %v5789, %v5786
        %v5964 = vpack.c.b16 %v5790, %v5787
        %v5965 = vpack.c.b16 %v5791, %v5788
        %v5966 = vpack.c.b16 %v5795, %v5792
        %v5967 = vpack.c.b16 %v5796, %v5793
        %v5968 = vpack.c.b16 %v5797, %v5794
        %v5969 = vpack.c.b16 %v5801, %v5798
        %v5970 = vpack.c.b16 %v5802, %v5799
        %v5971 = vpack.c.b16 %v5803, %v5800
        %v5972 = vpack.c.b16 %v5807, %v5804
        %v5973 = vpack.c.b16 %v5808, %v5805
        %v5974 = vpack.c.b16 %v5809, %v5806
        %v5975 = vpack.c.b16 %v5813, %v5810
        %v5976 = vpack.c.b16 %v5814, %v5811
        %v5977 = vpack.c.b16 %v5815, %v5812
        %v5978 = vpack.c.b16 %v5819, %v5816
        %v5979 = vpack.c.b16 %v5820, %v5817
        %v5980 = vpack.c.b16 %v5821, %v5818
        %v5981 = vpack.c.b16 %v5825, %v5822
        %v5982 = vpack.c.b16 %v5826, %v5823
        %v5983 = vpack.c.b16 %v5827, %v5824
        %v5984 = vpack.c.b16 %v5831, %v5828
        %v5985 = vpack.c.b16 %v5832, %v5829
        %v5986 = vpack.c.b16 %v5833, %v5830
        %v5987 = vpack.c.b16 %v5837, %v5834
        %v5988 = vpack.c.b16 %v5838, %v5835
        %v5989 = vpack.c.b16 %v5839, %v5836
        %v5990 = vpack.c.b16 %v5843, %v5840
        %v5991 = vpack.c.b16 %v5844, %v5841
        %v5992 = vpack.c.b16 %v5845, %v5842
        %v5993 = vpack.c.b16 %v5849, %v5846
        %v5994 = vpack.c.b16 %v5850, %v5847
        %v5995 = vpack.c.b16 %v5851, %v5848
        %v5996 = vpack.c.b16 %v5855, %v5852
        %v5997 = vpack.c.b16 %v5856, %v5853
        %v5998 = vpack.c.b16 %v5857, %v5854
        %v5999 = vpack.c.b16 %v5861, %v5858
        %v6000 = vpack.c.b16 %v5862, %v5859
        %v6001 = vpack.c.b16 %v5863, %v5860
        %v6002 = vpack.c.b16 %v5867, %v5864
        %v6003 = vpack.c.b16 %v5868, %v5865
        %v6004 = vpack.c.b16 %v5869, %v5866
        %v6005 = vpack.c.b16 %v5873, %v5870
        %v6006 = vpack.c.b16 %v5874, %v5871
        %v6007 = vpack.c.b16 %v5875, %v5872
        %v6008 = vpack.c.b16 %v5879, %v5876
        %v6009 = vpack.c.b16 %v5880, %v5877
        %v6010 = vpack.c.b16 %v5881, %v5878
        %v6011 = vpack.c.b16 %v5885, %v5882
        %v6012 = vpack.c.b16 %v5886, %v5883
        %v6013 = vpack.c.b16 %v5887, %v5884
        %v6014 = vpack.c.b16 %v5891, %v5888
        %v6015 = vpack.c.b16 %v5892, %v5889
        %v6016 = vpack.c.b16 %v5893, %v5890
        %v6017 = vpack.c.b16 %v5897, %v5894
        %v6018 = vpack.c.b16 %v5898, %v5895
        %v6019 = vpack.c.b16 %v5899, %v5896
        %v6020 = vpack.c.b16 %v5903, %v5900
        %v6021 = vpack.c.b16 %v5904, %v5901
        %v6022 = vpack.c.b16 %v5905, %v5902
        %v6023 = vpack.c.b16 %v5909, %v5906
        %v6024 = vpack.c.b16 %v5910, %v5907
        %v6025 = vpack.c.b16 %v5911, %v5908
        %v6026 = vpack.c.b16 %v5915, %v5912
        %v6027 = vpack.c.b16 %v5916, %v5913
        %v6028 = vpack.c.b16 %v5917, %v5914
        %v6029 = vpack.c.b16 %v5921, %v5918
        %v6030 = vpack.c.b16 %v5922, %v5919
        %v6031 = vpack.c.b16 %v5923, %v5920
        %v6032 = vpack.c.b16 %v5927, %v5924
        %v6033 = vpack.c.b16 %v5928, %v5925
        %v6034 = vpack.c.b16 %v5929, %v5926
        %v6035 = vpack.c.b16 %v5933, %v5930
        %v6036 = vpack.c.b16 %v5934, %v5931
        %v6037 = vpack.c.b16 %v5935, %v5932
        %v6038 = vpack.c.b16 %v5939, %v5936
        %v6039 = vpack.c.b16 %v5940, %v5937
        %v6040 = vpack.c.b16 %v5941, %v5938
        %v6041 = vpack.c.b16 %v5945, %v5942
        %v6042 = vpack.c.b16 %v5946, %v5943
        %v6043 = vpack.c.b16 %v5947, %v5944
        %6140 = vmatpush.bf16.msra.mxu0 %v5969
        %6141 = vmatpush.bf16.msra.mxu0 %v5966
        %6142 = vmatpush.bf16.msra.mxu0 %v5963
        %6143 = vmatpush.bf16.msra.mxu0 %v5960
        %6144 = vmatpush.bf16.msra.mxu0 %v5957
        %6145 = vmatpush.bf16.msra.mxu0 %v5954
        %6146 = vmatpush.bf16.msra.mxu0 %v5951
        %6147 = vmatpush.bf16.msra.mxu0 %v5948
        %6148 = vmatmul.bf16.gmra.mxu0 %v5620
        %v6149 = vpop.f32.mrf.mxu0
        %v6150 = vadd.f32 %v5507, %v6149
        %v6151 = vpop.f32.mrf.mxu0
        %6152 = vdwg.mxu0
        %6153 = vmatpush.bf16.msra.mxu0 %v5993
        %6154 = vmatpush.bf16.msra.mxu0 %v5990
        %6155 = vmatpush.bf16.msra.mxu0 %v5987
        %6156 = vmatpush.bf16.msra.mxu0 %v5984
        %6157 = vmatpush.bf16.msra.mxu0 %v5981
        %6158 = vmatpush.bf16.msra.mxu0 %v5978
        %6159 = vmatpush.bf16.msra.mxu0 %v5975
        %6160 = vmatpush.bf16.msra.mxu0 %v5972
        %6161 = vmatmul.bf16.gmra.mxu0 %v5621
        %v6162 = vpop.f32.mrf.mxu0
        %v6163 = vadd.f32 %v6150, %v6162
        %v6164 = vpop.f32.mrf.mxu0
        %6165 = vdwg.mxu0
        %6166 = vmatpush.bf16.msra.mxu0 %v6017
        %6167 = vmatpush.bf16.msra.mxu0 %v6014
        %6168 = vmatpush.bf16.msra.mxu0 %v6011
        %6169 = vmatpush.bf16.msra.mxu0 %v6008
        %6170 = vmatpush.bf16.msra.mxu0 %v6005
        %6171 = vmatpush.bf16.msra.mxu0 %v6002
        %6172 = vmatpush.bf16.msra.mxu0 %v5999
        %6173 = vmatpush.bf16.msra.mxu0 %v5996
        %6174 = vmatmul.bf16.gmra.mxu0 %v5622
        %v6175 = vpop.f32.mrf.mxu0
        %v6176 = vadd.f32 %v6163, %v6175
        %v6177 = vpop.f32.mrf.mxu0
        %6178 = vdwg.mxu0
        %6179 = vmatpush.bf16.msra.mxu0 %v6041
        %6180 = vmatpush.bf16.msra.mxu0 %v6038
        %6181 = vmatpush.bf16.msra.mxu0 %v6035
        %6182 = vmatpush.bf16.msra.mxu0 %v6032
        %6183 = vmatpush.bf16.msra.mxu0 %v6029
        %6184 = vmatpush.bf16.msra.mxu0 %v6026
        %6185 = vmatpush.bf16.msra.mxu0 %v6023
        %6186 = vmatpush.bf16.msra.mxu0 %v6020
        %6187 = vmatmul.bf16.gmra.mxu0 %v5623
        %v6188 = vpop.f32.mrf.mxu0
        %v6189 = vadd.f32 %v6176, %v6188
        %v6190 = vpop.f32.mrf.mxu0
        %6191 = vdwg.mxu0
        %6192 = vmatpush.bf16.msra.mxu0 %v5970
        %6193 = vmatpush.bf16.msra.mxu0 %v5967
        %6194 = vmatpush.bf16.msra.mxu0 %v5964
        %6195 = vmatpush.bf16.msra.mxu0 %v5961
        %6196 = vmatpush.bf16.msra.mxu0 %v5958
        %6197 = vmatpush.bf16.msra.mxu0 %v5955
        %6198 = vmatpush.bf16.msra.mxu0 %v5952
        %6199 = vmatpush.bf16.msra.mxu0 %v5949
        %6200 = vmatmul.bf16.gmra.mxu0 %v5620
        %v6201 = vpop.f32.mrf.mxu0
        %v6202 = vadd.f32 %v5559, %v6201
        %v6203 = vpop.f32.mrf.mxu0
        %6204 = vdwg.mxu0
        %6205 = vmatpush.bf16.msra.mxu0 %v5994
        %6206 = vmatpush.bf16.msra.mxu0 %v5991
        %6207 = vmatpush.bf16.msra.mxu0 %v5988
        %6208 = vmatpush.bf16.msra.mxu0 %v5985
        %6209 = vmatpush.bf16.msra.mxu0 %v5982
        %6210 = vmatpush.bf16.msra.mxu0 %v5979
        %6211 = vmatpush.bf16.msra.mxu0 %v5976
        %6212 = vmatpush.bf16.msra.mxu0 %v5973
        %6213 = vmatmul.bf16.gmra.mxu0 %v5621
        %v6214 = vpop.f32.mrf.mxu0
        %v6215 = vadd.f32 %v6202, %v6214
        %v6216 = vpop.f32.mrf.mxu0
        %6217 = vdwg.mxu0
        %6218 = vmatpush.bf16.msra.mxu0 %v6018
        %6219 = vmatpush.bf16.msra.mxu0 %v6015
        %6220 = vmatpush.bf16.msra.mxu0 %v6012
        %6221 = vmatpush.bf16.msra.mxu0 %v6009
        %6222 = vmatpush.bf16.msra.mxu0 %v6006
        %6223 = vmatpush.bf16.msra.mxu0 %v6003
        %6224 = vmatpush.bf16.msra.mxu0 %v6000
        %6225 = vmatpush.bf16.msra.mxu0 %v5997
        %6226 = vmatmul.bf16.gmra.mxu0 %v5622
        %v6227 = vpop.f32.mrf.mxu0
        %v6228 = vadd.f32 %v6215, %v6227
        %v6229 = vpop.f32.mrf.mxu0
        %6230 = vdwg.mxu0
        %6231 = vmatpush.bf16.msra.mxu0 %v6042
        %6232 = vmatpush.bf16.msra.mxu0 %v6039
        %6233 = vmatpush.bf16.msra.mxu0 %v6036
        %6234 = vmatpush.bf16.msra.mxu0 %v6033
        %6235 = vmatpush.bf16.msra.mxu0 %v6030
        %6236 = vmatpush.bf16.msra.mxu0 %v6027
        %6237 = vmatpush.bf16.msra.mxu0 %v6024
        %6238 = vmatpush.bf16.msra.mxu0 %v6021
        %6239 = vmatmul.bf16.gmra.mxu0 %v5623
        %v6240 = vpop.f32.mrf.mxu0
        %v6241 = vadd.f32 %v6228, %v6240
        %v6242 = vpop.f32.mrf.mxu0
        %6243 = vdwg.mxu0
        %6244 = vmatpush.bf16.msra.mxu0 %v5971
        %6245 = vmatpush.bf16.msra.mxu0 %v5968
        %6246 = vmatpush.bf16.msra.mxu0 %v5965
        %6247 = vmatpush.bf16.msra.mxu0 %v5962
        %6248 = vmatpush.bf16.msra.mxu0 %v5959
        %6249 = vmatpush.bf16.msra.mxu0 %v5956
        %6250 = vmatpush.bf16.msra.mxu0 %v5953
        %6251 = vmatpush.bf16.msra.mxu0 %v5950
        %6252 = vmatmul.bf16.gmra.mxu0 %v5620
        %v6253 = vpop.f32.mrf.mxu0
        %v6254 = vadd.f32 %v5611, %v6253
        %v6255 = vpop.f32.mrf.mxu0
        %6256 = vdwg.mxu0
        %6257 = vmatpush.bf16.msra.mxu0 %v5995
        %6258 = vmatpush.bf16.msra.mxu0 %v5992
        %6259 = vmatpush.bf16.msra.mxu0 %v5989
        %6260 = vmatpush.bf16.msra.mxu0 %v5986
        %6261 = vmatpush.bf16.msra.mxu0 %v5983
        %6262 = vmatpush.bf16.msra.mxu0 %v5980
        %6263 = vmatpush.bf16.msra.mxu0 %v5977
        %6264 = vmatpush.bf16.msra.mxu0 %v5974
        %6265 = vmatmul.bf16.gmra.mxu0 %v5621
        %v6266 = vpop.f32.mrf.mxu0
        %v6267 = vadd.f32 %v6254, %v6266
        %v6268 = vpop.f32.mrf.mxu0
        %6269 = vdwg.mxu0
        %6270 = vmatpush.bf16.msra.mxu0 %v6019
        %6271 = vmatpush.bf16.msra.mxu0 %v6016
        %6272 = vmatpush.bf16.msra.mxu0 %v6013
        %6273 = vmatpush.bf16.msra.mxu0 %v6010
        %6274 = vmatpush.bf16.msra.mxu0 %v6007
        %6275 = vmatpush.bf16.msra.mxu0 %v6004
        %6276 = vmatpush.bf16.msra.mxu0 %v6001
        %6277 = vmatpush.bf16.msra.mxu0 %v5998
        %6278 = vmatmul.bf16.gmra.mxu0 %v5622
        %v6279 = vpop.f32.mrf.mxu0
        %v6280 = vadd.f32 %v6267, %v6279
        %v6281 = vpop.f32.mrf.mxu0
        %6282 = vdwg.mxu0
        %6283 = vmatpush.bf16.msra.mxu0 %v6043
        %6284 = vmatpush.bf16.msra.mxu0 %v6040
        %6285 = vmatpush.bf16.msra.mxu0 %v6037
        %6286 = vmatpush.bf16.msra.mxu0 %v6034
        %6287 = vmatpush.bf16.msra.mxu0 %v6031
        %6288 = vmatpush.bf16.msra.mxu0 %v6028
        %6289 = vmatpush.bf16.msra.mxu0 %v6025
        %6290 = vmatpush.bf16.msra.mxu0 %v6022
        %6291 = vmatmul.bf16.gmra.mxu0 %v5623
        %v6292 = vpop.f32.mrf.mxu0
        %v6293 = vadd.f32 %v6280, %v6292
        %v6294 = vpop.f32.mrf.mxu0
        %6295 = vdwg.mxu0
        %s6296 = scalar_lea.vmem [#allocation6], 1536
        %v6297 = vld [vmem:[%s6296] sm:$0xff]
        %v6298 = vld [vmem:[%s6296 + $0x8] sm:$0xf]
        %v6299 = vld [vmem:[%s6296 + $0xc] sm:$0xff]
        %v6300 = vld [vmem:[%s6296 + $0x14] sm:$0xf]
        %v6301 = vld [vmem:[%s6296 + $0x18] sm:$0xff]
        %v6302 = vld [vmem:[%s6296 + $0x20] sm:$0xf]
        %v6303 = vld [vmem:[%s6296 + $0x24] sm:$0xff]
        %v6304 = vld [vmem:[%s6296 + $0x2c] sm:$0xf]
        %v6305 = vld [vmem:[%s6296 + $0x30] sm:$0xff]
        %v6306 = vld [vmem:[%s6296 + $0x38] sm:$0xf]
        %v6307 = vld [vmem:[%s6296 + $0x3c] sm:$0xff]
        %v6308 = vld [vmem:[%s6296 + $0x44] sm:$0xf]
        %v6309 = vld [vmem:[%s6296 + $0x48] sm:$0xff]
        %v6310 = vld [vmem:[%s6296 + $0x50] sm:$0xf]
        %v6311 = vld [vmem:[%s6296 + $0x54] sm:$0xff]
        %v6312 = vld [vmem:[%s6296 + $0x5c] sm:$0xf]
        %v6313 = vld [vmem:[%s6296 + $0x60] sm:$0xff]
        %v6314 = vld [vmem:[%s6296 + $0x68] sm:$0xf]
        %v6315 = vld [vmem:[%s6296 + $0x6c] sm:$0xff]
        %v6316 = vld [vmem:[%s6296 + $0x74] sm:$0xf]
        %v6317 = vld [vmem:[%s6296 + $0x78] sm:$0xff]
        %v6318 = vld [vmem:[%s6296 + $0x80] sm:$0xf]
        %v6319 = vld [vmem:[%s6296 + $0x84] sm:$0xff]
        %v6320 = vld [vmem:[%s6296 + $0x8c] sm:$0xf]
        %v6321 = vld [vmem:[%s6296 + $0x90] sm:$0xff]
        %v6322 = vld [vmem:[%s6296 + $0x98] sm:$0xf]
        %v6323 = vld [vmem:[%s6296 + $0x9c] sm:$0xff]
        %v6324 = vld [vmem:[%s6296 + $0xa4] sm:$0xf]
        %v6325 = vld [vmem:[%s6296 + $0xa8] sm:$0xff]
        %v6326 = vld [vmem:[%s6296 + $0xb0] sm:$0xf]
        %v6327 = vld [vmem:[%s6296 + $0xb4] sm:$0xff]
        %v6328 = vld [vmem:[%s6296 + $0xbc] sm:$0xf]
        %v6329 = vld [vmem:[%s6296 + $0xc0] sm:$0xff]
        %v6330 = vld [vmem:[%s6296 + $0xc8] sm:$0xf]
        %v6331 = vld [vmem:[%s6296 + $0xcc] sm:$0xff]
        %v6332 = vld [vmem:[%s6296 + $0xd4] sm:$0xf]
        %v6333 = vld [vmem:[%s6296 + $0xd8] sm:$0xff]
        %v6334 = vld [vmem:[%s6296 + $0xe0] sm:$0xf]
        %v6335 = vld [vmem:[%s6296 + $0xe4] sm:$0xff]
        %v6336 = vld [vmem:[%s6296 + $0xec] sm:$0xf]
        %v6337 = vld [vmem:[%s6296 + $0xf0] sm:$0xff]
        %v6338 = vld [vmem:[%s6296 + $0xf8] sm:$0xf]
        %v6339 = vld [vmem:[%s6296 + $0xfc] sm:$0xff]
        %v6340 = vld [vmem:[%s6296 + $0x104] sm:$0xf]
        %v6341 = vld [vmem:[%s6296 + $0x108] sm:$0xff]
        %v6342 = vld [vmem:[%s6296 + $0x110] sm:$0xf]
        %v6343 = vld [vmem:[%s6296 + $0x114] sm:$0xff]
        %v6344 = vld [vmem:[%s6296 + $0x11c] sm:$0xf]
        %v6345 = vld [vmem:[%s6296 + $0x120] sm:$0xff]
        %v6346 = vld [vmem:[%s6296 + $0x128] sm:$0xf]
        %v6347 = vld [vmem:[%s6296 + $0x12c] sm:$0xff]
        %v6348 = vld [vmem:[%s6296 + $0x134] sm:$0xf]
        %v6349 = vld [vmem:[%s6296 + $0x138] sm:$0xff]
        %v6350 = vld [vmem:[%s6296 + $0x140] sm:$0xf]
        %v6351 = vld [vmem:[%s6296 + $0x144] sm:$0xff]
        %v6352 = vld [vmem:[%s6296 + $0x14c] sm:$0xf]
        %v6353 = vld [vmem:[%s6296 + $0x150] sm:$0xff]
        %v6354 = vld [vmem:[%s6296 + $0x158] sm:$0xf]
        %v6355 = vld [vmem:[%s6296 + $0x15c] sm:$0xff]
        %v6356 = vld [vmem:[%s6296 + $0x164] sm:$0xf]
        %v6357 = vld [vmem:[%s6296 + $0x168] sm:$0xff]
        %v6358 = vld [vmem:[%s6296 + $0x170] sm:$0xf]
        %v6359 = vld [vmem:[%s6296 + $0x174] sm:$0xff]
        %v6360 = vld [vmem:[%s6296 + $0x17c] sm:$0xf]
        %v6361 = vld [vmem:[%s6296 + $0x180] sm:$0xff]
        %v6362 = vld [vmem:[%s6296 + $0x188] sm:$0xf]
        %v6363 = vld [vmem:[%s6296 + $0x18c] sm:$0xff]
        %v6364 = vld [vmem:[%s6296 + $0x194] sm:$0xf]
        %v6365 = vld [vmem:[%s6296 + $0x198] sm:$0xff]
        %v6366 = vld [vmem:[%s6296 + $0x1a0] sm:$0xf]
        %v6367 = vld [vmem:[%s6296 + $0x1a4] sm:$0xff]
        %v6368 = vld [vmem:[%s6296 + $0x1ac] sm:$0xf]
        %v6369 = vld [vmem:[%s6296 + $0x1b0] sm:$0xff]
        %v6370 = vld [vmem:[%s6296 + $0x1b8] sm:$0xf]
        %v6371 = vld [vmem:[%s6296 + $0x1bc] sm:$0xff]
        %v6372 = vld [vmem:[%s6296 + $0x1c4] sm:$0xf]
        %v6373 = vld [vmem:[%s6296 + $0x1c8] sm:$0xff]
        %v6374 = vld [vmem:[%s6296 + $0x1d0] sm:$0xf]
        %v6375 = vld [vmem:[%s6296 + $0x1d4] sm:$0xff]
        %v6376 = vld [vmem:[%s6296 + $0x1dc] sm:$0xf]
        %v6377 = vld [vmem:[%s6296 + $0x1e0] sm:$0xff]
        %v6378 = vld [vmem:[%s6296 + $0x1e8] sm:$0xf]
        %v6379 = vld [vmem:[%s6296 + $0x1ec] sm:$0xff]
        %v6380 = vld [vmem:[%s6296 + $0x1f4] sm:$0xf]
        %v6381 = vld [vmem:[%s6296 + $0x1f8] sm:$0xff]
        %v6382 = vld [vmem:[%s6296 + $0x200] sm:$0xf]
        %v6383 = vld [vmem:[%s6296 + $0x204] sm:$0xff]
        %v6384 = vld [vmem:[%s6296 + $0x20c] sm:$0xf]
        %v6385 = vld [vmem:[%s6296 + $0x210] sm:$0xff]
        %v6386 = vld [vmem:[%s6296 + $0x218] sm:$0xf]
        %v6387 = vld [vmem:[%s6296 + $0x21c] sm:$0xff]
        %v6388 = vld [vmem:[%s6296 + $0x224] sm:$0xf]
        %v6389 = vld [vmem:[%s6296 + $0x228] sm:$0xff]
        %v6390 = vld [vmem:[%s6296 + $0x230] sm:$0xf]
        %v6391 = vld [vmem:[%s6296 + $0x234] sm:$0xff]
        %v6392 = vld [vmem:[%s6296 + $0x23c] sm:$0xf]
        %v6393 = vld [vmem:[%s6296 + $0x240] sm:$0xff]
        %v6394 = vld [vmem:[%s6296 + $0x248] sm:$0xf]
        %v6395 = vld [vmem:[%s6296 + $0x24c] sm:$0xff]
        %v6396 = vld [vmem:[%s6296 + $0x254] sm:$0xf]
        %v6397 = vld [vmem:[%s6296 + $0x258] sm:$0xff]
        %v6398 = vld [vmem:[%s6296 + $0x260] sm:$0xf]
        %v6399 = vld [vmem:[%s6296 + $0x264] sm:$0xff]
        %v6400 = vld [vmem:[%s6296 + $0x26c] sm:$0xf]
        %v6401 = vld [vmem:[%s6296 + $0x270] sm:$0xff]
        %v6402 = vld [vmem:[%s6296 + $0x278] sm:$0xf]
        %v6403 = vld [vmem:[%s6296 + $0x27c] sm:$0xff]
        %v6404 = vld [vmem:[%s6296 + $0x284] sm:$0xf]
        %v6405 = vld [vmem:[%s6296 + $0x288] sm:$0xff]
        %v6406 = vld [vmem:[%s6296 + $0x290] sm:$0xf]
        %v6407 = vld [vmem:[%s6296 + $0x294] sm:$0xff]
        %v6408 = vld [vmem:[%s6296 + $0x29c] sm:$0xf]
        %v6409 = vld [vmem:[%s6296 + $0x2a0] sm:$0xff]
        %v6410 = vld [vmem:[%s6296 + $0x2a8] sm:$0xf]
        %v6411 = vld [vmem:[%s6296 + $0x2ac] sm:$0xff]
        %v6412 = vld [vmem:[%s6296 + $0x2b4] sm:$0xf]
        %v6413 = vld [vmem:[%s6296 + $0x2b8] sm:$0xff]
        %v6414 = vld [vmem:[%s6296 + $0x2c0] sm:$0xf]
        %v6415 = vld [vmem:[%s6296 + $0x2c4] sm:$0xff]
        %v6416 = vld [vmem:[%s6296 + $0x2cc] sm:$0xf]
        %v6417 = vld [vmem:[%s6296 + $0x2d0] sm:$0xff]
        %v6418 = vld [vmem:[%s6296 + $0x2d8] sm:$0xf]
        %v6419 = vld [vmem:[%s6296 + $0x2dc] sm:$0xff]
        %v6420 = vld [vmem:[%s6296 + $0x2e4] sm:$0xf]
        %v6421 = vld [vmem:[%s6296 + $0x2e8] sm:$0xff]
        %v6422 = vld [vmem:[%s6296 + $0x2f0] sm:$0xf]
        %v6423 = vld [vmem:[%s6296 + $0x2f4] sm:$0xff]
        %v6424 = vld [vmem:[%s6296 + $0x2fc] sm:$0xf]
        %v6427 = vunpack.c.l.b16 %v4099
        %v6428 = vunpack.c.h.b16 %v4099
        %v6429 = vunpack.c.l.b16 %v4100
        %v6430 = vunpack.c.h.b16 %v4100
        %v6431 = vpack.c.b16 %v6427, %v6427
        %v6432 = vpack.c.b16 %v6428, %v6428
        %v6433 = vpack.c.b16 %v6429, %v6429
        %v6434 = vpack.c.b16 %v6430, %v6430
        %v6567 = vunpack.c.l.b16 %v6297
        %v6568 = vunpack.c.h.b16 %v6297
        %v6569 = vunpack.c.l.b16 %v6298
        %v6570 = vunpack.c.l.b16 %v6299
        %v6571 = vunpack.c.h.b16 %v6299
        %v6572 = vunpack.c.l.b16 %v6300
        %v6573 = vunpack.c.l.b16 %v6301
        %v6574 = vunpack.c.h.b16 %v6301
        %v6575 = vunpack.c.l.b16 %v6302
        %v6576 = vunpack.c.l.b16 %v6303
        %v6577 = vunpack.c.h.b16 %v6303
        %v6578 = vunpack.c.l.b16 %v6304
        %v6579 = vunpack.c.l.b16 %v6305
        %v6580 = vunpack.c.h.b16 %v6305
        %v6581 = vunpack.c.l.b16 %v6306
        %v6582 = vunpack.c.l.b16 %v6307
        %v6583 = vunpack.c.h.b16 %v6307
        %v6584 = vunpack.c.l.b16 %v6308
        %v6585 = vunpack.c.l.b16 %v6309
        %v6586 = vunpack.c.h.b16 %v6309
        %v6587 = vunpack.c.l.b16 %v6310
        %v6588 = vunpack.c.l.b16 %v6311
        %v6589 = vunpack.c.h.b16 %v6311
        %v6590 = vunpack.c.l.b16 %v6312
        %v6591 = vunpack.c.l.b16 %v6313
        %v6592 = vunpack.c.h.b16 %v6313
        %v6593 = vunpack.c.l.b16 %v6314
        %v6594 = vunpack.c.l.b16 %v6315
        %v6595 = vunpack.c.h.b16 %v6315
        %v6596 = vunpack.c.l.b16 %v6316
        %v6597 = vunpack.c.l.b16 %v6317
        %v6598 = vunpack.c.h.b16 %v6317
        %v6599 = vunpack.c.l.b16 %v6318
        %v6600 = vunpack.c.l.b16 %v6319
        %v6601 = vunpack.c.h.b16 %v6319
        %v6602 = vunpack.c.l.b16 %v6320
        %v6603 = vunpack.c.l.b16 %v6321
        %v6604 = vunpack.c.h.b16 %v6321
        %v6605 = vunpack.c.l.b16 %v6322
        %v6606 = vunpack.c.l.b16 %v6323
        %v6607 = vunpack.c.h.b16 %v6323
        %v6608 = vunpack.c.l.b16 %v6324
        %v6609 = vunpack.c.l.b16 %v6325
        %v6610 = vunpack.c.h.b16 %v6325
        %v6611 = vunpack.c.l.b16 %v6326
        %v6612 = vunpack.c.l.b16 %v6327
        %v6613 = vunpack.c.h.b16 %v6327
        %v6614 = vunpack.c.l.b16 %v6328
        %v6615 = vunpack.c.l.b16 %v6329
        %v6616 = vunpack.c.h.b16 %v6329
        %v6617 = vunpack.c.l.b16 %v6330
        %v6618 = vunpack.c.l.b16 %v6331
        %v6619 = vunpack.c.h.b16 %v6331
        %v6620 = vunpack.c.l.b16 %v6332
        %v6621 = vunpack.c.l.b16 %v6333
        %v6622 = vunpack.c.h.b16 %v6333
        %v6623 = vunpack.c.l.b16 %v6334
        %v6624 = vunpack.c.l.b16 %v6335
        %v6625 = vunpack.c.h.b16 %v6335
        %v6626 = vunpack.c.l.b16 %v6336
        %v6627 = vunpack.c.l.b16 %v6337
        %v6628 = vunpack.c.h.b16 %v6337
        %v6629 = vunpack.c.l.b16 %v6338
        %v6630 = vunpack.c.l.b16 %v6339
        %v6631 = vunpack.c.h.b16 %v6339
        %v6632 = vunpack.c.l.b16 %v6340
        %v6633 = vunpack.c.l.b16 %v6341
        %v6634 = vunpack.c.h.b16 %v6341
        %v6635 = vunpack.c.l.b16 %v6342
        %v6636 = vunpack.c.l.b16 %v6343
        %v6637 = vunpack.c.h.b16 %v6343
        %v6638 = vunpack.c.l.b16 %v6344
        %v6639 = vunpack.c.l.b16 %v6345
        %v6640 = vunpack.c.h.b16 %v6345
        %v6641 = vunpack.c.l.b16 %v6346
        %v6642 = vunpack.c.l.b16 %v6347
        %v6643 = vunpack.c.h.b16 %v6347
        %v6644 = vunpack.c.l.b16 %v6348
        %v6645 = vunpack.c.l.b16 %v6349
        %v6646 = vunpack.c.h.b16 %v6349
        %v6647 = vunpack.c.l.b16 %v6350
        %v6648 = vunpack.c.l.b16 %v6351
        %v6649 = vunpack.c.h.b16 %v6351
        %v6650 = vunpack.c.l.b16 %v6352
        %v6651 = vunpack.c.l.b16 %v6353
        %v6652 = vunpack.c.h.b16 %v6353
        %v6653 = vunpack.c.l.b16 %v6354
        %v6654 = vunpack.c.l.b16 %v6355
        %v6655 = vunpack.c.h.b16 %v6355
        %v6656 = vunpack.c.l.b16 %v6356
        %v6657 = vunpack.c.l.b16 %v6357
        %v6658 = vunpack.c.h.b16 %v6357
        %v6659 = vunpack.c.l.b16 %v6358
        %v6660 = vunpack.c.l.b16 %v6359
        %v6661 = vunpack.c.h.b16 %v6359
        %v6662 = vunpack.c.l.b16 %v6360
        %v6663 = vunpack.c.l.b16 %v6361
        %v6664 = vunpack.c.h.b16 %v6361
        %v6665 = vunpack.c.l.b16 %v6362
        %v6666 = vunpack.c.l.b16 %v6363
        %v6667 = vunpack.c.h.b16 %v6363
        %v6668 = vunpack.c.l.b16 %v6364
        %v6669 = vunpack.c.l.b16 %v6365
        %v6670 = vunpack.c.h.b16 %v6365
        %v6671 = vunpack.c.l.b16 %v6366
        %v6672 = vunpack.c.l.b16 %v6367
        %v6673 = vunpack.c.h.b16 %v6367
        %v6674 = vunpack.c.l.b16 %v6368
        %v6675 = vunpack.c.l.b16 %v6369
        %v6676 = vunpack.c.h.b16 %v6369
        %v6677 = vunpack.c.l.b16 %v6370
        %v6678 = vunpack.c.l.b16 %v6371
        %v6679 = vunpack.c.h.b16 %v6371
        %v6680 = vunpack.c.l.b16 %v6372
        %v6681 = vunpack.c.l.b16 %v6373
        %v6682 = vunpack.c.h.b16 %v6373
        %v6683 = vunpack.c.l.b16 %v6374
        %v6684 = vunpack.c.l.b16 %v6375
        %v6685 = vunpack.c.h.b16 %v6375
        %v6686 = vunpack.c.l.b16 %v6376
        %v6687 = vunpack.c.l.b16 %v6377
        %v6688 = vunpack.c.h.b16 %v6377
        %v6689 = vunpack.c.l.b16 %v6378
        %v6690 = vunpack.c.l.b16 %v6379
        %v6691 = vunpack.c.h.b16 %v6379
        %v6692 = vunpack.c.l.b16 %v6380
        %v6693 = vunpack.c.l.b16 %v6381
        %v6694 = vunpack.c.h.b16 %v6381
        %v6695 = vunpack.c.l.b16 %v6382
        %v6696 = vunpack.c.l.b16 %v6383
        %v6697 = vunpack.c.h.b16 %v6383
        %v6698 = vunpack.c.l.b16 %v6384
        %v6699 = vunpack.c.l.b16 %v6385
        %v6700 = vunpack.c.h.b16 %v6385
        %v6701 = vunpack.c.l.b16 %v6386
        %v6702 = vunpack.c.l.b16 %v6387
        %v6703 = vunpack.c.h.b16 %v6387
        %v6704 = vunpack.c.l.b16 %v6388
        %v6705 = vunpack.c.l.b16 %v6389
        %v6706 = vunpack.c.h.b16 %v6389
        %v6707 = vunpack.c.l.b16 %v6390
        %v6708 = vunpack.c.l.b16 %v6391
        %v6709 = vunpack.c.h.b16 %v6391
        %v6710 = vunpack.c.l.b16 %v6392
        %v6711 = vunpack.c.l.b16 %v6393
        %v6712 = vunpack.c.h.b16 %v6393
        %v6713 = vunpack.c.l.b16 %v6394
        %v6714 = vunpack.c.l.b16 %v6395
        %v6715 = vunpack.c.h.b16 %v6395
        %v6716 = vunpack.c.l.b16 %v6396
        %v6717 = vunpack.c.l.b16 %v6397
        %v6718 = vunpack.c.h.b16 %v6397
        %v6719 = vunpack.c.l.b16 %v6398
        %v6720 = vunpack.c.l.b16 %v6399
        %v6721 = vunpack.c.h.b16 %v6399
        %v6722 = vunpack.c.l.b16 %v6400
        %v6723 = vunpack.c.l.b16 %v6401
        %v6724 = vunpack.c.h.b16 %v6401
        %v6725 = vunpack.c.l.b16 %v6402
        %v6726 = vunpack.c.l.b16 %v6403
        %v6727 = vunpack.c.h.b16 %v6403
        %v6728 = vunpack.c.l.b16 %v6404
        %v6729 = vunpack.c.l.b16 %v6405
        %v6730 = vunpack.c.h.b16 %v6405
        %v6731 = vunpack.c.l.b16 %v6406
        %v6732 = vunpack.c.l.b16 %v6407
        %v6733 = vunpack.c.h.b16 %v6407
        %v6734 = vunpack.c.l.b16 %v6408
        %v6735 = vunpack.c.l.b16 %v6409
        %v6736 = vunpack.c.h.b16 %v6409
        %v6737 = vunpack.c.l.b16 %v6410
        %v6738 = vunpack.c.l.b16 %v6411
        %v6739 = vunpack.c.h.b16 %v6411
        %v6740 = vunpack.c.l.b16 %v6412
        %v6741 = vunpack.c.l.b16 %v6413
        %v6742 = vunpack.c.h.b16 %v6413
        %v6743 = vunpack.c.l.b16 %v6414
        %v6744 = vunpack.c.l.b16 %v6415
        %v6745 = vunpack.c.h.b16 %v6415
        %v6746 = vunpack.c.l.b16 %v6416
        %v6747 = vunpack.c.l.b16 %v6417
        %v6748 = vunpack.c.h.b16 %v6417
        %v6749 = vunpack.c.l.b16 %v6418
        %v6750 = vunpack.c.l.b16 %v6419
        %v6751 = vunpack.c.h.b16 %v6419
        %v6752 = vunpack.c.l.b16 %v6420
        %v6753 = vunpack.c.l.b16 %v6421
        %v6754 = vunpack.c.h.b16 %v6421
        %v6755 = vunpack.c.l.b16 %v6422
        %v6756 = vunpack.c.l.b16 %v6423
        %v6757 = vunpack.c.h.b16 %v6423
        %v6758 = vunpack.c.l.b16 %v6424
        %v6759 = vpack.c.b16 %v6570, %v6567
        %v6760 = vpack.c.b16 %v6571, %v6568
        %v6761 = vpack.c.b16 %v6572, %v6569
        %v6762 = vpack.c.b16 %v6576, %v6573
        %v6763 = vpack.c.b16 %v6577, %v6574
        %v6764 = vpack.c.b16 %v6578, %v6575
        %v6765 = vpack.c.b16 %v6582, %v6579
        %v6766 = vpack.c.b16 %v6583, %v6580
        %v6767 = vpack.c.b16 %v6584, %v6581
        %v6768 = vpack.c.b16 %v6588, %v6585
        %v6769 = vpack.c.b16 %v6589, %v6586
        %v6770 = vpack.c.b16 %v6590, %v6587
        %v6771 = vpack.c.b16 %v6594, %v6591
        %v6772 = vpack.c.b16 %v6595, %v6592
        %v6773 = vpack.c.b16 %v6596, %v6593
        %v6774 = vpack.c.b16 %v6600, %v6597
        %v6775 = vpack.c.b16 %v6601, %v6598
        %v6776 = vpack.c.b16 %v6602, %v6599
        %v6777 = vpack.c.b16 %v6606, %v6603
        %v6778 = vpack.c.b16 %v6607, %v6604
        %v6779 = vpack.c.b16 %v6608, %v6605
        %v6780 = vpack.c.b16 %v6612, %v6609
        %v6781 = vpack.c.b16 %v6613, %v6610
        %v6782 = vpack.c.b16 %v6614, %v6611
        %v6783 = vpack.c.b16 %v6618, %v6615
        %v6784 = vpack.c.b16 %v6619, %v6616
        %v6785 = vpack.c.b16 %v6620, %v6617
        %v6786 = vpack.c.b16 %v6624, %v6621
        %v6787 = vpack.c.b16 %v6625, %v6622
        %v6788 = vpack.c.b16 %v6626, %v6623
        %v6789 = vpack.c.b16 %v6630, %v6627
        %v6790 = vpack.c.b16 %v6631, %v6628
        %v6791 = vpack.c.b16 %v6632, %v6629
        %v6792 = vpack.c.b16 %v6636, %v6633
        %v6793 = vpack.c.b16 %v6637, %v6634
        %v6794 = vpack.c.b16 %v6638, %v6635
        %v6795 = vpack.c.b16 %v6642, %v6639
        %v6796 = vpack.c.b16 %v6643, %v6640
        %v6797 = vpack.c.b16 %v6644, %v6641
        %v6798 = vpack.c.b16 %v6648, %v6645
        %v6799 = vpack.c.b16 %v6649, %v6646
        %v6800 = vpack.c.b16 %v6650, %v6647
        %v6801 = vpack.c.b16 %v6654, %v6651
        %v6802 = vpack.c.b16 %v6655, %v6652
        %v6803 = vpack.c.b16 %v6656, %v6653
        %v6804 = vpack.c.b16 %v6660, %v6657
        %v6805 = vpack.c.b16 %v6661, %v6658
        %v6806 = vpack.c.b16 %v6662, %v6659
        %v6807 = vpack.c.b16 %v6666, %v6663
        %v6808 = vpack.c.b16 %v6667, %v6664
        %v6809 = vpack.c.b16 %v6668, %v6665
        %v6810 = vpack.c.b16 %v6672, %v6669
        %v6811 = vpack.c.b16 %v6673, %v6670
        %v6812 = vpack.c.b16 %v6674, %v6671
        %v6813 = vpack.c.b16 %v6678, %v6675
        %v6814 = vpack.c.b16 %v6679, %v6676
        %v6815 = vpack.c.b16 %v6680, %v6677
        %v6816 = vpack.c.b16 %v6684, %v6681
        %v6817 = vpack.c.b16 %v6685, %v6682
        %v6818 = vpack.c.b16 %v6686, %v6683
        %v6819 = vpack.c.b16 %v6690, %v6687
        %v6820 = vpack.c.b16 %v6691, %v6688
        %v6821 = vpack.c.b16 %v6692, %v6689
        %v6822 = vpack.c.b16 %v6696, %v6693
        %v6823 = vpack.c.b16 %v6697, %v6694
        %v6824 = vpack.c.b16 %v6698, %v6695
        %v6825 = vpack.c.b16 %v6702, %v6699
        %v6826 = vpack.c.b16 %v6703, %v6700
        %v6827 = vpack.c.b16 %v6704, %v6701
        %v6828 = vpack.c.b16 %v6708, %v6705
        %v6829 = vpack.c.b16 %v6709, %v6706
        %v6830 = vpack.c.b16 %v6710, %v6707
        %v6831 = vpack.c.b16 %v6714, %v6711
        %v6832 = vpack.c.b16 %v6715, %v6712
        %v6833 = vpack.c.b16 %v6716, %v6713
        %v6834 = vpack.c.b16 %v6720, %v6717
        %v6835 = vpack.c.b16 %v6721, %v6718
        %v6836 = vpack.c.b16 %v6722, %v6719
        %v6837 = vpack.c.b16 %v6726, %v6723
        %v6838 = vpack.c.b16 %v6727, %v6724
        %v6839 = vpack.c.b16 %v6728, %v6725
        %v6840 = vpack.c.b16 %v6732, %v6729
        %v6841 = vpack.c.b16 %v6733, %v6730
        %v6842 = vpack.c.b16 %v6734, %v6731
        %v6843 = vpack.c.b16 %v6738, %v6735
        %v6844 = vpack.c.b16 %v6739, %v6736
        %v6845 = vpack.c.b16 %v6740, %v6737
        %v6846 = vpack.c.b16 %v6744, %v6741
        %v6847 = vpack.c.b16 %v6745, %v6742
        %v6848 = vpack.c.b16 %v6746, %v6743
        %v6849 = vpack.c.b16 %v6750, %v6747
        %v6850 = vpack.c.b16 %v6751, %v6748
        %v6851 = vpack.c.b16 %v6752, %v6749
        %v6852 = vpack.c.b16 %v6756, %v6753
        %v6853 = vpack.c.b16 %v6757, %v6754
        %v6854 = vpack.c.b16 %v6758, %v6755
        %6951 = vmatpush.bf16.msra.mxu0 %v6780
        %6952 = vmatpush.bf16.msra.mxu0 %v6777
        %6953 = vmatpush.bf16.msra.mxu0 %v6774
        %6954 = vmatpush.bf16.msra.mxu0 %v6771
        %6955 = vmatpush.bf16.msra.mxu0 %v6768
        %6956 = vmatpush.bf16.msra.mxu0 %v6765
        %6957 = vmatpush.bf16.msra.mxu0 %v6762
        %6958 = vmatpush.bf16.msra.mxu0 %v6759
        %6959 = vmatmul.bf16.gmra.mxu0 %v6431
        %v6960 = vpop.f32.mrf.mxu0
        %v6961 = vadd.f32 0.0, %v6960
        %v6962 = vpop.f32.mrf.mxu0
        %6963 = vdwg.mxu0
        %6964 = vmatpush.bf16.msra.mxu0 %v6804
        %6965 = vmatpush.bf16.msra.mxu0 %v6801
        %6966 = vmatpush.bf16.msra.mxu0 %v6798
        %6967 = vmatpush.bf16.msra.mxu0 %v6795
        %6968 = vmatpush.bf16.msra.mxu0 %v6792
        %6969 = vmatpush.bf16.msra.mxu0 %v6789
        %6970 = vmatpush.bf16.msra.mxu0 %v6786
        %6971 = vmatpush.bf16.msra.mxu0 %v6783
        %6972 = vmatmul.bf16.gmra.mxu0 %v6432
        %v6973 = vpop.f32.mrf.mxu0
        %v6974 = vadd.f32 %v6961, %v6973
        %v6975 = vpop.f32.mrf.mxu0
        %6976 = vdwg.mxu0
        %6977 = vmatpush.bf16.msra.mxu0 %v6828
        %6978 = vmatpush.bf16.msra.mxu0 %v6825
        %6979 = vmatpush.bf16.msra.mxu0 %v6822
        %6980 = vmatpush.bf16.msra.mxu0 %v6819
        %6981 = vmatpush.bf16.msra.mxu0 %v6816
        %6982 = vmatpush.bf16.msra.mxu0 %v6813
        %6983 = vmatpush.bf16.msra.mxu0 %v6810
        %6984 = vmatpush.bf16.msra.mxu0 %v6807
        %6985 = vmatmul.bf16.gmra.mxu0 %v6433
        %v6986 = vpop.f32.mrf.mxu0
        %v6987 = vadd.f32 %v6974, %v6986
        %v6988 = vpop.f32.mrf.mxu0
        %6989 = vdwg.mxu0
        %6990 = vmatpush.bf16.msra.mxu0 %v6852
        %6991 = vmatpush.bf16.msra.mxu0 %v6849
        %6992 = vmatpush.bf16.msra.mxu0 %v6846
        %6993 = vmatpush.bf16.msra.mxu0 %v6843
        %6994 = vmatpush.bf16.msra.mxu0 %v6840
        %6995 = vmatpush.bf16.msra.mxu0 %v6837
        %6996 = vmatpush.bf16.msra.mxu0 %v6834
        %6997 = vmatpush.bf16.msra.mxu0 %v6831
        %6998 = vmatmul.bf16.gmra.mxu0 %v6434
        %v6999 = vpop.f32.mrf.mxu0
        %v7000 = vadd.f32 %v6987, %v6999
        %v7001 = vpop.f32.mrf.mxu0
        %7002 = vdwg.mxu0
        %7003 = vmatpush.bf16.msra.mxu0 %v6781
        %7004 = vmatpush.bf16.msra.mxu0 %v6778
        %7005 = vmatpush.bf16.msra.mxu0 %v6775
        %7006 = vmatpush.bf16.msra.mxu0 %v6772
        %7007 = vmatpush.bf16.msra.mxu0 %v6769
        %7008 = vmatpush.bf16.msra.mxu0 %v6766
        %7009 = vmatpush.bf16.msra.mxu0 %v6763
        %7010 = vmatpush.bf16.msra.mxu0 %v6760
        %7011 = vmatmul.bf16.gmra.mxu0 %v6431
        %v7012 = vpop.f32.mrf.mxu0
        %v7013 = vadd.f32 0.0, %v7012
        %v7014 = vpop.f32.mrf.mxu0
        %7015 = vdwg.mxu0
        %7016 = vmatpush.bf16.msra.mxu0 %v6805
        %7017 = vmatpush.bf16.msra.mxu0 %v6802
        %7018 = vmatpush.bf16.msra.mxu0 %v6799
        %7019 = vmatpush.bf16.msra.mxu0 %v6796
        %7020 = vmatpush.bf16.msra.mxu0 %v6793
        %7021 = vmatpush.bf16.msra.mxu0 %v6790
        %7022 = vmatpush.bf16.msra.mxu0 %v6787
        %7023 = vmatpush.bf16.msra.mxu0 %v6784
        %7024 = vmatmul.bf16.gmra.mxu0 %v6432
        %v7025 = vpop.f32.mrf.mxu0
        %v7026 = vadd.f32 %v7013, %v7025
        %v7027 = vpop.f32.mrf.mxu0
        %7028 = vdwg.mxu0
        %7029 = vmatpush.bf16.msra.mxu0 %v6829
        %7030 = vmatpush.bf16.msra.mxu0 %v6826
        %7031 = vmatpush.bf16.msra.mxu0 %v6823
        %7032 = vmatpush.bf16.msra.mxu0 %v6820
        %7033 = vmatpush.bf16.msra.mxu0 %v6817
        %7034 = vmatpush.bf16.msra.mxu0 %v6814
        %7035 = vmatpush.bf16.msra.mxu0 %v6811
        %7036 = vmatpush.bf16.msra.mxu0 %v6808
        %7037 = vmatmul.bf16.gmra.mxu0 %v6433
        %v7038 = vpop.f32.mrf.mxu0
        %v7039 = vadd.f32 %v7026, %v7038
        %v7040 = vpop.f32.mrf.mxu0
        %7041 = vdwg.mxu0
        %7042 = vmatpush.bf16.msra.mxu0 %v6853
        %7043 = vmatpush.bf16.msra.mxu0 %v6850
        %7044 = vmatpush.bf16.msra.mxu0 %v6847
        %7045 = vmatpush.bf16.msra.mxu0 %v6844
        %7046 = vmatpush.bf16.msra.mxu0 %v6841
        %7047 = vmatpush.bf16.msra.mxu0 %v6838
        %7048 = vmatpush.bf16.msra.mxu0 %v6835
        %7049 = vmatpush.bf16.msra.mxu0 %v6832
        %7050 = vmatmul.bf16.gmra.mxu0 %v6434
        %v7051 = vpop.f32.mrf.mxu0
        %v7052 = vadd.f32 %v7039, %v7051
        %v7053 = vpop.f32.mrf.mxu0
        %7054 = vdwg.mxu0
        %7055 = vmatpush.bf16.msra.mxu0 %v6782
        %7056 = vmatpush.bf16.msra.mxu0 %v6779
        %7057 = vmatpush.bf16.msra.mxu0 %v6776
        %7058 = vmatpush.bf16.msra.mxu0 %v6773
        %7059 = vmatpush.bf16.msra.mxu0 %v6770
        %7060 = vmatpush.bf16.msra.mxu0 %v6767
        %7061 = vmatpush.bf16.msra.mxu0 %v6764
        %7062 = vmatpush.bf16.msra.mxu0 %v6761
        %7063 = vmatmul.bf16.gmra.mxu0 %v6431
        %v7064 = vpop.f32.mrf.mxu0
        %v7065 = vadd.f32 0.0, %v7064
        %v7066 = vpop.f32.mrf.mxu0
        %7067 = vdwg.mxu0
        %7068 = vmatpush.bf16.msra.mxu0 %v6806
        %7069 = vmatpush.bf16.msra.mxu0 %v6803
        %7070 = vmatpush.bf16.msra.mxu0 %v6800
        %7071 = vmatpush.bf16.msra.mxu0 %v6797
        %7072 = vmatpush.bf16.msra.mxu0 %v6794
        %7073 = vmatpush.bf16.msra.mxu0 %v6791
        %7074 = vmatpush.bf16.msra.mxu0 %v6788
        %7075 = vmatpush.bf16.msra.mxu0 %v6785
        %7076 = vmatmul.bf16.gmra.mxu0 %v6432
        %v7077 = vpop.f32.mrf.mxu0
        %v7078 = vadd.f32 %v7065, %v7077
        %v7079 = vpop.f32.mrf.mxu0
        %7080 = vdwg.mxu0
        %7081 = vmatpush.bf16.msra.mxu0 %v6830
        %7082 = vmatpush.bf16.msra.mxu0 %v6827
        %7083 = vmatpush.bf16.msra.mxu0 %v6824
        %7084 = vmatpush.bf16.msra.mxu0 %v6821
        %7085 = vmatpush.bf16.msra.mxu0 %v6818
        %7086 = vmatpush.bf16.msra.mxu0 %v6815
        %7087 = vmatpush.bf16.msra.mxu0 %v6812
        %7088 = vmatpush.bf16.msra.mxu0 %v6809
        %7089 = vmatmul.bf16.gmra.mxu0 %v6433
        %v7090 = vpop.f32.mrf.mxu0
        %v7091 = vadd.f32 %v7078, %v7090
        %v7092 = vpop.f32.mrf.mxu0
        %7093 = vdwg.mxu0
        %7094 = vmatpush.bf16.msra.mxu0 %v6854
        %7095 = vmatpush.bf16.msra.mxu0 %v6851
        %7096 = vmatpush.bf16.msra.mxu0 %v6848
        %7097 = vmatpush.bf16.msra.mxu0 %v6845
        %7098 = vmatpush.bf16.msra.mxu0 %v6842
        %7099 = vmatpush.bf16.msra.mxu0 %v6839
        %7100 = vmatpush.bf16.msra.mxu0 %v6836
        %7101 = vmatpush.bf16.msra.mxu0 %v6833
        %7102 = vmatmul.bf16.gmra.mxu0 %v6434
        %v7103 = vpop.f32.mrf.mxu0
        %v7104 = vadd.f32 %v7091, %v7103
        %v7105 = vpop.f32.mrf.mxu0
        %7106 = vdwg.mxu0
        %v7107 = vadd.f32 %v6189, %v7000
        %v7108 = vadd.f32 %v6241, %v7052
        %v7109 = vadd.f32 %v6293, %v7104
        %s7110 = scalar_lea.vmem [#allocation6], 2304
        %v7111 = vld [vmem:[%s7110] sm:$0xff]
        %v7112 = vld [vmem:[%s7110 + $0x8] sm:$0xf]
        %v7113 = vld [vmem:[%s7110 + $0xc] sm:$0xff]
        %v7114 = vld [vmem:[%s7110 + $0x14] sm:$0xf]
        %v7115 = vld [vmem:[%s7110 + $0x18] sm:$0xff]
        %v7116 = vld [vmem:[%s7110 + $0x20] sm:$0xf]
        %v7117 = vld [vmem:[%s7110 + $0x24] sm:$0xff]
        %v7118 = vld [vmem:[%s7110 + $0x2c] sm:$0xf]
        %v7119 = vld [vmem:[%s7110 + $0x30] sm:$0xff]
        %v7120 = vld [vmem:[%s7110 + $0x38] sm:$0xf]
        %v7121 = vld [vmem:[%s7110 + $0x3c] sm:$0xff]
        %v7122 = vld [vmem:[%s7110 + $0x44] sm:$0xf]
        %v7123 = vld [vmem:[%s7110 + $0x48] sm:$0xff]
        %v7124 = vld [vmem:[%s7110 + $0x50] sm:$0xf]
        %v7125 = vld [vmem:[%s7110 + $0x54] sm:$0xff]
        %v7126 = vld [vmem:[%s7110 + $0x5c] sm:$0xf]
        %v7127 = vld [vmem:[%s7110 + $0x60] sm:$0xff]
        %v7128 = vld [vmem:[%s7110 + $0x68] sm:$0xf]
        %v7129 = vld [vmem:[%s7110 + $0x6c] sm:$0xff]
        %v7130 = vld [vmem:[%s7110 + $0x74] sm:$0xf]
        %v7131 = vld [vmem:[%s7110 + $0x78] sm:$0xff]
        %v7132 = vld [vmem:[%s7110 + $0x80] sm:$0xf]
        %v7133 = vld [vmem:[%s7110 + $0x84] sm:$0xff]
        %v7134 = vld [vmem:[%s7110 + $0x8c] sm:$0xf]
        %v7135 = vld [vmem:[%s7110 + $0x90] sm:$0xff]
        %v7136 = vld [vmem:[%s7110 + $0x98] sm:$0xf]
        %v7137 = vld [vmem:[%s7110 + $0x9c] sm:$0xff]
        %v7138 = vld [vmem:[%s7110 + $0xa4] sm:$0xf]
        %v7139 = vld [vmem:[%s7110 + $0xa8] sm:$0xff]
        %v7140 = vld [vmem:[%s7110 + $0xb0] sm:$0xf]
        %v7141 = vld [vmem:[%s7110 + $0xb4] sm:$0xff]
        %v7142 = vld [vmem:[%s7110 + $0xbc] sm:$0xf]
        %v7143 = vld [vmem:[%s7110 + $0xc0] sm:$0xff]
        %v7144 = vld [vmem:[%s7110 + $0xc8] sm:$0xf]
        %v7145 = vld [vmem:[%s7110 + $0xcc] sm:$0xff]
        %v7146 = vld [vmem:[%s7110 + $0xd4] sm:$0xf]
        %v7147 = vld [vmem:[%s7110 + $0xd8] sm:$0xff]
        %v7148 = vld [vmem:[%s7110 + $0xe0] sm:$0xf]
        %v7149 = vld [vmem:[%s7110 + $0xe4] sm:$0xff]
        %v7150 = vld [vmem:[%s7110 + $0xec] sm:$0xf]
        %v7151 = vld [vmem:[%s7110 + $0xf0] sm:$0xff]
        %v7152 = vld [vmem:[%s7110 + $0xf8] sm:$0xf]
        %v7153 = vld [vmem:[%s7110 + $0xfc] sm:$0xff]
        %v7154 = vld [vmem:[%s7110 + $0x104] sm:$0xf]
        %v7155 = vld [vmem:[%s7110 + $0x108] sm:$0xff]
        %v7156 = vld [vmem:[%s7110 + $0x110] sm:$0xf]
        %v7157 = vld [vmem:[%s7110 + $0x114] sm:$0xff]
        %v7158 = vld [vmem:[%s7110 + $0x11c] sm:$0xf]
        %v7159 = vld [vmem:[%s7110 + $0x120] sm:$0xff]
        %v7160 = vld [vmem:[%s7110 + $0x128] sm:$0xf]
        %v7161 = vld [vmem:[%s7110 + $0x12c] sm:$0xff]
        %v7162 = vld [vmem:[%s7110 + $0x134] sm:$0xf]
        %v7163 = vld [vmem:[%s7110 + $0x138] sm:$0xff]
        %v7164 = vld [vmem:[%s7110 + $0x140] sm:$0xf]
        %v7165 = vld [vmem:[%s7110 + $0x144] sm:$0xff]
        %v7166 = vld [vmem:[%s7110 + $0x14c] sm:$0xf]
        %v7167 = vld [vmem:[%s7110 + $0x150] sm:$0xff]
        %v7168 = vld [vmem:[%s7110 + $0x158] sm:$0xf]
        %v7169 = vld [vmem:[%s7110 + $0x15c] sm:$0xff]
        %v7170 = vld [vmem:[%s7110 + $0x164] sm:$0xf]
        %v7171 = vld [vmem:[%s7110 + $0x168] sm:$0xff]
        %v7172 = vld [vmem:[%s7110 + $0x170] sm:$0xf]
        %v7173 = vld [vmem:[%s7110 + $0x174] sm:$0xff]
        %v7174 = vld [vmem:[%s7110 + $0x17c] sm:$0xf]
        %v7175 = vld [vmem:[%s7110 + $0x180] sm:$0xff]
        %v7176 = vld [vmem:[%s7110 + $0x188] sm:$0xf]
        %v7177 = vld [vmem:[%s7110 + $0x18c] sm:$0xff]
        %v7178 = vld [vmem:[%s7110 + $0x194] sm:$0xf]
        %v7179 = vld [vmem:[%s7110 + $0x198] sm:$0xff]
        %v7180 = vld [vmem:[%s7110 + $0x1a0] sm:$0xf]
        %v7181 = vld [vmem:[%s7110 + $0x1a4] sm:$0xff]
        %v7182 = vld [vmem:[%s7110 + $0x1ac] sm:$0xf]
        %v7183 = vld [vmem:[%s7110 + $0x1b0] sm:$0xff]
        %v7184 = vld [vmem:[%s7110 + $0x1b8] sm:$0xf]
        %v7185 = vld [vmem:[%s7110 + $0x1bc] sm:$0xff]
        %v7186 = vld [vmem:[%s7110 + $0x1c4] sm:$0xf]
        %v7187 = vld [vmem:[%s7110 + $0x1c8] sm:$0xff]
        %v7188 = vld [vmem:[%s7110 + $0x1d0] sm:$0xf]
        %v7189 = vld [vmem:[%s7110 + $0x1d4] sm:$0xff]
        %v7190 = vld [vmem:[%s7110 + $0x1dc] sm:$0xf]
        %v7191 = vld [vmem:[%s7110 + $0x1e0] sm:$0xff]
        %v7192 = vld [vmem:[%s7110 + $0x1e8] sm:$0xf]
        %v7193 = vld [vmem:[%s7110 + $0x1ec] sm:$0xff]
        %v7194 = vld [vmem:[%s7110 + $0x1f4] sm:$0xf]
        %v7195 = vld [vmem:[%s7110 + $0x1f8] sm:$0xff]
        %v7196 = vld [vmem:[%s7110 + $0x200] sm:$0xf]
        %v7197 = vld [vmem:[%s7110 + $0x204] sm:$0xff]
        %v7198 = vld [vmem:[%s7110 + $0x20c] sm:$0xf]
        %v7199 = vld [vmem:[%s7110 + $0x210] sm:$0xff]
        %v7200 = vld [vmem:[%s7110 + $0x218] sm:$0xf]
        %v7201 = vld [vmem:[%s7110 + $0x21c] sm:$0xff]
        %v7202 = vld [vmem:[%s7110 + $0x224] sm:$0xf]
        %v7203 = vld [vmem:[%s7110 + $0x228] sm:$0xff]
        %v7204 = vld [vmem:[%s7110 + $0x230] sm:$0xf]
        %v7205 = vld [vmem:[%s7110 + $0x234] sm:$0xff]
        %v7206 = vld [vmem:[%s7110 + $0x23c] sm:$0xf]
        %v7207 = vld [vmem:[%s7110 + $0x240] sm:$0xff]
        %v7208 = vld [vmem:[%s7110 + $0x248] sm:$0xf]
        %v7209 = vld [vmem:[%s7110 + $0x24c] sm:$0xff]
        %v7210 = vld [vmem:[%s7110 + $0x254] sm:$0xf]
        %v7211 = vld [vmem:[%s7110 + $0x258] sm:$0xff]
        %v7212 = vld [vmem:[%s7110 + $0x260] sm:$0xf]
        %v7213 = vld [vmem:[%s7110 + $0x264] sm:$0xff]
        %v7214 = vld [vmem:[%s7110 + $0x26c] sm:$0xf]
        %v7215 = vld [vmem:[%s7110 + $0x270] sm:$0xff]
        %v7216 = vld [vmem:[%s7110 + $0x278] sm:$0xf]
        %v7217 = vld [vmem:[%s7110 + $0x27c] sm:$0xff]
        %v7218 = vld [vmem:[%s7110 + $0x284] sm:$0xf]
        %v7219 = vld [vmem:[%s7110 + $0x288] sm:$0xff]
        %v7220 = vld [vmem:[%s7110 + $0x290] sm:$0xf]
        %v7221 = vld [vmem:[%s7110 + $0x294] sm:$0xff]
        %v7222 = vld [vmem:[%s7110 + $0x29c] sm:$0xf]
        %v7223 = vld [vmem:[%s7110 + $0x2a0] sm:$0xff]
        %v7224 = vld [vmem:[%s7110 + $0x2a8] sm:$0xf]
        %v7225 = vld [vmem:[%s7110 + $0x2ac] sm:$0xff]
        %v7226 = vld [vmem:[%s7110 + $0x2b4] sm:$0xf]
        %v7227 = vld [vmem:[%s7110 + $0x2b8] sm:$0xff]
        %v7228 = vld [vmem:[%s7110 + $0x2c0] sm:$0xf]
        %v7229 = vld [vmem:[%s7110 + $0x2c4] sm:$0xff]
        %v7230 = vld [vmem:[%s7110 + $0x2cc] sm:$0xf]
        %v7231 = vld [vmem:[%s7110 + $0x2d0] sm:$0xff]
        %v7232 = vld [vmem:[%s7110 + $0x2d8] sm:$0xf]
        %v7233 = vld [vmem:[%s7110 + $0x2dc] sm:$0xff]
        %v7234 = vld [vmem:[%s7110 + $0x2e4] sm:$0xf]
        %v7235 = vld [vmem:[%s7110 + $0x2e8] sm:$0xff]
        %v7236 = vld [vmem:[%s7110 + $0x2f0] sm:$0xf]
        %v7237 = vld [vmem:[%s7110 + $0x2f4] sm:$0xff]
        %v7238 = vld [vmem:[%s7110 + $0x2fc] sm:$0xf]
        %v7241 = vunpack.c.l.b16 %v4673
        %v7242 = vunpack.c.h.b16 %v4673
        %v7243 = vunpack.c.l.b16 %v4674
        %v7244 = vunpack.c.h.b16 %v4674
        %v7245 = vpack.c.b16 %v7241, %v7241
        %v7246 = vpack.c.b16 %v7242, %v7242
        %v7247 = vpack.c.b16 %v7243, %v7243
        %v7248 = vpack.c.b16 %v7244, %v7244
        %v7381 = vunpack.c.l.b16 %v7111
        %v7382 = vunpack.c.h.b16 %v7111
        %v7383 = vunpack.c.l.b16 %v7112
        %v7384 = vunpack.c.l.b16 %v7113
        %v7385 = vunpack.c.h.b16 %v7113
        %v7386 = vunpack.c.l.b16 %v7114
        %v7387 = vunpack.c.l.b16 %v7115
        %v7388 = vunpack.c.h.b16 %v7115
        %v7389 = vunpack.c.l.b16 %v7116
        %v7390 = vunpack.c.l.b16 %v7117
        %v7391 = vunpack.c.h.b16 %v7117
        %v7392 = vunpack.c.l.b16 %v7118
        %v7393 = vunpack.c.l.b16 %v7119
        %v7394 = vunpack.c.h.b16 %v7119
        %v7395 = vunpack.c.l.b16 %v7120
        %v7396 = vunpack.c.l.b16 %v7121
        %v7397 = vunpack.c.h.b16 %v7121
        %v7398 = vunpack.c.l.b16 %v7122
        %v7399 = vunpack.c.l.b16 %v7123
        %v7400 = vunpack.c.h.b16 %v7123
        %v7401 = vunpack.c.l.b16 %v7124
        %v7402 = vunpack.c.l.b16 %v7125
        %v7403 = vunpack.c.h.b16 %v7125
        %v7404 = vunpack.c.l.b16 %v7126
        %v7405 = vunpack.c.l.b16 %v7127
        %v7406 = vunpack.c.h.b16 %v7127
        %v7407 = vunpack.c.l.b16 %v7128
        %v7408 = vunpack.c.l.b16 %v7129
        %v7409 = vunpack.c.h.b16 %v7129
        %v7410 = vunpack.c.l.b16 %v7130
        %v7411 = vunpack.c.l.b16 %v7131
        %v7412 = vunpack.c.h.b16 %v7131
        %v7413 = vunpack.c.l.b16 %v7132
        %v7414 = vunpack.c.l.b16 %v7133
        %v7415 = vunpack.c.h.b16 %v7133
        %v7416 = vunpack.c.l.b16 %v7134
        %v7417 = vunpack.c.l.b16 %v7135
        %v7418 = vunpack.c.h.b16 %v7135
        %v7419 = vunpack.c.l.b16 %v7136
        %v7420 = vunpack.c.l.b16 %v7137
        %v7421 = vunpack.c.h.b16 %v7137
        %v7422 = vunpack.c.l.b16 %v7138
        %v7423 = vunpack.c.l.b16 %v7139
        %v7424 = vunpack.c.h.b16 %v7139
        %v7425 = vunpack.c.l.b16 %v7140
        %v7426 = vunpack.c.l.b16 %v7141
        %v7427 = vunpack.c.h.b16 %v7141
        %v7428 = vunpack.c.l.b16 %v7142
        %v7429 = vunpack.c.l.b16 %v7143
        %v7430 = vunpack.c.h.b16 %v7143
        %v7431 = vunpack.c.l.b16 %v7144
        %v7432 = vunpack.c.l.b16 %v7145
        %v7433 = vunpack.c.h.b16 %v7145
        %v7434 = vunpack.c.l.b16 %v7146
        %v7435 = vunpack.c.l.b16 %v7147
        %v7436 = vunpack.c.h.b16 %v7147
        %v7437 = vunpack.c.l.b16 %v7148
        %v7438 = vunpack.c.l.b16 %v7149
        %v7439 = vunpack.c.h.b16 %v7149
        %v7440 = vunpack.c.l.b16 %v7150
        %v7441 = vunpack.c.l.b16 %v7151
        %v7442 = vunpack.c.h.b16 %v7151
        %v7443 = vunpack.c.l.b16 %v7152
        %v7444 = vunpack.c.l.b16 %v7153
        %v7445 = vunpack.c.h.b16 %v7153
        %v7446 = vunpack.c.l.b16 %v7154
        %v7447 = vunpack.c.l.b16 %v7155
        %v7448 = vunpack.c.h.b16 %v7155
        %v7449 = vunpack.c.l.b16 %v7156
        %v7450 = vunpack.c.l.b16 %v7157
        %v7451 = vunpack.c.h.b16 %v7157
        %v7452 = vunpack.c.l.b16 %v7158
        %v7453 = vunpack.c.l.b16 %v7159
        %v7454 = vunpack.c.h.b16 %v7159
        %v7455 = vunpack.c.l.b16 %v7160
        %v7456 = vunpack.c.l.b16 %v7161
        %v7457 = vunpack.c.h.b16 %v7161
        %v7458 = vunpack.c.l.b16 %v7162
        %v7459 = vunpack.c.l.b16 %v7163
        %v7460 = vunpack.c.h.b16 %v7163
        %v7461 = vunpack.c.l.b16 %v7164
        %v7462 = vunpack.c.l.b16 %v7165
        %v7463 = vunpack.c.h.b16 %v7165
        %v7464 = vunpack.c.l.b16 %v7166
        %v7465 = vunpack.c.l.b16 %v7167
        %v7466 = vunpack.c.h.b16 %v7167
        %v7467 = vunpack.c.l.b16 %v7168
        %v7468 = vunpack.c.l.b16 %v7169
        %v7469 = vunpack.c.h.b16 %v7169
        %v7470 = vunpack.c.l.b16 %v7170
        %v7471 = vunpack.c.l.b16 %v7171
        %v7472 = vunpack.c.h.b16 %v7171
        %v7473 = vunpack.c.l.b16 %v7172
        %v7474 = vunpack.c.l.b16 %v7173
        %v7475 = vunpack.c.h.b16 %v7173
        %v7476 = vunpack.c.l.b16 %v7174
        %v7477 = vunpack.c.l.b16 %v7175
        %v7478 = vunpack.c.h.b16 %v7175
        %v7479 = vunpack.c.l.b16 %v7176
        %v7480 = vunpack.c.l.b16 %v7177
        %v7481 = vunpack.c.h.b16 %v7177
        %v7482 = vunpack.c.l.b16 %v7178
        %v7483 = vunpack.c.l.b16 %v7179
        %v7484 = vunpack.c.h.b16 %v7179
        %v7485 = vunpack.c.l.b16 %v7180
        %v7486 = vunpack.c.l.b16 %v7181
        %v7487 = vunpack.c.h.b16 %v7181
        %v7488 = vunpack.c.l.b16 %v7182
        %v7489 = vunpack.c.l.b16 %v7183
        %v7490 = vunpack.c.h.b16 %v7183
        %v7491 = vunpack.c.l.b16 %v7184
        %v7492 = vunpack.c.l.b16 %v7185
        %v7493 = vunpack.c.h.b16 %v7185
        %v7494 = vunpack.c.l.b16 %v7186
        %v7495 = vunpack.c.l.b16 %v7187
        %v7496 = vunpack.c.h.b16 %v7187
        %v7497 = vunpack.c.l.b16 %v7188
        %v7498 = vunpack.c.l.b16 %v7189
        %v7499 = vunpack.c.h.b16 %v7189
        %v7500 = vunpack.c.l.b16 %v7190
        %v7501 = vunpack.c.l.b16 %v7191
        %v7502 = vunpack.c.h.b16 %v7191
        %v7503 = vunpack.c.l.b16 %v7192
        %v7504 = vunpack.c.l.b16 %v7193
        %v7505 = vunpack.c.h.b16 %v7193
        %v7506 = vunpack.c.l.b16 %v7194
        %v7507 = vunpack.c.l.b16 %v7195
        %v7508 = vunpack.c.h.b16 %v7195
        %v7509 = vunpack.c.l.b16 %v7196
        %v7510 = vunpack.c.l.b16 %v7197
        %v7511 = vunpack.c.h.b16 %v7197
        %v7512 = vunpack.c.l.b16 %v7198
        %v7513 = vunpack.c.l.b16 %v7199
        %v7514 = vunpack.c.h.b16 %v7199
        %v7515 = vunpack.c.l.b16 %v7200
        %v7516 = vunpack.c.l.b16 %v7201
        %v7517 = vunpack.c.h.b16 %v7201
        %v7518 = vunpack.c.l.b16 %v7202
        %v7519 = vunpack.c.l.b16 %v7203
        %v7520 = vunpack.c.h.b16 %v7203
        %v7521 = vunpack.c.l.b16 %v7204
        %v7522 = vunpack.c.l.b16 %v7205
        %v7523 = vunpack.c.h.b16 %v7205
        %v7524 = vunpack.c.l.b16 %v7206
        %v7525 = vunpack.c.l.b16 %v7207
        %v7526 = vunpack.c.h.b16 %v7207
        %v7527 = vunpack.c.l.b16 %v7208
        %v7528 = vunpack.c.l.b16 %v7209
        %v7529 = vunpack.c.h.b16 %v7209
        %v7530 = vunpack.c.l.b16 %v7210
        %v7531 = vunpack.c.l.b16 %v7211
        %v7532 = vunpack.c.h.b16 %v7211
        %v7533 = vunpack.c.l.b16 %v7212
        %v7534 = vunpack.c.l.b16 %v7213
        %v7535 = vunpack.c.h.b16 %v7213
        %v7536 = vunpack.c.l.b16 %v7214
        %v7537 = vunpack.c.l.b16 %v7215
        %v7538 = vunpack.c.h.b16 %v7215
        %v7539 = vunpack.c.l.b16 %v7216
        %v7540 = vunpack.c.l.b16 %v7217
        %v7541 = vunpack.c.h.b16 %v7217
        %v7542 = vunpack.c.l.b16 %v7218
        %v7543 = vunpack.c.l.b16 %v7219
        %v7544 = vunpack.c.h.b16 %v7219
        %v7545 = vunpack.c.l.b16 %v7220
        %v7546 = vunpack.c.l.b16 %v7221
        %v7547 = vunpack.c.h.b16 %v7221
        %v7548 = vunpack.c.l.b16 %v7222
        %v7549 = vunpack.c.l.b16 %v7223
        %v7550 = vunpack.c.h.b16 %v7223
        %v7551 = vunpack.c.l.b16 %v7224
        %v7552 = vunpack.c.l.b16 %v7225
        %v7553 = vunpack.c.h.b16 %v7225
        %v7554 = vunpack.c.l.b16 %v7226
        %v7555 = vunpack.c.l.b16 %v7227
        %v7556 = vunpack.c.h.b16 %v7227
        %v7557 = vunpack.c.l.b16 %v7228
        %v7558 = vunpack.c.l.b16 %v7229
        %v7559 = vunpack.c.h.b16 %v7229
        %v7560 = vunpack.c.l.b16 %v7230
        %v7561 = vunpack.c.l.b16 %v7231
        %v7562 = vunpack.c.h.b16 %v7231
        %v7563 = vunpack.c.l.b16 %v7232
        %v7564 = vunpack.c.l.b16 %v7233
        %v7565 = vunpack.c.h.b16 %v7233
        %v7566 = vunpack.c.l.b16 %v7234
        %v7567 = vunpack.c.l.b16 %v7235
        %v7568 = vunpack.c.h.b16 %v7235
        %v7569 = vunpack.c.l.b16 %v7236
        %v7570 = vunpack.c.l.b16 %v7237
        %v7571 = vunpack.c.h.b16 %v7237
        %v7572 = vunpack.c.l.b16 %v7238
        %v7573 = vpack.c.b16 %v7384, %v7381
        %v7574 = vpack.c.b16 %v7385, %v7382
        %v7575 = vpack.c.b16 %v7386, %v7383
        %v7576 = vpack.c.b16 %v7390, %v7387
        %v7577 = vpack.c.b16 %v7391, %v7388
        %v7578 = vpack.c.b16 %v7392, %v7389
        %v7579 = vpack.c.b16 %v7396, %v7393
        %v7580 = vpack.c.b16 %v7397, %v7394
        %v7581 = vpack.c.b16 %v7398, %v7395
        %v7582 = vpack.c.b16 %v7402, %v7399
        %v7583 = vpack.c.b16 %v7403, %v7400
        %v7584 = vpack.c.b16 %v7404, %v7401
        %v7585 = vpack.c.b16 %v7408, %v7405
        %v7586 = vpack.c.b16 %v7409, %v7406
        %v7587 = vpack.c.b16 %v7410, %v7407
        %v7588 = vpack.c.b16 %v7414, %v7411
        %v7589 = vpack.c.b16 %v7415, %v7412
        %v7590 = vpack.c.b16 %v7416, %v7413
        %v7591 = vpack.c.b16 %v7420, %v7417
        %v7592 = vpack.c.b16 %v7421, %v7418
        %v7593 = vpack.c.b16 %v7422, %v7419
        %v7594 = vpack.c.b16 %v7426, %v7423
        %v7595 = vpack.c.b16 %v7427, %v7424
        %v7596 = vpack.c.b16 %v7428, %v7425
        %v7597 = vpack.c.b16 %v7432, %v7429
        %v7598 = vpack.c.b16 %v7433, %v7430
        %v7599 = vpack.c.b16 %v7434, %v7431
        %v7600 = vpack.c.b16 %v7438, %v7435
        %v7601 = vpack.c.b16 %v7439, %v7436
        %v7602 = vpack.c.b16 %v7440, %v7437
        %v7603 = vpack.c.b16 %v7444, %v7441
        %v7604 = vpack.c.b16 %v7445, %v7442
        %v7605 = vpack.c.b16 %v7446, %v7443
        %v7606 = vpack.c.b16 %v7450, %v7447
        %v7607 = vpack.c.b16 %v7451, %v7448
        %v7608 = vpack.c.b16 %v7452, %v7449
        %v7609 = vpack.c.b16 %v7456, %v7453
        %v7610 = vpack.c.b16 %v7457, %v7454
        %v7611 = vpack.c.b16 %v7458, %v7455
        %v7612 = vpack.c.b16 %v7462, %v7459
        %v7613 = vpack.c.b16 %v7463, %v7460
        %v7614 = vpack.c.b16 %v7464, %v7461
        %v7615 = vpack.c.b16 %v7468, %v7465
        %v7616 = vpack.c.b16 %v7469, %v7466
        %v7617 = vpack.c.b16 %v7470, %v7467
        %v7618 = vpack.c.b16 %v7474, %v7471
        %v7619 = vpack.c.b16 %v7475, %v7472
        %v7620 = vpack.c.b16 %v7476, %v7473
        %v7621 = vpack.c.b16 %v7480, %v7477
        %v7622 = vpack.c.b16 %v7481, %v7478
        %v7623 = vpack.c.b16 %v7482, %v7479
        %v7624 = vpack.c.b16 %v7486, %v7483
        %v7625 = vpack.c.b16 %v7487, %v7484
        %v7626 = vpack.c.b16 %v7488, %v7485
        %v7627 = vpack.c.b16 %v7492, %v7489
        %v7628 = vpack.c.b16 %v7493, %v7490
        %v7629 = vpack.c.b16 %v7494, %v7491
        %v7630 = vpack.c.b16 %v7498, %v7495
        %v7631 = vpack.c.b16 %v7499, %v7496
        %v7632 = vpack.c.b16 %v7500, %v7497
        %v7633 = vpack.c.b16 %v7504, %v7501
        %v7634 = vpack.c.b16 %v7505, %v7502
        %v7635 = vpack.c.b16 %v7506, %v7503
        %v7636 = vpack.c.b16 %v7510, %v7507
        %v7637 = vpack.c.b16 %v7511, %v7508
        %v7638 = vpack.c.b16 %v7512, %v7509
        %v7639 = vpack.c.b16 %v7516, %v7513
        %v7640 = vpack.c.b16 %v7517, %v7514
        %v7641 = vpack.c.b16 %v7518, %v7515
        %v7642 = vpack.c.b16 %v7522, %v7519
        %v7643 = vpack.c.b16 %v7523, %v7520
        %v7644 = vpack.c.b16 %v7524, %v7521
        %v7645 = vpack.c.b16 %v7528, %v7525
        %v7646 = vpack.c.b16 %v7529, %v7526
        %v7647 = vpack.c.b16 %v7530, %v7527
        %v7648 = vpack.c.b16 %v7534, %v7531
        %v7649 = vpack.c.b16 %v7535, %v7532
        %v7650 = vpack.c.b16 %v7536, %v7533
        %v7651 = vpack.c.b16 %v7540, %v7537
        %v7652 = vpack.c.b16 %v7541, %v7538
        %v7653 = vpack.c.b16 %v7542, %v7539
        %v7654 = vpack.c.b16 %v7546, %v7543
        %v7655 = vpack.c.b16 %v7547, %v7544
        %v7656 = vpack.c.b16 %v7548, %v7545
        %v7657 = vpack.c.b16 %v7552, %v7549
        %v7658 = vpack.c.b16 %v7553, %v7550
        %v7659 = vpack.c.b16 %v7554, %v7551
        %v7660 = vpack.c.b16 %v7558, %v7555
        %v7661 = vpack.c.b16 %v7559, %v7556
        %v7662 = vpack.c.b16 %v7560, %v7557
        %v7663 = vpack.c.b16 %v7564, %v7561
        %v7664 = vpack.c.b16 %v7565, %v7562
        %v7665 = vpack.c.b16 %v7566, %v7563
        %v7666 = vpack.c.b16 %v7570, %v7567
        %v7667 = vpack.c.b16 %v7571, %v7568
        %v7668 = vpack.c.b16 %v7572, %v7569
        %7765 = vmatpush.bf16.msra.mxu0 %v7594
        %7766 = vmatpush.bf16.msra.mxu0 %v7591
        %7767 = vmatpush.bf16.msra.mxu0 %v7588
        %7768 = vmatpush.bf16.msra.mxu0 %v7585
        %7769 = vmatpush.bf16.msra.mxu0 %v7582
        %7770 = vmatpush.bf16.msra.mxu0 %v7579
        %7771 = vmatpush.bf16.msra.mxu0 %v7576
        %7772 = vmatpush.bf16.msra.mxu0 %v7573
        %7773 = vmatmul.bf16.gmra.mxu0 %v7245
        %v7774 = vpop.f32.mrf.mxu0
        %v7775 = vadd.f32 0.0, %v7774
        %v7776 = vpop.f32.mrf.mxu0
        %7777 = vdwg.mxu0
        %7778 = vmatpush.bf16.msra.mxu0 %v7618
        %7779 = vmatpush.bf16.msra.mxu0 %v7615
        %7780 = vmatpush.bf16.msra.mxu0 %v7612
        %7781 = vmatpush.bf16.msra.mxu0 %v7609
        %7782 = vmatpush.bf16.msra.mxu0 %v7606
        %7783 = vmatpush.bf16.msra.mxu0 %v7603
        %7784 = vmatpush.bf16.msra.mxu0 %v7600
        %7785 = vmatpush.bf16.msra.mxu0 %v7597
        %7786 = vmatmul.bf16.gmra.mxu0 %v7246
        %v7787 = vpop.f32.mrf.mxu0
        %v7788 = vadd.f32 %v7775, %v7787
        %v7789 = vpop.f32.mrf.mxu0
        %7790 = vdwg.mxu0
        %7791 = vmatpush.bf16.msra.mxu0 %v7642
        %7792 = vmatpush.bf16.msra.mxu0 %v7639
        %7793 = vmatpush.bf16.msra.mxu0 %v7636
        %7794 = vmatpush.bf16.msra.mxu0 %v7633
        %7795 = vmatpush.bf16.msra.mxu0 %v7630
        %7796 = vmatpush.bf16.msra.mxu0 %v7627
        %7797 = vmatpush.bf16.msra.mxu0 %v7624
        %7798 = vmatpush.bf16.msra.mxu0 %v7621
        %7799 = vmatmul.bf16.gmra.mxu0 %v7247
        %v7800 = vpop.f32.mrf.mxu0
        %v7801 = vadd.f32 %v7788, %v7800
        %v7802 = vpop.f32.mrf.mxu0
        %7803 = vdwg.mxu0
        %7804 = vmatpush.bf16.msra.mxu0 %v7666
        %7805 = vmatpush.bf16.msra.mxu0 %v7663
        %7806 = vmatpush.bf16.msra.mxu0 %v7660
        %7807 = vmatpush.bf16.msra.mxu0 %v7657
        %7808 = vmatpush.bf16.msra.mxu0 %v7654
        %7809 = vmatpush.bf16.msra.mxu0 %v7651
        %7810 = vmatpush.bf16.msra.mxu0 %v7648
        %7811 = vmatpush.bf16.msra.mxu0 %v7645
        %7812 = vmatmul.bf16.gmra.mxu0 %v7248
        %v7813 = vpop.f32.mrf.mxu0
        %v7814 = vadd.f32 %v7801, %v7813
        %v7815 = vpop.f32.mrf.mxu0
        %7816 = vdwg.mxu0
        %7817 = vmatpush.bf16.msra.mxu0 %v7595
        %7818 = vmatpush.bf16.msra.mxu0 %v7592
        %7819 = vmatpush.bf16.msra.mxu0 %v7589
        %7820 = vmatpush.bf16.msra.mxu0 %v7586
        %7821 = vmatpush.bf16.msra.mxu0 %v7583
        %7822 = vmatpush.bf16.msra.mxu0 %v7580
        %7823 = vmatpush.bf16.msra.mxu0 %v7577
        %7824 = vmatpush.bf16.msra.mxu0 %v7574
        %7825 = vmatmul.bf16.gmra.mxu0 %v7245
        %v7826 = vpop.f32.mrf.mxu0
        %v7827 = vadd.f32 0.0, %v7826
        %v7828 = vpop.f32.mrf.mxu0
        %7829 = vdwg.mxu0
        %7830 = vmatpush.bf16.msra.mxu0 %v7619
        %7831 = vmatpush.bf16.msra.mxu0 %v7616
        %7832 = vmatpush.bf16.msra.mxu0 %v7613
        %7833 = vmatpush.bf16.msra.mxu0 %v7610
        %7834 = vmatpush.bf16.msra.mxu0 %v7607
        %7835 = vmatpush.bf16.msra.mxu0 %v7604
        %7836 = vmatpush.bf16.msra.mxu0 %v7601
        %7837 = vmatpush.bf16.msra.mxu0 %v7598
        %7838 = vmatmul.bf16.gmra.mxu0 %v7246
        %v7839 = vpop.f32.mrf.mxu0
        %v7840 = vadd.f32 %v7827, %v7839
        %v7841 = vpop.f32.mrf.mxu0
        %7842 = vdwg.mxu0
        %7843 = vmatpush.bf16.msra.mxu0 %v7643
        %7844 = vmatpush.bf16.msra.mxu0 %v7640
        %7845 = vmatpush.bf16.msra.mxu0 %v7637
        %7846 = vmatpush.bf16.msra.mxu0 %v7634
        %7847 = vmatpush.bf16.msra.mxu0 %v7631
        %7848 = vmatpush.bf16.msra.mxu0 %v7628
        %7849 = vmatpush.bf16.msra.mxu0 %v7625
        %7850 = vmatpush.bf16.msra.mxu0 %v7622
        %7851 = vmatmul.bf16.gmra.mxu0 %v7247
        %v7852 = vpop.f32.mrf.mxu0
        %v7853 = vadd.f32 %v7840, %v7852
        %v7854 = vpop.f32.mrf.mxu0
        %7855 = vdwg.mxu0
        %7856 = vmatpush.bf16.msra.mxu0 %v7667
        %7857 = vmatpush.bf16.msra.mxu0 %v7664
        %7858 = vmatpush.bf16.msra.mxu0 %v7661
        %7859 = vmatpush.bf16.msra.mxu0 %v7658
        %7860 = vmatpush.bf16.msra.mxu0 %v7655
        %7861 = vmatpush.bf16.msra.mxu0 %v7652
        %7862 = vmatpush.bf16.msra.mxu0 %v7649
        %7863 = vmatpush.bf16.msra.mxu0 %v7646
        %7864 = vmatmul.bf16.gmra.mxu0 %v7248
        %v7865 = vpop.f32.mrf.mxu0
        %v7866 = vadd.f32 %v7853, %v7865
        %v7867 = vpop.f32.mrf.mxu0
        %7868 = vdwg.mxu0
        %7869 = vmatpush.bf16.msra.mxu0 %v7596
        %7870 = vmatpush.bf16.msra.mxu0 %v7593
        %7871 = vmatpush.bf16.msra.mxu0 %v7590
        %7872 = vmatpush.bf16.msra.mxu0 %v7587
        %7873 = vmatpush.bf16.msra.mxu0 %v7584
        %7874 = vmatpush.bf16.msra.mxu0 %v7581
        %7875 = vmatpush.bf16.msra.mxu0 %v7578
        %7876 = vmatpush.bf16.msra.mxu0 %v7575
        %7877 = vmatmul.bf16.gmra.mxu0 %v7245
        %v7878 = vpop.f32.mrf.mxu0
        %v7879 = vadd.f32 0.0, %v7878
        %v7880 = vpop.f32.mrf.mxu0
        %7881 = vdwg.mxu0
        %7882 = vmatpush.bf16.msra.mxu0 %v7620
        %7883 = vmatpush.bf16.msra.mxu0 %v7617
        %7884 = vmatpush.bf16.msra.mxu0 %v7614
        %7885 = vmatpush.bf16.msra.mxu0 %v7611
        %7886 = vmatpush.bf16.msra.mxu0 %v7608
        %7887 = vmatpush.bf16.msra.mxu0 %v7605
        %7888 = vmatpush.bf16.msra.mxu0 %v7602
        %7889 = vmatpush.bf16.msra.mxu0 %v7599
        %7890 = vmatmul.bf16.gmra.mxu0 %v7246
        %v7891 = vpop.f32.mrf.mxu0
        %v7892 = vadd.f32 %v7879, %v7891
        %v7893 = vpop.f32.mrf.mxu0
        %7894 = vdwg.mxu0
        %7895 = vmatpush.bf16.msra.mxu0 %v7644
        %7896 = vmatpush.bf16.msra.mxu0 %v7641
        %7897 = vmatpush.bf16.msra.mxu0 %v7638
        %7898 = vmatpush.bf16.msra.mxu0 %v7635
        %7899 = vmatpush.bf16.msra.mxu0 %v7632
        %7900 = vmatpush.bf16.msra.mxu0 %v7629
        %7901 = vmatpush.bf16.msra.mxu0 %v7626
        %7902 = vmatpush.bf16.msra.mxu0 %v7623
        %7903 = vmatmul.bf16.gmra.mxu0 %v7247
        %v7904 = vpop.f32.mrf.mxu0
        %v7905 = vadd.f32 %v7892, %v7904
        %v7906 = vpop.f32.mrf.mxu0
        %7907 = vdwg.mxu0
        %7908 = vmatpush.bf16.msra.mxu0 %v7668
        %7909 = vmatpush.bf16.msra.mxu0 %v7665
        %7910 = vmatpush.bf16.msra.mxu0 %v7662
        %7911 = vmatpush.bf16.msra.mxu0 %v7659
        %7912 = vmatpush.bf16.msra.mxu0 %v7656
        %7913 = vmatpush.bf16.msra.mxu0 %v7653
        %7914 = vmatpush.bf16.msra.mxu0 %v7650
        %7915 = vmatpush.bf16.msra.mxu0 %v7647
        %7916 = vmatmul.bf16.gmra.mxu0 %v7248
        %v7917 = vpop.f32.mrf.mxu0
        %v7918 = vadd.f32 %v7905, %v7917
        %v7919 = vpop.f32.mrf.mxu0
        %7920 = vdwg.mxu0
        %v7921 = vadd.f32 %v7107, %v7814
        %v7922 = vadd.f32 %v7108, %v7866
        %v7923 = vadd.f32 %v7109, %v7918
        %s7924 = scalar_lea.vmem [#allocation6], 3072
        %v7925 = vld [vmem:[%s7924] sm:$0xff]
        %v7926 = vld [vmem:[%s7924 + $0x8] sm:$0xf]
        %v7927 = vld [vmem:[%s7924 + $0xc] sm:$0xff]
        %v7928 = vld [vmem:[%s7924 + $0x14] sm:$0xf]
        %v7929 = vld [vmem:[%s7924 + $0x18] sm:$0xff]
        %v7930 = vld [vmem:[%s7924 + $0x20] sm:$0xf]
        %v7931 = vld [vmem:[%s7924 + $0x24] sm:$0xff]
        %v7932 = vld [vmem:[%s7924 + $0x2c] sm:$0xf]
        %v7933 = vld [vmem:[%s7924 + $0x30] sm:$0xff]
        %v7934 = vld [vmem:[%s7924 + $0x38] sm:$0xf]
        %v7935 = vld [vmem:[%s7924 + $0x3c] sm:$0xff]
        %v7936 = vld [vmem:[%s7924 + $0x44] sm:$0xf]
        %v7937 = vld [vmem:[%s7924 + $0x48] sm:$0xff]
        %v7938 = vld [vmem:[%s7924 + $0x50] sm:$0xf]
        %v7939 = vld [vmem:[%s7924 + $0x54] sm:$0xff]
        %v7940 = vld [vmem:[%s7924 + $0x5c] sm:$0xf]
        %v7941 = vld [vmem:[%s7924 + $0x60] sm:$0xff]
        %v7942 = vld [vmem:[%s7924 + $0x68] sm:$0xf]
        %v7943 = vld [vmem:[%s7924 + $0x6c] sm:$0xff]
        %v7944 = vld [vmem:[%s7924 + $0x74] sm:$0xf]
        %v7945 = vld [vmem:[%s7924 + $0x78] sm:$0xff]
        %v7946 = vld [vmem:[%s7924 + $0x80] sm:$0xf]
        %v7947 = vld [vmem:[%s7924 + $0x84] sm:$0xff]
        %v7948 = vld [vmem:[%s7924 + $0x8c] sm:$0xf]
        %v7949 = vld [vmem:[%s7924 + $0x90] sm:$0xff]
        %v7950 = vld [vmem:[%s7924 + $0x98] sm:$0xf]
        %v7951 = vld [vmem:[%s7924 + $0x9c] sm:$0xff]
        %v7952 = vld [vmem:[%s7924 + $0xa4] sm:$0xf]
        %v7953 = vld [vmem:[%s7924 + $0xa8] sm:$0xff]
        %v7954 = vld [vmem:[%s7924 + $0xb0] sm:$0xf]
        %v7955 = vld [vmem:[%s7924 + $0xb4] sm:$0xff]
        %v7956 = vld [vmem:[%s7924 + $0xbc] sm:$0xf]
        %v7957 = vld [vmem:[%s7924 + $0xc0] sm:$0xff]
        %v7958 = vld [vmem:[%s7924 + $0xc8] sm:$0xf]
        %v7959 = vld [vmem:[%s7924 + $0xcc] sm:$0xff]
        %v7960 = vld [vmem:[%s7924 + $0xd4] sm:$0xf]
        %v7961 = vld [vmem:[%s7924 + $0xd8] sm:$0xff]
        %v7962 = vld [vmem:[%s7924 + $0xe0] sm:$0xf]
        %v7963 = vld [vmem:[%s7924 + $0xe4] sm:$0xff]
        %v7964 = vld [vmem:[%s7924 + $0xec] sm:$0xf]
        %v7965 = vld [vmem:[%s7924 + $0xf0] sm:$0xff]
        %v7966 = vld [vmem:[%s7924 + $0xf8] sm:$0xf]
        %v7967 = vld [vmem:[%s7924 + $0xfc] sm:$0xff]
        %v7968 = vld [vmem:[%s7924 + $0x104] sm:$0xf]
        %v7969 = vld [vmem:[%s7924 + $0x108] sm:$0xff]
        %v7970 = vld [vmem:[%s7924 + $0x110] sm:$0xf]
        %v7971 = vld [vmem:[%s7924 + $0x114] sm:$0xff]
        %v7972 = vld [vmem:[%s7924 + $0x11c] sm:$0xf]
        %v7973 = vld [vmem:[%s7924 + $0x120] sm:$0xff]
        %v7974 = vld [vmem:[%s7924 + $0x128] sm:$0xf]
        %v7975 = vld [vmem:[%s7924 + $0x12c] sm:$0xff]
        %v7976 = vld [vmem:[%s7924 + $0x134] sm:$0xf]
        %v7977 = vld [vmem:[%s7924 + $0x138] sm:$0xff]
        %v7978 = vld [vmem:[%s7924 + $0x140] sm:$0xf]
        %v7979 = vld [vmem:[%s7924 + $0x144] sm:$0xff]
        %v7980 = vld [vmem:[%s7924 + $0x14c] sm:$0xf]
        %v7981 = vld [vmem:[%s7924 + $0x150] sm:$0xff]
        %v7982 = vld [vmem:[%s7924 + $0x158] sm:$0xf]
        %v7983 = vld [vmem:[%s7924 + $0x15c] sm:$0xff]
        %v7984 = vld [vmem:[%s7924 + $0x164] sm:$0xf]
        %v7985 = vld [vmem:[%s7924 + $0x168] sm:$0xff]
        %v7986 = vld [vmem:[%s7924 + $0x170] sm:$0xf]
        %v7987 = vld [vmem:[%s7924 + $0x174] sm:$0xff]
        %v7988 = vld [vmem:[%s7924 + $0x17c] sm:$0xf]
        %v7989 = vld [vmem:[%s7924 + $0x180] sm:$0xff]
        %v7990 = vld [vmem:[%s7924 + $0x188] sm:$0xf]
        %v7991 = vld [vmem:[%s7924 + $0x18c] sm:$0xff]
        %v7992 = vld [vmem:[%s7924 + $0x194] sm:$0xf]
        %v7993 = vld [vmem:[%s7924 + $0x198] sm:$0xff]
        %v7994 = vld [vmem:[%s7924 + $0x1a0] sm:$0xf]
        %v7995 = vld [vmem:[%s7924 + $0x1a4] sm:$0xff]
        %v7996 = vld [vmem:[%s7924 + $0x1ac] sm:$0xf]
        %v7997 = vld [vmem:[%s7924 + $0x1b0] sm:$0xff]
        %v7998 = vld [vmem:[%s7924 + $0x1b8] sm:$0xf]
        %v7999 = vld [vmem:[%s7924 + $0x1bc] sm:$0xff]
        %v8000 = vld [vmem:[%s7924 + $0x1c4] sm:$0xf]
        %v8001 = vld [vmem:[%s7924 + $0x1c8] sm:$0xff]
        %v8002 = vld [vmem:[%s7924 + $0x1d0] sm:$0xf]
        %v8003 = vld [vmem:[%s7924 + $0x1d4] sm:$0xff]
        %v8004 = vld [vmem:[%s7924 + $0x1dc] sm:$0xf]
        %v8005 = vld [vmem:[%s7924 + $0x1e0] sm:$0xff]
        %v8006 = vld [vmem:[%s7924 + $0x1e8] sm:$0xf]
        %v8007 = vld [vmem:[%s7924 + $0x1ec] sm:$0xff]
        %v8008 = vld [vmem:[%s7924 + $0x1f4] sm:$0xf]
        %v8009 = vld [vmem:[%s7924 + $0x1f8] sm:$0xff]
        %v8010 = vld [vmem:[%s7924 + $0x200] sm:$0xf]
        %v8011 = vld [vmem:[%s7924 + $0x204] sm:$0xff]
        %v8012 = vld [vmem:[%s7924 + $0x20c] sm:$0xf]
        %v8013 = vld [vmem:[%s7924 + $0x210] sm:$0xff]
        %v8014 = vld [vmem:[%s7924 + $0x218] sm:$0xf]
        %v8015 = vld [vmem:[%s7924 + $0x21c] sm:$0xff]
        %v8016 = vld [vmem:[%s7924 + $0x224] sm:$0xf]
        %v8017 = vld [vmem:[%s7924 + $0x228] sm:$0xff]
        %v8018 = vld [vmem:[%s7924 + $0x230] sm:$0xf]
        %v8019 = vld [vmem:[%s7924 + $0x234] sm:$0xff]
        %v8020 = vld [vmem:[%s7924 + $0x23c] sm:$0xf]
        %v8021 = vld [vmem:[%s7924 + $0x240] sm:$0xff]
        %v8022 = vld [vmem:[%s7924 + $0x248] sm:$0xf]
        %v8023 = vld [vmem:[%s7924 + $0x24c] sm:$0xff]
        %v8024 = vld [vmem:[%s7924 + $0x254] sm:$0xf]
        %v8025 = vld [vmem:[%s7924 + $0x258] sm:$0xff]
        %v8026 = vld [vmem:[%s7924 + $0x260] sm:$0xf]
        %v8027 = vld [vmem:[%s7924 + $0x264] sm:$0xff]
        %v8028 = vld [vmem:[%s7924 + $0x26c] sm:$0xf]
        %v8029 = vld [vmem:[%s7924 + $0x270] sm:$0xff]
        %v8030 = vld [vmem:[%s7924 + $0x278] sm:$0xf]
        %v8031 = vld [vmem:[%s7924 + $0x27c] sm:$0xff]
        %v8032 = vld [vmem:[%s7924 + $0x284] sm:$0xf]
        %v8033 = vld [vmem:[%s7924 + $0x288] sm:$0xff]
        %v8034 = vld [vmem:[%s7924 + $0x290] sm:$0xf]
        %v8035 = vld [vmem:[%s7924 + $0x294] sm:$0xff]
        %v8036 = vld [vmem:[%s7924 + $0x29c] sm:$0xf]
        %v8037 = vld [vmem:[%s7924 + $0x2a0] sm:$0xff]
        %v8038 = vld [vmem:[%s7924 + $0x2a8] sm:$0xf]
        %v8039 = vld [vmem:[%s7924 + $0x2ac] sm:$0xff]
        %v8040 = vld [vmem:[%s7924 + $0x2b4] sm:$0xf]
        %v8041 = vld [vmem:[%s7924 + $0x2b8] sm:$0xff]
        %v8042 = vld [vmem:[%s7924 + $0x2c0] sm:$0xf]
        %v8043 = vld [vmem:[%s7924 + $0x2c4] sm:$0xff]
        %v8044 = vld [vmem:[%s7924 + $0x2cc] sm:$0xf]
        %v8045 = vld [vmem:[%s7924 + $0x2d0] sm:$0xff]
        %v8046 = vld [vmem:[%s7924 + $0x2d8] sm:$0xf]
        %v8047 = vld [vmem:[%s7924 + $0x2dc] sm:$0xff]
        %v8048 = vld [vmem:[%s7924 + $0x2e4] sm:$0xf]
        %v8049 = vld [vmem:[%s7924 + $0x2e8] sm:$0xff]
        %v8050 = vld [vmem:[%s7924 + $0x2f0] sm:$0xf]
        %v8051 = vld [vmem:[%s7924 + $0x2f4] sm:$0xff]
        %v8052 = vld [vmem:[%s7924 + $0x2fc] sm:$0xf]
        %v8054 = vshrl.u32 %v5620, 16
        %v8056 = vshll.u32 %v5620, 16
        %v8058 = vrot.slane %v8056, 1
        %v8059 = vor.u32 %v8054, %v8058
        %v8061 = vshrl.u32 %v5621, 16
        %v8063 = vshll.u32 %v5621, 16
        %v8065 = vrot.slane %v8063, 1
        %v8066 = vor.u32 %v8061, %v8065
        %v8068 = vshrl.u32 %v5622, 16
        %v8070 = vshll.u32 %v5622, 16
        %v8072 = vrot.slane %v8070, 1
        %v8073 = vor.u32 %v8068, %v8072
        %v8075 = vshrl.u32 %v5623, 16
        %v8077 = vshll.u32 %v5623, 16
        %v8079 = vrot.slane %v8077, 1
        %v8080 = vor.u32 %v8075, %v8079
        %v8213 = vunpack.c.l.b16 %v7925
        %v8214 = vunpack.c.h.b16 %v7925
        %v8215 = vunpack.c.l.b16 %v7926
        %v8216 = vunpack.c.l.b16 %v7927
        %v8217 = vunpack.c.h.b16 %v7927
        %v8218 = vunpack.c.l.b16 %v7928
        %v8219 = vunpack.c.l.b16 %v7929
        %v8220 = vunpack.c.h.b16 %v7929
        %v8221 = vunpack.c.l.b16 %v7930
        %v8222 = vunpack.c.l.b16 %v7931
        %v8223 = vunpack.c.h.b16 %v7931
        %v8224 = vunpack.c.l.b16 %v7932
        %v8225 = vunpack.c.l.b16 %v7933
        %v8226 = vunpack.c.h.b16 %v7933
        %v8227 = vunpack.c.l.b16 %v7934
        %v8228 = vunpack.c.l.b16 %v7935
        %v8229 = vunpack.c.h.b16 %v7935
        %v8230 = vunpack.c.l.b16 %v7936
        %v8231 = vunpack.c.l.b16 %v7937
        %v8232 = vunpack.c.h.b16 %v7937
        %v8233 = vunpack.c.l.b16 %v7938
        %v8234 = vunpack.c.l.b16 %v7939
        %v8235 = vunpack.c.h.b16 %v7939
        %v8236 = vunpack.c.l.b16 %v7940
        %v8237 = vunpack.c.l.b16 %v7941
        %v8238 = vunpack.c.h.b16 %v7941
        %v8239 = vunpack.c.l.b16 %v7942
        %v8240 = vunpack.c.l.b16 %v7943
        %v8241 = vunpack.c.h.b16 %v7943
        %v8242 = vunpack.c.l.b16 %v7944
        %v8243 = vunpack.c.l.b16 %v7945
        %v8244 = vunpack.c.h.b16 %v7945
        %v8245 = vunpack.c.l.b16 %v7946
        %v8246 = vunpack.c.l.b16 %v7947
        %v8247 = vunpack.c.h.b16 %v7947
        %v8248 = vunpack.c.l.b16 %v7948
        %v8249 = vunpack.c.l.b16 %v7949
        %v8250 = vunpack.c.h.b16 %v7949
        %v8251 = vunpack.c.l.b16 %v7950
        %v8252 = vunpack.c.l.b16 %v7951
        %v8253 = vunpack.c.h.b16 %v7951
        %v8254 = vunpack.c.l.b16 %v7952
        %v8255 = vunpack.c.l.b16 %v7953
        %v8256 = vunpack.c.h.b16 %v7953
        %v8257 = vunpack.c.l.b16 %v7954
        %v8258 = vunpack.c.l.b16 %v7955
        %v8259 = vunpack.c.h.b16 %v7955
        %v8260 = vunpack.c.l.b16 %v7956
        %v8261 = vunpack.c.l.b16 %v7957
        %v8262 = vunpack.c.h.b16 %v7957
        %v8263 = vunpack.c.l.b16 %v7958
        %v8264 = vunpack.c.l.b16 %v7959
        %v8265 = vunpack.c.h.b16 %v7959
        %v8266 = vunpack.c.l.b16 %v7960
        %v8267 = vunpack.c.l.b16 %v7961
        %v8268 = vunpack.c.h.b16 %v7961
        %v8269 = vunpack.c.l.b16 %v7962
        %v8270 = vunpack.c.l.b16 %v7963
        %v8271 = vunpack.c.h.b16 %v7963
        %v8272 = vunpack.c.l.b16 %v7964
        %v8273 = vunpack.c.l.b16 %v7965
        %v8274 = vunpack.c.h.b16 %v7965
        %v8275 = vunpack.c.l.b16 %v7966
        %v8276 = vunpack.c.l.b16 %v7967
        %v8277 = vunpack.c.h.b16 %v7967
        %v8278 = vunpack.c.l.b16 %v7968
        %v8279 = vunpack.c.l.b16 %v7969
        %v8280 = vunpack.c.h.b16 %v7969
        %v8281 = vunpack.c.l.b16 %v7970
        %v8282 = vunpack.c.l.b16 %v7971
        %v8283 = vunpack.c.h.b16 %v7971
        %v8284 = vunpack.c.l.b16 %v7972
        %v8285 = vunpack.c.l.b16 %v7973
        %v8286 = vunpack.c.h.b16 %v7973
        %v8287 = vunpack.c.l.b16 %v7974
        %v8288 = vunpack.c.l.b16 %v7975
        %v8289 = vunpack.c.h.b16 %v7975
        %v8290 = vunpack.c.l.b16 %v7976
        %v8291 = vunpack.c.l.b16 %v7977
        %v8292 = vunpack.c.h.b16 %v7977
        %v8293 = vunpack.c.l.b16 %v7978
        %v8294 = vunpack.c.l.b16 %v7979
        %v8295 = vunpack.c.h.b16 %v7979
        %v8296 = vunpack.c.l.b16 %v7980
        %v8297 = vunpack.c.l.b16 %v7981
        %v8298 = vunpack.c.h.b16 %v7981
        %v8299 = vunpack.c.l.b16 %v7982
        %v8300 = vunpack.c.l.b16 %v7983
        %v8301 = vunpack.c.h.b16 %v7983
        %v8302 = vunpack.c.l.b16 %v7984
        %v8303 = vunpack.c.l.b16 %v7985
        %v8304 = vunpack.c.h.b16 %v7985
        %v8305 = vunpack.c.l.b16 %v7986
        %v8306 = vunpack.c.l.b16 %v7987
        %v8307 = vunpack.c.h.b16 %v7987
        %v8308 = vunpack.c.l.b16 %v7988
        %v8309 = vunpack.c.l.b16 %v7989
        %v8310 = vunpack.c.h.b16 %v7989
        %v8311 = vunpack.c.l.b16 %v7990
        %v8312 = vunpack.c.l.b16 %v7991
        %v8313 = vunpack.c.h.b16 %v7991
        %v8314 = vunpack.c.l.b16 %v7992
        %v8315 = vunpack.c.l.b16 %v7993
        %v8316 = vunpack.c.h.b16 %v7993
        %v8317 = vunpack.c.l.b16 %v7994
        %v8318 = vunpack.c.l.b16 %v7995
        %v8319 = vunpack.c.h.b16 %v7995
        %v8320 = vunpack.c.l.b16 %v7996
        %v8321 = vunpack.c.l.b16 %v7997
        %v8322 = vunpack.c.h.b16 %v7997
        %v8323 = vunpack.c.l.b16 %v7998
        %v8324 = vunpack.c.l.b16 %v7999
        %v8325 = vunpack.c.h.b16 %v7999
        %v8326 = vunpack.c.l.b16 %v8000
        %v8327 = vunpack.c.l.b16 %v8001
        %v8328 = vunpack.c.h.b16 %v8001
        %v8329 = vunpack.c.l.b16 %v8002
        %v8330 = vunpack.c.l.b16 %v8003
        %v8331 = vunpack.c.h.b16 %v8003
        %v8332 = vunpack.c.l.b16 %v8004
        %v8333 = vunpack.c.l.b16 %v8005
        %v8334 = vunpack.c.h.b16 %v8005
        %v8335 = vunpack.c.l.b16 %v8006
        %v8336 = vunpack.c.l.b16 %v8007
        %v8337 = vunpack.c.h.b16 %v8007
        %v8338 = vunpack.c.l.b16 %v8008
        %v8339 = vunpack.c.l.b16 %v8009
        %v8340 = vunpack.c.h.b16 %v8009
        %v8341 = vunpack.c.l.b16 %v8010
        %v8342 = vunpack.c.l.b16 %v8011
        %v8343 = vunpack.c.h.b16 %v8011
        %v8344 = vunpack.c.l.b16 %v8012
        %v8345 = vunpack.c.l.b16 %v8013
        %v8346 = vunpack.c.h.b16 %v8013
        %v8347 = vunpack.c.l.b16 %v8014
        %v8348 = vunpack.c.l.b16 %v8015
        %v8349 = vunpack.c.h.b16 %v8015
        %v8350 = vunpack.c.l.b16 %v8016
        %v8351 = vunpack.c.l.b16 %v8017
        %v8352 = vunpack.c.h.b16 %v8017
        %v8353 = vunpack.c.l.b16 %v8018
        %v8354 = vunpack.c.l.b16 %v8019
        %v8355 = vunpack.c.h.b16 %v8019
        %v8356 = vunpack.c.l.b16 %v8020
        %v8357 = vunpack.c.l.b16 %v8021
        %v8358 = vunpack.c.h.b16 %v8021
        %v8359 = vunpack.c.l.b16 %v8022
        %v8360 = vunpack.c.l.b16 %v8023
        %v8361 = vunpack.c.h.b16 %v8023
        %v8362 = vunpack.c.l.b16 %v8024
        %v8363 = vunpack.c.l.b16 %v8025
        %v8364 = vunpack.c.h.b16 %v8025
        %v8365 = vunpack.c.l.b16 %v8026
        %v8366 = vunpack.c.l.b16 %v8027
        %v8367 = vunpack.c.h.b16 %v8027
        %v8368 = vunpack.c.l.b16 %v8028
        %v8369 = vunpack.c.l.b16 %v8029
        %v8370 = vunpack.c.h.b16 %v8029
        %v8371 = vunpack.c.l.b16 %v8030
        %v8372 = vunpack.c.l.b16 %v8031
        %v8373 = vunpack.c.h.b16 %v8031
        %v8374 = vunpack.c.l.b16 %v8032
        %v8375 = vunpack.c.l.b16 %v8033
        %v8376 = vunpack.c.h.b16 %v8033
        %v8377 = vunpack.c.l.b16 %v8034
        %v8378 = vunpack.c.l.b16 %v8035
        %v8379 = vunpack.c.h.b16 %v8035
        %v8380 = vunpack.c.l.b16 %v8036
        %v8381 = vunpack.c.l.b16 %v8037
        %v8382 = vunpack.c.h.b16 %v8037
        %v8383 = vunpack.c.l.b16 %v8038
        %v8384 = vunpack.c.l.b16 %v8039
        %v8385 = vunpack.c.h.b16 %v8039
        %v8386 = vunpack.c.l.b16 %v8040
        %v8387 = vunpack.c.l.b16 %v8041
        %v8388 = vunpack.c.h.b16 %v8041
        %v8389 = vunpack.c.l.b16 %v8042
        %v8390 = vunpack.c.l.b16 %v8043
        %v8391 = vunpack.c.h.b16 %v8043
        %v8392 = vunpack.c.l.b16 %v8044
        %v8393 = vunpack.c.l.b16 %v8045
        %v8394 = vunpack.c.h.b16 %v8045
        %v8395 = vunpack.c.l.b16 %v8046
        %v8396 = vunpack.c.l.b16 %v8047
        %v8397 = vunpack.c.h.b16 %v8047
        %v8398 = vunpack.c.l.b16 %v8048
        %v8399 = vunpack.c.l.b16 %v8049
        %v8400 = vunpack.c.h.b16 %v8049
        %v8401 = vunpack.c.l.b16 %v8050
        %v8402 = vunpack.c.l.b16 %v8051
        %v8403 = vunpack.c.h.b16 %v8051
        %v8404 = vunpack.c.l.b16 %v8052
        %v8405 = vpack.c.b16 %v8216, %v8213
        %v8406 = vpack.c.b16 %v8217, %v8214
        %v8407 = vpack.c.b16 %v8218, %v8215
        %v8408 = vpack.c.b16 %v8222, %v8219
        %v8409 = vpack.c.b16 %v8223, %v8220
        %v8410 = vpack.c.b16 %v8224, %v8221
        %v8411 = vpack.c.b16 %v8228, %v8225
        %v8412 = vpack.c.b16 %v8229, %v8226
        %v8413 = vpack.c.b16 %v8230, %v8227
        %v8414 = vpack.c.b16 %v8234, %v8231
        %v8415 = vpack.c.b16 %v8235, %v8232
        %v8416 = vpack.c.b16 %v8236, %v8233
        %v8417 = vpack.c.b16 %v8240, %v8237
        %v8418 = vpack.c.b16 %v8241, %v8238
        %v8419 = vpack.c.b16 %v8242, %v8239
        %v8420 = vpack.c.b16 %v8246, %v8243
        %v8421 = vpack.c.b16 %v8247, %v8244
        %v8422 = vpack.c.b16 %v8248, %v8245
        %v8423 = vpack.c.b16 %v8252, %v8249
        %v8424 = vpack.c.b16 %v8253, %v8250
        %v8425 = vpack.c.b16 %v8254, %v8251
        %v8426 = vpack.c.b16 %v8258, %v8255
        %v8427 = vpack.c.b16 %v8259, %v8256
        %v8428 = vpack.c.b16 %v8260, %v8257
        %v8429 = vpack.c.b16 %v8264, %v8261
        %v8430 = vpack.c.b16 %v8265, %v8262
        %v8431 = vpack.c.b16 %v8266, %v8263
        %v8432 = vpack.c.b16 %v8270, %v8267
        %v8433 = vpack.c.b16 %v8271, %v8268
        %v8434 = vpack.c.b16 %v8272, %v8269
        %v8435 = vpack.c.b16 %v8276, %v8273
        %v8436 = vpack.c.b16 %v8277, %v8274
        %v8437 = vpack.c.b16 %v8278, %v8275
        %v8438 = vpack.c.b16 %v8282, %v8279
        %v8439 = vpack.c.b16 %v8283, %v8280
        %v8440 = vpack.c.b16 %v8284, %v8281
        %v8441 = vpack.c.b16 %v8288, %v8285
        %v8442 = vpack.c.b16 %v8289, %v8286
        %v8443 = vpack.c.b16 %v8290, %v8287
        %v8444 = vpack.c.b16 %v8294, %v8291
        %v8445 = vpack.c.b16 %v8295, %v8292
        %v8446 = vpack.c.b16 %v8296, %v8293
        %v8447 = vpack.c.b16 %v8300, %v8297
        %v8448 = vpack.c.b16 %v8301, %v8298
        %v8449 = vpack.c.b16 %v8302, %v8299
        %v8450 = vpack.c.b16 %v8306, %v8303
        %v8451 = vpack.c.b16 %v8307, %v8304
        %v8452 = vpack.c.b16 %v8308, %v8305
        %v8453 = vpack.c.b16 %v8312, %v8309
        %v8454 = vpack.c.b16 %v8313, %v8310
        %v8455 = vpack.c.b16 %v8314, %v8311
        %v8456 = vpack.c.b16 %v8318, %v8315
        %v8457 = vpack.c.b16 %v8319, %v8316
        %v8458 = vpack.c.b16 %v8320, %v8317
        %v8459 = vpack.c.b16 %v8324, %v8321
        %v8460 = vpack.c.b16 %v8325, %v8322
        %v8461 = vpack.c.b16 %v8326, %v8323
        %v8462 = vpack.c.b16 %v8330, %v8327
        %v8463 = vpack.c.b16 %v8331, %v8328
        %v8464 = vpack.c.b16 %v8332, %v8329
        %v8465 = vpack.c.b16 %v8336, %v8333
        %v8466 = vpack.c.b16 %v8337, %v8334
        %v8467 = vpack.c.b16 %v8338, %v8335
        %v8468 = vpack.c.b16 %v8342, %v8339
        %v8469 = vpack.c.b16 %v8343, %v8340
        %v8470 = vpack.c.b16 %v8344, %v8341
        %v8471 = vpack.c.b16 %v8348, %v8345
        %v8472 = vpack.c.b16 %v8349, %v8346
        %v8473 = vpack.c.b16 %v8350, %v8347
        %v8474 = vpack.c.b16 %v8354, %v8351
        %v8475 = vpack.c.b16 %v8355, %v8352
        %v8476 = vpack.c.b16 %v8356, %v8353
        %v8477 = vpack.c.b16 %v8360, %v8357
        %v8478 = vpack.c.b16 %v8361, %v8358
        %v8479 = vpack.c.b16 %v8362, %v8359
        %v8480 = vpack.c.b16 %v8366, %v8363
        %v8481 = vpack.c.b16 %v8367, %v8364
        %v8482 = vpack.c.b16 %v8368, %v8365
        %v8483 = vpack.c.b16 %v8372, %v8369
        %v8484 = vpack.c.b16 %v8373, %v8370
        %v8485 = vpack.c.b16 %v8374, %v8371
        %v8486 = vpack.c.b16 %v8378, %v8375
        %v8487 = vpack.c.b16 %v8379, %v8376
        %v8488 = vpack.c.b16 %v8380, %v8377
        %v8489 = vpack.c.b16 %v8384, %v8381
        %v8490 = vpack.c.b16 %v8385, %v8382
        %v8491 = vpack.c.b16 %v8386, %v8383
        %v8492 = vpack.c.b16 %v8390, %v8387
        %v8493 = vpack.c.b16 %v8391, %v8388
        %v8494 = vpack.c.b16 %v8392, %v8389
        %v8495 = vpack.c.b16 %v8396, %v8393
        %v8496 = vpack.c.b16 %v8397, %v8394
        %v8497 = vpack.c.b16 %v8398, %v8395
        %v8498 = vpack.c.b16 %v8402, %v8399
        %v8499 = vpack.c.b16 %v8403, %v8400
        %v8500 = vpack.c.b16 %v8404, %v8401
        %8597 = vmatpush.bf16.msra.mxu0 %v8426
        %8598 = vmatpush.bf16.msra.mxu0 %v8423
        %8599 = vmatpush.bf16.msra.mxu0 %v8420
        %8600 = vmatpush.bf16.msra.mxu0 %v8417
        %8601 = vmatpush.bf16.msra.mxu0 %v8414
        %8602 = vmatpush.bf16.msra.mxu0 %v8411
        %8603 = vmatpush.bf16.msra.mxu0 %v8408
        %8604 = vmatpush.bf16.msra.mxu0 %v8405
        %8605 = vmatmul.bf16.gmra.mxu0 %v8059
        %v8606 = vpop.f32.mrf.mxu0
        %v8607 = vadd.f32 0.0, %v8606
        %v8608 = vpop.f32.mrf.mxu0
        %8609 = vdwg.mxu0
        %8610 = vmatpush.bf16.msra.mxu0 %v8450
        %8611 = vmatpush.bf16.msra.mxu0 %v8447
        %8612 = vmatpush.bf16.msra.mxu0 %v8444
        %8613 = vmatpush.bf16.msra.mxu0 %v8441
        %8614 = vmatpush.bf16.msra.mxu0 %v8438
        %8615 = vmatpush.bf16.msra.mxu0 %v8435
        %8616 = vmatpush.bf16.msra.mxu0 %v8432
        %8617 = vmatpush.bf16.msra.mxu0 %v8429
        %8618 = vmatmul.bf16.gmra.mxu0 %v8066
        %v8619 = vpop.f32.mrf.mxu0
        %v8620 = vadd.f32 %v8607, %v8619
        %v8621 = vpop.f32.mrf.mxu0
        %8622 = vdwg.mxu0
        %8623 = vmatpush.bf16.msra.mxu0 %v8474
        %8624 = vmatpush.bf16.msra.mxu0 %v8471
        %8625 = vmatpush.bf16.msra.mxu0 %v8468
        %8626 = vmatpush.bf16.msra.mxu0 %v8465
        %8627 = vmatpush.bf16.msra.mxu0 %v8462
        %8628 = vmatpush.bf16.msra.mxu0 %v8459
        %8629 = vmatpush.bf16.msra.mxu0 %v8456
        %8630 = vmatpush.bf16.msra.mxu0 %v8453
        %8631 = vmatmul.bf16.gmra.mxu0 %v8073
        %v8632 = vpop.f32.mrf.mxu0
        %v8633 = vadd.f32 %v8620, %v8632
        %v8634 = vpop.f32.mrf.mxu0
        %8635 = vdwg.mxu0
        %8636 = vmatpush.bf16.msra.mxu0 %v8498
        %8637 = vmatpush.bf16.msra.mxu0 %v8495
        %8638 = vmatpush.bf16.msra.mxu0 %v8492
        %8639 = vmatpush.bf16.msra.mxu0 %v8489
        %8640 = vmatpush.bf16.msra.mxu0 %v8486
        %8641 = vmatpush.bf16.msra.mxu0 %v8483
        %8642 = vmatpush.bf16.msra.mxu0 %v8480
        %8643 = vmatpush.bf16.msra.mxu0 %v8477
        %8644 = vmatmul.bf16.gmra.mxu0 %v8080
        %v8645 = vpop.f32.mrf.mxu0
        %v8646 = vadd.f32 %v8633, %v8645
        %v8647 = vpop.f32.mrf.mxu0
        %8648 = vdwg.mxu0
        %8649 = vmatpush.bf16.msra.mxu0 %v8427
        %8650 = vmatpush.bf16.msra.mxu0 %v8424
        %8651 = vmatpush.bf16.msra.mxu0 %v8421
        %8652 = vmatpush.bf16.msra.mxu0 %v8418
        %8653 = vmatpush.bf16.msra.mxu0 %v8415
        %8654 = vmatpush.bf16.msra.mxu0 %v8412
        %8655 = vmatpush.bf16.msra.mxu0 %v8409
        %8656 = vmatpush.bf16.msra.mxu0 %v8406
        %8657 = vmatmul.bf16.gmra.mxu0 %v8059
        %v8658 = vpop.f32.mrf.mxu0
        %v8659 = vadd.f32 0.0, %v8658
        %v8660 = vpop.f32.mrf.mxu0
        %8661 = vdwg.mxu0
        %8662 = vmatpush.bf16.msra.mxu0 %v8451
        %8663 = vmatpush.bf16.msra.mxu0 %v8448
        %8664 = vmatpush.bf16.msra.mxu0 %v8445
        %8665 = vmatpush.bf16.msra.mxu0 %v8442
        %8666 = vmatpush.bf16.msra.mxu0 %v8439
        %8667 = vmatpush.bf16.msra.mxu0 %v8436
        %8668 = vmatpush.bf16.msra.mxu0 %v8433
        %8669 = vmatpush.bf16.msra.mxu0 %v8430
        %8670 = vmatmul.bf16.gmra.mxu0 %v8066
        %v8671 = vpop.f32.mrf.mxu0
        %v8672 = vadd.f32 %v8659, %v8671
        %v8673 = vpop.f32.mrf.mxu0
        %8674 = vdwg.mxu0
        %8675 = vmatpush.bf16.msra.mxu0 %v8475
        %8676 = vmatpush.bf16.msra.mxu0 %v8472
        %8677 = vmatpush.bf16.msra.mxu0 %v8469
        %8678 = vmatpush.bf16.msra.mxu0 %v8466
        %8679 = vmatpush.bf16.msra.mxu0 %v8463
        %8680 = vmatpush.bf16.msra.mxu0 %v8460
        %8681 = vmatpush.bf16.msra.mxu0 %v8457
        %8682 = vmatpush.bf16.msra.mxu0 %v8454
        %8683 = vmatmul.bf16.gmra.mxu0 %v8073
        %v8684 = vpop.f32.mrf.mxu0
        %v8685 = vadd.f32 %v8672, %v8684
        %v8686 = vpop.f32.mrf.mxu0
        %8687 = vdwg.mxu0
        %8688 = vmatpush.bf16.msra.mxu0 %v8499
        %8689 = vmatpush.bf16.msra.mxu0 %v8496
        %8690 = vmatpush.bf16.msra.mxu0 %v8493
        %8691 = vmatpush.bf16.msra.mxu0 %v8490
        %8692 = vmatpush.bf16.msra.mxu0 %v8487
        %8693 = vmatpush.bf16.msra.mxu0 %v8484
        %8694 = vmatpush.bf16.msra.mxu0 %v8481
        %8695 = vmatpush.bf16.msra.mxu0 %v8478
        %8696 = vmatmul.bf16.gmra.mxu0 %v8080
        %v8697 = vpop.f32.mrf.mxu0
        %v8698 = vadd.f32 %v8685, %v8697
        %v8699 = vpop.f32.mrf.mxu0
        %8700 = vdwg.mxu0
        %8701 = vmatpush.bf16.msra.mxu0 %v8428
        %8702 = vmatpush.bf16.msra.mxu0 %v8425
        %8703 = vmatpush.bf16.msra.mxu0 %v8422
        %8704 = vmatpush.bf16.msra.mxu0 %v8419
        %8705 = vmatpush.bf16.msra.mxu0 %v8416
        %8706 = vmatpush.bf16.msra.mxu0 %v8413
        %8707 = vmatpush.bf16.msra.mxu0 %v8410
        %8708 = vmatpush.bf16.msra.mxu0 %v8407
        %8709 = vmatmul.bf16.gmra.mxu0 %v8059
        %v8710 = vpop.f32.mrf.mxu0
        %v8711 = vadd.f32 0.0, %v8710
        %v8712 = vpop.f32.mrf.mxu0
        %8713 = vdwg.mxu0
        %8714 = vmatpush.bf16.msra.mxu0 %v8452
        %8715 = vmatpush.bf16.msra.mxu0 %v8449
        %8716 = vmatpush.bf16.msra.mxu0 %v8446
        %8717 = vmatpush.bf16.msra.mxu0 %v8443
        %8718 = vmatpush.bf16.msra.mxu0 %v8440
        %8719 = vmatpush.bf16.msra.mxu0 %v8437
        %8720 = vmatpush.bf16.msra.mxu0 %v8434
        %8721 = vmatpush.bf16.msra.mxu0 %v8431
        %8722 = vmatmul.bf16.gmra.mxu0 %v8066
        %v8723 = vpop.f32.mrf.mxu0
        %v8724 = vadd.f32 %v8711, %v8723
        %v8725 = vpop.f32.mrf.mxu0
        %8726 = vdwg.mxu0
        %8727 = vmatpush.bf16.msra.mxu0 %v8476
        %8728 = vmatpush.bf16.msra.mxu0 %v8473
        %8729 = vmatpush.bf16.msra.mxu0 %v8470
        %8730 = vmatpush.bf16.msra.mxu0 %v8467
        %8731 = vmatpush.bf16.msra.mxu0 %v8464
        %8732 = vmatpush.bf16.msra.mxu0 %v8461
        %8733 = vmatpush.bf16.msra.mxu0 %v8458
        %8734 = vmatpush.bf16.msra.mxu0 %v8455
        %8735 = vmatmul.bf16.gmra.mxu0 %v8073
        %v8736 = vpop.f32.mrf.mxu0
        %v8737 = vadd.f32 %v8724, %v8736
        %v8738 = vpop.f32.mrf.mxu0
        %8739 = vdwg.mxu0
        %8740 = vmatpush.bf16.msra.mxu0 %v8500
        %8741 = vmatpush.bf16.msra.mxu0 %v8497
        %8742 = vmatpush.bf16.msra.mxu0 %v8494
        %8743 = vmatpush.bf16.msra.mxu0 %v8491
        %8744 = vmatpush.bf16.msra.mxu0 %v8488
        %8745 = vmatpush.bf16.msra.mxu0 %v8485
        %8746 = vmatpush.bf16.msra.mxu0 %v8482
        %8747 = vmatpush.bf16.msra.mxu0 %v8479
        %8748 = vmatmul.bf16.gmra.mxu0 %v8080
        %v8749 = vpop.f32.mrf.mxu0
        %v8750 = vadd.f32 %v8737, %v8749
        %v8751 = vpop.f32.mrf.mxu0
        %8752 = vdwg.mxu0
        %v8753 = vadd.f32 %v7921, %v8646
        %v8754 = vadd.f32 %v7922, %v8698
        %v8755 = vadd.f32 %v7923, %v8750
        %v8756 = vld [vmem:[#allocation7] sm:$0x7]
        %v8758 = vperm.slane %v8756, 0
        %v8759 = vperm.slane %v8756, 1
        %v8760 = vperm.slane %v8756, 2
        %v8764 = vadd.f32 %v8753, %v8758
        %v8765 = vadd.f32 %v8754, %v8759
        %v8766 = vadd.f32 %v8755, %v8760
        %v8767 = vmax.f32 %v8764, 0.0
        %v8768 = vmax.f32 %v8765, 0.0
        %v8769 = vmax.f32 %v8766, 0.0
        %v8770 = vpack.c.bf16 %v8768, %v8767
        %v8771 = vpack.c.bf16 %v8769, %v8769
        %8772 = vmatpush.bf16.msra.mxu0 %v5287
        %8773 = vmatpush.bf16.msra.mxu0 %v5284
        %8774 = vmatpush.bf16.msra.mxu0 %v5281
        %8775 = vmatpush.bf16.msra.mxu0 %v5278
        %8776 = vmatpush.bf16.msra.mxu0 %v5275
        %8777 = vmatpush.bf16.msra.mxu0 %v5272
        %8778 = vmatpush.bf16.msra.mxu0 %v5269
        %8779 = vmatpush.bf16.msra.mxu0 %v5266
        %8780 = vmatmul.bf16.gmra.mxu0 %v7245
        %v8781 = vpop.f32.mrf.mxu0
        %v8782 = vadd.f32 0.0, %v8781
        %v8783 = vpop.f32.mrf.mxu0
        %8784 = vdwg.mxu0
        %8785 = vmatpush.bf16.msra.mxu0 %v5311
        %8786 = vmatpush.bf16.msra.mxu0 %v5308
        %8787 = vmatpush.bf16.msra.mxu0 %v5305
        %8788 = vmatpush.bf16.msra.mxu0 %v5302
        %8789 = vmatpush.bf16.msra.mxu0 %v5299
        %8790 = vmatpush.bf16.msra.mxu0 %v5296
        %8791 = vmatpush.bf16.msra.mxu0 %v5293
        %8792 = vmatpush.bf16.msra.mxu0 %v5290
        %8793 = vmatmul.bf16.gmra.mxu0 %v7246
        %v8794 = vpop.f32.mrf.mxu0
        %v8795 = vadd.f32 %v8782, %v8794
        %v8796 = vpop.f32.mrf.mxu0
        %8797 = vdwg.mxu0
        %8798 = vmatpush.bf16.msra.mxu0 %v5335
        %8799 = vmatpush.bf16.msra.mxu0 %v5332
        %8800 = vmatpush.bf16.msra.mxu0 %v5329
        %8801 = vmatpush.bf16.msra.mxu0 %v5326
        %8802 = vmatpush.bf16.msra.mxu0 %v5323
        %8803 = vmatpush.bf16.msra.mxu0 %v5320
        %8804 = vmatpush.bf16.msra.mxu0 %v5317
        %8805 = vmatpush.bf16.msra.mxu0 %v5314
        %8806 = vmatmul.bf16.gmra.mxu0 %v7247
        %v8807 = vpop.f32.mrf.mxu0
        %v8808 = vadd.f32 %v8795, %v8807
        %v8809 = vpop.f32.mrf.mxu0
        %8810 = vdwg.mxu0
        %8811 = vmatpush.bf16.msra.mxu0 %v5359
        %8812 = vmatpush.bf16.msra.mxu0 %v5356
        %8813 = vmatpush.bf16.msra.mxu0 %v5353
        %8814 = vmatpush.bf16.msra.mxu0 %v5350
        %8815 = vmatpush.bf16.msra.mxu0 %v5347
        %8816 = vmatpush.bf16.msra.mxu0 %v5344
        %8817 = vmatpush.bf16.msra.mxu0 %v5341
        %8818 = vmatpush.bf16.msra.mxu0 %v5338
        %8819 = vmatmul.bf16.gmra.mxu0 %v7248
        %v8820 = vpop.f32.mrf.mxu0
        %v8821 = vadd.f32 %v8808, %v8820
        %v8822 = vpop.f32.mrf.mxu0
        %8823 = vdwg.mxu0
        %8824 = vmatpush.bf16.msra.mxu0 %v5288
        %8825 = vmatpush.bf16.msra.mxu0 %v5285
        %8826 = vmatpush.bf16.msra.mxu0 %v5282
        %8827 = vmatpush.bf16.msra.mxu0 %v5279
        %8828 = vmatpush.bf16.msra.mxu0 %v5276
        %8829 = vmatpush.bf16.msra.mxu0 %v5273
        %8830 = vmatpush.bf16.msra.mxu0 %v5270
        %8831 = vmatpush.bf16.msra.mxu0 %v5267
        %8832 = vmatmul.bf16.gmra.mxu0 %v7245
        %v8833 = vpop.f32.mrf.mxu0
        %v8834 = vadd.f32 0.0, %v8833
        %v8835 = vpop.f32.mrf.mxu0
        %8836 = vdwg.mxu0
        %8837 = vmatpush.bf16.msra.mxu0 %v5312
        %8838 = vmatpush.bf16.msra.mxu0 %v5309
        %8839 = vmatpush.bf16.msra.mxu0 %v5306
        %8840 = vmatpush.bf16.msra.mxu0 %v5303
        %8841 = vmatpush.bf16.msra.mxu0 %v5300
        %8842 = vmatpush.bf16.msra.mxu0 %v5297
        %8843 = vmatpush.bf16.msra.mxu0 %v5294
        %8844 = vmatpush.bf16.msra.mxu0 %v5291
        %8845 = vmatmul.bf16.gmra.mxu0 %v7246
        %v8846 = vpop.f32.mrf.mxu0
        %v8847 = vadd.f32 %v8834, %v8846
        %v8848 = vpop.f32.mrf.mxu0
        %8849 = vdwg.mxu0
        %8850 = vmatpush.bf16.msra.mxu0 %v5336
        %8851 = vmatpush.bf16.msra.mxu0 %v5333
        %8852 = vmatpush.bf16.msra.mxu0 %v5330
        %8853 = vmatpush.bf16.msra.mxu0 %v5327
        %8854 = vmatpush.bf16.msra.mxu0 %v5324
        %8855 = vmatpush.bf16.msra.mxu0 %v5321
        %8856 = vmatpush.bf16.msra.mxu0 %v5318
        %8857 = vmatpush.bf16.msra.mxu0 %v5315
        %8858 = vmatmul.bf16.gmra.mxu0 %v7247
        %v8859 = vpop.f32.mrf.mxu0
        %v8860 = vadd.f32 %v8847, %v8859
        %v8861 = vpop.f32.mrf.mxu0
        %8862 = vdwg.mxu0
        %8863 = vmatpush.bf16.msra.mxu0 %v5360
        %8864 = vmatpush.bf16.msra.mxu0 %v5357
        %8865 = vmatpush.bf16.msra.mxu0 %v5354
        %8866 = vmatpush.bf16.msra.mxu0 %v5351
        %8867 = vmatpush.bf16.msra.mxu0 %v5348
        %8868 = vmatpush.bf16.msra.mxu0 %v5345
        %8869 = vmatpush.bf16.msra.mxu0 %v5342
        %8870 = vmatpush.bf16.msra.mxu0 %v5339
        %8871 = vmatmul.bf16.gmra.mxu0 %v7248
        %v8872 = vpop.f32.mrf.mxu0
        %v8873 = vadd.f32 %v8860, %v8872
        %v8874 = vpop.f32.mrf.mxu0
        %8875 = vdwg.mxu0
        %8876 = vmatpush.bf16.msra.mxu0 %v5289
        %8877 = vmatpush.bf16.msra.mxu0 %v5286
        %8878 = vmatpush.bf16.msra.mxu0 %v5283
        %8879 = vmatpush.bf16.msra.mxu0 %v5280
        %8880 = vmatpush.bf16.msra.mxu0 %v5277
        %8881 = vmatpush.bf16.msra.mxu0 %v5274
        %8882 = vmatpush.bf16.msra.mxu0 %v5271
        %8883 = vmatpush.bf16.msra.mxu0 %v5268
        %8884 = vmatmul.bf16.gmra.mxu0 %v7245
        %v8885 = vpop.f32.mrf.mxu0
        %v8886 = vadd.f32 0.0, %v8885
        %v8887 = vpop.f32.mrf.mxu0
        %8888 = vdwg.mxu0
        %8889 = vmatpush.bf16.msra.mxu0 %v5313
        %8890 = vmatpush.bf16.msra.mxu0 %v5310
        %8891 = vmatpush.bf16.msra.mxu0 %v5307
        %8892 = vmatpush.bf16.msra.mxu0 %v5304
        %8893 = vmatpush.bf16.msra.mxu0 %v5301
        %8894 = vmatpush.bf16.msra.mxu0 %v5298
        %8895 = vmatpush.bf16.msra.mxu0 %v5295
        %8896 = vmatpush.bf16.msra.mxu0 %v5292
        %8897 = vmatmul.bf16.gmra.mxu0 %v7246
        %v8898 = vpop.f32.mrf.mxu0
        %v8899 = vadd.f32 %v8886, %v8898
        %v8900 = vpop.f32.mrf.mxu0
        %8901 = vdwg.mxu0
        %8902 = vmatpush.bf16.msra.mxu0 %v5337
        %8903 = vmatpush.bf16.msra.mxu0 %v5334
        %8904 = vmatpush.bf16.msra.mxu0 %v5331
        %8905 = vmatpush.bf16.msra.mxu0 %v5328
        %8906 = vmatpush.bf16.msra.mxu0 %v5325
        %8907 = vmatpush.bf16.msra.mxu0 %v5322
        %8908 = vmatpush.bf16.msra.mxu0 %v5319
        %8909 = vmatpush.bf16.msra.mxu0 %v5316
        %8910 = vmatmul.bf16.gmra.mxu0 %v7247
        %v8911 = vpop.f32.mrf.mxu0
        %v8912 = vadd.f32 %v8899, %v8911
        %v8913 = vpop.f32.mrf.mxu0
        %8914 = vdwg.mxu0
        %8915 = vmatpush.bf16.msra.mxu0 %v5361
        %8916 = vmatpush.bf16.msra.mxu0 %v5358
        %8917 = vmatpush.bf16.msra.mxu0 %v5355
        %8918 = vmatpush.bf16.msra.mxu0 %v5352
        %8919 = vmatpush.bf16.msra.mxu0 %v5349
        %8920 = vmatpush.bf16.msra.mxu0 %v5346
        %8921 = vmatpush.bf16.msra.mxu0 %v5343
        %8922 = vmatpush.bf16.msra.mxu0 %v5340
        %8923 = vmatmul.bf16.gmra.mxu0 %v7248
        %v8924 = vpop.f32.mrf.mxu0
        %v8925 = vadd.f32 %v8912, %v8924
        %v8926 = vpop.f32.mrf.mxu0
        %8927 = vdwg.mxu0
        %8928 = vmatpush.bf16.msra.mxu0 %v5969
        %8929 = vmatpush.bf16.msra.mxu0 %v5966
        %8930 = vmatpush.bf16.msra.mxu0 %v5963
        %8931 = vmatpush.bf16.msra.mxu0 %v5960
        %8932 = vmatpush.bf16.msra.mxu0 %v5957
        %8933 = vmatpush.bf16.msra.mxu0 %v5954
        %8934 = vmatpush.bf16.msra.mxu0 %v5951
        %8935 = vmatpush.bf16.msra.mxu0 %v5948
        %8936 = vmatmul.bf16.gmra.mxu0 %v6431
        %v8937 = vpop.f32.mrf.mxu0
        %v8938 = vadd.f32 %v8821, %v8937
        %v8939 = vpop.f32.mrf.mxu0
        %8940 = vdwg.mxu0
        %8941 = vmatpush.bf16.msra.mxu0 %v5993
        %8942 = vmatpush.bf16.msra.mxu0 %v5990
        %8943 = vmatpush.bf16.msra.mxu0 %v5987
        %8944 = vmatpush.bf16.msra.mxu0 %v5984
        %8945 = vmatpush.bf16.msra.mxu0 %v5981
        %8946 = vmatpush.bf16.msra.mxu0 %v5978
        %8947 = vmatpush.bf16.msra.mxu0 %v5975
        %8948 = vmatpush.bf16.msra.mxu0 %v5972
        %8949 = vmatmul.bf16.gmra.mxu0 %v6432
        %v8950 = vpop.f32.mrf.mxu0
        %v8951 = vadd.f32 %v8938, %v8950
        %v8952 = vpop.f32.mrf.mxu0
        %8953 = vdwg.mxu0
        %8954 = vmatpush.bf16.msra.mxu0 %v6017
        %8955 = vmatpush.bf16.msra.mxu0 %v6014
        %8956 = vmatpush.bf16.msra.mxu0 %v6011
        %8957 = vmatpush.bf16.msra.mxu0 %v6008
        %8958 = vmatpush.bf16.msra.mxu0 %v6005
        %8959 = vmatpush.bf16.msra.mxu0 %v6002
        %8960 = vmatpush.bf16.msra.mxu0 %v5999
        %8961 = vmatpush.bf16.msra.mxu0 %v5996
        %8962 = vmatmul.bf16.gmra.mxu0 %v6433
        %v8963 = vpop.f32.mrf.mxu0
        %v8964 = vadd.f32 %v8951, %v8963
        %v8965 = vpop.f32.mrf.mxu0
        %8966 = vdwg.mxu0
        %8967 = vmatpush.bf16.msra.mxu0 %v6041
        %8968 = vmatpush.bf16.msra.mxu0 %v6038
        %8969 = vmatpush.bf16.msra.mxu0 %v6035
        %8970 = vmatpush.bf16.msra.mxu0 %v6032
        %8971 = vmatpush.bf16.msra.mxu0 %v6029
        %8972 = vmatpush.bf16.msra.mxu0 %v6026
        %8973 = vmatpush.bf16.msra.mxu0 %v6023
        %8974 = vmatpush.bf16.msra.mxu0 %v6020
        %8975 = vmatmul.bf16.gmra.mxu0 %v6434
        %v8976 = vpop.f32.mrf.mxu0
        %v8977 = vadd.f32 %v8964, %v8976
        %v8978 = vpop.f32.mrf.mxu0
        %8979 = vdwg.mxu0
        %8980 = vmatpush.bf16.msra.mxu0 %v5970
        %8981 = vmatpush.bf16.msra.mxu0 %v5967
        %8982 = vmatpush.bf16.msra.mxu0 %v5964
        %8983 = vmatpush.bf16.msra.mxu0 %v5961
        %8984 = vmatpush.bf16.msra.mxu0 %v5958
        %8985 = vmatpush.bf16.msra.mxu0 %v5955
        %8986 = vmatpush.bf16.msra.mxu0 %v5952
        %8987 = vmatpush.bf16.msra.mxu0 %v5949
        %8988 = vmatmul.bf16.gmra.mxu0 %v6431
        %v8989 = vpop.f32.mrf.mxu0
        %v8990 = vadd.f32 %v8873, %v8989
        %v8991 = vpop.f32.mrf.mxu0
        %8992 = vdwg.mxu0
        %8993 = vmatpush.bf16.msra.mxu0 %v5994
        %8994 = vmatpush.bf16.msra.mxu0 %v5991
        %8995 = vmatpush.bf16.msra.mxu0 %v5988
        %8996 = vmatpush.bf16.msra.mxu0 %v5985
        %8997 = vmatpush.bf16.msra.mxu0 %v5982
        %8998 = vmatpush.bf16.msra.mxu0 %v5979
        %8999 = vmatpush.bf16.msra.mxu0 %v5976
        %9000 = vmatpush.bf16.msra.mxu0 %v5973
        %9001 = vmatmul.bf16.gmra.mxu0 %v6432
        %v9002 = vpop.f32.mrf.mxu0
        %v9003 = vadd.f32 %v8990, %v9002
        %v9004 = vpop.f32.mrf.mxu0
        %9005 = vdwg.mxu0
        %9006 = vmatpush.bf16.msra.mxu0 %v6018
        %9007 = vmatpush.bf16.msra.mxu0 %v6015
        %9008 = vmatpush.bf16.msra.mxu0 %v6012
        %9009 = vmatpush.bf16.msra.mxu0 %v6009
        %9010 = vmatpush.bf16.msra.mxu0 %v6006
        %9011 = vmatpush.bf16.msra.mxu0 %v6003
        %9012 = vmatpush.bf16.msra.mxu0 %v6000
        %9013 = vmatpush.bf16.msra.mxu0 %v5997
        %9014 = vmatmul.bf16.gmra.mxu0 %v6433
        %v9015 = vpop.f32.mrf.mxu0
        %v9016 = vadd.f32 %v9003, %v9015
        %v9017 = vpop.f32.mrf.mxu0
        %9018 = vdwg.mxu0
        %9019 = vmatpush.bf16.msra.mxu0 %v6042
        %9020 = vmatpush.bf16.msra.mxu0 %v6039
        %9021 = vmatpush.bf16.msra.mxu0 %v6036
        %9022 = vmatpush.bf16.msra.mxu0 %v6033
        %9023 = vmatpush.bf16.msra.mxu0 %v6030
        %9024 = vmatpush.bf16.msra.mxu0 %v6027
        %9025 = vmatpush.bf16.msra.mxu0 %v6024
        %9026 = vmatpush.bf16.msra.mxu0 %v6021
        %9027 = vmatmul.bf16.gmra.mxu0 %v6434
        %v9028 = vpop.f32.mrf.mxu0
        %v9029 = vadd.f32 %v9016, %v9028
        %v9030 = vpop.f32.mrf.mxu0
        %9031 = vdwg.mxu0
        %9032 = vmatpush.bf16.msra.mxu0 %v5971
        %9033 = vmatpush.bf16.msra.mxu0 %v5968
        %9034 = vmatpush.bf16.msra.mxu0 %v5965
        %9035 = vmatpush.bf16.msra.mxu0 %v5962
        %9036 = vmatpush.bf16.msra.mxu0 %v5959
        %9037 = vmatpush.bf16.msra.mxu0 %v5956
        %9038 = vmatpush.bf16.msra.mxu0 %v5953
        %9039 = vmatpush.bf16.msra.mxu0 %v5950
        %9040 = vmatmul.bf16.gmra.mxu0 %v6431
        %v9041 = vpop.f32.mrf.mxu0
        %v9042 = vadd.f32 %v8925, %v9041
        %v9043 = vpop.f32.mrf.mxu0
        %9044 = vdwg.mxu0
        %9045 = vmatpush.bf16.msra.mxu0 %v5995
        %9046 = vmatpush.bf16.msra.mxu0 %v5992
        %9047 = vmatpush.bf16.msra.mxu0 %v5989
        %9048 = vmatpush.bf16.msra.mxu0 %v5986
        %9049 = vmatpush.bf16.msra.mxu0 %v5983
        %9050 = vmatpush.bf16.msra.mxu0 %v5980
        %9051 = vmatpush.bf16.msra.mxu0 %v5977
        %9052 = vmatpush.bf16.msra.mxu0 %v5974
        %9053 = vmatmul.bf16.gmra.mxu0 %v6432
        %v9054 = vpop.f32.mrf.mxu0
        %v9055 = vadd.f32 %v9042, %v9054
        %v9056 = vpop.f32.mrf.mxu0
        %9057 = vdwg.mxu0
        %9058 = vmatpush.bf16.msra.mxu0 %v6019
        %9059 = vmatpush.bf16.msra.mxu0 %v6016
        %9060 = vmatpush.bf16.msra.mxu0 %v6013
        %9061 = vmatpush.bf16.msra.mxu0 %v6010
        %9062 = vmatpush.bf16.msra.mxu0 %v6007
        %9063 = vmatpush.bf16.msra.mxu0 %v6004
        %9064 = vmatpush.bf16.msra.mxu0 %v6001
        %9065 = vmatpush.bf16.msra.mxu0 %v5998
        %9066 = vmatmul.bf16.gmra.mxu0 %v6433
        %v9067 = vpop.f32.mrf.mxu0
        %v9068 = vadd.f32 %v9055, %v9067
        %v9069 = vpop.f32.mrf.mxu0
        %9070 = vdwg.mxu0
        %9071 = vmatpush.bf16.msra.mxu0 %v6043
        %9072 = vmatpush.bf16.msra.mxu0 %v6040
        %9073 = vmatpush.bf16.msra.mxu0 %v6037
        %9074 = vmatpush.bf16.msra.mxu0 %v6034
        %9075 = vmatpush.bf16.msra.mxu0 %v6031
        %9076 = vmatpush.bf16.msra.mxu0 %v6028
        %9077 = vmatpush.bf16.msra.mxu0 %v6025
        %9078 = vmatpush.bf16.msra.mxu0 %v6022
        %9079 = vmatmul.bf16.gmra.mxu0 %v6434
        %v9080 = vpop.f32.mrf.mxu0
        %v9081 = vadd.f32 %v9068, %v9080
        %v9082 = vpop.f32.mrf.mxu0
        %9083 = vdwg.mxu0
        %9084 = vmatpush.bf16.msra.mxu0 %v6780
        %9085 = vmatpush.bf16.msra.mxu0 %v6777
        %9086 = vmatpush.bf16.msra.mxu0 %v6774
        %9087 = vmatpush.bf16.msra.mxu0 %v6771
        %9088 = vmatpush.bf16.msra.mxu0 %v6768
        %9089 = vmatpush.bf16.msra.mxu0 %v6765
        %9090 = vmatpush.bf16.msra.mxu0 %v6762
        %9091 = vmatpush.bf16.msra.mxu0 %v6759
        %9092 = vmatmul.bf16.gmra.mxu0 %v8059
        %v9093 = vpop.f32.mrf.mxu0
        %v9094 = vadd.f32 0.0, %v9093
        %v9095 = vpop.f32.mrf.mxu0
        %9096 = vdwg.mxu0
        %9097 = vmatpush.bf16.msra.mxu0 %v6804
        %9098 = vmatpush.bf16.msra.mxu0 %v6801
        %9099 = vmatpush.bf16.msra.mxu0 %v6798
        %9100 = vmatpush.bf16.msra.mxu0 %v6795
        %9101 = vmatpush.bf16.msra.mxu0 %v6792
        %9102 = vmatpush.bf16.msra.mxu0 %v6789
        %9103 = vmatpush.bf16.msra.mxu0 %v6786
        %9104 = vmatpush.bf16.msra.mxu0 %v6783
        %9105 = vmatmul.bf16.gmra.mxu0 %v8066
        %v9106 = vpop.f32.mrf.mxu0
        %v9107 = vadd.f32 %v9094, %v9106
        %v9108 = vpop.f32.mrf.mxu0
        %9109 = vdwg.mxu0
        %9110 = vmatpush.bf16.msra.mxu0 %v6828
        %9111 = vmatpush.bf16.msra.mxu0 %v6825
        %9112 = vmatpush.bf16.msra.mxu0 %v6822
        %9113 = vmatpush.bf16.msra.mxu0 %v6819
        %9114 = vmatpush.bf16.msra.mxu0 %v6816
        %9115 = vmatpush.bf16.msra.mxu0 %v6813
        %9116 = vmatpush.bf16.msra.mxu0 %v6810
        %9117 = vmatpush.bf16.msra.mxu0 %v6807
        %9118 = vmatmul.bf16.gmra.mxu0 %v8073
        %v9119 = vpop.f32.mrf.mxu0
        %v9120 = vadd.f32 %v9107, %v9119
        %v9121 = vpop.f32.mrf.mxu0
        %9122 = vdwg.mxu0
        %9123 = vmatpush.bf16.msra.mxu0 %v6852
        %9124 = vmatpush.bf16.msra.mxu0 %v6849
        %9125 = vmatpush.bf16.msra.mxu0 %v6846
        %9126 = vmatpush.bf16.msra.mxu0 %v6843
        %9127 = vmatpush.bf16.msra.mxu0 %v6840
        %9128 = vmatpush.bf16.msra.mxu0 %v6837
        %9129 = vmatpush.bf16.msra.mxu0 %v6834
        %9130 = vmatpush.bf16.msra.mxu0 %v6831
        %9131 = vmatmul.bf16.gmra.mxu0 %v8080
        %v9132 = vpop.f32.mrf.mxu0
        %v9133 = vadd.f32 %v9120, %v9132
        %v9134 = vpop.f32.mrf.mxu0
        %9135 = vdwg.mxu0
        %9136 = vmatpush.bf16.msra.mxu0 %v6781
        %9137 = vmatpush.bf16.msra.mxu0 %v6778
        %9138 = vmatpush.bf16.msra.mxu0 %v6775
        %9139 = vmatpush.bf16.msra.mxu0 %v6772
        %9140 = vmatpush.bf16.msra.mxu0 %v6769
        %9141 = vmatpush.bf16.msra.mxu0 %v6766
        %9142 = vmatpush.bf16.msra.mxu0 %v6763
        %9143 = vmatpush.bf16.msra.mxu0 %v6760
        %9144 = vmatmul.bf16.gmra.mxu0 %v8059
        %v9145 = vpop.f32.mrf.mxu0
        %v9146 = vadd.f32 0.0, %v9145
        %v9147 = vpop.f32.mrf.mxu0
        %9148 = vdwg.mxu0
        %9149 = vmatpush.bf16.msra.mxu0 %v6805
        %9150 = vmatpush.bf16.msra.mxu0 %v6802
        %9151 = vmatpush.bf16.msra.mxu0 %v6799
        %9152 = vmatpush.bf16.msra.mxu0 %v6796
        %9153 = vmatpush.bf16.msra.mxu0 %v6793
        %9154 = vmatpush.bf16.msra.mxu0 %v6790
        %9155 = vmatpush.bf16.msra.mxu0 %v6787
        %9156 = vmatpush.bf16.msra.mxu0 %v6784
        %9157 = vmatmul.bf16.gmra.mxu0 %v8066
        %v9158 = vpop.f32.mrf.mxu0
        %v9159 = vadd.f32 %v9146, %v9158
        %v9160 = vpop.f32.mrf.mxu0
        %9161 = vdwg.mxu0
        %9162 = vmatpush.bf16.msra.mxu0 %v6829
        %9163 = vmatpush.bf16.msra.mxu0 %v6826
        %9164 = vmatpush.bf16.msra.mxu0 %v6823
        %9165 = vmatpush.bf16.msra.mxu0 %v6820
        %9166 = vmatpush.bf16.msra.mxu0 %v6817
        %9167 = vmatpush.bf16.msra.mxu0 %v6814
        %9168 = vmatpush.bf16.msra.mxu0 %v6811
        %9169 = vmatpush.bf16.msra.mxu0 %v6808
        %9170 = vmatmul.bf16.gmra.mxu0 %v8073
        %v9171 = vpop.f32.mrf.mxu0
        %v9172 = vadd.f32 %v9159, %v9171
        %v9173 = vpop.f32.mrf.mxu0
        %9174 = vdwg.mxu0
        %9175 = vmatpush.bf16.msra.mxu0 %v6853
        %9176 = vmatpush.bf16.msra.mxu0 %v6850
        %9177 = vmatpush.bf16.msra.mxu0 %v6847
        %9178 = vmatpush.bf16.msra.mxu0 %v6844
        %9179 = vmatpush.bf16.msra.mxu0 %v6841
        %9180 = vmatpush.bf16.msra.mxu0 %v6838
        %9181 = vmatpush.bf16.msra.mxu0 %v6835
        %9182 = vmatpush.bf16.msra.mxu0 %v6832
        %9183 = vmatmul.bf16.gmra.mxu0 %v8080
        %v9184 = vpop.f32.mrf.mxu0
        %v9185 = vadd.f32 %v9172, %v9184
        %v9186 = vpop.f32.mrf.mxu0
        %9187 = vdwg.mxu0
        %9188 = vmatpush.bf16.msra.mxu0 %v6782
        %9189 = vmatpush.bf16.msra.mxu0 %v6779
        %9190 = vmatpush.bf16.msra.mxu0 %v6776
        %9191 = vmatpush.bf16.msra.mxu0 %v6773
        %9192 = vmatpush.bf16.msra.mxu0 %v6770
        %9193 = vmatpush.bf16.msra.mxu0 %v6767
        %9194 = vmatpush.bf16.msra.mxu0 %v6764
        %9195 = vmatpush.bf16.msra.mxu0 %v6761
        %9196 = vmatmul.bf16.gmra.mxu0 %v8059
        %v9197 = vpop.f32.mrf.mxu0
        %v9198 = vadd.f32 0.0, %v9197
        %v9199 = vpop.f32.mrf.mxu0
        %9200 = vdwg.mxu0
        %9201 = vmatpush.bf16.msra.mxu0 %v6806
        %9202 = vmatpush.bf16.msra.mxu0 %v6803
        %9203 = vmatpush.bf16.msra.mxu0 %v6800
        %9204 = vmatpush.bf16.msra.mxu0 %v6797
        %9205 = vmatpush.bf16.msra.mxu0 %v6794
        %9206 = vmatpush.bf16.msra.mxu0 %v6791
        %9207 = vmatpush.bf16.msra.mxu0 %v6788
        %9208 = vmatpush.bf16.msra.mxu0 %v6785
        %9209 = vmatmul.bf16.gmra.mxu0 %v8066
        %v9210 = vpop.f32.mrf.mxu0
        %v9211 = vadd.f32 %v9198, %v9210
        %v9212 = vpop.f32.mrf.mxu0
        %9213 = vdwg.mxu0
        %9214 = vmatpush.bf16.msra.mxu0 %v6830
        %9215 = vmatpush.bf16.msra.mxu0 %v6827
        %9216 = vmatpush.bf16.msra.mxu0 %v6824
        %9217 = vmatpush.bf16.msra.mxu0 %v6821
        %9218 = vmatpush.bf16.msra.mxu0 %v6818
        %9219 = vmatpush.bf16.msra.mxu0 %v6815
        %9220 = vmatpush.bf16.msra.mxu0 %v6812
        %9221 = vmatpush.bf16.msra.mxu0 %v6809
        %9222 = vmatmul.bf16.gmra.mxu0 %v8073
        %v9223 = vpop.f32.mrf.mxu0
        %v9224 = vadd.f32 %v9211, %v9223
        %v9225 = vpop.f32.mrf.mxu0
        %9226 = vdwg.mxu0
        %9227 = vmatpush.bf16.msra.mxu0 %v6854
        %9228 = vmatpush.bf16.msra.mxu0 %v6851
        %9229 = vmatpush.bf16.msra.mxu0 %v6848
        %9230 = vmatpush.bf16.msra.mxu0 %v6845
        %9231 = vmatpush.bf16.msra.mxu0 %v6842
        %9232 = vmatpush.bf16.msra.mxu0 %v6839
        %9233 = vmatpush.bf16.msra.mxu0 %v6836
        %9234 = vmatpush.bf16.msra.mxu0 %v6833
        %9235 = vmatmul.bf16.gmra.mxu0 %v8080
        %v9236 = vpop.f32.mrf.mxu0
        %v9237 = vadd.f32 %v9224, %v9236
        %v9238 = vpop.f32.mrf.mxu0
        %9239 = vdwg.mxu0
        %v9240 = vadd.f32 %v8977, %v9133
        %v9241 = vadd.f32 %v9029, %v9185
        %v9242 = vadd.f32 %v9081, %v9237
        %v9244 = vshrl.u32 %v4938, 16
        %v9246 = vshll.u32 %v4938, 16
        %v9248 = vrot.slane %v9246, 1
        %v9249 = vor.u32 %v9244, %v9248
        %v9251 = vshrl.u32 %v4939, 16
        %v9253 = vshll.u32 %v4939, 16
        %v9255 = vrot.slane %v9253, 1
        %v9256 = vor.u32 %v9251, %v9255
        %v9258 = vshrl.u32 %v4940, 16
        %v9260 = vshll.u32 %v4940, 16
        %v9262 = vrot.slane %v9260, 1
        %v9263 = vor.u32 %v9258, %v9262
        %v9265 = vshrl.u32 %v4941, 16
        %v9267 = vshll.u32 %v4941, 16
        %v9269 = vrot.slane %v9267, 1
        %v9270 = vor.u32 %v9265, %v9269
        %9275 = vmatpush.bf16.msra.mxu0 %v7594
        %9276 = vmatpush.bf16.msra.mxu0 %v7591
        %9277 = vmatpush.bf16.msra.mxu0 %v7588
        %9278 = vmatpush.bf16.msra.mxu0 %v7585
        %9279 = vmatpush.bf16.msra.mxu0 %v7582
        %9280 = vmatpush.bf16.msra.mxu0 %v7579
        %9281 = vmatpush.bf16.msra.mxu0 %v7576
        %9282 = vmatpush.bf16.msra.mxu0 %v7573
        %9283 = vmatmul.bf16.gmra.mxu0 %v9249
        %v9284 = vpop.f32.mrf.mxu0
        %v9285 = vadd.f32 0.0, %v9284
        %v9286 = vpop.f32.mrf.mxu0
        %9287 = vdwg.mxu0
        %9288 = vmatpush.bf16.msra.mxu0 %v7618
        %9289 = vmatpush.bf16.msra.mxu0 %v7615
        %9290 = vmatpush.bf16.msra.mxu0 %v7612
        %9291 = vmatpush.bf16.msra.mxu0 %v7609
        %9292 = vmatpush.bf16.msra.mxu0 %v7606
        %9293 = vmatpush.bf16.msra.mxu0 %v7603
        %9294 = vmatpush.bf16.msra.mxu0 %v7600
        %9295 = vmatpush.bf16.msra.mxu0 %v7597
        %9296 = vmatmul.bf16.gmra.mxu0 %v9256
        %v9297 = vpop.f32.mrf.mxu0
        %v9298 = vadd.f32 %v9285, %v9297
        %v9299 = vpop.f32.mrf.mxu0
        %9300 = vdwg.mxu0
        %9301 = vmatpush.bf16.msra.mxu0 %v7642
        %9302 = vmatpush.bf16.msra.mxu0 %v7639
        %9303 = vmatpush.bf16.msra.mxu0 %v7636
        %9304 = vmatpush.bf16.msra.mxu0 %v7633
        %9305 = vmatpush.bf16.msra.mxu0 %v7630
        %9306 = vmatpush.bf16.msra.mxu0 %v7627
        %9307 = vmatpush.bf16.msra.mxu0 %v7624
        %9308 = vmatpush.bf16.msra.mxu0 %v7621
        %9309 = vmatmul.bf16.gmra.mxu0 %v9263
        %v9310 = vpop.f32.mrf.mxu0
        %v9311 = vadd.f32 %v9298, %v9310
        %v9312 = vpop.f32.mrf.mxu0
        %9313 = vdwg.mxu0
        %9314 = vmatpush.bf16.msra.mxu0 %v7666
        %9315 = vmatpush.bf16.msra.mxu0 %v7663
        %9316 = vmatpush.bf16.msra.mxu0 %v7660
        %9317 = vmatpush.bf16.msra.mxu0 %v7657
        %9318 = vmatpush.bf16.msra.mxu0 %v7654
        %9319 = vmatpush.bf16.msra.mxu0 %v7651
        %9320 = vmatpush.bf16.msra.mxu0 %v7648
        %9321 = vmatpush.bf16.msra.mxu0 %v7645
        %9322 = vmatmul.bf16.gmra.mxu0 %v9270
        %v9323 = vpop.f32.mrf.mxu0
        %v9324 = vadd.f32 %v9311, %v9323
        %v9325 = vpop.f32.mrf.mxu0
        %9326 = vdwg.mxu0
        %9327 = vmatpush.bf16.msra.mxu0 %v7595
        %9328 = vmatpush.bf16.msra.mxu0 %v7592
        %9329 = vmatpush.bf16.msra.mxu0 %v7589
        %9330 = vmatpush.bf16.msra.mxu0 %v7586
        %9331 = vmatpush.bf16.msra.mxu0 %v7583
        %9332 = vmatpush.bf16.msra.mxu0 %v7580
        %9333 = vmatpush.bf16.msra.mxu0 %v7577
        %9334 = vmatpush.bf16.msra.mxu0 %v7574
        %9335 = vmatmul.bf16.gmra.mxu0 %v9249
        %v9336 = vpop.f32.mrf.mxu0
        %v9337 = vadd.f32 0.0, %v9336
        %v9338 = vpop.f32.mrf.mxu0
        %9339 = vdwg.mxu0
        %9340 = vmatpush.bf16.msra.mxu0 %v7619
        %9341 = vmatpush.bf16.msra.mxu0 %v7616
        %9342 = vmatpush.bf16.msra.mxu0 %v7613
        %9343 = vmatpush.bf16.msra.mxu0 %v7610
        %9344 = vmatpush.bf16.msra.mxu0 %v7607
        %9345 = vmatpush.bf16.msra.mxu0 %v7604
        %9346 = vmatpush.bf16.msra.mxu0 %v7601
        %9347 = vmatpush.bf16.msra.mxu0 %v7598
        %9348 = vmatmul.bf16.gmra.mxu0 %v9256
        %v9349 = vpop.f32.mrf.mxu0
        %v9350 = vadd.f32 %v9337, %v9349
        %v9351 = vpop.f32.mrf.mxu0
        %9352 = vdwg.mxu0
        %9353 = vmatpush.bf16.msra.mxu0 %v7643
        %9354 = vmatpush.bf16.msra.mxu0 %v7640
        %9355 = vmatpush.bf16.msra.mxu0 %v7637
        %9356 = vmatpush.bf16.msra.mxu0 %v7634
        %9357 = vmatpush.bf16.msra.mxu0 %v7631
        %9358 = vmatpush.bf16.msra.mxu0 %v7628
        %9359 = vmatpush.bf16.msra.mxu0 %v7625
        %9360 = vmatpush.bf16.msra.mxu0 %v7622
        %9361 = vmatmul.bf16.gmra.mxu0 %v9263
        %v9362 = vpop.f32.mrf.mxu0
        %v9363 = vadd.f32 %v9350, %v9362
        %v9364 = vpop.f32.mrf.mxu0
        %9365 = vdwg.mxu0
        %9366 = vmatpush.bf16.msra.mxu0 %v7667
        %9367 = vmatpush.bf16.msra.mxu0 %v7664
        %9368 = vmatpush.bf16.msra.mxu0 %v7661
        %9369 = vmatpush.bf16.msra.mxu0 %v7658
        %9370 = vmatpush.bf16.msra.mxu0 %v7655
        %9371 = vmatpush.bf16.msra.mxu0 %v7652
        %9372 = vmatpush.bf16.msra.mxu0 %v7649
        %9373 = vmatpush.bf16.msra.mxu0 %v7646
        %9374 = vmatmul.bf16.gmra.mxu0 %v9270
        %v9375 = vpop.f32.mrf.mxu0
        %v9376 = vadd.f32 %v9363, %v9375
        %v9377 = vpop.f32.mrf.mxu0
        %9378 = vdwg.mxu0
        %9379 = vmatpush.bf16.msra.mxu0 %v7596
        %9380 = vmatpush.bf16.msra.mxu0 %v7593
        %9381 = vmatpush.bf16.msra.mxu0 %v7590
        %9382 = vmatpush.bf16.msra.mxu0 %v7587
        %9383 = vmatpush.bf16.msra.mxu0 %v7584
        %9384 = vmatpush.bf16.msra.mxu0 %v7581
        %9385 = vmatpush.bf16.msra.mxu0 %v7578
        %9386 = vmatpush.bf16.msra.mxu0 %v7575
        %9387 = vmatmul.bf16.gmra.mxu0 %v9249
        %v9388 = vpop.f32.mrf.mxu0
        %v9389 = vadd.f32 0.0, %v9388
        %v9390 = vpop.f32.mrf.mxu0
        %9391 = vdwg.mxu0
        %9392 = vmatpush.bf16.msra.mxu0 %v7620
        %9393 = vmatpush.bf16.msra.mxu0 %v7617
        %9394 = vmatpush.bf16.msra.mxu0 %v7614
        %9395 = vmatpush.bf16.msra.mxu0 %v7611
        %9396 = vmatpush.bf16.msra.mxu0 %v7608
        %9397 = vmatpush.bf16.msra.mxu0 %v7605
        %9398 = vmatpush.bf16.msra.mxu0 %v7602
        %9399 = vmatpush.bf16.msra.mxu0 %v7599
        %9400 = vmatmul.bf16.gmra.mxu0 %v9256
        %v9401 = vpop.f32.mrf.mxu0
        %v9402 = vadd.f32 %v9389, %v9401
        %v9403 = vpop.f32.mrf.mxu0
        %9404 = vdwg.mxu0
        %9405 = vmatpush.bf16.msra.mxu0 %v7644
        %9406 = vmatpush.bf16.msra.mxu0 %v7641
        %9407 = vmatpush.bf16.msra.mxu0 %v7638
        %9408 = vmatpush.bf16.msra.mxu0 %v7635
        %9409 = vmatpush.bf16.msra.mxu0 %v7632
        %9410 = vmatpush.bf16.msra.mxu0 %v7629
        %9411 = vmatpush.bf16.msra.mxu0 %v7626
        %9412 = vmatpush.bf16.msra.mxu0 %v7623
        %9413 = vmatmul.bf16.gmra.mxu0 %v9263
        %v9414 = vpop.f32.mrf.mxu0
        %v9415 = vadd.f32 %v9402, %v9414
        %v9416 = vpop.f32.mrf.mxu0
        %9417 = vdwg.mxu0
        %9418 = vmatpush.bf16.msra.mxu0 %v7668
        %9419 = vmatpush.bf16.msra.mxu0 %v7665
        %9420 = vmatpush.bf16.msra.mxu0 %v7662
        %9421 = vmatpush.bf16.msra.mxu0 %v7659
        %9422 = vmatpush.bf16.msra.mxu0 %v7656
        %9423 = vmatpush.bf16.msra.mxu0 %v7653
        %9424 = vmatpush.bf16.msra.mxu0 %v7650
        %9425 = vmatpush.bf16.msra.mxu0 %v7647
        %9426 = vmatmul.bf16.gmra.mxu0 %v9270
        %v9427 = vpop.f32.mrf.mxu0
        %v9428 = vadd.f32 %v9415, %v9427
        %v9429 = vpop.f32.mrf.mxu0
        %9430 = vdwg.mxu0
        %v9431 = vadd.f32 %v9240, %v9324
        %v9432 = vadd.f32 %v9241, %v9376
        %v9433 = vadd.f32 %v9242, %v9428
        %v9435 = vshrl.u32 %v6431, 16
        %v9437 = vshll.u32 %v6431, 16
        %v9439 = vrot.slane %v9437, 1
        %v9440 = vor.u32 %v9435, %v9439
        %v9442 = vshrl.u32 %v6432, 16
        %v9444 = vshll.u32 %v6432, 16
        %v9446 = vrot.slane %v9444, 1
        %v9447 = vor.u32 %v9442, %v9446
        %v9449 = vshrl.u32 %v6433, 16
        %v9451 = vshll.u32 %v6433, 16
        %v9453 = vrot.slane %v9451, 1
        %v9454 = vor.u32 %v9449, %v9453
        %v9456 = vshrl.u32 %v6434, 16
        %v9458 = vshll.u32 %v6434, 16
        %v9460 = vrot.slane %v9458, 1
        %v9461 = vor.u32 %v9456, %v9460
        %9466 = vmatpush.bf16.msra.mxu0 %v8426
        %9467 = vmatpush.bf16.msra.mxu0 %v8423
        %9468 = vmatpush.bf16.msra.mxu0 %v8420
        %9469 = vmatpush.bf16.msra.mxu0 %v8417
        %9470 = vmatpush.bf16.msra.mxu0 %v8414
        %9471 = vmatpush.bf16.msra.mxu0 %v8411
        %9472 = vmatpush.bf16.msra.mxu0 %v8408
        %9473 = vmatpush.bf16.msra.mxu0 %v8405
        %9474 = vmatmul.bf16.gmra.mxu0 %v9440
        %v9475 = vpop.f32.mrf.mxu0
        %v9476 = vadd.f32 0.0, %v9475
        %v9477 = vpop.f32.mrf.mxu0
        %9478 = vdwg.mxu0
        %9479 = vmatpush.bf16.msra.mxu0 %v8450
        %9480 = vmatpush.bf16.msra.mxu0 %v8447
        %9481 = vmatpush.bf16.msra.mxu0 %v8444
        %9482 = vmatpush.bf16.msra.mxu0 %v8441
        %9483 = vmatpush.bf16.msra.mxu0 %v8438
        %9484 = vmatpush.bf16.msra.mxu0 %v8435
        %9485 = vmatpush.bf16.msra.mxu0 %v8432
        %9486 = vmatpush.bf16.msra.mxu0 %v8429
        %9487 = vmatmul.bf16.gmra.mxu0 %v9447
        %v9488 = vpop.f32.mrf.mxu0
        %v9489 = vadd.f32 %v9476, %v9488
        %v9490 = vpop.f32.mrf.mxu0
        %9491 = vdwg.mxu0
        %9492 = vmatpush.bf16.msra.mxu0 %v8474
        %9493 = vmatpush.bf16.msra.mxu0 %v8471
        %9494 = vmatpush.bf16.msra.mxu0 %v8468
        %9495 = vmatpush.bf16.msra.mxu0 %v8465
        %9496 = vmatpush.bf16.msra.mxu0 %v8462
        %9497 = vmatpush.bf16.msra.mxu0 %v8459
        %9498 = vmatpush.bf16.msra.mxu0 %v8456
        %9499 = vmatpush.bf16.msra.mxu0 %v8453
        %9500 = vmatmul.bf16.gmra.mxu0 %v9454
        %v9501 = vpop.f32.mrf.mxu0
        %v9502 = vadd.f32 %v9489, %v9501
        %v9503 = vpop.f32.mrf.mxu0
        %9504 = vdwg.mxu0
        %9505 = vmatpush.bf16.msra.mxu0 %v8498
        %9506 = vmatpush.bf16.msra.mxu0 %v8495
        %9507 = vmatpush.bf16.msra.mxu0 %v8492
        %9508 = vmatpush.bf16.msra.mxu0 %v8489
        %9509 = vmatpush.bf16.msra.mxu0 %v8486
        %9510 = vmatpush.bf16.msra.mxu0 %v8483
        %9511 = vmatpush.bf16.msra.mxu0 %v8480
        %9512 = vmatpush.bf16.msra.mxu0 %v8477
        %9513 = vmatmul.bf16.gmra.mxu0 %v9461
        %v9514 = vpop.f32.mrf.mxu0
        %v9515 = vadd.f32 %v9502, %v9514
        %v9516 = vpop.f32.mrf.mxu0
        %9517 = vdwg.mxu0
        %9518 = vmatpush.bf16.msra.mxu0 %v8427
        %9519 = vmatpush.bf16.msra.mxu0 %v8424
        %9520 = vmatpush.bf16.msra.mxu0 %v8421
        %9521 = vmatpush.bf16.msra.mxu0 %v8418
        %9522 = vmatpush.bf16.msra.mxu0 %v8415
        %9523 = vmatpush.bf16.msra.mxu0 %v8412
        %9524 = vmatpush.bf16.msra.mxu0 %v8409
        %9525 = vmatpush.bf16.msra.mxu0 %v8406
        %9526 = vmatmul.bf16.gmra.mxu0 %v9440
        %v9527 = vpop.f32.mrf.mxu0
        %v9528 = vadd.f32 0.0, %v9527
        %v9529 = vpop.f32.mrf.mxu0
        %9530 = vdwg.mxu0
        %9531 = vmatpush.bf16.msra.mxu0 %v8451
        %9532 = vmatpush.bf16.msra.mxu0 %v8448
        %9533 = vmatpush.bf16.msra.mxu0 %v8445
        %9534 = vmatpush.bf16.msra.mxu0 %v8442
        %9535 = vmatpush.bf16.msra.mxu0 %v8439
        %9536 = vmatpush.bf16.msra.mxu0 %v8436
        %9537 = vmatpush.bf16.msra.mxu0 %v8433
        %9538 = vmatpush.bf16.msra.mxu0 %v8430
        %9539 = vmatmul.bf16.gmra.mxu0 %v9447
        %v9540 = vpop.f32.mrf.mxu0
        %v9541 = vadd.f32 %v9528, %v9540
        %v9542 = vpop.f32.mrf.mxu0
        %9543 = vdwg.mxu0
        %9544 = vmatpush.bf16.msra.mxu0 %v8475
        %9545 = vmatpush.bf16.msra.mxu0 %v8472
        %9546 = vmatpush.bf16.msra.mxu0 %v8469
        %9547 = vmatpush.bf16.msra.mxu0 %v8466
        %9548 = vmatpush.bf16.msra.mxu0 %v8463
        %9549 = vmatpush.bf16.msra.mxu0 %v8460
        %9550 = vmatpush.bf16.msra.mxu0 %v8457
        %9551 = vmatpush.bf16.msra.mxu0 %v8454
        %9552 = vmatmul.bf16.gmra.mxu0 %v9454
        %v9553 = vpop.f32.mrf.mxu0
        %v9554 = vadd.f32 %v9541, %v9553
        %v9555 = vpop.f32.mrf.mxu0
        %9556 = vdwg.mxu0
        %9557 = vmatpush.bf16.msra.mxu0 %v8499
        %9558 = vmatpush.bf16.msra.mxu0 %v8496
        %9559 = vmatpush.bf16.msra.mxu0 %v8493
        %9560 = vmatpush.bf16.msra.mxu0 %v8490
        %9561 = vmatpush.bf16.msra.mxu0 %v8487
        %9562 = vmatpush.bf16.msra.mxu0 %v8484
        %9563 = vmatpush.bf16.msra.mxu0 %v8481
        %9564 = vmatpush.bf16.msra.mxu0 %v8478
        %9565 = vmatmul.bf16.gmra.mxu0 %v9461
        %v9566 = vpop.f32.mrf.mxu0
        %v9567 = vadd.f32 %v9554, %v9566
        %v9568 = vpop.f32.mrf.mxu0
        %9569 = vdwg.mxu0
        %9570 = vmatpush.bf16.msra.mxu0 %v8428
        %9571 = vmatpush.bf16.msra.mxu0 %v8425
        %9572 = vmatpush.bf16.msra.mxu0 %v8422
        %9573 = vmatpush.bf16.msra.mxu0 %v8419
        %9574 = vmatpush.bf16.msra.mxu0 %v8416
        %9575 = vmatpush.bf16.msra.mxu0 %v8413
        %9576 = vmatpush.bf16.msra.mxu0 %v8410
        %9577 = vmatpush.bf16.msra.mxu0 %v8407
        %9578 = vmatmul.bf16.gmra.mxu0 %v9440
        %v9579 = vpop.f32.mrf.mxu0
        %v9580 = vadd.f32 0.0, %v9579
        %v9581 = vpop.f32.mrf.mxu0
        %9582 = vdwg.mxu0
        %9583 = vmatpush.bf16.msra.mxu0 %v8452
        %9584 = vmatpush.bf16.msra.mxu0 %v8449
        %9585 = vmatpush.bf16.msra.mxu0 %v8446
        %9586 = vmatpush.bf16.msra.mxu0 %v8443
        %9587 = vmatpush.bf16.msra.mxu0 %v8440
        %9588 = vmatpush.bf16.msra.mxu0 %v8437
        %9589 = vmatpush.bf16.msra.mxu0 %v8434
        %9590 = vmatpush.bf16.msra.mxu0 %v8431
        %9591 = vmatmul.bf16.gmra.mxu0 %v9447
        %v9592 = vpop.f32.mrf.mxu0
        %v9593 = vadd.f32 %v9580, %v9592
        %v9594 = vpop.f32.mrf.mxu0
        %9595 = vdwg.mxu0
        %9596 = vmatpush.bf16.msra.mxu0 %v8476
        %9597 = vmatpush.bf16.msra.mxu0 %v8473
        %9598 = vmatpush.bf16.msra.mxu0 %v8470
        %9599 = vmatpush.bf16.msra.mxu0 %v8467
        %9600 = vmatpush.bf16.msra.mxu0 %v8464
        %9601 = vmatpush.bf16.msra.mxu0 %v8461
        %9602 = vmatpush.bf16.msra.mxu0 %v8458
        %9603 = vmatpush.bf16.msra.mxu0 %v8455
        %9604 = vmatmul.bf16.gmra.mxu0 %v9454
        %v9605 = vpop.f32.mrf.mxu0
        %v9606 = vadd.f32 %v9593, %v9605
        %v9607 = vpop.f32.mrf.mxu0
        %9608 = vdwg.mxu0
        %9609 = vmatpush.bf16.msra.mxu0 %v8500
        %9610 = vmatpush.bf16.msra.mxu0 %v8497
        %9611 = vmatpush.bf16.msra.mxu0 %v8494
        %9612 = vmatpush.bf16.msra.mxu0 %v8491
        %9613 = vmatpush.bf16.msra.mxu0 %v8488
        %9614 = vmatpush.bf16.msra.mxu0 %v8485
        %9615 = vmatpush.bf16.msra.mxu0 %v8482
        %9616 = vmatpush.bf16.msra.mxu0 %v8479
        %9617 = vmatmul.bf16.gmra.mxu0 %v9461
        %v9618 = vpop.f32.mrf.mxu0
        %v9619 = vadd.f32 %v9606, %v9618
        %v9620 = vpop.f32.mrf.mxu0
        %9621 = vdwg.mxu0
        %v9622 = vadd.f32 %v9431, %v9515
        %v9623 = vadd.f32 %v9432, %v9567
        %v9624 = vadd.f32 %v9433, %v9619
        %v9625 = vadd.f32 %v9622, %v8758
        %v9626 = vadd.f32 %v9623, %v8759
        %v9627 = vadd.f32 %v9624, %v8760
        %v9628 = vmax.f32 %v9625, 0.0
        %v9629 = vmax.f32 %v9626, 0.0
        %v9630 = vmax.f32 %v9627, 0.0
        %v9631 = vpack.c.bf16 %v9629, %v9628
        %v9632 = vpack.c.bf16 %v9630, %v9630
        %v9633 = vld [vmem:[#allocation9] sm:$0xf]
        %v9634 = vld [vmem:[#allocation9 + $0x4] sm:$0xf]
        %v9635 = vld [vmem:[#allocation9 + $0x8] sm:$0xf]
        %v9636 = vld [vmem:[#allocation9 + $0xc] sm:$0xf]
        %v9637 = vld [vmem:[#allocation9 + $0x10] sm:$0xf]
        %v9638 = vld [vmem:[#allocation9 + $0x14] sm:$0xf]
        %v9639 = vld [vmem:[#allocation9 + $0x18] sm:$0xf]
        %v9640 = vld [vmem:[#allocation9 + $0x1c] sm:$0xf]
        %v9641 = vld [vmem:[#allocation9 + $0x20] sm:$0xf]
        %v9642 = vld [vmem:[#allocation9 + $0x24] sm:$0xf]
        %v9643 = vld [vmem:[#allocation9 + $0x28] sm:$0xf]
        %v9644 = vld [vmem:[#allocation9 + $0x2c] sm:$0xf]
        %v9645 = vld [vmem:[#allocation9 + $0x30] sm:$0xf]
        %v9646 = vld [vmem:[#allocation9 + $0x34] sm:$0xf]
        %v9647 = vld [vmem:[#allocation9 + $0x38] sm:$0xf]
        %v9648 = vld [vmem:[#allocation9 + $0x3c] sm:$0xf]
        %v9649 = vld [vmem:[#allocation9 + $0x40] sm:$0xf]
        %v9650 = vld [vmem:[#allocation9 + $0x44] sm:$0xf]
        %v9651 = vld [vmem:[#allocation9 + $0x48] sm:$0xf]
        %v9652 = vld [vmem:[#allocation9 + $0x4c] sm:$0xf]
        %v9653 = vld [vmem:[#allocation9 + $0x50] sm:$0xf]
        %v9654 = vld [vmem:[#allocation9 + $0x54] sm:$0xf]
        %v9655 = vld [vmem:[#allocation9 + $0x58] sm:$0xf]
        %v9656 = vld [vmem:[#allocation9 + $0x5c] sm:$0xf]
        %v9657 = vld [vmem:[#allocation9 + $0x60] sm:$0xf]
        %v9658 = vld [vmem:[#allocation9 + $0x64] sm:$0xf]
        %v9659 = vld [vmem:[#allocation9 + $0x68] sm:$0xf]
        %v9660 = vld [vmem:[#allocation9 + $0x6c] sm:$0xf]
        %v9661 = vld [vmem:[#allocation9 + $0x70] sm:$0xf]
        %v9662 = vld [vmem:[#allocation9 + $0x74] sm:$0xf]
        %v9663 = vld [vmem:[#allocation9 + $0x78] sm:$0xf]
        %v9664 = vld [vmem:[#allocation9 + $0x7c] sm:$0xf]
        %v9665 = vld [vmem:[#allocation9 + $0x80] sm:$0xf]
        %v9666 = vld [vmem:[#allocation9 + $0x84] sm:$0xf]
        %v9667 = vld [vmem:[#allocation9 + $0x88] sm:$0xf]
        %v9668 = vld [vmem:[#allocation9 + $0x8c] sm:$0xf]
        %v9669 = vld [vmem:[#allocation9 + $0x90] sm:$0xf]
        %v9670 = vld [vmem:[#allocation9 + $0x94] sm:$0xf]
        %v9671 = vld [vmem:[#allocation9 + $0x98] sm:$0xf]
        %v9672 = vld [vmem:[#allocation9 + $0x9c] sm:$0xf]
        %v9673 = vld [vmem:[#allocation9 + $0xa0] sm:$0xf]
        %v9674 = vld [vmem:[#allocation9 + $0xa4] sm:$0xf]
        %v9675 = vld [vmem:[#allocation9 + $0xa8] sm:$0xf]
        %v9676 = vld [vmem:[#allocation9 + $0xac] sm:$0xf]
        %v9677 = vld [vmem:[#allocation9 + $0xb0] sm:$0xf]
        %v9678 = vld [vmem:[#allocation9 + $0xb4] sm:$0xf]
        %v9679 = vld [vmem:[#allocation9 + $0xb8] sm:$0xf]
        %v9680 = vld [vmem:[#allocation9 + $0xbc] sm:$0xf]
        %s9681 = scalar_lea.vmem [#allocation9], 192
        %v9682 = vld [vmem:[%s9681] sm:$0xf]
        %v9683 = vld [vmem:[%s9681 + $0x4] sm:$0xf]
        %v9684 = vld [vmem:[%s9681 + $0x8] sm:$0xf]
        %v9685 = vld [vmem:[%s9681 + $0xc] sm:$0xf]
        %v9686 = vld [vmem:[%s9681 + $0x10] sm:$0xf]
        %v9687 = vld [vmem:[%s9681 + $0x14] sm:$0xf]
        %v9688 = vld [vmem:[%s9681 + $0x18] sm:$0xf]
        %v9689 = vld [vmem:[%s9681 + $0x1c] sm:$0xf]
        %v9690 = vld [vmem:[%s9681 + $0x20] sm:$0xf]
        %v9691 = vld [vmem:[%s9681 + $0x24] sm:$0xf]
        %v9692 = vld [vmem:[%s9681 + $0x28] sm:$0xf]
        %v9693 = vld [vmem:[%s9681 + $0x2c] sm:$0xf]
        %v9694 = vld [vmem:[%s9681 + $0x30] sm:$0xf]
        %v9695 = vld [vmem:[%s9681 + $0x34] sm:$0xf]
        %v9696 = vld [vmem:[%s9681 + $0x38] sm:$0xf]
        %v9697 = vld [vmem:[%s9681 + $0x3c] sm:$0xf]
        %v9698 = vld [vmem:[%s9681 + $0x40] sm:$0xf]
        %v9699 = vld [vmem:[%s9681 + $0x44] sm:$0xf]
        %v9700 = vld [vmem:[%s9681 + $0x48] sm:$0xf]
        %v9701 = vld [vmem:[%s9681 + $0x4c] sm:$0xf]
        %v9702 = vld [vmem:[%s9681 + $0x50] sm:$0xf]
        %v9703 = vld [vmem:[%s9681 + $0x54] sm:$0xf]
        %v9704 = vld [vmem:[%s9681 + $0x58] sm:$0xf]
        %v9705 = vld [vmem:[%s9681 + $0x5c] sm:$0xf]
        %v9706 = vld [vmem:[%s9681 + $0x60] sm:$0xf]
        %v9707 = vld [vmem:[%s9681 + $0x64] sm:$0xf]
        %v9708 = vld [vmem:[%s9681 + $0x68] sm:$0xf]
        %v9709 = vld [vmem:[%s9681 + $0x6c] sm:$0xf]
        %v9710 = vld [vmem:[%s9681 + $0x70] sm:$0xf]
        %v9711 = vld [vmem:[%s9681 + $0x74] sm:$0xf]
        %v9712 = vld [vmem:[%s9681 + $0x78] sm:$0xf]
        %v9713 = vld [vmem:[%s9681 + $0x7c] sm:$0xf]
        %v9714 = vld [vmem:[%s9681 + $0x80] sm:$0xf]
        %v9715 = vld [vmem:[%s9681 + $0x84] sm:$0xf]
        %v9716 = vld [vmem:[%s9681 + $0x88] sm:$0xf]
        %v9717 = vld [vmem:[%s9681 + $0x8c] sm:$0xf]
        %v9718 = vld [vmem:[%s9681 + $0x90] sm:$0xf]
        %v9719 = vld [vmem:[%s9681 + $0x94] sm:$0xf]
        %v9720 = vld [vmem:[%s9681 + $0x98] sm:$0xf]
        %v9721 = vld [vmem:[%s9681 + $0x9c] sm:$0xf]
        %v9722 = vld [vmem:[%s9681 + $0xa0] sm:$0xf]
        %v9723 = vld [vmem:[%s9681 + $0xa4] sm:$0xf]
        %v9724 = vld [vmem:[%s9681 + $0xa8] sm:$0xf]
        %v9725 = vld [vmem:[%s9681 + $0xac] sm:$0xf]
        %v9726 = vld [vmem:[%s9681 + $0xb0] sm:$0xf]
        %v9727 = vld [vmem:[%s9681 + $0xb4] sm:$0xf]
        %v9728 = vld [vmem:[%s9681 + $0xb8] sm:$0xf]
        %v9729 = vld [vmem:[%s9681 + $0xbc] sm:$0xf]
        %v9732 = vunpack.c.l.b16 %v9631
        %v9733 = vunpack.c.h.b16 %v9631
        %v9734 = vunpack.c.l.b16 %v9632
        %v9735 = vpack.c.b16 %v9732, %v9732
        %v9736 = vpack.c.b16 %v9733, %v9733
        %v9737 = vpack.c.b16 %v9734, %v9734
        %v9789 = vunpack.c.l.b16 %v9682
        %v9790 = vunpack.c.l.b16 %v9683
        %v9791 = vunpack.c.l.b16 %v9684
        %v9792 = vunpack.c.l.b16 %v9685
        %v9793 = vunpack.c.l.b16 %v9686
        %v9794 = vunpack.c.l.b16 %v9687
        %v9795 = vunpack.c.l.b16 %v9688
        %v9796 = vunpack.c.l.b16 %v9689
        %v9797 = vunpack.c.l.b16 %v9690
        %v9798 = vunpack.c.l.b16 %v9691
        %v9799 = vunpack.c.l.b16 %v9692
        %v9800 = vunpack.c.l.b16 %v9693
        %v9801 = vunpack.c.l.b16 %v9694
        %v9802 = vunpack.c.l.b16 %v9695
        %v9803 = vunpack.c.l.b16 %v9696
        %v9804 = vunpack.c.l.b16 %v9697
        %v9805 = vunpack.c.l.b16 %v9698
        %v9806 = vunpack.c.l.b16 %v9699
        %v9807 = vunpack.c.l.b16 %v9700
        %v9808 = vunpack.c.l.b16 %v9701
        %v9809 = vunpack.c.l.b16 %v9702
        %v9810 = vunpack.c.l.b16 %v9703
        %v9811 = vunpack.c.l.b16 %v9704
        %v9812 = vunpack.c.l.b16 %v9705
        %v9813 = vunpack.c.l.b16 %v9706
        %v9814 = vunpack.c.l.b16 %v9707
        %v9815 = vunpack.c.l.b16 %v9708
        %v9816 = vunpack.c.l.b16 %v9709
        %v9817 = vunpack.c.l.b16 %v9710
        %v9818 = vunpack.c.l.b16 %v9711
        %v9819 = vunpack.c.l.b16 %v9712
        %v9820 = vunpack.c.l.b16 %v9713
        %v9821 = vunpack.c.l.b16 %v9714
        %v9822 = vunpack.c.l.b16 %v9715
        %v9823 = vunpack.c.l.b16 %v9716
        %v9824 = vunpack.c.l.b16 %v9717
        %v9825 = vunpack.c.l.b16 %v9718
        %v9826 = vunpack.c.l.b16 %v9719
        %v9827 = vunpack.c.l.b16 %v9720
        %v9828 = vunpack.c.l.b16 %v9721
        %v9829 = vunpack.c.l.b16 %v9722
        %v9830 = vunpack.c.l.b16 %v9723
        %v9831 = vunpack.c.l.b16 %v9724
        %v9832 = vunpack.c.l.b16 %v9725
        %v9833 = vunpack.c.l.b16 %v9726
        %v9834 = vunpack.c.l.b16 %v9727
        %v9835 = vunpack.c.l.b16 %v9728
        %v9836 = vunpack.c.l.b16 %v9729
        %v9837 = vpack.c.b16 %v9790, %v9789
        %v9838 = vpack.c.b16 %v9792, %v9791
        %v9839 = vpack.c.b16 %v9794, %v9793
        %v9840 = vpack.c.b16 %v9796, %v9795
        %v9841 = vpack.c.b16 %v9798, %v9797
        %v9842 = vpack.c.b16 %v9800, %v9799
        %v9843 = vpack.c.b16 %v9802, %v9801
        %v9844 = vpack.c.b16 %v9804, %v9803
        %v9845 = vpack.c.b16 %v9806, %v9805
        %v9846 = vpack.c.b16 %v9808, %v9807
        %v9847 = vpack.c.b16 %v9810, %v9809
        %v9848 = vpack.c.b16 %v9812, %v9811
        %v9849 = vpack.c.b16 %v9814, %v9813
        %v9850 = vpack.c.b16 %v9816, %v9815
        %v9851 = vpack.c.b16 %v9818, %v9817
        %v9852 = vpack.c.b16 %v9820, %v9819
        %v9853 = vpack.c.b16 %v9822, %v9821
        %v9854 = vpack.c.b16 %v9824, %v9823
        %v9855 = vpack.c.b16 %v9826, %v9825
        %v9856 = vpack.c.b16 %v9828, %v9827
        %v9857 = vpack.c.b16 %v9830, %v9829
        %v9858 = vpack.c.b16 %v9832, %v9831
        %v9859 = vpack.c.b16 %v9834, %v9833
        %v9860 = vpack.c.b16 %v9836, %v9835
        %9885 = vmatpush.bf16.msra.mxu0 %v9844
        %9886 = vmatpush.bf16.msra.mxu0 %v9843
        %9887 = vmatpush.bf16.msra.mxu0 %v9842
        %9888 = vmatpush.bf16.msra.mxu0 %v9841
        %9889 = vmatpush.bf16.msra.mxu0 %v9840
        %9890 = vmatpush.bf16.msra.mxu0 %v9839
        %9891 = vmatpush.bf16.msra.mxu0 %v9838
        %9892 = vmatpush.bf16.msra.mxu0 %v9837
        %9893 = vmatmul.bf16.gmra.mxu0 %v9735
        %v9894 = vpop.f32.mrf.mxu0
        %v9895 = vadd.f32 0.0, %v9894
        %v9896 = vpop.f32.mrf.mxu0
        %9897 = vdwg.mxu0
        %9898 = vmatpush.bf16.msra.mxu0 %v9852
        %9899 = vmatpush.bf16.msra.mxu0 %v9851
        %9900 = vmatpush.bf16.msra.mxu0 %v9850
        %9901 = vmatpush.bf16.msra.mxu0 %v9849
        %9902 = vmatpush.bf16.msra.mxu0 %v9848
        %9903 = vmatpush.bf16.msra.mxu0 %v9847
        %9904 = vmatpush.bf16.msra.mxu0 %v9846
        %9905 = vmatpush.bf16.msra.mxu0 %v9845
        %9906 = vmatmul.bf16.gmra.mxu0 %v9736
        %v9907 = vpop.f32.mrf.mxu0
        %v9908 = vadd.f32 %v9895, %v9907
        %v9909 = vpop.f32.mrf.mxu0
        %9910 = vdwg.mxu0
        %9911 = vmatpush.bf16.msra.mxu0 %v9860
        %9912 = vmatpush.bf16.msra.mxu0 %v9859
        %9913 = vmatpush.bf16.msra.mxu0 %v9858
        %9914 = vmatpush.bf16.msra.mxu0 %v9857
        %9915 = vmatpush.bf16.msra.mxu0 %v9856
        %9916 = vmatpush.bf16.msra.mxu0 %v9855
        %9917 = vmatpush.bf16.msra.mxu0 %v9854
        %9918 = vmatpush.bf16.msra.mxu0 %v9853
        %9919 = vmatmul.bf16.gmra.mxu0 %v9737
        %v9920 = vpop.f32.mrf.mxu0
        %v9921 = vadd.f32 %v9908, %v9920
        %v9922 = vpop.f32.mrf.mxu0
        %9923 = vdwg.mxu0
        %v9926 = vunpack.c.l.b16 %v8770
        %v9927 = vunpack.c.h.b16 %v8770
        %v9928 = vunpack.c.l.b16 %v8771
        %v9929 = vpack.c.b16 %v9926, %v9926
        %v9930 = vpack.c.b16 %v9927, %v9927
        %v9931 = vpack.c.b16 %v9928, %v9928
        %v9983 = vunpack.c.l.b16 %v9633
        %v9984 = vunpack.c.l.b16 %v9634
        %v9985 = vunpack.c.l.b16 %v9635
        %v9986 = vunpack.c.l.b16 %v9636
        %v9987 = vunpack.c.l.b16 %v9637
        %v9988 = vunpack.c.l.b16 %v9638
        %v9989 = vunpack.c.l.b16 %v9639
        %v9990 = vunpack.c.l.b16 %v9640
        %v9991 = vunpack.c.l.b16 %v9641
        %v9992 = vunpack.c.l.b16 %v9642
        %v9993 = vunpack.c.l.b16 %v9643
        %v9994 = vunpack.c.l.b16 %v9644
        %v9995 = vunpack.c.l.b16 %v9645
        %v9996 = vunpack.c.l.b16 %v9646
        %v9997 = vunpack.c.l.b16 %v9647
        %v9998 = vunpack.c.l.b16 %v9648
        %v9999 = vunpack.c.l.b16 %v9649
        %v10000 = vunpack.c.l.b16 %v9650
        %v10001 = vunpack.c.l.b16 %v9651
        %v10002 = vunpack.c.l.b16 %v9652
        %v10003 = vunpack.c.l.b16 %v9653
        %v10004 = vunpack.c.l.b16 %v9654
        %v10005 = vunpack.c.l.b16 %v9655
        %v10006 = vunpack.c.l.b16 %v9656
        %v10007 = vunpack.c.l.b16 %v9657
        %v10008 = vunpack.c.l.b16 %v9658
        %v10009 = vunpack.c.l.b16 %v9659
        %v10010 = vunpack.c.l.b16 %v9660
        %v10011 = vunpack.c.l.b16 %v9661
        %v10012 = vunpack.c.l.b16 %v9662
        %v10013 = vunpack.c.l.b16 %v9663
        %v10014 = vunpack.c.l.b16 %v9664
        %v10015 = vunpack.c.l.b16 %v9665
        %v10016 = vunpack.c.l.b16 %v9666
        %v10017 = vunpack.c.l.b16 %v9667
        %v10018 = vunpack.c.l.b16 %v9668
        %v10019 = vunpack.c.l.b16 %v9669
        %v10020 = vunpack.c.l.b16 %v9670
        %v10021 = vunpack.c.l.b16 %v9671
        %v10022 = vunpack.c.l.b16 %v9672
        %v10023 = vunpack.c.l.b16 %v9673
        %v10024 = vunpack.c.l.b16 %v9674
        %v10025 = vunpack.c.l.b16 %v9675
        %v10026 = vunpack.c.l.b16 %v9676
        %v10027 = vunpack.c.l.b16 %v9677
        %v10028 = vunpack.c.l.b16 %v9678
        %v10029 = vunpack.c.l.b16 %v9679
        %v10030 = vunpack.c.l.b16 %v9680
        %v10031 = vpack.c.b16 %v9984, %v9983
        %v10032 = vpack.c.b16 %v9986, %v9985
        %v10033 = vpack.c.b16 %v9988, %v9987
        %v10034 = vpack.c.b16 %v9990, %v9989
        %v10035 = vpack.c.b16 %v9992, %v9991
        %v10036 = vpack.c.b16 %v9994, %v9993
        %v10037 = vpack.c.b16 %v9996, %v9995
        %v10038 = vpack.c.b16 %v9998, %v9997
        %v10039 = vpack.c.b16 %v10000, %v9999
        %v10040 = vpack.c.b16 %v10002, %v10001
        %v10041 = vpack.c.b16 %v10004, %v10003
        %v10042 = vpack.c.b16 %v10006, %v10005
        %v10043 = vpack.c.b16 %v10008, %v10007
        %v10044 = vpack.c.b16 %v10010, %v10009
        %v10045 = vpack.c.b16 %v10012, %v10011
        %v10046 = vpack.c.b16 %v10014, %v10013
        %v10047 = vpack.c.b16 %v10016, %v10015
        %v10048 = vpack.c.b16 %v10018, %v10017
        %v10049 = vpack.c.b16 %v10020, %v10019
        %v10050 = vpack.c.b16 %v10022, %v10021
        %v10051 = vpack.c.b16 %v10024, %v10023
        %v10052 = vpack.c.b16 %v10026, %v10025
        %v10053 = vpack.c.b16 %v10028, %v10027
        %v10054 = vpack.c.b16 %v10030, %v10029
        %10079 = vmatpush.bf16.msra.mxu0 %v10038
        %10080 = vmatpush.bf16.msra.mxu0 %v10037
        %10081 = vmatpush.bf16.msra.mxu0 %v10036
        %10082 = vmatpush.bf16.msra.mxu0 %v10035
        %10083 = vmatpush.bf16.msra.mxu0 %v10034
        %10084 = vmatpush.bf16.msra.mxu0 %v10033
        %10085 = vmatpush.bf16.msra.mxu0 %v10032
        %10086 = vmatpush.bf16.msra.mxu0 %v10031
        %10087 = vmatmul.bf16.gmra.mxu0 %v9929
        %v10088 = vpop.f32.mrf.mxu0
        %v10089 = vadd.f32 %v9921, %v10088
        %v10090 = vpop.f32.mrf.mxu0
        %10091 = vdwg.mxu0
        %10092 = vmatpush.bf16.msra.mxu0 %v10046
        %10093 = vmatpush.bf16.msra.mxu0 %v10045
        %10094 = vmatpush.bf16.msra.mxu0 %v10044
        %10095 = vmatpush.bf16.msra.mxu0 %v10043
        %10096 = vmatpush.bf16.msra.mxu0 %v10042
        %10097 = vmatpush.bf16.msra.mxu0 %v10041
        %10098 = vmatpush.bf16.msra.mxu0 %v10040
        %10099 = vmatpush.bf16.msra.mxu0 %v10039
        %10100 = vmatmul.bf16.gmra.mxu0 %v9930
        %v10101 = vpop.f32.mrf.mxu0
        %v10102 = vadd.f32 %v10089, %v10101
        %v10103 = vpop.f32.mrf.mxu0
        %10104 = vdwg.mxu0
        %10105 = vmatpush.bf16.msra.mxu0 %v10054
        %10106 = vmatpush.bf16.msra.mxu0 %v10053
        %10107 = vmatpush.bf16.msra.mxu0 %v10052
        %10108 = vmatpush.bf16.msra.mxu0 %v10051
        %10109 = vmatpush.bf16.msra.mxu0 %v10050
        %10110 = vmatpush.bf16.msra.mxu0 %v10049
        %10111 = vmatpush.bf16.msra.mxu0 %v10048
        %10112 = vmatpush.bf16.msra.mxu0 %v10047
        %10113 = vmatmul.bf16.gmra.mxu0 %v9931
        %v10114 = vpop.f32.mrf.mxu0
        %v10115 = vadd.f32 %v10102, %v10114
        %v10116 = vpop.f32.mrf.mxu0
        %10117 = vdwg.mxu0
        %s10118 = scalar_lea.vmem [#allocation9], 384
        %v10119 = vld [vmem:[%s10118] sm:$0xf]
        %v10120 = vld [vmem:[%s10118 + $0x4] sm:$0xf]
        %v10121 = vld [vmem:[%s10118 + $0x8] sm:$0xf]
        %v10122 = vld [vmem:[%s10118 + $0xc] sm:$0xf]
        %v10123 = vld [vmem:[%s10118 + $0x10] sm:$0xf]
        %v10124 = vld [vmem:[%s10118 + $0x14] sm:$0xf]
        %v10125 = vld [vmem:[%s10118 + $0x18] sm:$0xf]
        %v10126 = vld [vmem:[%s10118 + $0x1c] sm:$0xf]
        %v10127 = vld [vmem:[%s10118 + $0x20] sm:$0xf]
        %v10128 = vld [vmem:[%s10118 + $0x24] sm:$0xf]
        %v10129 = vld [vmem:[%s10118 + $0x28] sm:$0xf]
        %v10130 = vld [vmem:[%s10118 + $0x2c] sm:$0xf]
        %v10131 = vld [vmem:[%s10118 + $0x30] sm:$0xf]
        %v10132 = vld [vmem:[%s10118 + $0x34] sm:$0xf]
        %v10133 = vld [vmem:[%s10118 + $0x38] sm:$0xf]
        %v10134 = vld [vmem:[%s10118 + $0x3c] sm:$0xf]
        %v10135 = vld [vmem:[%s10118 + $0x40] sm:$0xf]
        %v10136 = vld [vmem:[%s10118 + $0x44] sm:$0xf]
        %v10137 = vld [vmem:[%s10118 + $0x48] sm:$0xf]
        %v10138 = vld [vmem:[%s10118 + $0x4c] sm:$0xf]
        %v10139 = vld [vmem:[%s10118 + $0x50] sm:$0xf]
        %v10140 = vld [vmem:[%s10118 + $0x54] sm:$0xf]
        %v10141 = vld [vmem:[%s10118 + $0x58] sm:$0xf]
        %v10142 = vld [vmem:[%s10118 + $0x5c] sm:$0xf]
        %v10143 = vld [vmem:[%s10118 + $0x60] sm:$0xf]
        %v10144 = vld [vmem:[%s10118 + $0x64] sm:$0xf]
        %v10145 = vld [vmem:[%s10118 + $0x68] sm:$0xf]
        %v10146 = vld [vmem:[%s10118 + $0x6c] sm:$0xf]
        %v10147 = vld [vmem:[%s10118 + $0x70] sm:$0xf]
        %v10148 = vld [vmem:[%s10118 + $0x74] sm:$0xf]
        %v10149 = vld [vmem:[%s10118 + $0x78] sm:$0xf]
        %v10150 = vld [vmem:[%s10118 + $0x7c] sm:$0xf]
        %v10151 = vld [vmem:[%s10118 + $0x80] sm:$0xf]
        %v10152 = vld [vmem:[%s10118 + $0x84] sm:$0xf]
        %v10153 = vld [vmem:[%s10118 + $0x88] sm:$0xf]
        %v10154 = vld [vmem:[%s10118 + $0x8c] sm:$0xf]
        %v10155 = vld [vmem:[%s10118 + $0x90] sm:$0xf]
        %v10156 = vld [vmem:[%s10118 + $0x94] sm:$0xf]
        %v10157 = vld [vmem:[%s10118 + $0x98] sm:$0xf]
        %v10158 = vld [vmem:[%s10118 + $0x9c] sm:$0xf]
        %v10159 = vld [vmem:[%s10118 + $0xa0] sm:$0xf]
        %v10160 = vld [vmem:[%s10118 + $0xa4] sm:$0xf]
        %v10161 = vld [vmem:[%s10118 + $0xa8] sm:$0xf]
        %v10162 = vld [vmem:[%s10118 + $0xac] sm:$0xf]
        %v10163 = vld [vmem:[%s10118 + $0xb0] sm:$0xf]
        %v10164 = vld [vmem:[%s10118 + $0xb4] sm:$0xf]
        %v10165 = vld [vmem:[%s10118 + $0xb8] sm:$0xf]
        %v10166 = vld [vmem:[%s10118 + $0xbc] sm:$0xf]
        %v10168 = vshrl.u32 %v9929, 16
        %v10170 = vshll.u32 %v9929, 16
        %v10172 = vrot.slane %v10170, 1
        %v10173 = vor.u32 %v10168, %v10172
        %v10175 = vshrl.u32 %v9930, 16
        %v10177 = vshll.u32 %v9930, 16
        %v10179 = vrot.slane %v10177, 1
        %v10180 = vor.u32 %v10175, %v10179
        %v10182 = vshrl.u32 %v9931, 16
        %v10184 = vshll.u32 %v9931, 16
        %v10186 = vrot.slane %v10184, 1
        %v10187 = vor.u32 %v10182, %v10186
        %v10239 = vunpack.c.l.b16 %v10119
        %v10240 = vunpack.c.l.b16 %v10120
        %v10241 = vunpack.c.l.b16 %v10121
        %v10242 = vunpack.c.l.b16 %v10122
        %v10243 = vunpack.c.l.b16 %v10123
        %v10244 = vunpack.c.l.b16 %v10124
        %v10245 = vunpack.c.l.b16 %v10125
        %v10246 = vunpack.c.l.b16 %v10126
        %v10247 = vunpack.c.l.b16 %v10127
        %v10248 = vunpack.c.l.b16 %v10128
        %v10249 = vunpack.c.l.b16 %v10129
        %v10250 = vunpack.c.l.b16 %v10130
        %v10251 = vunpack.c.l.b16 %v10131
        %v10252 = vunpack.c.l.b16 %v10132
        %v10253 = vunpack.c.l.b16 %v10133
        %v10254 = vunpack.c.l.b16 %v10134
        %v10255 = vunpack.c.l.b16 %v10135
        %v10256 = vunpack.c.l.b16 %v10136
        %v10257 = vunpack.c.l.b16 %v10137
        %v10258 = vunpack.c.l.b16 %v10138
        %v10259 = vunpack.c.l.b16 %v10139
        %v10260 = vunpack.c.l.b16 %v10140
        %v10261 = vunpack.c.l.b16 %v10141
        %v10262 = vunpack.c.l.b16 %v10142
        %v10263 = vunpack.c.l.b16 %v10143
        %v10264 = vunpack.c.l.b16 %v10144
        %v10265 = vunpack.c.l.b16 %v10145
        %v10266 = vunpack.c.l.b16 %v10146
        %v10267 = vunpack.c.l.b16 %v10147
        %v10268 = vunpack.c.l.b16 %v10148
        %v10269 = vunpack.c.l.b16 %v10149
        %v10270 = vunpack.c.l.b16 %v10150
        %v10271 = vunpack.c.l.b16 %v10151
        %v10272 = vunpack.c.l.b16 %v10152
        %v10273 = vunpack.c.l.b16 %v10153
        %v10274 = vunpack.c.l.b16 %v10154
        %v10275 = vunpack.c.l.b16 %v10155
        %v10276 = vunpack.c.l.b16 %v10156
        %v10277 = vunpack.c.l.b16 %v10157
        %v10278 = vunpack.c.l.b16 %v10158
        %v10279 = vunpack.c.l.b16 %v10159
        %v10280 = vunpack.c.l.b16 %v10160
        %v10281 = vunpack.c.l.b16 %v10161
        %v10282 = vunpack.c.l.b16 %v10162
        %v10283 = vunpack.c.l.b16 %v10163
        %v10284 = vunpack.c.l.b16 %v10164
        %v10285 = vunpack.c.l.b16 %v10165
        %v10286 = vunpack.c.l.b16 %v10166
        %v10287 = vpack.c.b16 %v10240, %v10239
        %v10288 = vpack.c.b16 %v10242, %v10241
        %v10289 = vpack.c.b16 %v10244, %v10243
        %v10290 = vpack.c.b16 %v10246, %v10245
        %v10291 = vpack.c.b16 %v10248, %v10247
        %v10292 = vpack.c.b16 %v10250, %v10249
        %v10293 = vpack.c.b16 %v10252, %v10251
        %v10294 = vpack.c.b16 %v10254, %v10253
        %v10295 = vpack.c.b16 %v10256, %v10255
        %v10296 = vpack.c.b16 %v10258, %v10257
        %v10297 = vpack.c.b16 %v10260, %v10259
        %v10298 = vpack.c.b16 %v10262, %v10261
        %v10299 = vpack.c.b16 %v10264, %v10263
        %v10300 = vpack.c.b16 %v10266, %v10265
        %v10301 = vpack.c.b16 %v10268, %v10267
        %v10302 = vpack.c.b16 %v10270, %v10269
        %v10303 = vpack.c.b16 %v10272, %v10271
        %v10304 = vpack.c.b16 %v10274, %v10273
        %v10305 = vpack.c.b16 %v10276, %v10275
        %v10306 = vpack.c.b16 %v10278, %v10277
        %v10307 = vpack.c.b16 %v10280, %v10279
        %v10308 = vpack.c.b16 %v10282, %v10281
        %v10309 = vpack.c.b16 %v10284, %v10283
        %v10310 = vpack.c.b16 %v10286, %v10285
        %10335 = vmatpush.bf16.msra.mxu0 %v10294
        %10336 = vmatpush.bf16.msra.mxu0 %v10293
        %10337 = vmatpush.bf16.msra.mxu0 %v10292
        %10338 = vmatpush.bf16.msra.mxu0 %v10291
        %10339 = vmatpush.bf16.msra.mxu0 %v10290
        %10340 = vmatpush.bf16.msra.mxu0 %v10289
        %10341 = vmatpush.bf16.msra.mxu0 %v10288
        %10342 = vmatpush.bf16.msra.mxu0 %v10287
        %10343 = vmatmul.bf16.gmra.mxu0 %v10173
        %v10344 = vpop.f32.mrf.mxu0
        %v10345 = vadd.f32 0.0, %v10344
        %v10346 = vpop.f32.mrf.mxu0
        %10347 = vdwg.mxu0
        %10348 = vmatpush.bf16.msra.mxu0 %v10302
        %10349 = vmatpush.bf16.msra.mxu0 %v10301
        %10350 = vmatpush.bf16.msra.mxu0 %v10300
        %10351 = vmatpush.bf16.msra.mxu0 %v10299
        %10352 = vmatpush.bf16.msra.mxu0 %v10298
        %10353 = vmatpush.bf16.msra.mxu0 %v10297
        %10354 = vmatpush.bf16.msra.mxu0 %v10296
        %10355 = vmatpush.bf16.msra.mxu0 %v10295
        %10356 = vmatmul.bf16.gmra.mxu0 %v10180
        %v10357 = vpop.f32.mrf.mxu0
        %v10358 = vadd.f32 %v10345, %v10357
        %v10359 = vpop.f32.mrf.mxu0
        %10360 = vdwg.mxu0
        %10361 = vmatpush.bf16.msra.mxu0 %v10310
        %10362 = vmatpush.bf16.msra.mxu0 %v10309
        %10363 = vmatpush.bf16.msra.mxu0 %v10308
        %10364 = vmatpush.bf16.msra.mxu0 %v10307
        %10365 = vmatpush.bf16.msra.mxu0 %v10306
        %10366 = vmatpush.bf16.msra.mxu0 %v10305
        %10367 = vmatpush.bf16.msra.mxu0 %v10304
        %10368 = vmatpush.bf16.msra.mxu0 %v10303
        %10369 = vmatmul.bf16.gmra.mxu0 %v10187
        %v10370 = vpop.f32.mrf.mxu0
        %v10371 = vadd.f32 %v10358, %v10370
        %v10372 = vpop.f32.mrf.mxu0
        %10373 = vdwg.mxu0
        %v10374 = vadd.f32 %v10115, %v10371
        %s10375 = scalar_lea.vmem [#allocation9], 576
        %v10376 = vld [vmem:[%s10375] sm:$0xf]
        %v10377 = vld [vmem:[%s10375 + $0x4] sm:$0xf]
        %v10378 = vld [vmem:[%s10375 + $0x8] sm:$0xf]
        %v10379 = vld [vmem:[%s10375 + $0xc] sm:$0xf]
        %v10380 = vld [vmem:[%s10375 + $0x10] sm:$0xf]
        %v10381 = vld [vmem:[%s10375 + $0x14] sm:$0xf]
        %v10382 = vld [vmem:[%s10375 + $0x18] sm:$0xf]
        %v10383 = vld [vmem:[%s10375 + $0x1c] sm:$0xf]
        %v10384 = vld [vmem:[%s10375 + $0x20] sm:$0xf]
        %v10385 = vld [vmem:[%s10375 + $0x24] sm:$0xf]
        %v10386 = vld [vmem:[%s10375 + $0x28] sm:$0xf]
        %v10387 = vld [vmem:[%s10375 + $0x2c] sm:$0xf]
        %v10388 = vld [vmem:[%s10375 + $0x30] sm:$0xf]
        %v10389 = vld [vmem:[%s10375 + $0x34] sm:$0xf]
        %v10390 = vld [vmem:[%s10375 + $0x38] sm:$0xf]
        %v10391 = vld [vmem:[%s10375 + $0x3c] sm:$0xf]
        %v10392 = vld [vmem:[%s10375 + $0x40] sm:$0xf]
        %v10393 = vld [vmem:[%s10375 + $0x44] sm:$0xf]
        %v10394 = vld [vmem:[%s10375 + $0x48] sm:$0xf]
        %v10395 = vld [vmem:[%s10375 + $0x4c] sm:$0xf]
        %v10396 = vld [vmem:[%s10375 + $0x50] sm:$0xf]
        %v10397 = vld [vmem:[%s10375 + $0x54] sm:$0xf]
        %v10398 = vld [vmem:[%s10375 + $0x58] sm:$0xf]
        %v10399 = vld [vmem:[%s10375 + $0x5c] sm:$0xf]
        %v10400 = vld [vmem:[%s10375 + $0x60] sm:$0xf]
        %v10401 = vld [vmem:[%s10375 + $0x64] sm:$0xf]
        %v10402 = vld [vmem:[%s10375 + $0x68] sm:$0xf]
        %v10403 = vld [vmem:[%s10375 + $0x6c] sm:$0xf]
        %v10404 = vld [vmem:[%s10375 + $0x70] sm:$0xf]
        %v10405 = vld [vmem:[%s10375 + $0x74] sm:$0xf]
        %v10406 = vld [vmem:[%s10375 + $0x78] sm:$0xf]
        %v10407 = vld [vmem:[%s10375 + $0x7c] sm:$0xf]
        %v10408 = vld [vmem:[%s10375 + $0x80] sm:$0xf]
        %v10409 = vld [vmem:[%s10375 + $0x84] sm:$0xf]
        %v10410 = vld [vmem:[%s10375 + $0x88] sm:$0xf]
        %v10411 = vld [vmem:[%s10375 + $0x8c] sm:$0xf]
        %v10412 = vld [vmem:[%s10375 + $0x90] sm:$0xf]
        %v10413 = vld [vmem:[%s10375 + $0x94] sm:$0xf]
        %v10414 = vld [vmem:[%s10375 + $0x98] sm:$0xf]
        %v10415 = vld [vmem:[%s10375 + $0x9c] sm:$0xf]
        %v10416 = vld [vmem:[%s10375 + $0xa0] sm:$0xf]
        %v10417 = vld [vmem:[%s10375 + $0xa4] sm:$0xf]
        %v10418 = vld [vmem:[%s10375 + $0xa8] sm:$0xf]
        %v10419 = vld [vmem:[%s10375 + $0xac] sm:$0xf]
        %v10420 = vld [vmem:[%s10375 + $0xb0] sm:$0xf]
        %v10421 = vld [vmem:[%s10375 + $0xb4] sm:$0xf]
        %v10422 = vld [vmem:[%s10375 + $0xb8] sm:$0xf]
        %v10423 = vld [vmem:[%s10375 + $0xbc] sm:$0xf]
        %v10425 = vshrl.u32 %v9735, 16
        %v10427 = vshll.u32 %v9735, 16
        %v10429 = vrot.slane %v10427, 1
        %v10430 = vor.u32 %v10425, %v10429
        %v10432 = vshrl.u32 %v9736, 16
        %v10434 = vshll.u32 %v9736, 16
        %v10436 = vrot.slane %v10434, 1
        %v10437 = vor.u32 %v10432, %v10436
        %v10439 = vshrl.u32 %v9737, 16
        %v10441 = vshll.u32 %v9737, 16
        %v10443 = vrot.slane %v10441, 1
        %v10444 = vor.u32 %v10439, %v10443
        %v10496 = vunpack.c.l.b16 %v10376
        %v10497 = vunpack.c.l.b16 %v10377
        %v10498 = vunpack.c.l.b16 %v10378
        %v10499 = vunpack.c.l.b16 %v10379
        %v10500 = vunpack.c.l.b16 %v10380
        %v10501 = vunpack.c.l.b16 %v10381
        %v10502 = vunpack.c.l.b16 %v10382
        %v10503 = vunpack.c.l.b16 %v10383
        %v10504 = vunpack.c.l.b16 %v10384
        %v10505 = vunpack.c.l.b16 %v10385
        %v10506 = vunpack.c.l.b16 %v10386
        %v10507 = vunpack.c.l.b16 %v10387
        %v10508 = vunpack.c.l.b16 %v10388
        %v10509 = vunpack.c.l.b16 %v10389
        %v10510 = vunpack.c.l.b16 %v10390
        %v10511 = vunpack.c.l.b16 %v10391
        %v10512 = vunpack.c.l.b16 %v10392
        %v10513 = vunpack.c.l.b16 %v10393
        %v10514 = vunpack.c.l.b16 %v10394
        %v10515 = vunpack.c.l.b16 %v10395
        %v10516 = vunpack.c.l.b16 %v10396
        %v10517 = vunpack.c.l.b16 %v10397
        %v10518 = vunpack.c.l.b16 %v10398
        %v10519 = vunpack.c.l.b16 %v10399
        %v10520 = vunpack.c.l.b16 %v10400
        %v10521 = vunpack.c.l.b16 %v10401
        %v10522 = vunpack.c.l.b16 %v10402
        %v10523 = vunpack.c.l.b16 %v10403
        %v10524 = vunpack.c.l.b16 %v10404
        %v10525 = vunpack.c.l.b16 %v10405
        %v10526 = vunpack.c.l.b16 %v10406
        %v10527 = vunpack.c.l.b16 %v10407
        %v10528 = vunpack.c.l.b16 %v10408
        %v10529 = vunpack.c.l.b16 %v10409
        %v10530 = vunpack.c.l.b16 %v10410
        %v10531 = vunpack.c.l.b16 %v10411
        %v10532 = vunpack.c.l.b16 %v10412
        %v10533 = vunpack.c.l.b16 %v10413
        %v10534 = vunpack.c.l.b16 %v10414
        %v10535 = vunpack.c.l.b16 %v10415
        %v10536 = vunpack.c.l.b16 %v10416
        %v10537 = vunpack.c.l.b16 %v10417
        %v10538 = vunpack.c.l.b16 %v10418
        %v10539 = vunpack.c.l.b16 %v10419
        %v10540 = vunpack.c.l.b16 %v10420
        %v10541 = vunpack.c.l.b16 %v10421
        %v10542 = vunpack.c.l.b16 %v10422
        %v10543 = vunpack.c.l.b16 %v10423
        %v10544 = vpack.c.b16 %v10497, %v10496
        %v10545 = vpack.c.b16 %v10499, %v10498
        %v10546 = vpack.c.b16 %v10501, %v10500
        %v10547 = vpack.c.b16 %v10503, %v10502
        %v10548 = vpack.c.b16 %v10505, %v10504
        %v10549 = vpack.c.b16 %v10507, %v10506
        %v10550 = vpack.c.b16 %v10509, %v10508
        %v10551 = vpack.c.b16 %v10511, %v10510
        %v10552 = vpack.c.b16 %v10513, %v10512
        %v10553 = vpack.c.b16 %v10515, %v10514
        %v10554 = vpack.c.b16 %v10517, %v10516
        %v10555 = vpack.c.b16 %v10519, %v10518
        %v10556 = vpack.c.b16 %v10521, %v10520
        %v10557 = vpack.c.b16 %v10523, %v10522
        %v10558 = vpack.c.b16 %v10525, %v10524
        %v10559 = vpack.c.b16 %v10527, %v10526
        %v10560 = vpack.c.b16 %v10529, %v10528
        %v10561 = vpack.c.b16 %v10531, %v10530
        %v10562 = vpack.c.b16 %v10533, %v10532
        %v10563 = vpack.c.b16 %v10535, %v10534
        %v10564 = vpack.c.b16 %v10537, %v10536
        %v10565 = vpack.c.b16 %v10539, %v10538
        %v10566 = vpack.c.b16 %v10541, %v10540
        %v10567 = vpack.c.b16 %v10543, %v10542
        %10592 = vmatpush.bf16.msra.mxu0 %v10551
        %10593 = vmatpush.bf16.msra.mxu0 %v10550
        %10594 = vmatpush.bf16.msra.mxu0 %v10549
        %10595 = vmatpush.bf16.msra.mxu0 %v10548
        %10596 = vmatpush.bf16.msra.mxu0 %v10547
        %10597 = vmatpush.bf16.msra.mxu0 %v10546
        %10598 = vmatpush.bf16.msra.mxu0 %v10545
        %10599 = vmatpush.bf16.msra.mxu0 %v10544
        %10600 = vmatmul.bf16.gmra.mxu0 %v10430
        %v10601 = vpop.f32.mrf.mxu0
        %v10602 = vadd.f32 0.0, %v10601
        %v10603 = vpop.f32.mrf.mxu0
        %10604 = vdwg.mxu0
        %10605 = vmatpush.bf16.msra.mxu0 %v10559
        %10606 = vmatpush.bf16.msra.mxu0 %v10558
        %10607 = vmatpush.bf16.msra.mxu0 %v10557
        %10608 = vmatpush.bf16.msra.mxu0 %v10556
        %10609 = vmatpush.bf16.msra.mxu0 %v10555
        %10610 = vmatpush.bf16.msra.mxu0 %v10554
        %10611 = vmatpush.bf16.msra.mxu0 %v10553
        %10612 = vmatpush.bf16.msra.mxu0 %v10552
        %10613 = vmatmul.bf16.gmra.mxu0 %v10437
        %v10614 = vpop.f32.mrf.mxu0
        %v10615 = vadd.f32 %v10602, %v10614
        %v10616 = vpop.f32.mrf.mxu0
        %10617 = vdwg.mxu0
        %10618 = vmatpush.bf16.msra.mxu0 %v10567
        %10619 = vmatpush.bf16.msra.mxu0 %v10566
        %10620 = vmatpush.bf16.msra.mxu0 %v10565
        %10621 = vmatpush.bf16.msra.mxu0 %v10564
        %10622 = vmatpush.bf16.msra.mxu0 %v10563
        %10623 = vmatpush.bf16.msra.mxu0 %v10562
        %10624 = vmatpush.bf16.msra.mxu0 %v10561
        %10625 = vmatpush.bf16.msra.mxu0 %v10560
        %10626 = vmatmul.bf16.gmra.mxu0 %v10444
        %v10627 = vpop.f32.mrf.mxu0
        %v10628 = vadd.f32 %v10615, %v10627
        %v10629 = vpop.f32.mrf.mxu0
        %10630 = vdwg.mxu0
        %v10631 = vadd.f32 %v10374, %v10628
        %s10632 = scalar_lea.vmem [#allocation9], 768
        %v10633 = vld [vmem:[%s10632] sm:$0xf]
        %v10634 = vld [vmem:[%s10632 + $0x4] sm:$0xf]
        %v10635 = vld [vmem:[%s10632 + $0x8] sm:$0xf]
        %v10636 = vld [vmem:[%s10632 + $0xc] sm:$0xf]
        %v10637 = vld [vmem:[%s10632 + $0x10] sm:$0xf]
        %v10638 = vld [vmem:[%s10632 + $0x14] sm:$0xf]
        %v10639 = vld [vmem:[%s10632 + $0x18] sm:$0xf]
        %v10640 = vld [vmem:[%s10632 + $0x1c] sm:$0xf]
        %v10641 = vld [vmem:[%s10632 + $0x20] sm:$0xf]
        %v10642 = vld [vmem:[%s10632 + $0x24] sm:$0xf]
        %v10643 = vld [vmem:[%s10632 + $0x28] sm:$0xf]
        %v10644 = vld [vmem:[%s10632 + $0x2c] sm:$0xf]
        %v10645 = vld [vmem:[%s10632 + $0x30] sm:$0xf]
        %v10646 = vld [vmem:[%s10632 + $0x34] sm:$0xf]
        %v10647 = vld [vmem:[%s10632 + $0x38] sm:$0xf]
        %v10648 = vld [vmem:[%s10632 + $0x3c] sm:$0xf]
        %v10649 = vld [vmem:[%s10632 + $0x40] sm:$0xf]
        %v10650 = vld [vmem:[%s10632 + $0x44] sm:$0xf]
        %v10651 = vld [vmem:[%s10632 + $0x48] sm:$0xf]
        %v10652 = vld [vmem:[%s10632 + $0x4c] sm:$0xf]
        %v10653 = vld [vmem:[%s10632 + $0x50] sm:$0xf]
        %v10654 = vld [vmem:[%s10632 + $0x54] sm:$0xf]
        %v10655 = vld [vmem:[%s10632 + $0x58] sm:$0xf]
        %v10656 = vld [vmem:[%s10632 + $0x5c] sm:$0xf]
        %v10657 = vld [vmem:[%s10632 + $0x60] sm:$0xf]
        %v10658 = vld [vmem:[%s10632 + $0x64] sm:$0xf]
        %v10659 = vld [vmem:[%s10632 + $0x68] sm:$0xf]
        %v10660 = vld [vmem:[%s10632 + $0x6c] sm:$0xf]
        %v10661 = vld [vmem:[%s10632 + $0x70] sm:$0xf]
        %v10662 = vld [vmem:[%s10632 + $0x74] sm:$0xf]
        %v10663 = vld [vmem:[%s10632 + $0x78] sm:$0xf]
        %v10664 = vld [vmem:[%s10632 + $0x7c] sm:$0xf]
        %v10665 = vld [vmem:[%s10632 + $0x80] sm:$0xf]
        %v10666 = vld [vmem:[%s10632 + $0x84] sm:$0xf]
        %v10667 = vld [vmem:[%s10632 + $0x88] sm:$0xf]
        %v10668 = vld [vmem:[%s10632 + $0x8c] sm:$0xf]
        %v10669 = vld [vmem:[%s10632 + $0x90] sm:$0xf]
        %v10670 = vld [vmem:[%s10632 + $0x94] sm:$0xf]
        %v10671 = vld [vmem:[%s10632 + $0x98] sm:$0xf]
        %v10672 = vld [vmem:[%s10632 + $0x9c] sm:$0xf]
        %v10673 = vld [vmem:[%s10632 + $0xa0] sm:$0xf]
        %v10674 = vld [vmem:[%s10632 + $0xa4] sm:$0xf]
        %v10675 = vld [vmem:[%s10632 + $0xa8] sm:$0xf]
        %v10676 = vld [vmem:[%s10632 + $0xac] sm:$0xf]
        %v10677 = vld [vmem:[%s10632 + $0xb0] sm:$0xf]
        %v10678 = vld [vmem:[%s10632 + $0xb4] sm:$0xf]
        %v10679 = vld [vmem:[%s10632 + $0xb8] sm:$0xf]
        %v10680 = vld [vmem:[%s10632 + $0xbc] sm:$0xf]
        %v10681 = vrot.slane %v9929, 1
        %v10682 = vrot.slane %v9930, 1
        %v10683 = vrot.slane %v9931, 1
        %v10735 = vunpack.c.l.b16 %v10633
        %v10736 = vunpack.c.l.b16 %v10634
        %v10737 = vunpack.c.l.b16 %v10635
        %v10738 = vunpack.c.l.b16 %v10636
        %v10739 = vunpack.c.l.b16 %v10637
        %v10740 = vunpack.c.l.b16 %v10638
        %v10741 = vunpack.c.l.b16 %v10639
        %v10742 = vunpack.c.l.b16 %v10640
        %v10743 = vunpack.c.l.b16 %v10641
        %v10744 = vunpack.c.l.b16 %v10642
        %v10745 = vunpack.c.l.b16 %v10643
        %v10746 = vunpack.c.l.b16 %v10644
        %v10747 = vunpack.c.l.b16 %v10645
        %v10748 = vunpack.c.l.b16 %v10646
        %v10749 = vunpack.c.l.b16 %v10647
        %v10750 = vunpack.c.l.b16 %v10648
        %v10751 = vunpack.c.l.b16 %v10649
        %v10752 = vunpack.c.l.b16 %v10650
        %v10753 = vunpack.c.l.b16 %v10651
        %v10754 = vunpack.c.l.b16 %v10652
        %v10755 = vunpack.c.l.b16 %v10653
        %v10756 = vunpack.c.l.b16 %v10654
        %v10757 = vunpack.c.l.b16 %v10655
        %v10758 = vunpack.c.l.b16 %v10656
        %v10759 = vunpack.c.l.b16 %v10657
        %v10760 = vunpack.c.l.b16 %v10658
        %v10761 = vunpack.c.l.b16 %v10659
        %v10762 = vunpack.c.l.b16 %v10660
        %v10763 = vunpack.c.l.b16 %v10661
        %v10764 = vunpack.c.l.b16 %v10662
        %v10765 = vunpack.c.l.b16 %v10663
        %v10766 = vunpack.c.l.b16 %v10664
        %v10767 = vunpack.c.l.b16 %v10665
        %v10768 = vunpack.c.l.b16 %v10666
        %v10769 = vunpack.c.l.b16 %v10667
        %v10770 = vunpack.c.l.b16 %v10668
        %v10771 = vunpack.c.l.b16 %v10669
        %v10772 = vunpack.c.l.b16 %v10670
        %v10773 = vunpack.c.l.b16 %v10671
        %v10774 = vunpack.c.l.b16 %v10672
        %v10775 = vunpack.c.l.b16 %v10673
        %v10776 = vunpack.c.l.b16 %v10674
        %v10777 = vunpack.c.l.b16 %v10675
        %v10778 = vunpack.c.l.b16 %v10676
        %v10779 = vunpack.c.l.b16 %v10677
        %v10780 = vunpack.c.l.b16 %v10678
        %v10781 = vunpack.c.l.b16 %v10679
        %v10782 = vunpack.c.l.b16 %v10680
        %v10783 = vpack.c.b16 %v10736, %v10735
        %v10784 = vpack.c.b16 %v10738, %v10737
        %v10785 = vpack.c.b16 %v10740, %v10739
        %v10786 = vpack.c.b16 %v10742, %v10741
        %v10787 = vpack.c.b16 %v10744, %v10743
        %v10788 = vpack.c.b16 %v10746, %v10745
        %v10789 = vpack.c.b16 %v10748, %v10747
        %v10790 = vpack.c.b16 %v10750, %v10749
        %v10791 = vpack.c.b16 %v10752, %v10751
        %v10792 = vpack.c.b16 %v10754, %v10753
        %v10793 = vpack.c.b16 %v10756, %v10755
        %v10794 = vpack.c.b16 %v10758, %v10757
        %v10795 = vpack.c.b16 %v10760, %v10759
        %v10796 = vpack.c.b16 %v10762, %v10761
        %v10797 = vpack.c.b16 %v10764, %v10763
        %v10798 = vpack.c.b16 %v10766, %v10765
        %v10799 = vpack.c.b16 %v10768, %v10767
        %v10800 = vpack.c.b16 %v10770, %v10769
        %v10801 = vpack.c.b16 %v10772, %v10771
        %v10802 = vpack.c.b16 %v10774, %v10773
        %v10803 = vpack.c.b16 %v10776, %v10775
        %v10804 = vpack.c.b16 %v10778, %v10777
        %v10805 = vpack.c.b16 %v10780, %v10779
        %v10806 = vpack.c.b16 %v10782, %v10781
        %10831 = vmatpush.bf16.msra.mxu0 %v10790
        %10832 = vmatpush.bf16.msra.mxu0 %v10789
        %10833 = vmatpush.bf16.msra.mxu0 %v10788
        %10834 = vmatpush.bf16.msra.mxu0 %v10787
        %10835 = vmatpush.bf16.msra.mxu0 %v10786
        %10836 = vmatpush.bf16.msra.mxu0 %v10785
        %10837 = vmatpush.bf16.msra.mxu0 %v10784
        %10838 = vmatpush.bf16.msra.mxu0 %v10783
        %10839 = vmatmul.bf16.gmra.mxu0 %v10681
        %v10840 = vpop.f32.mrf.mxu0
        %v10841 = vadd.f32 0.0, %v10840
        %v10842 = vpop.f32.mrf.mxu0
        %10843 = vdwg.mxu0
        %10844 = vmatpush.bf16.msra.mxu0 %v10798
        %10845 = vmatpush.bf16.msra.mxu0 %v10797
        %10846 = vmatpush.bf16.msra.mxu0 %v10796
        %10847 = vmatpush.bf16.msra.mxu0 %v10795
        %10848 = vmatpush.bf16.msra.mxu0 %v10794
        %10849 = vmatpush.bf16.msra.mxu0 %v10793
        %10850 = vmatpush.bf16.msra.mxu0 %v10792
        %10851 = vmatpush.bf16.msra.mxu0 %v10791
        %10852 = vmatmul.bf16.gmra.mxu0 %v10682
        %v10853 = vpop.f32.mrf.mxu0
        %v10854 = vadd.f32 %v10841, %v10853
        %v10855 = vpop.f32.mrf.mxu0
        %10856 = vdwg.mxu0
        %10857 = vmatpush.bf16.msra.mxu0 %v10806
        %10858 = vmatpush.bf16.msra.mxu0 %v10805
        %10859 = vmatpush.bf16.msra.mxu0 %v10804
        %10860 = vmatpush.bf16.msra.mxu0 %v10803
        %10861 = vmatpush.bf16.msra.mxu0 %v10802
        %10862 = vmatpush.bf16.msra.mxu0 %v10801
        %10863 = vmatpush.bf16.msra.mxu0 %v10800
        %10864 = vmatpush.bf16.msra.mxu0 %v10799
        %10865 = vmatmul.bf16.gmra.mxu0 %v10683
        %v10866 = vpop.f32.mrf.mxu0
        %v10867 = vadd.f32 %v10854, %v10866
        %v10868 = vpop.f32.mrf.mxu0
        %10869 = vdwg.mxu0
        %v10870 = vadd.f32 %v10631, %v10867
        %v10871 = vld [vmem:[#allocation10] sm:$0x1]
        %v10873 = vperm.slane %v10871, 0
        %v10875 = vadd.f32 %v10870, %v10873
        %v10876 = vmax.f32 %v10875, 0.0
        %v10877 = vpack.c.bf16 %v10876, %v10876
        %v10878 = vld [vmem:[#allocation12] sm:$0xf]
        %v10879 = vld [vmem:[#allocation12 + $0x4] sm:$0xf]
        %v10880 = vld [vmem:[#allocation12 + $0x8] sm:$0xf]
        %v10881 = vld [vmem:[#allocation12 + $0xc] sm:$0xf]
        %v10882 = vld [vmem:[#allocation12 + $0x10] sm:$0xf]
        %v10883 = vld [vmem:[#allocation12 + $0x14] sm:$0xf]
        %v10884 = vld [vmem:[#allocation12 + $0x18] sm:$0xf]
        %v10885 = vld [vmem:[#allocation12 + $0x1c] sm:$0xf]
        %v10886 = vld [vmem:[#allocation12 + $0x20] sm:$0xf]
        %v10887 = vld [vmem:[#allocation12 + $0x24] sm:$0xf]
        %v10888 = vld [vmem:[#allocation12 + $0x28] sm:$0xf]
        %v10889 = vld [vmem:[#allocation12 + $0x2c] sm:$0xf]
        %v10890 = vld [vmem:[#allocation12 + $0x30] sm:$0xf]
        %v10891 = vld [vmem:[#allocation12 + $0x34] sm:$0xf]
        %v10892 = vld [vmem:[#allocation12 + $0x38] sm:$0xf]
        %v10893 = vld [vmem:[#allocation12 + $0x3c] sm:$0xf]
        %v10894 = vld [vmem:[#allocation12 + $0x40] sm:$0xf]
        %v10895 = vld [vmem:[#allocation12 + $0x44] sm:$0xf]
        %v10896 = vld [vmem:[#allocation12 + $0x48] sm:$0xf]
        %v10897 = vld [vmem:[#allocation12 + $0x4c] sm:$0xf]
        %v10898 = vld [vmem:[#allocation12 + $0x50] sm:$0xf]
        %v10899 = vld [vmem:[#allocation12 + $0x54] sm:$0xf]
        %v10900 = vld [vmem:[#allocation12 + $0x58] sm:$0xf]
        %v10901 = vld [vmem:[#allocation12 + $0x5c] sm:$0xf]
        %v10902 = vld [vmem:[#allocation12 + $0x60] sm:$0xf]
        %v10903 = vld [vmem:[#allocation12 + $0x64] sm:$0xf]
        %v10904 = vld [vmem:[#allocation12 + $0x68] sm:$0xf]
        %v10905 = vld [vmem:[#allocation12 + $0x6c] sm:$0xf]
        %v10906 = vld [vmem:[#allocation12 + $0x70] sm:$0xf]
        %v10907 = vld [vmem:[#allocation12 + $0x74] sm:$0xf]
        %v10908 = vld [vmem:[#allocation12 + $0x78] sm:$0xf]
        %v10909 = vld [vmem:[#allocation12 + $0x7c] sm:$0xf]
        %v10911 = vunpack.c.l.b16 %v10877
        %v10912 = vpack.c.b16 %v10911, %v10911
        %v10914 = vshrl.u32 %v10912, 16
        %v10933 = vunpack.c.l.b16 %v10894
        %v10934 = vunpack.c.l.b16 %v10895
        %v10935 = vunpack.c.l.b16 %v10896
        %v10936 = vunpack.c.l.b16 %v10897
        %v10937 = vunpack.c.l.b16 %v10898
        %v10938 = vunpack.c.l.b16 %v10899
        %v10939 = vunpack.c.l.b16 %v10900
        %v10940 = vunpack.c.l.b16 %v10901
        %v10941 = vunpack.c.l.b16 %v10902
        %v10942 = vunpack.c.l.b16 %v10903
        %v10943 = vunpack.c.l.b16 %v10904
        %v10944 = vunpack.c.l.b16 %v10905
        %v10945 = vunpack.c.l.b16 %v10906
        %v10946 = vunpack.c.l.b16 %v10907
        %v10947 = vunpack.c.l.b16 %v10908
        %v10948 = vunpack.c.l.b16 %v10909
        %v10949 = vpack.c.b16 %v10934, %v10933
        %v10950 = vpack.c.b16 %v10936, %v10935
        %v10951 = vpack.c.b16 %v10938, %v10937
        %v10952 = vpack.c.b16 %v10940, %v10939
        %v10953 = vpack.c.b16 %v10942, %v10941
        %v10954 = vpack.c.b16 %v10944, %v10943
        %v10955 = vpack.c.b16 %v10946, %v10945
        %v10956 = vpack.c.b16 %v10948, %v10947
        %10965 = vmatpush.bf16.msra.mxu0 %v10956
        %10966 = vmatpush.bf16.msra.mxu0 %v10955
        %10967 = vmatpush.bf16.msra.mxu0 %v10954
        %10968 = vmatpush.bf16.msra.mxu0 %v10953
        %10969 = vmatpush.bf16.msra.mxu0 %v10952
        %10970 = vmatpush.bf16.msra.mxu0 %v10951
        %10971 = vmatpush.bf16.msra.mxu0 %v10950
        %10972 = vmatpush.bf16.msra.mxu0 %v10949
        %10973 = vmatmul.bf16.gmra.mxu0 %v10914
        %v10974 = vpop.f32.mrf.mxu0
        %v10975 = vadd.f32 0.0, %v10974
        %v10976 = vpop.f32.mrf.mxu0
        %10977 = vdwg.mxu0
        %v10994 = vunpack.c.l.b16 %v10878
        %v10995 = vunpack.c.l.b16 %v10879
        %v10996 = vunpack.c.l.b16 %v10880
        %v10997 = vunpack.c.l.b16 %v10881
        %v10998 = vunpack.c.l.b16 %v10882
        %v10999 = vunpack.c.l.b16 %v10883
        %v11000 = vunpack.c.l.b16 %v10884
        %v11001 = vunpack.c.l.b16 %v10885
        %v11002 = vunpack.c.l.b16 %v10886
        %v11003 = vunpack.c.l.b16 %v10887
        %v11004 = vunpack.c.l.b16 %v10888
        %v11005 = vunpack.c.l.b16 %v10889
        %v11006 = vunpack.c.l.b16 %v10890
        %v11007 = vunpack.c.l.b16 %v10891
        %v11008 = vunpack.c.l.b16 %v10892
        %v11009 = vunpack.c.l.b16 %v10893
        %v11010 = vpack.c.b16 %v10995, %v10994
        %v11011 = vpack.c.b16 %v10997, %v10996
        %v11012 = vpack.c.b16 %v10999, %v10998
        %v11013 = vpack.c.b16 %v11001, %v11000
        %v11014 = vpack.c.b16 %v11003, %v11002
        %v11015 = vpack.c.b16 %v11005, %v11004
        %v11016 = vpack.c.b16 %v11007, %v11006
        %v11017 = vpack.c.b16 %v11009, %v11008
        %11026 = vmatpush.bf16.msra.mxu0 %v11017
        %11027 = vmatpush.bf16.msra.mxu0 %v11016
        %11028 = vmatpush.bf16.msra.mxu0 %v11015
        %11029 = vmatpush.bf16.msra.mxu0 %v11014
        %11030 = vmatpush.bf16.msra.mxu0 %v11013
        %11031 = vmatpush.bf16.msra.mxu0 %v11012
        %11032 = vmatpush.bf16.msra.mxu0 %v11011
        %11033 = vmatpush.bf16.msra.mxu0 %v11010
        %11034 = vmatmul.bf16.gmra.mxu0 %v10877
        %v11035 = vpop.f32.mrf.mxu0
        %v11036 = vadd.f32 %v10975, %v11035
        %v11037 = vpop.f32.mrf.mxu0
        %11038 = vdwg.mxu0
        %v11039 = vld [vmem:[#allocation12 + $0x80] sm:$0xf]
        %v11040 = vld [vmem:[#allocation12 + $0x84] sm:$0xf]
        %v11041 = vld [vmem:[#allocation12 + $0x88] sm:$0xf]
        %v11042 = vld [vmem:[#allocation12 + $0x8c] sm:$0xf]
        %v11043 = vld [vmem:[#allocation12 + $0x90] sm:$0xf]
        %v11044 = vld [vmem:[#allocation12 + $0x94] sm:$0xf]
        %v11045 = vld [vmem:[#allocation12 + $0x98] sm:$0xf]
        %v11046 = vld [vmem:[#allocation12 + $0x9c] sm:$0xf]
        %v11047 = vld [vmem:[#allocation12 + $0xa0] sm:$0xf]
        %v11048 = vld [vmem:[#allocation12 + $0xa4] sm:$0xf]
        %v11049 = vld [vmem:[#allocation12 + $0xa8] sm:$0xf]
        %v11050 = vld [vmem:[#allocation12 + $0xac] sm:$0xf]
        %v11051 = vld [vmem:[#allocation12 + $0xb0] sm:$0xf]
        %v11052 = vld [vmem:[#allocation12 + $0xb4] sm:$0xf]
        %v11053 = vld [vmem:[#allocation12 + $0xb8] sm:$0xf]
        %v11054 = vld [vmem:[#allocation12 + $0xbc] sm:$0xf]
        %v11055 = vrot.slane %v10912, 1
        %v11073 = vunpack.c.l.b16 %v11039
        %v11074 = vunpack.c.l.b16 %v11040
        %v11075 = vunpack.c.l.b16 %v11041
        %v11076 = vunpack.c.l.b16 %v11042
        %v11077 = vunpack.c.l.b16 %v11043
        %v11078 = vunpack.c.l.b16 %v11044
        %v11079 = vunpack.c.l.b16 %v11045
        %v11080 = vunpack.c.l.b16 %v11046
        %v11081 = vunpack.c.l.b16 %v11047
        %v11082 = vunpack.c.l.b16 %v11048
        %v11083 = vunpack.c.l.b16 %v11049
        %v11084 = vunpack.c.l.b16 %v11050
        %v11085 = vunpack.c.l.b16 %v11051
        %v11086 = vunpack.c.l.b16 %v11052
        %v11087 = vunpack.c.l.b16 %v11053
        %v11088 = vunpack.c.l.b16 %v11054
        %v11089 = vpack.c.b16 %v11074, %v11073
        %v11090 = vpack.c.b16 %v11076, %v11075
        %v11091 = vpack.c.b16 %v11078, %v11077
        %v11092 = vpack.c.b16 %v11080, %v11079
        %v11093 = vpack.c.b16 %v11082, %v11081
        %v11094 = vpack.c.b16 %v11084, %v11083
        %v11095 = vpack.c.b16 %v11086, %v11085
        %v11096 = vpack.c.b16 %v11088, %v11087
        %11105 = vmatpush.bf16.msra.mxu0 %v11096
        %11106 = vmatpush.bf16.msra.mxu0 %v11095
        %11107 = vmatpush.bf16.msra.mxu0 %v11094
        %11108 = vmatpush.bf16.msra.mxu0 %v11093
        %11109 = vmatpush.bf16.msra.mxu0 %v11092
        %11110 = vmatpush.bf16.msra.mxu0 %v11091
        %11111 = vmatpush.bf16.msra.mxu0 %v11090
        %11112 = vmatpush.bf16.msra.mxu0 %v11089
        %11113 = vmatmul.bf16.gmra.mxu0 %v11055
        %v11114 = vpop.f32.mrf.mxu0
        %v11115 = vadd.f32 0.0, %v11114
        %v11116 = vpop.f32.mrf.mxu0
        %11117 = vdwg.mxu0
        %v11118 = vadd.f32 %v11036, %v11115
        %v11119 = vld [vmem:[#allocation13] sm:$0x1]
        %v11120 = vadd.f32 %v11118, %v11119
        %11121 = vst [vmem:[%s453] sm:$0x1] %v11120
        %p11122 = scmp.lt.s32.totalorder %s25, 1
        %s11123 = scalar_select %p11122, %s25, 1
        %s11124 = scalar_lea.vmem %s9, %s11123
        // Predicated region
        $region89: #{dqn_forward.1} parent=55 // pred_check
          %p11125 = pneg %p237
        $region90: #{dqn_forward.1} parent=55 // pred_check_branch
          %11127 = sbr.rel (%p11125) target = $region92
        $region91: #{dqn_forward.1} parent=55 // pred_region
          _
        $region92: #{dqn_forward.1} parent=55 // pred_fallthru
          _
      $region56: #{dqn_forward.1} parent=5 // pred_fallthru
        _
      %p11128 = scmp.le.s32.totalorder 2, %s20
      // Predicated region
      $region93: #{dqn_forward.1} parent=5 // pred_check
        %p11129 = pneg %p11128
      $region94: #{dqn_forward.1} parent=5 // pred_check_branch
        %11131 = sbr.rel (%p11129) target = $region96
      $region95: #{dqn_forward.1} parent=5 // pred_region
        %s11132 = ssub.s32 %s20, 2
        // Predicated region
        $region97: #{dqn_forward.1} parent=95 // pred_check
          %p11133 = pneg %p243
        $region98: #{dqn_forward.1} parent=95 // pred_check_branch
          %11135 = sbr.rel (%p11133) target = $region100
        $region99: #{dqn_forward.1} parent=95 // pred_region
          %p11136 = scmp.lt.s32.totalorder %s26, 1
          %s11137 = scalar_select %p11136, %s26, 1
          %s11138 = scalar_lea.vmem %s9, %s11137
        $region100: #{dqn_forward.1} parent=95 // pred_fallthru
          _
      $region96: #{dqn_forward.1} parent=5 // pred_fallthru
        _
    $region6: #{dqn_forward.1} parent=1 // loop_footer
      %s24 = sadd.s32 1, %s20
    $region7: #{dqn_forward.1} parent=1 // loop_footer_branch
      %19 = sbr.rel target = $region3
    $region8: #{dqn_forward.1} parent=1 // loop_exit
      _
    %11139 = vsyncpa [#allocation3], 1
    %s11140 = scalar_lea.sflag [#allocation3], 1
    %11141 = vsyncpa %s11140, 1
    %11142 = vsyncpa [#allocation5], 1
    %11143 = vsyncpa [#allocation8], 1
    %11144 = vsyncpa [#allocation11], 1
    %11145 = vsyncpa [#allocation14], 1

</llo_original>
